<compile_context>
chip_gen: v6e
topology: v6e:2x2x1
jax: 0.10.0
libtpu: 0.0.40
codegen_flags: <defaults>
</compile_context>

<pallas_src>
import functools

import jax
import jax.numpy as jnp
from jax.experimental import pallas as pl
from jax.experimental.pallas import tpu as pltpu

EPS = 1e-5
LANE = 128
TILE_M_MM = 512      # matmul kernels (multiple of 256 for v6e/v7x MXU)
TILE_M_EW = 2048     # mem-bound elementwise epilogue


def _rup(x, m):
    return ((x + m - 1) // m) * m


@functools.lru_cache(maxsize=None)
def _vmem_limit_bytes():
    cap = 64 * 1024 * 1024
    try:
        info = pltpu.get_tpu_info()
        for attr in ("vmem_capacity_bytes", "vmem_bytes", "vmem_size_bytes"):
            v = getattr(info, attr, None)
            if v:
                cap = int(v)
                break
    except Exception:
        pass
    # leave headroom for the compiler; never below the old 32 MiB default.
    return max(32 * 1024 * 1024, min(cap * 3 // 4, 100 * 1024 * 1024))


def _cparams(sem):
    return pltpu.CompilerParams(dimension_semantics=sem,
                                vmem_limit_bytes=_vmem_limit_bytes())


# ----------------------------- Pallas kernels -----------------------------

def _conv1_sc_kernel(x_ref, w1_ref, wsc_ref,
                     y1_ref, yr_ref, s1_ref, q1_ref, sr_ref, qr_ref, *,
                     mask_rows, m_real, tile_m):
    # x: [TM, K] f32 (cast to bf16 in-kernel), w1: [K, C1], wsc: [K, Csc] bf16.
    x = x_ref[...].astype(jnp.bfloat16)
    if mask_rows:  # only compiled in when m % tile_m != 0
        row = (pl.program_id(0) * tile_m
               + jax.lax.broadcasted_iota(jnp.int32, (tile_m, 1), 0))
        x = jnp.where(row < m_real, x, jnp.zeros_like(x))

    y1 = jnp.dot(x, w1_ref[...], preferred_element_type=jnp.float32)
    y1_ref[...] = y1.astype(y1_ref.dtype)
    s1_ref[...] = jnp.sum(y1, axis=0).reshape(1, 1, -1)
    q1_ref[...] = jnp.sum(y1 * y1, axis=0).reshape(1, 1, -1)

    yr = jnp.dot(x, wsc_ref[...], preferred_element_type=jnp.float32)
    yr_ref[...] = yr.astype(yr_ref.dtype)
    sr_ref[...] = jnp.sum(yr, axis=0).reshape(1, 1, -1)
    qr_ref[...] = jnp.sum(yr * yr, axis=0).reshape(1, 1, -1)


def _conv2_kernel(d0_ref, d1_ref, d2_ref, s1_ref, b1_ref, w_ref,
                  y_ref, sum_ref, ssq_ref, hbuf, acc_ref, *, hs, ws, ds):
    # d{z}_ref: (1, 1, hs, ws, Cin) bf16 depth-shifted slabs of RAW conv1 output
    # (BN1 + ReLU fused here).  w_ref: (9, 3*Cin, Cout) bf16, row = dz*3+dy,
    # K index = dx*Cin + ci.  hbuf: (3, hs+2, ws+2, Cin) bf16 zero-haloed slab.
    c_in = s1_ref.shape[1]
    c_out = w_ref.shape[2]
    j = pl.program_id(1)
    scale = s1_ref[...]          # (1, Cin) f32
    shift = b1_ref[...]

    # Halo must be exactly zero; re-zero every iteration so the kernel has no
    # cross-iteration state (safe with "parallel" megacore splitting).
    hbuf[...] = jnp.zeros(hbuf.shape, hbuf.dtype)

    d_refs = (d0_ref, d1_ref, d2_ref)
    for dz in range(3):
        raw = d_refs[dz][...][0, 0]                            # (hs, ws, Cin)
        h = raw.astype(jnp.float32) * scale + shift            # BN1
        h = jnp.maximum(h, 0.0)                                # ReLU
        if dz != 1:                                            # depth zero-pad
            dcoord = j + (dz - 1)
            valid = jnp.logical_and(dcoord >= 0, dcoord < ds)
            h = h * valid.astype(jnp.float32)
        hbuf[dz, 1:hs + 1, 1:ws + 1, :] = h.astype(jnp.bfloat16)

    # 9 matmuls with K = 3*Cin (the W shift folded into the contraction).
    first = True
    for dz in range(3):
        cat = jnp.concatenate([hbuf[dz, :, 0:ws, :],
                               hbuf[dz, :, 1:ws + 1, :],
                               hbuf[dz, :, 2:ws + 2, :]], axis=-1)
        for dy in range(3):
            patch = cat[dy:dy + hs].reshape(hs * ws, 3 * c_in)
            contrib = jnp.dot(patch, w_ref[dz * 3 + dy],
                              preferred_element_type=jnp.float32)
            if first:
                acc_ref[...] = contrib
                first = False
            else:
                acc_ref[...] += contrib

    acc = acc_ref[...]
    y_ref[...] = acc.reshape(1, 1, hs, ws, c_out).astype(y_ref.dtype)
    sum_ref[...] = jnp.sum(acc, axis=0).reshape(1, 1, 1, c_out)
    ssq_ref[...] = jnp.sum(acc * acc, axis=0).reshape(1, 1, 1, c_out)


def _conv3_kernel(y2_ref, s_ref, b_ref, w_ref, y3_ref, sum_ref, ssq_ref, *,
                  mask_rows, m_real, tile_m):
    # Fused: BN2 + ReLU on the bf16 input tile, bf16 cast, matmul w3, and BN3
    # partial statistics (from the f32 accumulator).
    h = y2_ref[...].astype(jnp.float32) * s_ref[...] + b_ref[...]
    h = jnp.maximum(h, 0.0)
    if mask_rows:
        row = (pl.program_id(0) * tile_m
               + jax.lax.broadcasted_iota(jnp.int32, (tile_m, 1), 0))
        h = jnp.where(row < m_real, h, 0.0)
    y3 = jnp.dot(h.astype(jnp.bfloat16), w_ref[...],
                 preferred_element_type=jnp.float32)
    y3_ref[...] = y3.astype(y3_ref.dtype)
    sum_ref[...] = jnp.sum(y3, axis=0).reshape(1, 1, -1)
    ssq_ref[...] = jnp.sum(y3 * y3, axis=0).reshape(1, 1, -1)


def _final_kernel(y3_ref, s3_ref, b3_ref, yr_ref, ssc_ref, bsc_ref, o_ref):
    a = y3_ref[...].astype(jnp.float32) * s3_ref[...] + b3_ref[...]
    r = yr_ref[...].astype(jnp.float32) * ssc_ref[...] + bsc_ref[...]
    z = jnp.maximum(a + r, 0.0)
    # Output block carries the real (unpadded) channel width -> no XLA slice.
    o_ref[...] = z[:, :o_ref.shape[1]].astype(o_ref.dtype)


# --------------------------- pallas_call wrappers ---------------------------

def _conv1_sc_call(x2d, w1, wsc, tile_m, m_real):
    _, k = x2d.shape
    c1 = w1.shape[1]
    c2 = wsc.shape[1]
    g = (m_real + tile_m - 1) // tile_m
    mask_rows = (m_real % tile_m) != 0
    flops = 2 * m_real * k * (c1 + c2)
    bytes_acc = (m_real * k * 4 + k * (c1 + c2) * 2 + m_real * (c1 + c2) * 2
                 + 4 * g * (c1 + c2) * 4)
    return pl.pallas_call(
        functools.partial(_conv1_sc_kernel, mask_rows=mask_rows,
                          m_real=m_real, tile_m=tile_m),
        grid=(g,),
        in_specs=[pl.BlockSpec((tile_m, k), lambda i: (i, 0)),
                  pl.BlockSpec((k, c1), lambda i: (0, 0)),
                  pl.BlockSpec((k, c2), lambda i: (0, 0))],
        out_specs=(pl.BlockSpec((tile_m, c1), lambda i: (i, 0)),
                   pl.BlockSpec((tile_m, c2), lambda i: (i, 0)),
                   pl.BlockSpec((1, 1, c1), lambda i: (i, 0, 0)),
                   pl.BlockSpec((1, 1, c1), lambda i: (i, 0, 0)),
                   pl.BlockSpec((1, 1, c2), lambda i: (i, 0, 0)),
                   pl.BlockSpec((1, 1, c2), lambda i: (i, 0, 0))),
        out_shape=(jax.ShapeDtypeStruct((m_real, c1), jnp.bfloat16),
                   jax.ShapeDtypeStruct((m_real, c2), jnp.bfloat16),
                   jax.ShapeDtypeStruct((g, 1, c1), jnp.float32),
                   jax.ShapeDtypeStruct((g, 1, c1), jnp.float32),
                   jax.ShapeDtypeStruct((g, 1, c2), jnp.float32),
                   jax.ShapeDtypeStruct((g, 1, c2), jnp.float32)),
        compiler_params=_cparams(("parallel",)),
        cost_estimate=pl.CostEstimate(flops=flops, transcendentals=0,
                                      bytes_accessed=bytes_acc),
    )(x2d, w1, wsc)


def _depth_map(dz, ds):
    def idx(i, j):
        return (i, jnp.clip(j + (dz - 1), 0, ds - 1), 0, 0, 0)
    return idx


def _conv2_call(y1_5d, scale1, shift1, w2, n, ds, hs, ws):
    c_in = y1_5d.shape[-1]
    c_out = w2.shape[-1]
    in_specs = [pl.BlockSpec((1, 1, hs, ws, c_in), _depth_map(dz, ds))
                for dz in range(3)]
    in_specs += [pl.BlockSpec((1, c_in), lambda i, j: (0, 0)),
                 pl.BlockSpec((1, c_in), lambda i, j: (0, 0)),
                 pl.BlockSpec((9, 3 * c_in, c_out), lambda i, j: (0, 0, 0))]
    m = n * ds * hs * ws
    flops = 2 * m * 27 * c_in * c_out
    bytes_acc = (3 * y1_5d.size * 2 + w2.size * 2 + m * c_out * 2
                 + 2 * n * ds * c_out * 4)
    return pl.pallas_call(
        functools.partial(_conv2_kernel, hs=hs, ws=ws, ds=ds),
        grid=(n, ds),
        in_specs=in_specs,
        out_specs=(pl.BlockSpec((1, 1, hs, ws, c_out),
                                lambda i, j: (i, j, 0, 0, 0)),
                   pl.BlockSpec((1, 1, 1, c_out), lambda i, j: (i, j, 0, 0)),
                   pl.BlockSpec((1, 1, 1, c_out), lambda i, j: (i, j, 0, 0))),
        out_shape=(jax.ShapeDtypeStruct((n, ds, hs, ws, c_out), jnp.bfloat16),
                   jax.ShapeDtypeStruct((n, ds, 1, c_out), jnp.float32),
                   jax.ShapeDtypeStruct((n, ds, 1, c_out), jnp.float32)),
        scratch_shapes=[pltpu.VMEM((3, hs + 2, ws + 2, c_in), jnp.bfloat16),
                        pltpu.VMEM((hs * ws, c_out), jnp.float32)],
        compiler_params=_cparams(("parallel", "parallel")),
        cost_estimate=pl.CostEstimate(flops=flops, transcendentals=0,
                                      bytes_accessed=bytes_acc),
    )(y1_5d, y1_5d, y1_5d, scale1.reshape(1, c_in), shift1.reshape(1, c_in), w2)


def _conv3_call(y2f, scale2, shift2, w3, m_real, tile_m):
    _, k = y2f.shape
    co = w3.shape[1]
    g = (m_real + tile_m - 1) // tile_m
    mask_rows = (m_real % tile_m) != 0
    flops = 2 * m_real * k * co
    bytes_acc = m_real * k * 2 + k * co * 2 + m_real * co * 2 + 2 * g * co * 4
    return pl.pallas_call(
        functools.partial(_conv3_kernel, mask_rows=mask_rows,
                          m_real=m_real, tile_m=tile_m),
        grid=(g,),
        in_specs=[pl.BlockSpec((tile_m, k), lambda i: (i, 0)),
                  pl.BlockSpec((1, k), lambda i: (0, 0)),
                  pl.BlockSpec((1, k), lambda i: (0, 0)),
                  pl.BlockSpec((k, co), lambda i: (0, 0))],
        out_specs=(pl.BlockSpec((tile_m, co), lambda i: (i, 0)),
                   pl.BlockSpec((1, 1, co), lambda i: (i, 0, 0)),
                   pl.BlockSpec((1, 1, co), lambda i: (i, 0, 0))),
        out_shape=(jax.ShapeDtypeStruct((m_real, co), jnp.bfloat16),
                   jax.ShapeDtypeStruct((g, 1, co), jnp.float32),
                   jax.ShapeDtypeStruct((g, 1, co), jnp.float32)),
        compiler_params=_cparams(("parallel",)),
        cost_estimate=pl.CostEstimate(flops=flops, transcendentals=0,
                                      bytes_accessed=bytes_acc),
    )(y2f, scale2.reshape(1, k), shift2.reshape(1, k), w3)


def _final_call(y3, scale3, shift3, yres, scale_sc, shift_sc, c_real, tile_m,
                m_real):
    _, c = y3.shape
    g = (m_real + tile_m - 1) // tile_m
    vec = lambda v: v.reshape(1, c)
    return pl.pallas_call(
        _final_kernel,
        grid=(g,),
        in_specs=[pl.BlockSpec((tile_m, c), lambda i: (i, 0)),
                  pl.BlockSpec((1, c), lambda i: (0, 0)),
                  pl.BlockSpec((1, c), lambda i: (0, 0)),
                  pl.BlockSpec((tile_m, c), lambda i: (i, 0)),
                  pl.BlockSpec((1, c), lambda i: (0, 0)),
                  pl.BlockSpec((1, c), lambda i: (0, 0))],
        out_specs=pl.BlockSpec((tile_m, c_real), lambda i: (i, 0)),
        out_shape=jax.ShapeDtypeStruct((m_real, c_real), jnp.float32),
        compiler_params=_cparams(("parallel",)),
    )(y3, vec(scale3), vec(shift3), yres, vec(scale_sc), vec(shift_sc))


# ------------------------------- JAX glue ----------------------------------

def _bn_scale_shift(sums, ssqs, count, gamma, beta):
    red = tuple(range(sums.ndim - 1))
    s = jnp.sum(sums, axis=red)
    sq = jnp.sum(ssqs, axis=red)
    mean = s / count
    var = jnp.maximum(sq / count - mean * mean, 0.0)  # biased var (PyTorch BN)
    scale = gamma * jax.lax.rsqrt(var + EPS)
    shift = beta - mean * scale
    return scale, shift


@functools.partial(jax.jit, static_argnames=("n1", "n2", "stride"))
def bottleneck_block(x_ndhwc, pp, n1, n2, stride=1):
    """x_ndhwc: [N, D, H, W, n1] f32; returns [N, D', H', W', 4*n2] f32."""
    c1p = _rup(n1, LANE)
    c2p = _rup(n2, LANE)

    # 1x1x1 conv with stride s, no padding == spatial subsampling.
    xs = x_ndhwc[:, ::stride, ::stride, ::stride, :]
    n, ds, hs, ws, _ = xs.shape
    m = n * ds * hs * ws

    x2d = xs.reshape(m, n1)
    if c1p != n1:
        x2d = jnp.pad(x2d, ((0, 0), (0, c1p - n1)))

    tm = min(TILE_M_MM, _rup(m, 8))

    # conv1 + conv_shortcut matmuls (one x read) + BN partial statistics.
    y1, yres, s1, q1, ssc, qsc = _conv1_sc_call(x2d, pp["w1"], pp["wsc"], tm, m)
    scale1, shift1 = _bn_scale_shift(s1, q1, m, pp["g1"], pp["b1"])
    scale_sc, shift_sc = _bn_scale_shift(ssc, qsc, m, pp["gsc"], pp["bsc"])

    # conv2: 3x3x3 pad 1 stride 1; BN1+ReLU fused in-kernel, halo built in VMEM.
    y1_5d = y1.reshape(n, ds, hs, ws, c2p)
    y2, s2, q2 = _conv2_call(y1_5d, scale1, shift1, pp["w2"], n, ds, hs, ws)
    scale2, shift2 = _bn_scale_shift(s2, q2, m, pp["g2"], pp["b2"])

    # conv3 matmul with BN2+ReLU fused on the input, + BN3 partial stats.
    y2f = y2.reshape(m, c2p)
    y3, s3, q3 = _conv3_call(y2f, scale2, shift2, pp["w3"], m, tm)
    scale3, shift3 = _bn_scale_shift(s3, q3, m, pp["g3"], pp["b3"])

    # BN3 + BN_shortcut + residual add + final ReLU (real channel width out).
    tm_ew = min(TILE_M_EW, _rup(m, 8))
    out2d = _final_call(y3, scale3, shift3, yres, scale_sc, shift_sc,
                        4 * n2, tm_ew, m)
    return out2d.reshape(n, ds, hs, ws, 4 * n2)


# --------------------------- parameter handling -----------------------------

def _kaiming_normal(key, shape, fan_in):
    std = (2.0 / fan_in) ** 0.5  # kaiming_normal_, nonlinearity='relu'
    return jax.random.normal(key, shape, dtype=jnp.float32) * std


def init_params(key, n1, n2):
    k1, k2, k3, k4 = jax.random.split(key, 4)
    w1 = _kaiming_normal(k1, (n1, n2), fan_in=n1)
    w2_5d = _kaiming_normal(k2, (3, 3, 3, n2, n2), fan_in=n2 * 27)
    w3 = _kaiming_normal(k3, (n2, 4 * n2), fan_in=n2)
    w_sc = _kaiming_normal(k4, (n1, 4 * n2), fan_in=n1)
    ones = lambda c: jnp.ones((c,), jnp.float32)
    zeros = lambda c: jnp.zeros((c,), jnp.float32)
    return dict(
        w1=w1, g1=ones(n2), b1=zeros(n2),
        w2_5d=w2_5d, g2=ones(n2), b2=zeros(n2),
        w3=w3, g3=ones(4 * n2), b3=zeros(4 * n2),
        w_sc=w_sc, g_sc=ones(4 * n2), b_sc=zeros(4 * n2),
    )


def prepare_params(p, n1, n2):
    """Pad channels to multiples of 128 and pack bf16 weights for the kernels."""
    c1p = _rup(n1, LANE)
    c2p = _rup(n2, LANE)
    c3p = _rup(4 * n2, LANE)
    padw = lambda w, r, c: jnp.pad(w, ((0, r - w.shape[0]), (0, c - w.shape[1])))
    padv = lambda v, c: jnp.pad(v, (0, c - v.shape[0]))
    # conv2 weight packed as (dz*3+dy, dx*Cin+ci, Cout) for the concat-K dots.
    w2 = jnp.pad(p["w2_5d"], ((0, 0), (0, 0), (0, 0),
                              (0, c2p - n2), (0, c2p - n2)))
    w2 = w2.reshape(9, 3 * c2p, c2p).astype(jnp.bfloat16)
    return dict(
        w1=padw(p["w1"], c1p, c2p).astype(jnp.bfloat16),
        wsc=padw(p["w_sc"], c1p, c3p).astype(jnp.bfloat16),
        w2=w2,
        w3=padw(p["w3"], c2p, c3p).astype(jnp.bfloat16),
        g1=padv(p["g1"], c2p), b1=padv(p["b1"], c2p),
        g2=padv(p["g2"], c2p), b2=padv(p["b2"], c2p),
        g3=padv(p["g3"], c3p), b3=padv(p["b3"], c3p),
        gsc=padv(p["g_sc"], c3p), bsc=padv(p["b_sc"], c3p),
    )


# --------------------------- pure-JAX reference -----------------------------

def _ref_convbn(x, w_dhwio, gamma, beta, stride, padding, relu):
    y = jax.lax.conv_general_dilated(
        x, w_dhwio, window_strides=(stride,) * 3,
        padding=[(padding, padding)] * 3,
        dimension_numbers=("NDHWC", "DHWIO", "NDHWC"))
    mean = y.mean(axis=(0, 1, 2, 3), keepdims=True)
    var = jnp.square(y - mean).mean(axis=(0, 1, 2, 3), keepdims=True)
    y = (y - mean) * jax.lax.rsqrt(var + EPS) * gamma + beta
    return jnp.maximum(y, 0.0) if relu else y


def bottleneck_block_ref(x_ndhwc, params, stride=1):
    n1, n2 = params["w1"].shape
    w1 = params["w1"].reshape(1, 1, 1, n1, n2)
    w3 = params["w3"].reshape(1, 1, 1, n2, 4 * n2)
    wsc = params["w_sc"].reshape(1, 1, 1, n1, 4 * n2)
    res = _ref_convbn(x_ndhwc, wsc, params["g_sc"], params["b_sc"], stride, 0, False)
    h = _ref_convbn(x_ndhwc, w1, params["g1"], params["b1"], stride, 0, True)
    h = _ref_convbn(h, params["w2_5d"], params["g2"], params["b2"], 1, 1, True)
    h = _ref_convbn(h, w3, params["g3"], params["b3"], 1, 0, False)
    return jnp.maximum(h + res, 0.0)


# --------------------------------- main -------------------------------------

if __name__ == "__main__":
    key = jax.random.PRNGKey(0)
    kx, kp = jax.random.split(key)

    N, n1, n2, S = 2, 4, 4, 8          # batch=2, in-ch=4, bottleneck=4, spatial=8^3
    x_ncdhw = jax.random.normal(kx, (N, n1, S, S, S), dtype=jnp.float32)  # PyTorch layout
    x_ndhwc = jnp.transpose(x_ncdhw, (0, 2, 3, 4, 1))                      # kernel layout

    params = init_params(kp, n1, n2)
    pparams = prepare_params(params, n1, n2)

    ok = True
    for stride in (1, 2):
        out = bottleneck_block(x_ndhwc, pparams, n1=n1, n2=n2, stride=stride)
        out = jax.block_until_ready(out)
        ref = jax.block_until_ready(bottleneck_block_ref(x_ndhwc, params, stride=stride))
        err = float(jnp.max(jnp.abs(out - ref)))
        if out.shape != ref.shape or not bool(jnp.allclose(out, ref, atol=4e-2, rtol=4e-2)):
            ok = False
            print(f"MISMATCH stride={stride} max_abs_err={err}")

    if ok:
        print("KERNEL_OK")
</pallas_src>

<mosaic_0001>
module attributes {stable_mosaic.version = 11 : i64} {
  func.func @_conv1_sc_kernel(%arg0: i32, %arg1: memref<512x128xf32, #tpu.memory_space<vmem>>, %arg2: memref<128x128xbf16, #tpu.memory_space<vmem>>, %arg3: memref<128x128xbf16, #tpu.memory_space<vmem>>, %arg4: memref<512x128xbf16, #tpu.memory_space<vmem>>, %arg5: memref<512x128xbf16, #tpu.memory_space<vmem>>, %arg6: memref<1x1x128xf32, #tpu.memory_space<vmem>>, %arg7: memref<1x1x128xf32, #tpu.memory_space<vmem>>, %arg8: memref<1x1x128xf32, #tpu.memory_space<vmem>>, %arg9: memref<1x1x128xf32, #tpu.memory_space<vmem>>) attributes {dimension_semantics = [#tpu.dimension_semantics<parallel>], iteration_bounds = array<i64: 2>, scalar_prefetch = 0 : i64, scratch_operands = 0 : i64, tpu.core_type = #tpu.core_type<tc>, window_params = [{transform_indices = @transform_0, window_bounds = array<i64: 512, 128>}, {pipeline_mode = #tpu.pipeline_mode<synchronous>, transform_indices = @transform_1, window_bounds = array<i64: 128, 128>}, {pipeline_mode = #tpu.pipeline_mode<synchronous>, transform_indices = @transform_2, window_bounds = array<i64: 128, 128>}, {transform_indices = @transform_3, window_bounds = array<i64: 512, 128>}, {transform_indices = @transform_4, window_bounds = array<i64: 512, 128>}, {transform_indices = @transform_5, window_bounds = array<i64: 1, 1, 128>}, {transform_indices = @transform_6, window_bounds = array<i64: 1, 1, 128>}, {transform_indices = @transform_7, window_bounds = array<i64: 1, 1, 128>}, {transform_indices = @transform_8, window_bounds = array<i64: 1, 1, 128>}]} {
    %c0 = arith.constant 0 : index
    %c0_0 = arith.constant 0 : index
    %0 = vector.load %arg1[%c0, %c0_0] : memref<512x128xf32, #tpu.memory_space<vmem>>, vector<512x128xf32>
    %1 = arith.truncf %0 : vector<512x128xf32> to vector<512x128xbf16>
    %c0_1 = arith.constant 0 : index
    %c0_2 = arith.constant 0 : index
    %2 = vector.load %arg2[%c0_1, %c0_2] : memref<128x128xbf16, #tpu.memory_space<vmem>>, vector<128x128xbf16>
    %cst = arith.constant dense<0.000000e+00> : vector<512x128xf32>
    %3 = tpu.matmul %1, %2, %cst {dimension_numbers = #tpu.dot_dimension_numbers<[1], [0], [0], [1], [0, 0, 1, 1], [], []>} : vector<512x128xbf16>, vector<128x128xbf16>, vector<512x128xf32> -> vector<512x128xf32>
    %4 = arith.truncf %3 : vector<512x128xf32> to vector<512x128xbf16>
    %c0_3 = arith.constant 0 : index
    %c0_4 = arith.constant 0 : index
    %5 = vector.load %arg4[%c0_3, %c0_4] : memref<512x128xbf16, #tpu.memory_space<vmem>>, vector<512x128xbf16>
    tpu.vector_store %arg4[%c0_3, %c0_4], %4 {strides = array<i32>} : memref<512x128xbf16, #tpu.memory_space<vmem>>, vector<512x128xbf16>,
    %cst_5 = arith.constant dense<0.000000e+00> : vector<128xf32>
    %6 = vector.multi_reduction <add>, %3, %cst_5 [0] : vector<512x128xf32> to vector<128xf32>
    %7 = vector.shape_cast %6 : vector<128xf32> to vector<1x1x128xf32>
    %c0_6 = arith.constant 0 : index
    %c0_7 = arith.constant 0 : index
    %c0_8 = arith.constant 0 : index
    %8 = vector.load %arg6[%c0_6, %c0_7, %c0_8] : memref<1x1x128xf32, #tpu.memory_space<vmem>>, vector<1x1x128xf32>
    tpu.vector_store %arg6[%c0_6, %c0_7, %c0_8], %7 {strides = array<i32>} : memref<1x1x128xf32, #tpu.memory_space<vmem>>, vector<1x1x128xf32>,
    %9 = arith.mulf %3, %3 : vector<512x128xf32>
    %cst_9 = arith.constant dense<0.000000e+00> : vector<128xf32>
    %10 = vector.multi_reduction <add>, %9, %cst_9 [0] : vector<512x128xf32> to vector<128xf32>
    %11 = vector.shape_cast %10 : vector<128xf32> to vector<1x1x128xf32>
    %c0_10 = arith.constant 0 : index
    %c0_11 = arith.constant 0 : index
    %c0_12 = arith.constant 0 : index
    %12 = vector.load %arg7[%c0_10, %c0_11, %c0_12] : memref<1x1x128xf32, #tpu.memory_space<vmem>>, vector<1x1x128xf32>
    tpu.vector_store %arg7[%c0_10, %c0_11, %c0_12], %11 {strides = array<i32>} : memref<1x1x128xf32, #tpu.memory_space<vmem>>, vector<1x1x128xf32>,
    %c0_13 = arith.constant 0 : index
    %c0_14 = arith.constant 0 : index
    %13 = vector.load %arg3[%c0_13, %c0_14] : memref<128x128xbf16, #tpu.memory_space<vmem>>, vector<128x128xbf16>
    %cst_15 = arith.constant dense<0.000000e+00> : vector<512x128xf32>
    %14 = tpu.matmul %1, %13, %cst_15 {dimension_numbers = #tpu.dot_dimension_numbers<[1], [0], [0], [1], [0, 0, 1, 1], [], []>} : vector<512x128xbf16>, vector<128x128xbf16>, vector<512x128xf32> -> vector<512x128xf32>
    %15 = arith.truncf %14 : vector<512x128xf32> to vector<512x128xbf16>
    %c0_16 = arith.constant 0 : index
    %c0_17 = arith.constant 0 : index
    %16 = vector.load %arg5[%c0_16, %c0_17] : memref<512x128xbf16, #tpu.memory_space<vmem>>, vector<512x128xbf16>
    tpu.vector_store %arg5[%c0_16, %c0_17], %15 {strides = array<i32>} : memref<512x128xbf16, #tpu.memory_space<vmem>>, vector<512x128xbf16>,
    %cst_18 = arith.constant dense<0.000000e+00> : vector<128xf32>
    %17 = vector.multi_reduction <add>, %14, %cst_18 [0] : vector<512x128xf32> to vector<128xf32>
    %18 = vector.shape_cast %17 : vector<128xf32> to vector<1x1x128xf32>
    %c0_19 = arith.constant 0 : index
    %c0_20 = arith.constant 0 : index
    %c0_21 = arith.constant 0 : index
    %19 = vector.load %arg8[%c0_19, %c0_20, %c0_21] : memref<1x1x128xf32, #tpu.memory_space<vmem>>, vector<1x1x128xf32>
    tpu.vector_store %arg8[%c0_19, %c0_20, %c0_21], %18 {strides = array<i32>} : memref<1x1x128xf32, #tpu.memory_space<vmem>>, vector<1x1x128xf32>,
    %20 = arith.mulf %14, %14 : vector<512x128xf32>
    %cst_22 = arith.constant dense<0.000000e+00> : vector<128xf32>
    %21 = vector.multi_reduction <add>, %20, %cst_22 [0] : vector<512x128xf32> to vector<128xf32>
    %22 = vector.shape_cast %21 : vector<128xf32> to vector<1x1x128xf32>
    %c0_23 = arith.constant 0 : index
    %c0_24 = arith.constant 0 : index
    %c0_25 = arith.constant 0 : index
    %23 = vector.load %arg9[%c0_23, %c0_24, %c0_25] : memref<1x1x128xf32, #tpu.memory_space<vmem>>, vector<1x1x128xf32>
    tpu.vector_store %arg9[%c0_23, %c0_24, %c0_25], %22 {strides = array<i32>} : memref<1x1x128xf32, #tpu.memory_space<vmem>>, vector<1x1x128xf32>,
    return
  }
  func.func @transform_0(%arg0: i32) -> (i32, i32) {
    %c0_i32 = arith.constant 0 : i32
    %c0_i32_0 = arith.constant 0 : i32
    return %arg0, %c0_i32 : i32, i32
  }
  func.func @transform_1(%arg0: i32) -> (i32, i32) {
    %c0_i32 = arith.constant 0 : i32
    %c0_i32_0 = arith.constant 0 : i32
    %c0_i32_1 = arith.constant 0 : i32
    return %c0_i32, %c0_i32_0 : i32, i32
  }
  func.func @transform_2(%arg0: i32) -> (i32, i32) {
    %c0_i32 = arith.constant 0 : i32
    %c0_i32_0 = arith.constant 0 : i32
    %c0_i32_1 = arith.constant 0 : i32
    return %c0_i32, %c0_i32_0 : i32, i32
  }
  func.func @transform_3(%arg0: i32) -> (i32, i32) {
    %c0_i32 = arith.constant 0 : i32
    %c0_i32_0 = arith.constant 0 : i32
    return %arg0, %c0_i32 : i32, i32
  }
  func.func @transform_4(%arg0: i32) -> (i32, i32) {
    %c0_i32 = arith.constant 0 : i32
    %c0_i32_0 = arith.constant 0 : i32
    return %arg0, %c0_i32 : i32, i32
  }
  func.func @transform_5(%arg0: i32) -> (i32, i32, i32) {
    %c0_i32 = arith.constant 0 : i32
    %c0_i32_0 = arith.constant 0 : i32
    %c0_i32_1 = arith.constant 0 : i32
    return %arg0, %c0_i32, %c0_i32_0 : i32, i32, i32
  }
  func.func @transform_6(%arg0: i32) -> (i32, i32, i32) {
    %c0_i32 = arith.constant 0 : i32
    %c0_i32_0 = arith.constant 0 : i32
    %c0_i32_1 = arith.constant 0 : i32
    return %arg0, %c0_i32, %c0_i32_0 : i32, i32, i32
  }
  func.func @transform_7(%arg0: i32) -> (i32, i32, i32) {
    %c0_i32 = arith.constant 0 : i32
    %c0_i32_0 = arith.constant 0 : i32
    %c0_i32_1 = arith.constant 0 : i32
    return %arg0, %c0_i32, %c0_i32_0 : i32, i32, i32
  }
  func.func @transform_8(%arg0: i32) -> (i32, i32, i32) {
    %c0_i32 = arith.constant 0 : i32
    %c0_i32_0 = arith.constant 0 : i32
    %c0_i32_1 = arith.constant 0 : i32
    return %arg0, %c0_i32, %c0_i32_0 : i32, i32, i32
  }
}

module attributes {stable_mosaic.version = 11 : i64} {
  func.func @_conv3_kernel(%arg0: i32, %arg1: memref<512x128xbf16, #tpu.memory_space<vmem>>, %arg2: memref<1x128xf32, #tpu.memory_space<vmem>>, %arg3: memref<1x128xf32, #tpu.memory_space<vmem>>, %arg4: memref<128x128xbf16, #tpu.memory_space<vmem>>, %arg5: memref<512x128xbf16, #tpu.memory_space<vmem>>, %arg6: memref<1x1x128xf32, #tpu.memory_space<vmem>>, %arg7: memref<1x1x128xf32, #tpu.memory_space<vmem>>) attributes {dimension_semantics = [#tpu.dimension_semantics<parallel>], iteration_bounds = array<i64: 2>, scalar_prefetch = 0 : i64, scratch_operands = 0 : i64, tpu.core_type = #tpu.core_type<tc>, window_params = [{transform_indices = @transform_0, window_bounds = array<i64: 512, 128>}, {pipeline_mode = #tpu.pipeline_mode<synchronous>, transform_indices = @transform_1, window_bounds = array<i64: 1, 128>}, {pipeline_mode = #tpu.pipeline_mode<synchronous>, transform_indices = @transform_2, window_bounds = array<i64: 1, 128>}, {pipeline_mode = #tpu.pipeline_mode<synchronous>, transform_indices = @transform_3, window_bounds = array<i64: 128, 128>}, {transform_indices = @transform_4, window_bounds = array<i64: 512, 128>}, {transform_indices = @transform_5, window_bounds = array<i64: 1, 1, 128>}, {transform_indices = @transform_6, window_bounds = array<i64: 1, 1, 128>}]} {
    %c0 = arith.constant 0 : index
    %c0_0 = arith.constant 0 : index
    %0 = vector.load %arg1[%c0, %c0_0] : memref<512x128xbf16, #tpu.memory_space<vmem>>, vector<512x128xbf16>
    %1 = arith.extf %0 : vector<512x128xbf16> to vector<512x128xf32>
    %c0_1 = arith.constant 0 : index
    %c0_2 = arith.constant 0 : index
    %2 = vector.load %arg2[%c0_1, %c0_2] : memref<1x128xf32, #tpu.memory_space<vmem>>, vector<1x128xf32>
    %3 = vector.broadcast %2 : vector<1x128xf32> to vector<512x128xf32>
    %4 = arith.mulf %1, %3 : vector<512x128xf32>
    %c0_3 = arith.constant 0 : index
    %c0_4 = arith.constant 0 : index
    %5 = vector.load %arg3[%c0_3, %c0_4] : memref<1x128xf32, #tpu.memory_space<vmem>>, vector<1x128xf32>
    %6 = vector.broadcast %5 : vector<1x128xf32> to vector<512x128xf32>
    %7 = arith.addf %4, %6 : vector<512x128xf32>
    %cst = arith.constant 0.000000e+00 : f32
    %8 = vector.broadcast %cst : f32 to vector<512x128xf32>
    %9 = arith.maximumf %7, %8 : vector<512x128xf32>
    %10 = arith.truncf %9 : vector<512x128xf32> to vector<512x128xbf16>
    %c0_5 = arith.constant 0 : index
    %c0_6 = arith.constant 0 : index
    %11 = vector.load %arg4[%c0_5, %c0_6] : memref<128x128xbf16, #tpu.memory_space<vmem>>, vector<128x128xbf16>
    %cst_7 = arith.constant dense<0.000000e+00> : vector<512x128xf32>
    %12 = tpu.matmul %10, %11, %cst_7 {dimension_numbers = #tpu.dot_dimension_numbers<[1], [0], [0], [1], [0, 0, 1, 1], [], []>} : vector<512x128xbf16>, vector<128x128xbf16>, vector<512x128xf32> -> vector<512x128xf32>
    %13 = arith.truncf %12 : vector<512x128xf32> to vector<512x128xbf16>
    %c0_8 = arith.constant 0 : index
    %c0_9 = arith.constant 0 : index
    %14 = vector.load %arg5[%c0_8, %c0_9] : memref<512x128xbf16, #tpu.memory_space<vmem>>, vector<512x128xbf16>
    tpu.vector_store %arg5[%c0_8, %c0_9], %13 {strides = array<i32>} : memref<512x128xbf16, #tpu.memory_space<vmem>>, vector<512x128xbf16>,
    %cst_10 = arith.constant dense<0.000000e+00> : vector<128xf32>
    %15 = vector.multi_reduction <add>, %12, %cst_10 [0] : vector<512x128xf32> to vector<128xf32>
    %16 = vector.shape_cast %15 : vector<128xf32> to vector<1x1x128xf32>
    %c0_11 = arith.constant 0 : index
    %c0_12 = arith.constant 0 : index
    %c0_13 = arith.constant 0 : index
    %17 = vector.load %arg6[%c0_11, %c0_12, %c0_13] : memref<1x1x128xf32, #tpu.memory_space<vmem>>, vector<1x1x128xf32>
    tpu.vector_store %arg6[%c0_11, %c0_12, %c0_13], %16 {strides = array<i32>} : memref<1x1x128xf32, #tpu.memory_space<vmem>>, vector<1x1x128xf32>,
    %18 = arith.mulf %12, %12 : vector<512x128xf32>
    %cst_14 = arith.constant dense<0.000000e+00> : vector<128xf32>
    %19 = vector.multi_reduction <add>, %18, %cst_14 [0] : vector<512x128xf32> to vector<128xf32>
    %20 = vector.shape_cast %19 : vector<128xf32> to vector<1x1x128xf32>
    %c0_15 = arith.constant 0 : index
    %c0_16 = arith.constant 0 : index
    %c0_17 = arith.constant 0 : index
    %21 = vector.load %arg7[%c0_15, %c0_16, %c0_17] : memref<1x1x128xf32, #tpu.memory_space<vmem>>, vector<1x1x128xf32>
    tpu.vector_store %arg7[%c0_15, %c0_16, %c0_17], %20 {strides = array<i32>} : memref<1x1x128xf32, #tpu.memory_space<vmem>>, vector<1x1x128xf32>,
    return
  }
  func.func @transform_0(%arg0: i32) -> (i32, i32) {
    %c0_i32 = arith.constant 0 : i32
    %c0_i32_0 = arith.constant 0 : i32
    return %arg0, %c0_i32 : i32, i32
  }
  func.func @transform_1(%arg0: i32) -> (i32, i32) {
    %c0_i32 = arith.constant 0 : i32
    %c0_i32_0 = arith.constant 0 : i32
    %c0_i32_1 = arith.constant 0 : i32
    return %c0_i32, %c0_i32_0 : i32, i32
  }
  func.func @transform_2(%arg0: i32) -> (i32, i32) {
    %c0_i32 = arith.constant 0 : i32
    %c0_i32_0 = arith.constant 0 : i32
    %c0_i32_1 = arith.constant 0 : i32
    return %c0_i32, %c0_i32_0 : i32, i32
  }
  func.func @transform_3(%arg0: i32) -> (i32, i32) {
    %c0_i32 = arith.constant 0 : i32
    %c0_i32_0 = arith.constant 0 : i32
    %c0_i32_1 = arith.constant 0 : i32
    return %c0_i32, %c0_i32_0 : i32, i32
  }
  func.func @transform_4(%arg0: i32) -> (i32, i32) {
    %c0_i32 = arith.constant 0 : i32
    %c0_i32_0 = arith.constant 0 : i32
    return %arg0, %c0_i32 : i32, i32
  }
  func.func @transform_5(%arg0: i32) -> (i32, i32, i32) {
    %c0_i32 = arith.constant 0 : i32
    %c0_i32_0 = arith.constant 0 : i32
    %c0_i32_1 = arith.constant 0 : i32
    return %arg0, %c0_i32, %c0_i32_0 : i32, i32, i32
  }
  func.func @transform_6(%arg0: i32) -> (i32, i32, i32) {
    %c0_i32 = arith.constant 0 : i32
    %c0_i32_0 = arith.constant 0 : i32
    %c0_i32_1 = arith.constant 0 : i32
    return %arg0, %c0_i32, %c0_i32_0 : i32, i32, i32
  }
}

module attributes {stable_mosaic.version = 11 : i64} {
  func.func @_conv2_kernel(%arg0: i32, %arg1: i32, %arg2: memref<1x1x8x8x128xbf16, #tpu.memory_space<vmem>>, %arg3: memref<1x1x8x8x128xbf16, #tpu.memory_space<vmem>>, %arg4: memref<1x1x8x8x128xbf16, #tpu.memory_space<vmem>>, %arg5: memref<1x128xf32, #tpu.memory_space<vmem>>, %arg6: memref<1x128xf32, #tpu.memory_space<vmem>>, %arg7: memref<9x384x128xbf16, #tpu.memory_space<vmem>>, %arg8: memref<1x1x8x8x128xbf16, #tpu.memory_space<vmem>>, %arg9: memref<1x1x1x128xf32, #tpu.memory_space<vmem>>, %arg10: memref<1x1x1x128xf32, #tpu.memory_space<vmem>>, %arg11: memref<3x10x10x128xbf16, #tpu.memory_space<vmem>>, %arg12: memref<64x128xf32, #tpu.memory_space<vmem>>) attributes {dimension_semantics = [#tpu.dimension_semantics<parallel>, #tpu.dimension_semantics<parallel>], iteration_bounds = array<i64: 2, 8>, scalar_prefetch = 0 : i64, scratch_operands = 2 : i64, tpu.core_type = #tpu.core_type<tc>, window_params = [{transform_indices = @transform_0, window_bounds = array<i64: 1, 1, 8, 8, 128>}, {transform_indices = @transform_1, window_bounds = array<i64: 1, 1, 8, 8, 128>}, {transform_indices = @transform_2, window_bounds = array<i64: 1, 1, 8, 8, 128>}, {pipeline_mode = #tpu.pipeline_mode<synchronous>, transform_indices = @transform_3, window_bounds = array<i64: 1, 128>}, {pipeline_mode = #tpu.pipeline_mode<synchronous>, transform_indices = @transform_4, window_bounds = array<i64: 1, 128>}, {pipeline_mode = #tpu.pipeline_mode<synchronous>, transform_indices = @transform_5, window_bounds = array<i64: 9, 384, 128>}, {transform_indices = @transform_6, window_bounds = array<i64: 1, 1, 8, 8, 128>}, {transform_indices = @transform_7, window_bounds = array<i64: 1, 1, 1, 128>}, {transform_indices = @transform_8, window_bounds = array<i64: 1, 1, 1, 128>}]} {
    %c0 = arith.constant 0 : index
    %c0_0 = arith.constant 0 : index
    %0 = vector.load %arg5[%c0, %c0_0] : memref<1x128xf32, #tpu.memory_space<vmem>>, vector<1x128xf32>
    %c0_1 = arith.constant 0 : index
    %c0_2 = arith.constant 0 : index
    %1 = vector.load %arg6[%c0_1, %c0_2] : memref<1x128xf32, #tpu.memory_space<vmem>>, vector<1x128xf32>
    %cst = arith.constant 0.000000e+00 : bf16
    %2 = vector.broadcast %cst : bf16 to vector<3x10x10x128xbf16>
    %c0_3 = arith.constant 0 : index
    %c0_4 = arith.constant 0 : index
    %c0_5 = arith.constant 0 : index
    %c0_6 = arith.constant 0 : index
    %3 = vector.load %arg11[%c0_3, %c0_4, %c0_5, %c0_6] : memref<3x10x10x128xbf16, #tpu.memory_space<vmem>>, vector<3x10x10x128xbf16>
    tpu.vector_store %arg11[%c0_3, %c0_4, %c0_5, %c0_6], %2 {strides = array<i32>} : memref<3x10x10x128xbf16, #tpu.memory_space<vmem>>, vector<3x10x10x128xbf16>,
    %c0_7 = arith.constant 0 : index
    %c0_8 = arith.constant 0 : index
    %c0_9 = arith.constant 0 : index
    %c0_10 = arith.constant 0 : index
    %c0_11 = arith.constant 0 : index
    %4 = vector.load %arg2[%c0_7, %c0_8, %c0_9, %c0_10, %c0_11] : memref<1x1x8x8x128xbf16, #tpu.memory_space<vmem>>, vector<1x1x8x8x128xbf16>
    %5 = vector.shape_cast %4 : vector<1x1x8x8x128xbf16> to vector<8x8x128xbf16>
    %6 = arith.extf %5 : vector<8x8x128xbf16> to vector<8x8x128xf32>
    %7 = vector.shape_cast %0 : vector<1x128xf32> to vector<1x1x128xf32>
    %8 = vector.broadcast %7 : vector<1x1x128xf32> to vector<8x8x128xf32>
    %9 = arith.mulf %6, %8 : vector<8x8x128xf32>
    %10 = vector.shape_cast %1 : vector<1x128xf32> to vector<1x1x128xf32>
    %11 = vector.broadcast %10 : vector<1x1x128xf32> to vector<8x8x128xf32>
    %12 = arith.addf %9, %11 : vector<8x8x128xf32>
    %cst_12 = arith.constant 0.000000e+00 : f32
    %13 = vector.broadcast %cst_12 : f32 to vector<8x8x128xf32>
    %14 = arith.maximumf %12, %13 : vector<8x8x128xf32>
    %c-1_i32 = arith.constant -1 : i32
    %15 = arith.addi %arg1, %c-1_i32 : i32
    %c0_i32 = arith.constant 0 : i32
    %16 = arith.cmpi sge, %15, %c0_i32 : i32
    %c8_i32 = arith.constant 8 : i32
    %17 = arith.cmpi slt, %15, %c8_i32 : i32
    %18 = arith.andi %16, %17 : i1
    %19 = arith.extui %18 : i1 to i32
    %20 = arith.sitofp %19 : i32 to f32
    %21 = vector.broadcast %20 : f32 to vector<8x8x128xf32>
    %22 = arith.mulf %14, %21 : vector<8x8x128xf32>
    %23 = arith.truncf %22 : vector<8x8x128xf32> to vector<8x8x128xbf16>
    %c0_13 = arith.constant 0 : index
    %c1 = arith.constant 1 : index
    %c1_14 = arith.constant 1 : index
    %c0_15 = arith.constant 0 : index
    %24 = vector.load %arg11[%c0_13, %c1, %c1_14, %c0_15] : memref<3x10x10x128xbf16, #tpu.memory_space<vmem>>, vector<1x8x8x128xbf16>
    %25 = vector.shape_cast %24 : vector<1x8x8x128xbf16> to vector<8x8x128xbf16>
    %26 = vector.shape_cast %23 : vector<8x8x128xbf16> to vector<1x8x8x128xbf16>
    tpu.vector_store %arg11[%c0_13, %c1, %c1_14, %c0_15], %26 {strides = array<i32>} : memref<3x10x10x128xbf16, #tpu.memory_space<vmem>>, vector<1x8x8x128xbf16>,
    %c0_16 = arith.constant 0 : index
    %c0_17 = arith.constant 0 : index
    %c0_18 = arith.constant 0 : index
    %c0_19 = arith.constant 0 : index
    %c0_20 = arith.constant 0 : index
    %27 = vector.load %arg3[%c0_16, %c0_17, %c0_18, %c0_19, %c0_20] : memref<1x1x8x8x128xbf16, #tpu.memory_space<vmem>>, vector<1x1x8x8x128xbf16>
    %28 = vector.shape_cast %27 : vector<1x1x8x8x128xbf16> to vector<8x8x128xbf16>
    %29 = arith.extf %28 : vector<8x8x128xbf16> to vector<8x8x128xf32>
    %30 = vector.shape_cast %0 : vector<1x128xf32> to vector<1x1x128xf32>
    %31 = vector.broadcast %30 : vector<1x1x128xf32> to vector<8x8x128xf32>
    %32 = arith.mulf %29, %31 : vector<8x8x128xf32>
    %33 = vector.shape_cast %1 : vector<1x128xf32> to vector<1x1x128xf32>
    %34 = vector.broadcast %33 : vector<1x1x128xf32> to vector<8x8x128xf32>
    %35 = arith.addf %32, %34 : vector<8x8x128xf32>
    %cst_21 = arith.constant 0.000000e+00 : f32
    %36 = vector.broadcast %cst_21 : f32 to vector<8x8x128xf32>
    %37 = arith.maximumf %35, %36 : vector<8x8x128xf32>
    %38 = arith.truncf %37 : vector<8x8x128xf32> to vector<8x8x128xbf16>
    %c1_22 = arith.constant 1 : index
    %c1_23 = arith.constant 1 : index
    %c1_24 = arith.constant 1 : index
    %c0_25 = arith.constant 0 : index
    %39 = vector.load %arg11[%c1_22, %c1_23, %c1_24, %c0_25] : memref<3x10x10x128xbf16, #tpu.memory_space<vmem>>, vector<1x8x8x128xbf16>
    %40 = vector.shape_cast %39 : vector<1x8x8x128xbf16> to vector<8x8x128xbf16>
    %41 = vector.shape_cast %38 : vector<8x8x128xbf16> to vector<1x8x8x128xbf16>
    tpu.vector_store %arg11[%c1_22, %c1_23, %c1_24, %c0_25], %41 {strides = array<i32>} : memref<3x10x10x128xbf16, #tpu.memory_space<vmem>>, vector<1x8x8x128xbf16>,
    %c0_26 = arith.constant 0 : index
    %c0_27 = arith.constant 0 : index
    %c0_28 = arith.constant 0 : index
    %c0_29 = arith.constant 0 : index
    %c0_30 = arith.constant 0 : index
    %42 = vector.load %arg4[%c0_26, %c0_27, %c0_28, %c0_29, %c0_30] : memref<1x1x8x8x128xbf16, #tpu.memory_space<vmem>>, vector<1x1x8x8x128xbf16>
    %43 = vector.shape_cast %42 : vector<1x1x8x8x128xbf16> to vector<8x8x128xbf16>
    %44 = arith.extf %43 : vector<8x8x128xbf16> to vector<8x8x128xf32>
    %45 = vector.shape_cast %0 : vector<1x128xf32> to vector<1x1x128xf32>
    %46 = vector.broadcast %45 : vector<1x1x128xf32> to vector<8x8x128xf32>
    %47 = arith.mulf %44, %46 : vector<8x8x128xf32>
    %48 = vector.shape_cast %1 : vector<1x128xf32> to vector<1x1x128xf32>
    %49 = vector.broadcast %48 : vector<1x1x128xf32> to vector<8x8x128xf32>
    %50 = arith.addf %47, %49 : vector<8x8x128xf32>
    %cst_31 = arith.constant 0.000000e+00 : f32
    %51 = vector.broadcast %cst_31 : f32 to vector<8x8x128xf32>
    %52 = arith.maximumf %50, %51 : vector<8x8x128xf32>
    %c1_i32 = arith.constant 1 : i32
    %53 = arith.addi %arg1, %c1_i32 : i32
    %c0_i32_32 = arith.constant 0 : i32
    %54 = arith.cmpi sge, %53, %c0_i32_32 : i32
    %c8_i32_33 = arith.constant 8 : i32
    %55 = arith.cmpi slt, %53, %c8_i32_33 : i32
    %56 = arith.andi %54, %55 : i1
    %57 = arith.extui %56 : i1 to i32
    %58 = arith.sitofp %57 : i32 to f32
    %59 = vector.broadcast %58 : f32 to vector<8x8x128xf32>
    %60 = arith.mulf %52, %59 : vector<8x8x128xf32>
    %61 = arith.truncf %60 : vector<8x8x128xf32> to vector<8x8x128xbf16>
    %c2 = arith.constant 2 : index
    %c1_34 = arith.constant 1 : index
    %c1_35 = arith.constant 1 : index
    %c0_36 = arith.constant 0 : index
    %62 = vector.load %arg11[%c2, %c1_34, %c1_35, %c0_36] : memref<3x10x10x128xbf16, #tpu.memory_space<vmem>>, vector<1x8x8x128xbf16>
    %63 = vector.shape_cast %62 : vector<1x8x8x128xbf16> to vector<8x8x128xbf16>
    %64 = vector.shape_cast %61 : vector<8x8x128xbf16> to vector<1x8x8x128xbf16>
    tpu.vector_store %arg11[%c2, %c1_34, %c1_35, %c0_36], %64 {strides = array<i32>} : memref<3x10x10x128xbf16, #tpu.memory_space<vmem>>, vector<1x8x8x128xbf16>,
    %c0_37 = arith.constant 0 : index
    %c0_38 = arith.constant 0 : index
    %c0_39 = arith.constant 0 : index
    %c0_40 = arith.constant 0 : index
    %65 = vector.load %arg11[%c0_37, %c0_38, %c0_39, %c0_40] : memref<3x10x10x128xbf16, #tpu.memory_space<vmem>>, vector<1x10x8x128xbf16>
    %66 = vector.shape_cast %65 : vector<1x10x8x128xbf16> to vector<10x8x128xbf16>
    %c0_41 = arith.constant 0 : index
    %c0_42 = arith.constant 0 : index
    %c1_43 = arith.constant 1 : index
    %c0_44 = arith.constant 0 : index
    %67 = vector.load %arg11[%c0_41, %c0_42, %c1_43, %c0_44] : memref<3x10x10x128xbf16, #tpu.memory_space<vmem>>, vector<1x10x8x128xbf16>
    %68 = vector.shape_cast %67 : vector<1x10x8x128xbf16> to vector<10x8x128xbf16>
    %c0_45 = arith.constant 0 : index
    %c0_46 = arith.constant 0 : index
    %c2_47 = arith.constant 2 : index
    %c0_48 = arith.constant 0 : index
    %69 = vector.load %arg11[%c0_45, %c0_46, %c2_47, %c0_48] : memref<3x10x10x128xbf16, #tpu.memory_space<vmem>>, vector<1x10x8x128xbf16>
    %70 = vector.shape_cast %69 : vector<1x10x8x128xbf16> to vector<10x8x128xbf16>
    %71 = tpu.concatenate %66, %68, %70 in 2 : vector<10x8x128xbf16>, vector<10x8x128xbf16>, vector<10x8x128xbf16> -> vector<10x8x384xbf16>
    %72 = vector.extract_strided_slice %71 {offsets = [0, 0, 0], sizes = [8, 8, 384], strides = [1, 1, 1]} : vector<10x8x384xbf16> to vector<8x8x384xbf16>
    %73 = vector.shape_cast %72 : vector<8x8x384xbf16> to vector<64x384xbf16>
    %c0_49 = arith.constant 0 : index
    %c0_50 = arith.constant 0 : index
    %c0_51 = arith.constant 0 : index
    %74 = vector.load %arg7[%c0_49, %c0_50, %c0_51] : memref<9x384x128xbf16, #tpu.memory_space<vmem>>, vector<1x384x128xbf16>
    %75 = vector.shape_cast %74 : vector<1x384x128xbf16> to vector<384x128xbf16>
    %cst_52 = arith.constant dense<0.000000e+00> : vector<64x128xf32>
    %76 = tpu.matmul %73, %75, %cst_52 {dimension_numbers = #tpu.dot_dimension_numbers<[1], [0], [0], [1], [0, 0, 1, 1], [], []>} : vector<64x384xbf16>, vector<384x128xbf16>, vector<64x128xf32> -> vector<64x128xf32>
    %c0_53 = arith.constant 0 : index
    %c0_54 = arith.constant 0 : index
    %77 = vector.load %arg12[%c0_53, %c0_54] : memref<64x128xf32, #tpu.memory_space<vmem>>, vector<64x128xf32>
    tpu.vector_store %arg12[%c0_53, %c0_54], %76 {strides = array<i32>} : memref<64x128xf32, #tpu.memory_space<vmem>>, vector<64x128xf32>,
    %78 = vector.extract_strided_slice %71 {offsets = [1, 0, 0], sizes = [8, 8, 384], strides = [1, 1, 1]} : vector<10x8x384xbf16> to vector<8x8x384xbf16>
    %79 = vector.shape_cast %78 : vector<8x8x384xbf16> to vector<64x384xbf16>
    %c1_55 = arith.constant 1 : index
    %c0_56 = arith.constant 0 : index
    %c0_57 = arith.constant 0 : index
    %80 = vector.load %arg7[%c1_55, %c0_56, %c0_57] : memref<9x384x128xbf16, #tpu.memory_space<vmem>>, vector<1x384x128xbf16>
    %81 = vector.shape_cast %80 : vector<1x384x128xbf16> to vector<384x128xbf16>
    %cst_58 = arith.constant dense<0.000000e+00> : vector<64x128xf32>
    %82 = tpu.matmul %79, %81, %cst_58 {dimension_numbers = #tpu.dot_dimension_numbers<[1], [0], [0], [1], [0, 0, 1, 1], [], []>} : vector<64x384xbf16>, vector<384x128xbf16>, vector<64x128xf32> -> vector<64x128xf32>
    %c0_59 = arith.constant 0 : index
    %c0_60 = arith.constant 0 : index
    %83 = vector.load %arg12[%c0_59, %c0_60] : memref<64x128xf32, #tpu.memory_space<vmem>>, vector<64x128xf32>
    %84 = arith.addf %83, %82 : vector<64x128xf32>
    %c0_61 = arith.constant 0 : index
    %c0_62 = arith.constant 0 : index
    %85 = vector.load %arg12[%c0_61, %c0_62] : memref<64x128xf32, #tpu.memory_space<vmem>>, vector<64x128xf32>
    tpu.vector_store %arg12[%c0_61, %c0_62], %84 {strides = array<i32>} : memref<64x128xf32, #tpu.memory_space<vmem>>, vector<64x128xf32>,
    %86 = vector.extract_strided_slice %71 {offsets = [2, 0, 0], sizes = [8, 8, 384], strides = [1, 1, 1]} : vector<10x8x384xbf16> to vector<8x8x384xbf16>
    %87 = vector.shape_cast %86 : vector<8x8x384xbf16> to vector<64x384xbf16>
    %c2_63 = arith.constant 2 : index
    %c0_64 = arith.constant 0 : index
    %c0_65 = arith.constant 0 : index
    %88 = vector.load %arg7[%c2_63, %c0_64, %c0_65] : memref<9x384x128xbf16, #tpu.memory_space<vmem>>, vector<1x384x128xbf16>
    %89 = vector.shape_cast %88 : vector<1x384x128xbf16> to vector<384x128xbf16>
    %cst_66 = arith.constant dense<0.000000e+00> : vector<64x128xf32>
    %90 = tpu.matmul %87, %89, %cst_66 {dimension_numbers = #tpu.dot_dimension_numbers<[1], [0], [0], [1], [0, 0, 1, 1], [], []>} : vector<64x384xbf16>, vector<384x128xbf16>, vector<64x128xf32> -> vector<64x128xf32>
    %c0_67 = arith.constant 0 : index
    %c0_68 = arith.constant 0 : index
    %91 = vector.load %arg12[%c0_67, %c0_68] : memref<64x128xf32, #tpu.memory_space<vmem>>, vector<64x128xf32>
    %92 = arith.addf %91, %90 : vector<64x128xf32>
    %c0_69 = arith.constant 0 : index
    %c0_70 = arith.constant 0 : index
    %93 = vector.load %arg12[%c0_69, %c0_70] : memref<64x128xf32, #tpu.memory_space<vmem>>, vector<64x128xf32>
    tpu.vector_store %arg12[%c0_69, %c0_70], %92 {strides = array<i32>} : memref<64x128xf32, #tpu.memory_space<vmem>>, vector<64x128xf32>,
    %c1_71 = arith.constant 1 : index
    %c0_72 = arith.constant 0 : index
    %c0_73 = arith.constant 0 : index
    %c0_74 = arith.constant 0 : index
    %94 = vector.load %arg11[%c1_71, %c0_72, %c0_73, %c0_74] : memref<3x10x10x128xbf16, #tpu.memory_space<vmem>>, vector<1x10x8x128xbf16>
    %95 = vector.shape_cast %94 : vector<1x10x8x128xbf16> to vector<10x8x128xbf16>
    %c1_75 = arith.constant 1 : index
    %c0_76 = arith.constant 0 : index
    %c1_77 = arith.constant 1 : index
    %c0_78 = arith.constant 0 : index
    %96 = vector.load %arg11[%c1_75, %c0_76, %c1_77, %c0_78] : memref<3x10x10x128xbf16, #tpu.memory_space<vmem>>, vector<1x10x8x128xbf16>
    %97 = vector.shape_cast %96 : vector<1x10x8x128xbf16> to vector<10x8x128xbf16>
    %c1_79 = arith.constant 1 : index
    %c0_80 = arith.constant 0 : index
    %c2_81 = arith.constant 2 : index
    %c0_82 = arith.constant 0 : index
    %98 = vector.load %arg11[%c1_79, %c0_80, %c2_81, %c0_82] : memref<3x10x10x128xbf16, #tpu.memory_space<vmem>>, vector<1x10x8x128xbf16>
    %99 = vector.shape_cast %98 : vector<1x10x8x128xbf16> to vector<10x8x128xbf16>
    %100 = tpu.concatenate %95, %97, %99 in 2 : vector<10x8x128xbf16>, vector<10x8x128xbf16>, vector<10x8x128xbf16> -> vector<10x8x384xbf16>
    %101 = vector.extract_strided_slice %100 {offsets = [0, 0, 0], sizes = [8, 8, 384], strides = [1, 1, 1]} : vector<10x8x384xbf16> to vector<8x8x384xbf16>
    %102 = vector.shape_cast %101 : vector<8x8x384xbf16> to vector<64x384xbf16>
    %c3 = arith.constant 3 : index
    %c0_83 = arith.constant 0 : index
    %c0_84 = arith.constant 0 : index
    %103 = vector.load %arg7[%c3, %c0_83, %c0_84] : memref<9x384x128xbf16, #tpu.memory_space<vmem>>, vector<1x384x128xbf16>
    %104 = vector.shape_cast %103 : vector<1x384x128xbf16> to vector<384x128xbf16>
    %cst_85 = arith.constant dense<0.000000e+00> : vector<64x128xf32>
    %105 = tpu.matmul %102, %104, %cst_85 {dimension_numbers = #tpu.dot_dimension_numbers<[1], [0], [0], [1], [0, 0, 1, 1], [], []>} : vector<64x384xbf16>, vector<384x128xbf16>, vector<64x128xf32> -> vector<64x128xf32>
    %c0_86 = arith.constant 0 : index
    %c0_87 = arith.constant 0 : index
    %106 = vector.load %arg12[%c0_86, %c0_87] : memref<64x128xf32, #tpu.memory_space<vmem>>, vector<64x128xf32>
    %107 = arith.addf %106, %105 : vector<64x128xf32>
    %c0_88 = arith.constant 0 : index
    %c0_89 = arith.constant 0 : index
    %108 = vector.load %arg12[%c0_88, %c0_89] : memref<64x128xf32, #tpu.memory_space<vmem>>, vector<64x128xf32>
    tpu.vector_store %arg12[%c0_88, %c0_89], %107 {strides = array<i32>} : memref<64x128xf32, #tpu.memory_space<vmem>>, vector<64x128xf32>,
    %109 = vector.extract_strided_slice %100 {offsets = [1, 0, 0], sizes = [8, 8, 384], strides = [1, 1, 1]} : vector<10x8x384xbf16> to vector<8x8x384xbf16>
    %110 = vector.shape_cast %109 : vector<8x8x384xbf16> to vector<64x384xbf16>
    %c4 = arith.constant 4 : index
    %c0_90 = arith.constant 0 : index
    %c0_91 = arith.constant 0 : index
    %111 = vector.load %arg7[%c4, %c0_90, %c0_91] : memref<9x384x128xbf16, #tpu.memory_space<vmem>>, vector<1x384x128xbf16>
    %112 = vector.shape_cast %111 : vector<1x384x128xbf16> to vector<384x128xbf16>
    %cst_92 = arith.constant dense<0.000000e+00> : vector<64x128xf32>
    %113 = tpu.matmul %110, %112, %cst_92 {dimension_numbers = #tpu.dot_dimension_numbers<[1], [0], [0], [1], [0, 0, 1, 1], [], []>} : vector<64x384xbf16>, vector<384x128xbf16>, vector<64x128xf32> -> vector<64x128xf32>
    %c0_93 = arith.constant 0 : index
    %c0_94 = arith.constant 0 : index
    %114 = vector.load %arg12[%c0_93, %c0_94] : memref<64x128xf32, #tpu.memory_space<vmem>>, vector<64x128xf32>
    %115 = arith.addf %114, %113 : vector<64x128xf32>
    %c0_95 = arith.constant 0 : index
    %c0_96 = arith.constant 0 : index
    %116 = vector.load %arg12[%c0_95, %c0_96] : memref<64x128xf32, #tpu.memory_space<vmem>>, vector<64x128xf32>
    tpu.vector_store %arg12[%c0_95, %c0_96], %115 {strides = array<i32>} : memref<64x128xf32, #tpu.memory_space<vmem>>, vector<64x128xf32>,
    %117 = vector.extract_strided_slice %100 {offsets = [2, 0, 0], sizes = [8, 8, 384], strides = [1, 1, 1]} : vector<10x8x384xbf16> to vector<8x8x384xbf16>
    %118 = vector.shape_cast %117 : vector<8x8x384xbf16> to vector<64x384xbf16>
    %c5 = arith.constant 5 : index
    %c0_97 = arith.constant 0 : index
    %c0_98 = arith.constant 0 : index
    %119 = vector.load %arg7[%c5, %c0_97, %c0_98] : memref<9x384x128xbf16, #tpu.memory_space<vmem>>, vector<1x384x128xbf16>
    %120 = vector.shape_cast %119 : vector<1x384x128xbf16> to vector<384x128xbf16>
    %cst_99 = arith.constant dense<0.000000e+00> : vector<64x128xf32>
    %121 = tpu.matmul %118, %120, %cst_99 {dimension_numbers = #tpu.dot_dimension_numbers<[1], [0], [0], [1], [0, 0, 1, 1], [], []>} : vector<64x384xbf16>, vector<384x128xbf16>, vector<64x128xf32> -> vector<64x128xf32>
    %c0_100 = arith.constant 0 : index
    %c0_101 = arith.constant 0 : index
    %122 = vector.load %arg12[%c0_100, %c0_101] : memref<64x128xf32, #tpu.memory_space<vmem>>, vector<64x128xf32>
    %123 = arith.addf %122, %121 : vector<64x128xf32>
    %c0_102 = arith.constant 0 : index
    %c0_103 = arith.constant 0 : index
    %124 = vector.load %arg12[%c0_102, %c0_103] : memref<64x128xf32, #tpu.memory_space<vmem>>, vector<64x128xf32>
    tpu.vector_store %arg12[%c0_102, %c0_103], %123 {strides = array<i32>} : memref<64x128xf32, #tpu.memory_space<vmem>>, vector<64x128xf32>,
    %c2_104 = arith.constant 2 : index
    %c0_105 = arith.constant 0 : index
    %c0_106 = arith.constant 0 : index
    %c0_107 = arith.constant 0 : index
    %125 = vector.load %arg11[%c2_104, %c0_105, %c0_106, %c0_107] : memref<3x10x10x128xbf16, #tpu.memory_space<vmem>>, vector<1x10x8x128xbf16>
    %126 = vector.shape_cast %125 : vector<1x10x8x128xbf16> to vector<10x8x128xbf16>
    %c2_108 = arith.constant 2 : index
    %c0_109 = arith.constant 0 : index
    %c1_110 = arith.constant 1 : index
    %c0_111 = arith.constant 0 : index
    %127 = vector.load %arg11[%c2_108, %c0_109, %c1_110, %c0_111] : memref<3x10x10x128xbf16, #tpu.memory_space<vmem>>, vector<1x10x8x128xbf16>
    %128 = vector.shape_cast %127 : vector<1x10x8x128xbf16> to vector<10x8x128xbf16>
    %c2_112 = arith.constant 2 : index
    %c0_113 = arith.constant 0 : index
    %c2_114 = arith.constant 2 : index
    %c0_115 = arith.constant 0 : index
    %129 = vector.load %arg11[%c2_112, %c0_113, %c2_114, %c0_115] : memref<3x10x10x128xbf16, #tpu.memory_space<vmem>>, vector<1x10x8x128xbf16>
    %130 = vector.shape_cast %129 : vector<1x10x8x128xbf16> to vector<10x8x128xbf16>
    %131 = tpu.concatenate %126, %128, %130 in 2 : vector<10x8x128xbf16>, vector<10x8x128xbf16>, vector<10x8x128xbf16> -> vector<10x8x384xbf16>
    %132 = vector.extract_strided_slice %131 {offsets = [0, 0, 0], sizes = [8, 8, 384], strides = [1, 1, 1]} : vector<10x8x384xbf16> to vector<8x8x384xbf16>
    %133 = vector.shape_cast %132 : vector<8x8x384xbf16> to vector<64x384xbf16>
    %c6 = arith.constant 6 : index
    %c0_116 = arith.constant 0 : index
    %c0_117 = arith.constant 0 : index
    %134 = vector.load %arg7[%c6, %c0_116, %c0_117] : memref<9x384x128xbf16, #tpu.memory_space<vmem>>, vector<1x384x128xbf16>
    %135 = vector.shape_cast %134 : vector<1x384x128xbf16> to vector<384x128xbf16>
    %cst_118 = arith.constant dense<0.000000e+00> : vector<64x128xf32>
    %136 = tpu.matmul %133, %135, %cst_118 {dimension_numbers = #tpu.dot_dimension_numbers<[1], [0], [0], [1], [0, 0, 1, 1], [], []>} : vector<64x384xbf16>, vector<384x128xbf16>, vector<64x128xf32> -> vector<64x128xf32>
    %c0_119 = arith.constant 0 : index
    %c0_120 = arith.constant 0 : index
    %137 = vector.load %arg12[%c0_119, %c0_120] : memref<64x128xf32, #tpu.memory_space<vmem>>, vector<64x128xf32>
    %138 = arith.addf %137, %136 : vector<64x128xf32>
    %c0_121 = arith.constant 0 : index
    %c0_122 = arith.constant 0 : index
    %139 = vector.load %arg12[%c0_121, %c0_122] : memref<64x128xf32, #tpu.memory_space<vmem>>, vector<64x128xf32>
    tpu.vector_store %arg12[%c0_121, %c0_122], %138 {strides = array<i32>} : memref<64x128xf32, #tpu.memory_space<vmem>>, vector<64x128xf32>,
    %140 = vector.extract_strided_slice %131 {offsets = [1, 0, 0], sizes = [8, 8, 384], strides = [1, 1, 1]} : vector<10x8x384xbf16> to vector<8x8x384xbf16>
    %141 = vector.shape_cast %140 : vector<8x8x384xbf16> to vector<64x384xbf16>
    %c7 = arith.constant 7 : index
    %c0_123 = arith.constant 0 : index
    %c0_124 = arith.constant 0 : index
    %142 = vector.load %arg7[%c7, %c0_123, %c0_124] : memref<9x384x128xbf16, #tpu.memory_space<vmem>>, vector<1x384x128xbf16>
    %143 = vector.shape_cast %142 : vector<1x384x128xbf16> to vector<384x128xbf16>
    %cst_125 = arith.constant dense<0.000000e+00> : vector<64x128xf32>
    %144 = tpu.matmul %141, %143, %cst_125 {dimension_numbers = #tpu.dot_dimension_numbers<[1], [0], [0], [1], [0, 0, 1, 1], [], []>} : vector<64x384xbf16>, vector<384x128xbf16>, vector<64x128xf32> -> vector<64x128xf32>
    %c0_126 = arith.constant 0 : index
    %c0_127 = arith.constant 0 : index
    %145 = vector.load %arg12[%c0_126, %c0_127] : memref<64x128xf32, #tpu.memory_space<vmem>>, vector<64x128xf32>
    %146 = arith.addf %145, %144 : vector<64x128xf32>
    %c0_128 = arith.constant 0 : index
    %c0_129 = arith.constant 0 : index
    %147 = vector.load %arg12[%c0_128, %c0_129] : memref<64x128xf32, #tpu.memory_space<vmem>>, vector<64x128xf32>
    tpu.vector_store %arg12[%c0_128, %c0_129], %146 {strides = array<i32>} : memref<64x128xf32, #tpu.memory_space<vmem>>, vector<64x128xf32>,
    %148 = vector.extract_strided_slice %131 {offsets = [2, 0, 0], sizes = [8, 8, 384], strides = [1, 1, 1]} : vector<10x8x384xbf16> to vector<8x8x384xbf16>
    %149 = vector.shape_cast %148 : vector<8x8x384xbf16> to vector<64x384xbf16>
    %c8 = arith.constant 8 : index
    %c0_130 = arith.constant 0 : index
    %c0_131 = arith.constant 0 : index
    %150 = vector.load %arg7[%c8, %c0_130, %c0_131] : memref<9x384x128xbf16, #tpu.memory_space<vmem>>, vector<1x384x128xbf16>
    %151 = vector.shape_cast %150 : vector<1x384x128xbf16> to vector<384x128xbf16>
    %cst_132 = arith.constant dense<0.000000e+00> : vector<64x128xf32>
    %152 = tpu.matmul %149, %151, %cst_132 {dimension_numbers = #tpu.dot_dimension_numbers<[1], [0], [0], [1], [0, 0, 1, 1], [], []>} : vector<64x384xbf16>, vector<384x128xbf16>, vector<64x128xf32> -> vector<64x128xf32>
    %c0_133 = arith.constant 0 : index
    %c0_134 = arith.constant 0 : index
    %153 = vector.load %arg12[%c0_133, %c0_134] : memref<64x128xf32, #tpu.memory_space<vmem>>, vector<64x128xf32>
    %154 = arith.addf %153, %152 : vector<64x128xf32>
    %c0_135 = arith.constant 0 : index
    %c0_136 = arith.constant 0 : index
    %155 = vector.load %arg12[%c0_135, %c0_136] : memref<64x128xf32, #tpu.memory_space<vmem>>, vector<64x128xf32>
    tpu.vector_store %arg12[%c0_135, %c0_136], %154 {strides = array<i32>} : memref<64x128xf32, #tpu.memory_space<vmem>>, vector<64x128xf32>,
    %c0_137 = arith.constant 0 : index
    %c0_138 = arith.constant 0 : index
    %156 = vector.load %arg12[%c0_137, %c0_138] : memref<64x128xf32, #tpu.memory_space<vmem>>, vector<64x128xf32>
    %157 = vector.shape_cast %156 : vector<64x128xf32> to vector<1x1x8x8x128xf32>
    %158 = arith.truncf %157 : vector<1x1x8x8x128xf32> to vector<1x1x8x8x128xbf16>
    %c0_139 = arith.constant 0 : index
    %c0_140 = arith.constant 0 : index
    %c0_141 = arith.constant 0 : index
    %c0_142 = arith.constant 0 : index
    %c0_143 = arith.constant 0 : index
    %159 = vector.load %arg8[%c0_139, %c0_140, %c0_141, %c0_142, %c0_143] : memref<1x1x8x8x128xbf16, #tpu.memory_space<vmem>>, vector<1x1x8x8x128xbf16>
    tpu.vector_store %arg8[%c0_139, %c0_140, %c0_141, %c0_142, %c0_143], %158 {strides = array<i32>} : memref<1x1x8x8x128xbf16, #tpu.memory_space<vmem>>, vector<1x1x8x8x128xbf16>,
    %cst_144 = arith.constant dense<0.000000e+00> : vector<128xf32>
    %160 = vector.multi_reduction <add>, %156, %cst_144 [0] : vector<64x128xf32> to vector<128xf32>
    %161 = vector.shape_cast %160 : vector<128xf32> to vector<1x1x1x128xf32>
    %c0_145 = arith.constant 0 : index
    %c0_146 = arith.constant 0 : index
    %c0_147 = arith.constant 0 : index
    %c0_148 = arith.constant 0 : index
    %162 = vector.load %arg9[%c0_145, %c0_146, %c0_147, %c0_148] : memref<1x1x1x128xf32, #tpu.memory_space<vmem>>, vector<1x1x1x128xf32>
    tpu.vector_store %arg9[%c0_145, %c0_146, %c0_147, %c0_148], %161 {strides = array<i32>} : memref<1x1x1x128xf32, #tpu.memory_space<vmem>>, vector<1x1x1x128xf32>,
    %163 = arith.mulf %156, %156 : vector<64x128xf32>
    %cst_149 = arith.constant dense<0.000000e+00> : vector<128xf32>
    %164 = vector.multi_reduction <add>, %163, %cst_149 [0] : vector<64x128xf32> to vector<128xf32>
    %165 = vector.shape_cast %164 : vector<128xf32> to vector<1x1x1x128xf32>
    %c0_150 = arith.constant 0 : index
    %c0_151 = arith.constant 0 : index
    %c0_152 = arith.constant 0 : index
    %c0_153 = arith.constant 0 : index
    %166 = vector.load %arg10[%c0_150, %c0_151, %c0_152, %c0_153] : memref<1x1x1x128xf32, #tpu.memory_space<vmem>>, vector<1x1x1x128xf32>
    tpu.vector_store %arg10[%c0_150, %c0_151, %c0_152, %c0_153], %165 {strides = array<i32>} : memref<1x1x1x128xf32, #tpu.memory_space<vmem>>, vector<1x1x1x128xf32>,
    return
  }
  func.func @transform_0(%arg0: i32, %arg1: i32) -> (i32, i32, i32, i32, i32) {
    %c-1_i32 = arith.constant -1 : i32
    %0 = arith.addi %arg1, %c-1_i32 : i32
    %c0_i32 = arith.constant 0 : i32
    %c7_i32 = arith.constant 7 : i32
    %1 = arith.maxsi %c0_i32, %0 : i32
    %2 = arith.minsi %c7_i32, %1 : i32
    %c0_i32_0 = arith.constant 0 : i32
    %c0_i32_1 = arith.constant 0 : i32
    %c0_i32_2 = arith.constant 0 : i32
    %c0_i32_3 = arith.constant 0 : i32
    return %arg0, %2, %c0_i32_0, %c0_i32_1, %c0_i32_2 : i32, i32, i32, i32, i32
  }
  func.func @transform_1(%arg0: i32, %arg1: i32) -> (i32, i32, i32, i32, i32) {
    %c0_i32 = arith.constant 0 : i32
    %0 = arith.addi %arg1, %c0_i32 : i32
    %c0_i32_0 = arith.constant 0 : i32
    %c7_i32 = arith.constant 7 : i32
    %1 = arith.maxsi %c0_i32_0, %0 : i32
    %2 = arith.minsi %c7_i32, %1 : i32
    %c0_i32_1 = arith.constant 0 : i32
    %c0_i32_2 = arith.constant 0 : i32
    %c0_i32_3 = arith.constant 0 : i32
    %c0_i32_4 = arith.constant 0 : i32
    return %arg0, %2, %c0_i32_1, %c0_i32_2, %c0_i32_3 : i32, i32, i32, i32, i32
  }
  func.func @transform_2(%arg0: i32, %arg1: i32) -> (i32, i32, i32, i32, i32) {
    %c1_i32 = arith.constant 1 : i32
    %0 = arith.addi %arg1, %c1_i32 : i32
    %c0_i32 = arith.constant 0 : i32
    %c7_i32 = arith.constant 7 : i32
    %1 = arith.maxsi %c0_i32, %0 : i32
    %2 = arith.minsi %c7_i32, %1 : i32
    %c0_i32_0 = arith.constant 0 : i32
    %c0_i32_1 = arith.constant 0 : i32
    %c0_i32_2 = arith.constant 0 : i32
    %c0_i32_3 = arith.constant 0 : i32
    return %arg0, %2, %c0_i32_0, %c0_i32_1, %c0_i32_2 : i32, i32, i32, i32, i32
  }
  func.func @transform_3(%arg0: i32, %arg1: i32) -> (i32, i32) {
    %c0_i32 = arith.constant 0 : i32
    %c0_i32_0 = arith.constant 0 : i32
    %c0_i32_1 = arith.constant 0 : i32
    return %c0_i32, %c0_i32_0 : i32, i32
  }
  func.func @transform_4(%arg0: i32, %arg1: i32) -> (i32, i32) {
    %c0_i32 = arith.constant 0 : i32
    %c0_i32_0 = arith.constant 0 : i32
    %c0_i32_1 = arith.constant 0 : i32
    return %c0_i32, %c0_i32_0 : i32, i32
  }
  func.func @transform_5(%arg0: i32, %arg1: i32) -> (i32, i32, i32) {
    %c0_i32 = arith.constant 0 : i32
    %c0_i32_0 = arith.constant 0 : i32
    %c0_i32_1 = arith.constant 0 : i32
    %c0_i32_2 = arith.constant 0 : i32
    return %c0_i32, %c0_i32_0, %c0_i32_1 : i32, i32, i32
  }
  func.func @transform_6(%arg0: i32, %arg1: i32) -> (i32, i32, i32, i32, i32) {
    %c0_i32 = arith.constant 0 : i32
    %c0_i32_0 = arith.constant 0 : i32
    %c0_i32_1 = arith.constant 0 : i32
    %c0_i32_2 = arith.constant 0 : i32
    return %arg0, %arg1, %c0_i32, %c0_i32_0, %c0_i32_1 : i32, i32, i32, i32, i32
  }
  func.func @transform_7(%arg0: i32, %arg1: i32) -> (i32, i32, i32, i32) {
    %c0_i32 = arith.constant 0 : i32
    %c0_i32_0 = arith.constant 0 : i32
    %c0_i32_1 = arith.constant 0 : i32
    return %arg0, %arg1, %c0_i32, %c0_i32_0 : i32, i32, i32, i32
  }
  func.func @transform_8(%arg0: i32, %arg1: i32) -> (i32, i32, i32, i32) {
    %c0_i32 = arith.constant 0 : i32
    %c0_i32_0 = arith.constant 0 : i32
    %c0_i32_1 = arith.constant 0 : i32
    return %arg0, %arg1, %c0_i32, %c0_i32_0 : i32, i32, i32, i32
  }
}

module attributes {stable_mosaic.version = 11 : i64} {
  func.func @_final_kernel(%arg0: i32, %arg1: memref<1024x128xbf16, #tpu.memory_space<vmem>>, %arg2: memref<1x128xf32, #tpu.memory_space<vmem>>, %arg3: memref<1x128xf32, #tpu.memory_space<vmem>>, %arg4: memref<1024x128xbf16, #tpu.memory_space<vmem>>, %arg5: memref<1x128xf32, #tpu.memory_space<vmem>>, %arg6: memref<1x128xf32, #tpu.memory_space<vmem>>, %arg7: memref<1024x16xf32, #tpu.memory_space<vmem>>) attributes {dimension_semantics = [#tpu.dimension_semantics<parallel>], iteration_bounds = array<i64: 1>, scalar_prefetch = 0 : i64, scratch_operands = 0 : i64, tpu.core_type = #tpu.core_type<tc>, window_params = [{transform_indices = @transform_0, window_bounds = array<i64: 1024, 128>}, {pipeline_mode = #tpu.pipeline_mode<synchronous>, transform_indices = @transform_1, window_bounds = array<i64: 1, 128>}, {pipeline_mode = #tpu.pipeline_mode<synchronous>, transform_indices = @transform_2, window_bounds = array<i64: 1, 128>}, {transform_indices = @transform_3, window_bounds = array<i64: 1024, 128>}, {pipeline_mode = #tpu.pipeline_mode<synchronous>, transform_indices = @transform_4, window_bounds = array<i64: 1, 128>}, {pipeline_mode = #tpu.pipeline_mode<synchronous>, transform_indices = @transform_5, window_bounds = array<i64: 1, 128>}, {transform_indices = @transform_6, window_bounds = array<i64: 1024, 16>}]} {
    %c0 = arith.constant 0 : index
    %c0_0 = arith.constant 0 : index
    %0 = vector.load %arg1[%c0, %c0_0] : memref<1024x128xbf16, #tpu.memory_space<vmem>>, vector<1024x128xbf16>
    %1 = arith.extf %0 : vector<1024x128xbf16> to vector<1024x128xf32>
    %c0_1 = arith.constant 0 : index
    %c0_2 = arith.constant 0 : index
    %2 = vector.load %arg2[%c0_1, %c0_2] : memref<1x128xf32, #tpu.memory_space<vmem>>, vector<1x128xf32>
    %3 = vector.broadcast %2 : vector<1x128xf32> to vector<1024x128xf32>
    %4 = arith.mulf %1, %3 : vector<1024x128xf32>
    %c0_3 = arith.constant 0 : index
    %c0_4 = arith.constant 0 : index
    %5 = vector.load %arg3[%c0_3, %c0_4] : memref<1x128xf32, #tpu.memory_space<vmem>>, vector<1x128xf32>
    %6 = vector.broadcast %5 : vector<1x128xf32> to vector<1024x128xf32>
    %7 = arith.addf %4, %6 : vector<1024x128xf32>
    %c0_5 = arith.constant 0 : index
    %c0_6 = arith.constant 0 : index
    %8 = vector.load %arg4[%c0_5, %c0_6] : memref<1024x128xbf16, #tpu.memory_space<vmem>>, vector<1024x128xbf16>
    %9 = arith.extf %8 : vector<1024x128xbf16> to vector<1024x128xf32>
    %c0_7 = arith.constant 0 : index
    %c0_8 = arith.constant 0 : index
    %10 = vector.load %arg5[%c0_7, %c0_8] : memref<1x128xf32, #tpu.memory_space<vmem>>, vector<1x128xf32>
    %11 = vector.broadcast %10 : vector<1x128xf32> to vector<1024x128xf32>
    %12 = arith.mulf %9, %11 : vector<1024x128xf32>
    %c0_9 = arith.constant 0 : index
    %c0_10 = arith.constant 0 : index
    %13 = vector.load %arg6[%c0_9, %c0_10] : memref<1x128xf32, #tpu.memory_space<vmem>>, vector<1x128xf32>
    %14 = vector.broadcast %13 : vector<1x128xf32> to vector<1024x128xf32>
    %15 = arith.addf %12, %14 : vector<1024x128xf32>
    %16 = arith.addf %7, %15 : vector<1024x128xf32>
    %cst = arith.constant 0.000000e+00 : f32
    %17 = vector.broadcast %cst : f32 to vector<1024x128xf32>
    %18 = arith.maximumf %16, %17 : vector<1024x128xf32>
    %19 = vector.extract_strided_slice %18 {offsets = [0, 0], sizes = [1024, 16], strides = [1, 1]} : vector<1024x128xf32> to vector<1024x16xf32>
    %c0_11 = arith.constant 0 : index
    %c0_12 = arith.constant 0 : index
    %20 = vector.load %arg7[%c0_11, %c0_12] : memref<1024x16xf32, #tpu.memory_space<vmem>>, vector<1024x16xf32>
    tpu.vector_store %arg7[%c0_11, %c0_12], %19 {strides = array<i32>} : memref<1024x16xf32, #tpu.memory_space<vmem>>, vector<1024x16xf32>,
    return
  }
  func.func @transform_0(%arg0: i32) -> (i32, i32) {
    %c0_i32 = arith.constant 0 : i32
    %c0_i32_0 = arith.constant 0 : i32
    return %arg0, %c0_i32 : i32, i32
  }
  func.func @transform_1(%arg0: i32) -> (i32, i32) {
    %c0_i32 = arith.constant 0 : i32
    %c0_i32_0 = arith.constant 0 : i32
    %c0_i32_1 = arith.constant 0 : i32
    return %c0_i32, %c0_i32_0 : i32, i32
  }
  func.func @transform_2(%arg0: i32) -> (i32, i32) {
    %c0_i32 = arith.constant 0 : i32
    %c0_i32_0 = arith.constant 0 : i32
    %c0_i32_1 = arith.constant 0 : i32
    return %c0_i32, %c0_i32_0 : i32, i32
  }
  func.func @transform_3(%arg0: i32) -> (i32, i32) {
    %c0_i32 = arith.constant 0 : i32
    %c0_i32_0 = arith.constant 0 : i32
    return %arg0, %c0_i32 : i32, i32
  }
  func.func @transform_4(%arg0: i32) -> (i32, i32) {
    %c0_i32 = arith.constant 0 : i32
    %c0_i32_0 = arith.constant 0 : i32
    %c0_i32_1 = arith.constant 0 : i32
    return %c0_i32, %c0_i32_0 : i32, i32
  }
  func.func @transform_5(%arg0: i32) -> (i32, i32) {
    %c0_i32 = arith.constant 0 : i32
    %c0_i32_0 = arith.constant 0 : i32
    %c0_i32_1 = arith.constant 0 : i32
    return %c0_i32, %c0_i32_0 : i32, i32
  }
  func.func @transform_6(%arg0: i32) -> (i32, i32) {
    %c0_i32 = arith.constant 0 : i32
    %c0_i32_0 = arith.constant 0 : i32
    return %arg0, %c0_i32 : i32, i32
  }
}

</mosaic_0001>

<llo_original>
// kernel: bottleneck_block.6
$region0: #{bottleneck_block.6}
  #allocation0 [shape = 'u32[]', space=smem, size = 0x4, offset = 0x4, fixed_abs, tag = 'smem constant byte address 0x4 - core index']
  #allocation1 [shape = 'u32[144,128]{1,0:T(1,128)}', space=vmem, size = 0x12000, scoped, tag = 'internal scratch']
  %s0 = inlined_call_operand.vmem [shape: bf16[1024,128], index: 0, kind: input, shape index: {}]
  %s1 = inlined_call_operand.vmem [shape: f32[1,128], index: 1, kind: input, shape index: {}]
  %s2 = inlined_call_operand.vmem [shape: f32[1,128], index: 2, kind: input, shape index: {}]
  %s3 = inlined_call_operand.vmem [shape: bf16[128,128], index: 3, kind: input, shape index: {}]
  %s4 = inlined_call_operand.vmem [shape: bf16[1024,128], index: 4, kind: output, shape index: {0}]
  %s5 = inlined_call_operand.vmem [shape: f32[2,1,128], index: 5, kind: output, shape index: {1}]
  %s6 = inlined_call_operand.vmem [shape: f32[2,1,128], index: 6, kind: output, shape index: {2}]
  %7 = xla_tuple %s4, %s5, %s6
  %s8 = sld [smem:[#allocation0]]
  $region65: #{bottleneck_block.6} parent=0
    _
  %s10 = ssub.s32 1, %s8
  %s11 = scalar_select 0, %s10, %s8
  loop: start=0, step=1, limit=4
  $region2: #{bottleneck_block.6} parent=0 // loop_pre_header
    _
  $region3: #{bottleneck_block.6} parent=0 // loop_header
    %s13 = sphi 0, %s17
    %p14 = scmp.ge.s32.totalorder %s13, 4
    %s23 = sphi 0, %s25
    %s26 = sphi 0, %s23
    %s27 = sphi 0, %s26
    %s43 = sphi 0, %s27
    %s47 = sphi 0, %s47
    %s49 = sphi 0, %s47
    %s50 = sphi 0, %s49
    %s64 = sphi 0, %s50
    %s68 = sphi 0, %s68
    %s70 = sphi 0, %s68
    %s71 = sphi 0, %s70
    %s85 = sphi 0, %s71
    %s89 = sphi 0, %s89
    %s91 = sphi 0, %s89
    %s92 = sphi 0, %s91
    %s106 = sphi 0, %s92
    %s112 = sphi 0, %s114
    %s115 = sphi 0, %s112
    %s116 = sphi 0, %s115
    %s132 = sphi 0, %s116
    %s138 = sphi 0, %s140
    %s141 = sphi 0, %s138
    %s142 = sphi 0, %s141
    %s158 = sphi 0, %s142
    %s164 = sphi 0, %s166
    %s167 = sphi 0, %s164
    %s168 = sphi 0, %s167
    %s184 = sphi 0, %s168
  $region4: #{bottleneck_block.6} parent=0 // loop_header_branch
    %16 = sbr.rel (%p14) target = $region8
  $region5: #{bottleneck_block.6} parent=0 // loop_body
    %s18 = ssub.s32 %s13, 1
    %s19 = ssub.s32 %s13, 2
    %s20 = sadd.s32 %s13, 1
    %s21 = ssub.s32 %s13, %s20
    %p22 = scmp.eq.s32.totalorder %s21, 0
    %s24 = sadd.s32 %s23, 1
    %s25 = scalar_select %p22, %s23, %s24
    %p28 = pneg %p22
    %p29 = scmp.eq.s32.totalorder %s13, 1
    %p30 = por %p28, %p29
    %p31 = scmp.ne.s32.totalorder %s23, %s26
    %p32 = scmp.eq.s32.totalorder %s13, 0
    %p33 = por %p31, %p32
    %p34 = scmp.ne.s32.totalorder %s23, %s26
    %p35 = scmp.eq.s32.totalorder %s18, 1
    %p36 = por %p34, %p35
    %p37 = scmp.ne.s32.totalorder %s26, %s27
    %p38 = scmp.eq.s32.totalorder %s18, 0
    %p39 = por %p37, %p38
    %p40 = scmp.ne.s32.totalorder %s26, %s27
    %p41 = scmp.eq.s32.totalorder %s19, 1
    %p42 = por %p40, %p41
    %p44 = scmp.ne.s32.totalorder %s27, %s43
    %p45 = scmp.eq.s32.totalorder %s19, 0
    %p46 = por %p44, %p45
    %s48 = sadd.s32 %s47, 1
    %p51 = scmp.eq.s32.totalorder %s13, 1
    %p52 = scmp.ne.s32.totalorder %s47, %s49
    %p53 = scmp.eq.s32.totalorder %s13, 0
    %p54 = por %p52, %p53
    %p55 = scmp.ne.s32.totalorder %s47, %s49
    %p56 = scmp.eq.s32.totalorder %s18, 1
    %p57 = por %p55, %p56
    %p58 = scmp.ne.s32.totalorder %s49, %s50
    %p59 = scmp.eq.s32.totalorder %s18, 0
    %p60 = por %p58, %p59
    %p61 = scmp.ne.s32.totalorder %s49, %s50
    %p62 = scmp.eq.s32.totalorder %s19, 1
    %p63 = por %p61, %p62
    %p65 = scmp.ne.s32.totalorder %s50, %s64
    %p66 = scmp.eq.s32.totalorder %s19, 0
    %p67 = por %p65, %p66
    %s69 = sadd.s32 %s68, 1
    %p72 = scmp.eq.s32.totalorder %s13, 1
    %p73 = scmp.ne.s32.totalorder %s68, %s70
    %p74 = scmp.eq.s32.totalorder %s13, 0
    %p75 = por %p73, %p74
    %p76 = scmp.ne.s32.totalorder %s68, %s70
    %p77 = scmp.eq.s32.totalorder %s18, 1
    %p78 = por %p76, %p77
    %p79 = scmp.ne.s32.totalorder %s70, %s71
    %p80 = scmp.eq.s32.totalorder %s18, 0
    %p81 = por %p79, %p80
    %p82 = scmp.ne.s32.totalorder %s70, %s71
    %p83 = scmp.eq.s32.totalorder %s19, 1
    %p84 = por %p82, %p83
    %p86 = scmp.ne.s32.totalorder %s71, %s85
    %p87 = scmp.eq.s32.totalorder %s19, 0
    %p88 = por %p86, %p87
    %s90 = sadd.s32 %s89, 1
    %p93 = scmp.eq.s32.totalorder %s13, 1
    %p94 = scmp.ne.s32.totalorder %s89, %s91
    %p95 = scmp.eq.s32.totalorder %s13, 0
    %p96 = por %p94, %p95
    %p97 = scmp.ne.s32.totalorder %s89, %s91
    %p98 = scmp.eq.s32.totalorder %s18, 1
    %p99 = por %p97, %p98
    %p100 = scmp.ne.s32.totalorder %s91, %s92
    %p101 = scmp.eq.s32.totalorder %s18, 0
    %p102 = por %p100, %p101
    %p103 = scmp.ne.s32.totalorder %s91, %s92
    %p104 = scmp.eq.s32.totalorder %s19, 1
    %p105 = por %p103, %p104
    %p107 = scmp.ne.s32.totalorder %s92, %s106
    %p108 = scmp.eq.s32.totalorder %s19, 0
    %p109 = por %p107, %p108
    %s110 = ssub.s32 %s13, %s20
    %p111 = scmp.eq.s32.totalorder %s110, 0
    %s113 = sadd.s32 %s112, 1
    %s114 = scalar_select %p111, %s112, %s113
    %p117 = pneg %p111
    %p118 = scmp.eq.s32.totalorder %s13, 1
    %p119 = por %p117, %p118
    %p120 = scmp.ne.s32.totalorder %s112, %s115
    %p121 = scmp.eq.s32.totalorder %s13, 0
    %p122 = por %p120, %p121
    %p123 = scmp.ne.s32.totalorder %s112, %s115
    %p124 = scmp.eq.s32.totalorder %s18, 1
    %p125 = por %p123, %p124
    %p126 = scmp.ne.s32.totalorder %s115, %s116
    %p127 = scmp.eq.s32.totalorder %s18, 0
    %p128 = por %p126, %p127
    %p129 = scmp.ne.s32.totalorder %s115, %s116
    %p130 = scmp.eq.s32.totalorder %s19, 1
    %p131 = por %p129, %p130
    %p133 = scmp.ne.s32.totalorder %s116, %s132
    %p134 = scmp.eq.s32.totalorder %s19, 0
    %p135 = por %p133, %p134
    %s136 = ssub.s32 %s13, %s20
    %p137 = scmp.eq.s32.totalorder %s136, 0
    %s139 = sadd.s32 %s138, 1
    %s140 = scalar_select %p137, %s138, %s139
    %p143 = pneg %p137
    %p144 = scmp.eq.s32.totalorder %s13, 1
    %p145 = por %p143, %p144
    %p146 = scmp.ne.s32.totalorder %s138, %s141
    %p147 = scmp.eq.s32.totalorder %s13, 0
    %p148 = por %p146, %p147
    %p149 = scmp.ne.s32.totalorder %s138, %s141
    %p150 = scmp.eq.s32.totalorder %s18, 1
    %p151 = por %p149, %p150
    %p152 = scmp.ne.s32.totalorder %s141, %s142
    %p153 = scmp.eq.s32.totalorder %s18, 0
    %p154 = por %p152, %p153
    %p155 = scmp.ne.s32.totalorder %s141, %s142
    %p156 = scmp.eq.s32.totalorder %s19, 1
    %p157 = por %p155, %p156
    %p159 = scmp.ne.s32.totalorder %s142, %s158
    %p160 = scmp.eq.s32.totalorder %s19, 0
    %p161 = por %p159, %p160
    %s162 = ssub.s32 %s13, %s20
    %p163 = scmp.eq.s32.totalorder %s162, 0
    %s165 = sadd.s32 %s164, 1
    %s166 = scalar_select %p163, %s164, %s165
    %p169 = pneg %p163
    %p170 = scmp.eq.s32.totalorder %s13, 1
    %p171 = por %p169, %p170
    %p172 = scmp.ne.s32.totalorder %s164, %s167
    %p173 = scmp.eq.s32.totalorder %s13, 0
    %p174 = por %p172, %p173
    %p175 = scmp.ne.s32.totalorder %s164, %s167
    %p176 = scmp.eq.s32.totalorder %s18, 1
    %p177 = por %p175, %p176
    %p178 = scmp.ne.s32.totalorder %s167, %s168
    %p179 = scmp.eq.s32.totalorder %s18, 0
    %p180 = por %p178, %p179
    %p181 = scmp.ne.s32.totalorder %s167, %s168
    %p182 = scmp.eq.s32.totalorder %s19, 1
    %p183 = por %p181, %p182
    %p185 = scmp.ne.s32.totalorder %s168, %s184
    %p186 = scmp.eq.s32.totalorder %s19, 0
    %p187 = por %p185, %p186
    %p188 = scmp.le.s32.totalorder 1, %s13
    %p189 = scmp.lt.s32.totalorder %s13, 3
    %p190 = pnand %p188, %p189
    %p191 = pneg %p190
    // Predicated region
    $region9: #{bottleneck_block.6} parent=5 // pred_check
      _
    $region10: #{bottleneck_block.6} parent=5 // pred_check_branch
      %193 = sbr.rel (%p190) target = $region12
    $region11: #{bottleneck_block.6} parent=5 // pred_region
      %s194 = ssub.s32 %s13, 1
      // Predicated region
      $region13: #{bottleneck_block.6} parent=11 // pred_check
        %p195 = pneg %p60
      $region14: #{bottleneck_block.6} parent=11 // pred_check_branch
        %197 = sbr.rel (%p195) target = $region16
      $region15: #{bottleneck_block.6} parent=11 // pred_region
        _
      $region16: #{bottleneck_block.6} parent=11 // pred_fallthru
        _
      // Predicated region
      $region17: #{bottleneck_block.6} parent=11 // pred_check
        %p198 = pneg %p81
      $region18: #{bottleneck_block.6} parent=11 // pred_check_branch
        %200 = sbr.rel (%p198) target = $region20
      $region19: #{bottleneck_block.6} parent=11 // pred_region
        _
      $region20: #{bottleneck_block.6} parent=11 // pred_fallthru
        _
      // Predicated region
      $region21: #{bottleneck_block.6} parent=11 // pred_check
        %p201 = pneg %p102
      $region22: #{bottleneck_block.6} parent=11 // pred_check_branch
        %203 = sbr.rel (%p201) target = $region24
      $region23: #{bottleneck_block.6} parent=11 // pred_region
        _
      $region24: #{bottleneck_block.6} parent=11 // pred_fallthru
        _
    $region12: #{bottleneck_block.6} parent=5 // pred_fallthru
      _
    %p204 = scmp.lt.s32.totalorder %s13, 2
    // Predicated region
    $region25: #{bottleneck_block.6} parent=5 // pred_check
      %p205 = pneg %p204
    $region26: #{bottleneck_block.6} parent=5 // pred_check_branch
      %207 = sbr.rel (%p205) target = $region28
    $region27: #{bottleneck_block.6} parent=5 // pred_region
      // Predicated region
      $region29: #{bottleneck_block.6} parent=27 // pred_check
        %p208 = pneg %p33
      $region30: #{bottleneck_block.6} parent=27 // pred_check_branch
        %210 = sbr.rel (%p208) target = $region32
      $region31: #{bottleneck_block.6} parent=27 // pred_region
        %s211 = smul.u32 64, %s13
        %p212 = scmp.lt.s32.totalorder %s211, 127
        %s213 = scalar_select %p212, %s211, 127
        %s214 = smul.addr %s213, 4
        %s215 = scalar_lea.vmem %s0, %s214
        %s216 = smul.u32 64, %s13
      $region32: #{bottleneck_block.6} parent=27 // pred_fallthru
        _
    $region28: #{bottleneck_block.6} parent=5 // pred_fallthru
      _
    %p217 = scmp.le.s32.totalorder 1, %s13
    %p218 = scmp.lt.s32.totalorder %s13, 3
    %p219 = pnand %p217, %p218
    %p220 = pneg %p219
    // Predicated region
    $region33: #{bottleneck_block.6} parent=5 // pred_check
      _
    $region34: #{bottleneck_block.6} parent=5 // pred_check_branch
      %222 = sbr.rel (%p219) target = $region36
    $region35: #{bottleneck_block.6} parent=5 // pred_region
      %s223 = ssub.s32 %s13, 1
      %s224 = smul.u32 64, %s18
      %p225 = scmp.lt.s32.totalorder %s224, 127
      %s226 = scalar_select %p225, %s224, 127
      %s227 = smul.addr %s226, 4
      %s228 = scalar_lea.vmem %s0, %s227
      %p229 = pneg %p39
      %p230 = pneg %p36
      %p231 = pneg %p60
      %p232 = pneg %p57
      %p233 = pneg %p81
      %p234 = pneg %p78
      %p235 = pneg %p102
      %p236 = pneg %p99
      %p237 = pneg %p128
      %p238 = pneg %p125
      %s239 = smul.u32 64, %s18
      %p240 = scmp.lt.s32.totalorder %s239, 127
      %s241 = scalar_select %p240, %s239, 127
      %s242 = smul.addr %s241, 4
      %s243 = scalar_lea.vmem %s4, %s242
      %p244 = pneg %p154
      %p245 = pneg %p151
      %p246 = scmp.lt.s32.totalorder %s18, 1
      %s247 = scalar_select %p246, %s18, 1
      %s248 = scalar_lea.vmem %s5, %s247
      %p249 = pneg %p180
      %p250 = pneg %p177
      %p251 = scmp.lt.s32.totalorder %s18, 1
      %s252 = scalar_select %p251, %s18, 1
      %s253 = scalar_lea.vmem %s6, %s252
      %s254 = smul.u32 64, %s18
      %p255 = scmp.lt.s32.totalorder %s254, 127
      %s256 = scalar_select %p255, %s254, 127
      %s257 = smul.addr %s256, 4
      %s258 = scalar_lea.vmem %s0, %s257
      %s259 = smul.u32 64, %s18
      %s260 = smul.u32 64, %s18
      %p261 = scmp.lt.s32.totalorder %s260, 127
      %s262 = scalar_select %p261, %s260, 127
      %s263 = smul.addr %s262, 4
      %s264 = scalar_lea.vmem %s4, %s263
      %s265 = smul.u32 64, %s18
      %p266 = scmp.lt.s32.totalorder %s18, 1
      %s267 = scalar_select %p266, %s18, 1
      %s268 = scalar_lea.vmem %s5, %s267
      %p269 = scmp.lt.s32.totalorder %s18, 1
      %s270 = scalar_select %p269, %s18, 1
      %s271 = scalar_lea.vmem %s6, %s270
      %v273 = vld [vmem:[%s258] sm:$0xf]
      %v274 = vld [vmem:[%s258 + $0x4] sm:$0xf]
      %v275 = vld [vmem:[%s258 + $0x8] sm:$0xf]
      %v276 = vld [vmem:[%s258 + $0xc] sm:$0xf]
      %v277 = vld [vmem:[%s258 + $0x10] sm:$0xf]
      %v278 = vld [vmem:[%s258 + $0x14] sm:$0xf]
      %v279 = vld [vmem:[%s258 + $0x18] sm:$0xf]
      %v280 = vld [vmem:[%s258 + $0x1c] sm:$0xf]
      %v281 = vld [vmem:[%s258 + $0x20] sm:$0xf]
      %v282 = vld [vmem:[%s258 + $0x24] sm:$0xf]
      %v283 = vld [vmem:[%s258 + $0x28] sm:$0xf]
      %v284 = vld [vmem:[%s258 + $0x2c] sm:$0xf]
      %v285 = vld [vmem:[%s258 + $0x30] sm:$0xf]
      %v286 = vld [vmem:[%s258 + $0x34] sm:$0xf]
      %v287 = vld [vmem:[%s258 + $0x38] sm:$0xf]
      %v288 = vld [vmem:[%s258 + $0x3c] sm:$0xf]
      %v289 = vld [vmem:[%s258 + $0x40] sm:$0xf]
      %v290 = vld [vmem:[%s258 + $0x44] sm:$0xf]
      %v291 = vld [vmem:[%s258 + $0x48] sm:$0xf]
      %v292 = vld [vmem:[%s258 + $0x4c] sm:$0xf]
      %v293 = vld [vmem:[%s258 + $0x50] sm:$0xf]
      %v294 = vld [vmem:[%s258 + $0x54] sm:$0xf]
      %v295 = vld [vmem:[%s258 + $0x58] sm:$0xf]
      %v296 = vld [vmem:[%s258 + $0x5c] sm:$0xf]
      %v297 = vld [vmem:[%s258 + $0x60] sm:$0xf]
      %v298 = vld [vmem:[%s258 + $0x64] sm:$0xf]
      %v299 = vld [vmem:[%s258 + $0x68] sm:$0xf]
      %v300 = vld [vmem:[%s258 + $0x6c] sm:$0xf]
      %v301 = vld [vmem:[%s258 + $0x70] sm:$0xf]
      %v302 = vld [vmem:[%s258 + $0x74] sm:$0xf]
      %v303 = vld [vmem:[%s258 + $0x78] sm:$0xf]
      %v304 = vld [vmem:[%s258 + $0x7c] sm:$0xf]
      %v305 = vld [vmem:[%s258 + $0x80] sm:$0xf]
      %v306 = vld [vmem:[%s258 + $0x84] sm:$0xf]
      %v307 = vld [vmem:[%s258 + $0x88] sm:$0xf]
      %v308 = vld [vmem:[%s258 + $0x8c] sm:$0xf]
      %v309 = vld [vmem:[%s258 + $0x90] sm:$0xf]
      %v310 = vld [vmem:[%s258 + $0x94] sm:$0xf]
      %v311 = vld [vmem:[%s258 + $0x98] sm:$0xf]
      %v312 = vld [vmem:[%s258 + $0x9c] sm:$0xf]
      %v313 = vld [vmem:[%s258 + $0xa0] sm:$0xf]
      %v314 = vld [vmem:[%s258 + $0xa4] sm:$0xf]
      %v315 = vld [vmem:[%s258 + $0xa8] sm:$0xf]
      %v316 = vld [vmem:[%s258 + $0xac] sm:$0xf]
      %v317 = vld [vmem:[%s258 + $0xb0] sm:$0xf]
      %v318 = vld [vmem:[%s258 + $0xb4] sm:$0xf]
      %v319 = vld [vmem:[%s258 + $0xb8] sm:$0xf]
      %v320 = vld [vmem:[%s258 + $0xbc] sm:$0xf]
      %v321 = vld [vmem:[%s258 + $0xc0] sm:$0xf]
      %v322 = vld [vmem:[%s258 + $0xc4] sm:$0xf]
      %v323 = vld [vmem:[%s258 + $0xc8] sm:$0xf]
      %v324 = vld [vmem:[%s258 + $0xcc] sm:$0xf]
      %v325 = vld [vmem:[%s258 + $0xd0] sm:$0xf]
      %v326 = vld [vmem:[%s258 + $0xd4] sm:$0xf]
      %v327 = vld [vmem:[%s258 + $0xd8] sm:$0xf]
      %v328 = vld [vmem:[%s258 + $0xdc] sm:$0xf]
      %v329 = vld [vmem:[%s258 + $0xe0] sm:$0xf]
      %v330 = vld [vmem:[%s258 + $0xe4] sm:$0xf]
      %v331 = vld [vmem:[%s258 + $0xe8] sm:$0xf]
      %v332 = vld [vmem:[%s258 + $0xec] sm:$0xf]
      %v333 = vld [vmem:[%s258 + $0xf0] sm:$0xf]
      %v334 = vld [vmem:[%s258 + $0xf4] sm:$0xf]
      %v335 = vld [vmem:[%s258 + $0xf8] sm:$0xf]
      %v336 = vld [vmem:[%s258 + $0xfc] sm:$0xf]
      %v337 = vunpack.c.l.bf16 %v273
      %v338 = vunpack.c.l.bf16 %v274
      %v339 = vunpack.c.l.bf16 %v275
      %v340 = vunpack.c.l.bf16 %v276
      %v341 = vunpack.c.l.bf16 %v277
      %v342 = vunpack.c.l.bf16 %v278
      %v343 = vunpack.c.l.bf16 %v279
      %v344 = vunpack.c.l.bf16 %v280
      %v345 = vunpack.c.l.bf16 %v281
      %v346 = vunpack.c.l.bf16 %v282
      %v347 = vunpack.c.l.bf16 %v283
      %v348 = vunpack.c.l.bf16 %v284
      %v349 = vunpack.c.l.bf16 %v285
      %v350 = vunpack.c.l.bf16 %v286
      %v351 = vunpack.c.l.bf16 %v287
      %v352 = vunpack.c.l.bf16 %v288
      %v353 = vunpack.c.l.bf16 %v289
      %v354 = vunpack.c.l.bf16 %v290
      %v355 = vunpack.c.l.bf16 %v291
      %v356 = vunpack.c.l.bf16 %v292
      %v357 = vunpack.c.l.bf16 %v293
      %v358 = vunpack.c.l.bf16 %v294
      %v359 = vunpack.c.l.bf16 %v295
      %v360 = vunpack.c.l.bf16 %v296
      %v361 = vunpack.c.l.bf16 %v297
      %v362 = vunpack.c.l.bf16 %v298
      %v363 = vunpack.c.l.bf16 %v299
      %v364 = vunpack.c.l.bf16 %v300
      %v365 = vunpack.c.l.bf16 %v301
      %v366 = vunpack.c.l.bf16 %v302
      %v367 = vunpack.c.l.bf16 %v303
      %v368 = vunpack.c.l.bf16 %v304
      %v369 = vunpack.c.l.bf16 %v305
      %v370 = vunpack.c.l.bf16 %v306
      %v371 = vunpack.c.l.bf16 %v307
      %v372 = vunpack.c.l.bf16 %v308
      %v373 = vunpack.c.l.bf16 %v309
      %v374 = vunpack.c.l.bf16 %v310
      %v375 = vunpack.c.l.bf16 %v311
      %v376 = vunpack.c.l.bf16 %v312
      %v377 = vunpack.c.l.bf16 %v313
      %v378 = vunpack.c.l.bf16 %v314
      %v379 = vunpack.c.l.bf16 %v315
      %v380 = vunpack.c.l.bf16 %v316
      %v381 = vunpack.c.l.bf16 %v317
      %v382 = vunpack.c.l.bf16 %v318
      %v383 = vunpack.c.l.bf16 %v319
      %v384 = vunpack.c.l.bf16 %v320
      %v385 = vunpack.c.l.bf16 %v321
      %v386 = vunpack.c.l.bf16 %v322
      %v387 = vunpack.c.l.bf16 %v323
      %v388 = vunpack.c.l.bf16 %v324
      %v389 = vunpack.c.l.bf16 %v325
      %v390 = vunpack.c.l.bf16 %v326
      %v391 = vunpack.c.l.bf16 %v327
      %v392 = vunpack.c.l.bf16 %v328
      %v393 = vunpack.c.l.bf16 %v329
      %v394 = vunpack.c.l.bf16 %v330
      %v395 = vunpack.c.l.bf16 %v331
      %v396 = vunpack.c.l.bf16 %v332
      %v397 = vunpack.c.l.bf16 %v333
      %v398 = vunpack.c.l.bf16 %v334
      %v399 = vunpack.c.l.bf16 %v335
      %v400 = vunpack.c.l.bf16 %v336
      %v401 = vld [vmem:[%s1] sm:$0x1]
      %v403 = vlaneseq
      %v404 = vshrl.u32 %v403, 7
      %v405 = vsub.s32 0, %v404
      %v406 = vrot.slane %v401, %v405
      %v408 = vmul.f32 %v337, %v406
      %v409 = vmul.f32 %v338, %v406
      %v410 = vmul.f32 %v339, %v406
      %v411 = vmul.f32 %v340, %v406
      %v412 = vmul.f32 %v341, %v406
      %v413 = vmul.f32 %v342, %v406
      %v414 = vmul.f32 %v343, %v406
      %v415 = vmul.f32 %v344, %v406
      %v416 = vmul.f32 %v345, %v406
      %v417 = vmul.f32 %v346, %v406
      %v418 = vmul.f32 %v347, %v406
      %v419 = vmul.f32 %v348, %v406
      %v420 = vmul.f32 %v349, %v406
      %v421 = vmul.f32 %v350, %v406
      %v422 = vmul.f32 %v351, %v406
      %v423 = vmul.f32 %v352, %v406
      %v424 = vmul.f32 %v353, %v406
      %v425 = vmul.f32 %v354, %v406
      %v426 = vmul.f32 %v355, %v406
      %v427 = vmul.f32 %v356, %v406
      %v428 = vmul.f32 %v357, %v406
      %v429 = vmul.f32 %v358, %v406
      %v430 = vmul.f32 %v359, %v406
      %v431 = vmul.f32 %v360, %v406
      %v432 = vmul.f32 %v361, %v406
      %v433 = vmul.f32 %v362, %v406
      %v434 = vmul.f32 %v363, %v406
      %v435 = vmul.f32 %v364, %v406
      %v436 = vmul.f32 %v365, %v406
      %v437 = vmul.f32 %v366, %v406
      %v438 = vmul.f32 %v367, %v406
      %v439 = vmul.f32 %v368, %v406
      %v440 = vmul.f32 %v369, %v406
      %v441 = vmul.f32 %v370, %v406
      %v442 = vmul.f32 %v371, %v406
      %v443 = vmul.f32 %v372, %v406
      %v444 = vmul.f32 %v373, %v406
      %v445 = vmul.f32 %v374, %v406
      %v446 = vmul.f32 %v375, %v406
      %v447 = vmul.f32 %v376, %v406
      %v448 = vmul.f32 %v377, %v406
      %v449 = vmul.f32 %v378, %v406
      %v450 = vmul.f32 %v379, %v406
      %v451 = vmul.f32 %v380, %v406
      %v452 = vmul.f32 %v381, %v406
      %v453 = vmul.f32 %v382, %v406
      %v454 = vmul.f32 %v383, %v406
      %v455 = vmul.f32 %v384, %v406
      %v456 = vmul.f32 %v385, %v406
      %v457 = vmul.f32 %v386, %v406
      %v458 = vmul.f32 %v387, %v406
      %v459 = vmul.f32 %v388, %v406
      %v460 = vmul.f32 %v389, %v406
      %v461 = vmul.f32 %v390, %v406
      %v462 = vmul.f32 %v391, %v406
      %v463 = vmul.f32 %v392, %v406
      %v464 = vmul.f32 %v393, %v406
      %v465 = vmul.f32 %v394, %v406
      %v466 = vmul.f32 %v395, %v406
      %v467 = vmul.f32 %v396, %v406
      %v468 = vmul.f32 %v397, %v406
      %v469 = vmul.f32 %v398, %v406
      %v470 = vmul.f32 %v399, %v406
      %v471 = vmul.f32 %v400, %v406
      %v472 = vld [vmem:[%s2] sm:$0x1]
      %v474 = vlaneseq
      %v475 = vshrl.u32 %v474, 7
      %v476 = vsub.s32 0, %v475
      %v477 = vrot.slane %v472, %v476
      %v479 = vadd.f32 %v408, %v477
      %v480 = vadd.f32 %v409, %v477
      %v481 = vadd.f32 %v410, %v477
      %v482 = vadd.f32 %v411, %v477
      %v483 = vadd.f32 %v412, %v477
      %v484 = vadd.f32 %v413, %v477
      %v485 = vadd.f32 %v414, %v477
      %v486 = vadd.f32 %v415, %v477
      %v487 = vadd.f32 %v416, %v477
      %v488 = vadd.f32 %v417, %v477
      %v489 = vadd.f32 %v418, %v477
      %v490 = vadd.f32 %v419, %v477
      %v491 = vadd.f32 %v420, %v477
      %v492 = vadd.f32 %v421, %v477
      %v493 = vadd.f32 %v422, %v477
      %v494 = vadd.f32 %v423, %v477
      %v495 = vadd.f32 %v424, %v477
      %v496 = vadd.f32 %v425, %v477
      %v497 = vadd.f32 %v426, %v477
      %v498 = vadd.f32 %v427, %v477
      %v499 = vadd.f32 %v428, %v477
      %v500 = vadd.f32 %v429, %v477
      %v501 = vadd.f32 %v430, %v477
      %v502 = vadd.f32 %v431, %v477
      %v503 = vadd.f32 %v432, %v477
      %v504 = vadd.f32 %v433, %v477
      %v505 = vadd.f32 %v434, %v477
      %v506 = vadd.f32 %v435, %v477
      %v507 = vadd.f32 %v436, %v477
      %v508 = vadd.f32 %v437, %v477
      %v509 = vadd.f32 %v438, %v477
      %v510 = vadd.f32 %v439, %v477
      %v511 = vadd.f32 %v440, %v477
      %v512 = vadd.f32 %v441, %v477
      %v513 = vadd.f32 %v442, %v477
      %v514 = vadd.f32 %v443, %v477
      %v515 = vadd.f32 %v444, %v477
      %v516 = vadd.f32 %v445, %v477
      %v517 = vadd.f32 %v446, %v477
      %v518 = vadd.f32 %v447, %v477
      %v519 = vadd.f32 %v448, %v477
      %v520 = vadd.f32 %v449, %v477
      %v521 = vadd.f32 %v450, %v477
      %v522 = vadd.f32 %v451, %v477
      %v523 = vadd.f32 %v452, %v477
      %v524 = vadd.f32 %v453, %v477
      %v525 = vadd.f32 %v454, %v477
      %v526 = vadd.f32 %v455, %v477
      %v527 = vadd.f32 %v456, %v477
      %v528 = vadd.f32 %v457, %v477
      %v529 = vadd.f32 %v458, %v477
      %v530 = vadd.f32 %v459, %v477
      %v531 = vadd.f32 %v460, %v477
      %v532 = vadd.f32 %v461, %v477
      %v533 = vadd.f32 %v462, %v477
      %v534 = vadd.f32 %v463, %v477
      %v535 = vadd.f32 %v464, %v477
      %v536 = vadd.f32 %v465, %v477
      %v537 = vadd.f32 %v466, %v477
      %v538 = vadd.f32 %v467, %v477
      %v539 = vadd.f32 %v468, %v477
      %v540 = vadd.f32 %v469, %v477
      %v541 = vadd.f32 %v470, %v477
      %v542 = vadd.f32 %v471, %v477
      %v543 = vmax.f32 %v479, 0.0
      %v544 = vmax.f32 %v480, 0.0
      %v545 = vmax.f32 %v481, 0.0
      %v546 = vmax.f32 %v482, 0.0
      %v547 = vmax.f32 %v483, 0.0
      %v548 = vmax.f32 %v484, 0.0
      %v549 = vmax.f32 %v485, 0.0
      %v550 = vmax.f32 %v486, 0.0
      %v551 = vmax.f32 %v487, 0.0
      %v552 = vmax.f32 %v488, 0.0
      %v553 = vmax.f32 %v489, 0.0
      %v554 = vmax.f32 %v490, 0.0
      %v555 = vmax.f32 %v491, 0.0
      %v556 = vmax.f32 %v492, 0.0
      %v557 = vmax.f32 %v493, 0.0
      %v558 = vmax.f32 %v494, 0.0
      %v559 = vmax.f32 %v495, 0.0
      %v560 = vmax.f32 %v496, 0.0
      %v561 = vmax.f32 %v497, 0.0
      %v562 = vmax.f32 %v498, 0.0
      %v563 = vmax.f32 %v499, 0.0
      %v564 = vmax.f32 %v500, 0.0
      %v565 = vmax.f32 %v501, 0.0
      %v566 = vmax.f32 %v502, 0.0
      %v567 = vmax.f32 %v503, 0.0
      %v568 = vmax.f32 %v504, 0.0
      %v569 = vmax.f32 %v505, 0.0
      %v570 = vmax.f32 %v506, 0.0
      %v571 = vmax.f32 %v507, 0.0
      %v572 = vmax.f32 %v508, 0.0
      %v573 = vmax.f32 %v509, 0.0
      %v574 = vmax.f32 %v510, 0.0
      %v575 = vmax.f32 %v511, 0.0
      %v576 = vmax.f32 %v512, 0.0
      %v577 = vmax.f32 %v513, 0.0
      %v578 = vmax.f32 %v514, 0.0
      %v579 = vmax.f32 %v515, 0.0
      %v580 = vmax.f32 %v516, 0.0
      %v581 = vmax.f32 %v517, 0.0
      %v582 = vmax.f32 %v518, 0.0
      %v583 = vmax.f32 %v519, 0.0
      %v584 = vmax.f32 %v520, 0.0
      %v585 = vmax.f32 %v521, 0.0
      %v586 = vmax.f32 %v522, 0.0
      %v587 = vmax.f32 %v523, 0.0
      %v588 = vmax.f32 %v524, 0.0
      %v589 = vmax.f32 %v525, 0.0
      %v590 = vmax.f32 %v526, 0.0
      %v591 = vmax.f32 %v527, 0.0
      %v592 = vmax.f32 %v528, 0.0
      %v593 = vmax.f32 %v529, 0.0
      %v594 = vmax.f32 %v530, 0.0
      %v595 = vmax.f32 %v531, 0.0
      %v596 = vmax.f32 %v532, 0.0
      %v597 = vmax.f32 %v533, 0.0
      %v598 = vmax.f32 %v534, 0.0
      %v599 = vmax.f32 %v535, 0.0
      %v600 = vmax.f32 %v536, 0.0
      %v601 = vmax.f32 %v537, 0.0
      %v602 = vmax.f32 %v538, 0.0
      %v603 = vmax.f32 %v539, 0.0
      %v604 = vmax.f32 %v540, 0.0
      %v605 = vmax.f32 %v541, 0.0
      %v606 = vmax.f32 %v542, 0.0
      %v607 = vpack.c.bf16 %v544, %v543
      %v608 = vpack.c.bf16 %v546, %v545
      %v609 = vpack.c.bf16 %v548, %v547
      %v610 = vpack.c.bf16 %v550, %v549
      %v611 = vpack.c.bf16 %v552, %v551
      %v612 = vpack.c.bf16 %v554, %v553
      %v613 = vpack.c.bf16 %v556, %v555
      %v614 = vpack.c.bf16 %v558, %v557
      %v615 = vpack.c.bf16 %v560, %v559
      %v616 = vpack.c.bf16 %v562, %v561
      %v617 = vpack.c.bf16 %v564, %v563
      %v618 = vpack.c.bf16 %v566, %v565
      %v619 = vpack.c.bf16 %v568, %v567
      %v620 = vpack.c.bf16 %v570, %v569
      %v621 = vpack.c.bf16 %v572, %v571
      %v622 = vpack.c.bf16 %v574, %v573
      %v623 = vpack.c.bf16 %v576, %v575
      %v624 = vpack.c.bf16 %v578, %v577
      %v625 = vpack.c.bf16 %v580, %v579
      %v626 = vpack.c.bf16 %v582, %v581
      %v627 = vpack.c.bf16 %v584, %v583
      %v628 = vpack.c.bf16 %v586, %v585
      %v629 = vpack.c.bf16 %v588, %v587
      %v630 = vpack.c.bf16 %v590, %v589
      %v631 = vpack.c.bf16 %v592, %v591
      %v632 = vpack.c.bf16 %v594, %v593
      %v633 = vpack.c.bf16 %v596, %v595
      %v634 = vpack.c.bf16 %v598, %v597
      %v635 = vpack.c.bf16 %v600, %v599
      %v636 = vpack.c.bf16 %v602, %v601
      %v637 = vpack.c.bf16 %v604, %v603
      %v638 = vpack.c.bf16 %v606, %v605
      %v639 = vld [vmem:[%s3] sm:$0xf]
      %v640 = vld [vmem:[%s3 + $0x4] sm:$0xf]
      %v641 = vld [vmem:[%s3 + $0x8] sm:$0xf]
      %v642 = vld [vmem:[%s3 + $0xc] sm:$0xf]
      %v643 = vld [vmem:[%s3 + $0x10] sm:$0xf]
      %v644 = vld [vmem:[%s3 + $0x14] sm:$0xf]
      %v645 = vld [vmem:[%s3 + $0x18] sm:$0xf]
      %v646 = vld [vmem:[%s3 + $0x1c] sm:$0xf]
      %v647 = vld [vmem:[%s3 + $0x20] sm:$0xf]
      %v648 = vld [vmem:[%s3 + $0x24] sm:$0xf]
      %v649 = vld [vmem:[%s3 + $0x28] sm:$0xf]
      %v650 = vld [vmem:[%s3 + $0x2c] sm:$0xf]
      %v651 = vld [vmem:[%s3 + $0x30] sm:$0xf]
      %v652 = vld [vmem:[%s3 + $0x34] sm:$0xf]
      %v653 = vld [vmem:[%s3 + $0x38] sm:$0xf]
      %v654 = vld [vmem:[%s3 + $0x3c] sm:$0xf]
      %v671 = vunpack.c.l.b16 %v639
      %v672 = vunpack.c.l.b16 %v640
      %v673 = vunpack.c.l.b16 %v641
      %v674 = vunpack.c.l.b16 %v642
      %v675 = vunpack.c.l.b16 %v643
      %v676 = vunpack.c.l.b16 %v644
      %v677 = vunpack.c.l.b16 %v645
      %v678 = vunpack.c.l.b16 %v646
      %v679 = vunpack.c.l.b16 %v647
      %v680 = vunpack.c.l.b16 %v648
      %v681 = vunpack.c.l.b16 %v649
      %v682 = vunpack.c.l.b16 %v650
      %v683 = vunpack.c.l.b16 %v651
      %v684 = vunpack.c.l.b16 %v652
      %v685 = vunpack.c.l.b16 %v653
      %v686 = vunpack.c.l.b16 %v654
      %v687 = vpack.c.b16 %v672, %v671
      %v688 = vpack.c.b16 %v674, %v673
      %v689 = vpack.c.b16 %v676, %v675
      %v690 = vpack.c.b16 %v678, %v677
      %v691 = vpack.c.b16 %v680, %v679
      %v692 = vpack.c.b16 %v682, %v681
      %v693 = vpack.c.b16 %v684, %v683
      %v694 = vpack.c.b16 %v686, %v685
      %703 = vmatprep.subr.bf16.mxu0 0
      %704 = vmatpush1.bf16.msra.mxu0 %v694
      %705 = vmatprep.subr.bf16.mxu0 0
      %706 = vmatpush1.bf16.msra.mxu0 %v693
      %707 = vmatprep.subr.bf16.mxu0 0
      %708 = vmatpush1.bf16.msra.mxu0 %v692
      %709 = vmatprep.subr.bf16.mxu0 0
      %710 = vmatpush1.bf16.msra.mxu0 %v691
      %711 = vmatprep.subr.bf16.mxu0 0
      %712 = vmatpush1.bf16.msra.mxu0 %v690
      %713 = vmatprep.subr.bf16.mxu0 0
      %714 = vmatpush1.bf16.msra.mxu0 %v689
      %715 = vmatprep.subr.bf16.mxu0 0
      %716 = vmatpush1.bf16.msra.mxu0 %v688
      %717 = vmatprep.subr.bf16.mxu0 0
      %718 = vmatpush1.bf16.msra.mxu0 %v687
      %719 = vmatprep.subr.bf16.mxu0 0
      %720 = vmatpush2.bf16.msra.mxu0 0
      %721 = vmatprep.subr.bf16.mxu0 0
      %722 = vmatpush2.bf16.msra.mxu0 0
      %723 = vmatprep.subr.bf16.mxu0 0
      %724 = vmatpush2.bf16.msra.mxu0 0
      %725 = vmatprep.subr.bf16.mxu0 0
      %726 = vmatpush2.bf16.msra.mxu0 0
      %727 = vmatprep.subr.bf16.mxu0 0
      %728 = vmatpush2.bf16.msra.mxu0 0
      %729 = vmatprep.subr.bf16.mxu0 0
      %730 = vmatpush2.bf16.msra.mxu0 0
      %731 = vmatprep.subr.bf16.mxu0 0
      %732 = vmatpush2.bf16.msra.mxu0 0
      %733 = vmatprep.subr.bf16.mxu0 0
      %734 = vmatpush2.bf16.msra.mxu0 0
      %735 = vmatprep.mubr.bf16.mxu0 0
      %736 = vmatmul.mubr.bf16.gmra.mxu0 %v607
      %v737 = vpop.f32.mrf.mxu0
      %v738 = vadd.f32 0.0, %v737
      %v739 = vpop.f32.mrf.mxu0
      %v740 = vpop.f32.mrf.mxu0
      %v741 = vadd.f32 0.0, %v740
      %v742 = vpop.f32.mrf.mxu0
      %743 = vmatprep.mubr.bf16.mxu0 0
      %744 = vmatmul.mubr.bf16.gmra.mxu0 %v608
      %v745 = vpop.f32.mrf.mxu0
      %v746 = vadd.f32 0.0, %v745
      %v747 = vpop.f32.mrf.mxu0
      %v748 = vpop.f32.mrf.mxu0
      %v749 = vadd.f32 0.0, %v748
      %v750 = vpop.f32.mrf.mxu0
      %751 = vmatprep.mubr.bf16.mxu0 0
      %752 = vmatmul.mubr.bf16.gmra.mxu0 %v609
      %v753 = vpop.f32.mrf.mxu0
      %v754 = vadd.f32 0.0, %v753
      %v755 = vpop.f32.mrf.mxu0
      %v756 = vpop.f32.mrf.mxu0
      %v757 = vadd.f32 0.0, %v756
      %v758 = vpop.f32.mrf.mxu0
      %759 = vmatprep.mubr.bf16.mxu0 0
      %760 = vmatmul.mubr.bf16.gmra.mxu0 %v610
      %v761 = vpop.f32.mrf.mxu0
      %v762 = vadd.f32 0.0, %v761
      %v763 = vpop.f32.mrf.mxu0
      %v764 = vpop.f32.mrf.mxu0
      %v765 = vadd.f32 0.0, %v764
      %v766 = vpop.f32.mrf.mxu0
      %767 = vmatprep.mubr.bf16.mxu0 0
      %768 = vmatmul.mubr.bf16.gmra.mxu0 %v611
      %v769 = vpop.f32.mrf.mxu0
      %v770 = vadd.f32 0.0, %v769
      %v771 = vpop.f32.mrf.mxu0
      %v772 = vpop.f32.mrf.mxu0
      %v773 = vadd.f32 0.0, %v772
      %v774 = vpop.f32.mrf.mxu0
      %775 = vmatprep.mubr.bf16.mxu0 0
      %776 = vmatmul.mubr.bf16.gmra.mxu0 %v612
      %v777 = vpop.f32.mrf.mxu0
      %v778 = vadd.f32 0.0, %v777
      %v779 = vpop.f32.mrf.mxu0
      %v780 = vpop.f32.mrf.mxu0
      %v781 = vadd.f32 0.0, %v780
      %v782 = vpop.f32.mrf.mxu0
      %783 = vmatprep.mubr.bf16.mxu0 0
      %784 = vmatmul.mubr.bf16.gmra.mxu0 %v613
      %v785 = vpop.f32.mrf.mxu0
      %v786 = vadd.f32 0.0, %v785
      %v787 = vpop.f32.mrf.mxu0
      %v788 = vpop.f32.mrf.mxu0
      %v789 = vadd.f32 0.0, %v788
      %v790 = vpop.f32.mrf.mxu0
      %791 = vmatprep.mubr.bf16.mxu0 0
      %792 = vmatmul.mubr.bf16.gmra.mxu0 %v614
      %v793 = vpop.f32.mrf.mxu0
      %v794 = vadd.f32 0.0, %v793
      %v795 = vpop.f32.mrf.mxu0
      %v796 = vpop.f32.mrf.mxu0
      %v797 = vadd.f32 0.0, %v796
      %v798 = vpop.f32.mrf.mxu0
      %799 = vmatprep.mubr.bf16.mxu0 0
      %800 = vmatmul.mubr.bf16.gmra.mxu0 %v615
      %v801 = vpop.f32.mrf.mxu0
      %v802 = vadd.f32 0.0, %v801
      %v803 = vpop.f32.mrf.mxu0
      %v804 = vpop.f32.mrf.mxu0
      %v805 = vadd.f32 0.0, %v804
      %v806 = vpop.f32.mrf.mxu0
      %807 = vmatprep.mubr.bf16.mxu0 0
      %808 = vmatmul.mubr.bf16.gmra.mxu0 %v616
      %v809 = vpop.f32.mrf.mxu0
      %v810 = vadd.f32 0.0, %v809
      %v811 = vpop.f32.mrf.mxu0
      %v812 = vpop.f32.mrf.mxu0
      %v813 = vadd.f32 0.0, %v812
      %v814 = vpop.f32.mrf.mxu0
      %815 = vmatprep.mubr.bf16.mxu0 0
      %816 = vmatmul.mubr.bf16.gmra.mxu0 %v617
      %v817 = vpop.f32.mrf.mxu0
      %v818 = vadd.f32 0.0, %v817
      %v819 = vpop.f32.mrf.mxu0
      %v820 = vpop.f32.mrf.mxu0
      %v821 = vadd.f32 0.0, %v820
      %v822 = vpop.f32.mrf.mxu0
      %823 = vmatprep.mubr.bf16.mxu0 0
      %824 = vmatmul.mubr.bf16.gmra.mxu0 %v618
      %v825 = vpop.f32.mrf.mxu0
      %v826 = vadd.f32 0.0, %v825
      %v827 = vpop.f32.mrf.mxu0
      %v828 = vpop.f32.mrf.mxu0
      %v829 = vadd.f32 0.0, %v828
      %v830 = vpop.f32.mrf.mxu0
      %831 = vmatprep.mubr.bf16.mxu0 0
      %832 = vmatmul.mubr.bf16.gmra.mxu0 %v619
      %v833 = vpop.f32.mrf.mxu0
      %v834 = vadd.f32 0.0, %v833
      %v835 = vpop.f32.mrf.mxu0
      %v836 = vpop.f32.mrf.mxu0
      %v837 = vadd.f32 0.0, %v836
      %v838 = vpop.f32.mrf.mxu0
      %839 = vmatprep.mubr.bf16.mxu0 0
      %840 = vmatmul.mubr.bf16.gmra.mxu0 %v620
      %v841 = vpop.f32.mrf.mxu0
      %v842 = vadd.f32 0.0, %v841
      %v843 = vpop.f32.mrf.mxu0
      %v844 = vpop.f32.mrf.mxu0
      %v845 = vadd.f32 0.0, %v844
      %v846 = vpop.f32.mrf.mxu0
      %847 = vmatprep.mubr.bf16.mxu0 0
      %848 = vmatmul.mubr.bf16.gmra.mxu0 %v621
      %v849 = vpop.f32.mrf.mxu0
      %v850 = vadd.f32 0.0, %v849
      %v851 = vpop.f32.mrf.mxu0
      %v852 = vpop.f32.mrf.mxu0
      %v853 = vadd.f32 0.0, %v852
      %v854 = vpop.f32.mrf.mxu0
      %855 = vmatprep.mubr.bf16.mxu0 0
      %856 = vmatmul.mubr.bf16.gmra.mxu0 %v622
      %v857 = vpop.f32.mrf.mxu0
      %v858 = vadd.f32 0.0, %v857
      %v859 = vpop.f32.mrf.mxu0
      %v860 = vpop.f32.mrf.mxu0
      %v861 = vadd.f32 0.0, %v860
      %v862 = vpop.f32.mrf.mxu0
      %863 = vmatprep.mubr.bf16.mxu0 0
      %864 = vmatmul.mubr.bf16.gmra.mxu0 %v623
      %v865 = vpop.f32.mrf.mxu0
      %v866 = vadd.f32 0.0, %v865
      %v867 = vpop.f32.mrf.mxu0
      %v868 = vpop.f32.mrf.mxu0
      %v869 = vadd.f32 0.0, %v868
      %v870 = vpop.f32.mrf.mxu0
      %871 = vmatprep.mubr.bf16.mxu0 0
      %872 = vmatmul.mubr.bf16.gmra.mxu0 %v624
      %v873 = vpop.f32.mrf.mxu0
      %v874 = vadd.f32 0.0, %v873
      %v875 = vpop.f32.mrf.mxu0
      %v876 = vpop.f32.mrf.mxu0
      %v877 = vadd.f32 0.0, %v876
      %v878 = vpop.f32.mrf.mxu0
      %879 = vmatprep.mubr.bf16.mxu0 0
      %880 = vmatmul.mubr.bf16.gmra.mxu0 %v625
      %v881 = vpop.f32.mrf.mxu0
      %v882 = vadd.f32 0.0, %v881
      %v883 = vpop.f32.mrf.mxu0
      %v884 = vpop.f32.mrf.mxu0
      %v885 = vadd.f32 0.0, %v884
      %v886 = vpop.f32.mrf.mxu0
      %887 = vmatprep.mubr.bf16.mxu0 0
      %888 = vmatmul.mubr.bf16.gmra.mxu0 %v626
      %v889 = vpop.f32.mrf.mxu0
      %v890 = vadd.f32 0.0, %v889
      %v891 = vpop.f32.mrf.mxu0
      %v892 = vpop.f32.mrf.mxu0
      %v893 = vadd.f32 0.0, %v892
      %v894 = vpop.f32.mrf.mxu0
      %895 = vmatprep.mubr.bf16.mxu0 0
      %896 = vmatmul.mubr.bf16.gmra.mxu0 %v627
      %v897 = vpop.f32.mrf.mxu0
      %v898 = vadd.f32 0.0, %v897
      %v899 = vpop.f32.mrf.mxu0
      %v900 = vpop.f32.mrf.mxu0
      %v901 = vadd.f32 0.0, %v900
      %v902 = vpop.f32.mrf.mxu0
      %903 = vmatprep.mubr.bf16.mxu0 0
      %904 = vmatmul.mubr.bf16.gmra.mxu0 %v628
      %v905 = vpop.f32.mrf.mxu0
      %v906 = vadd.f32 0.0, %v905
      %v907 = vpop.f32.mrf.mxu0
      %v908 = vpop.f32.mrf.mxu0
      %v909 = vadd.f32 0.0, %v908
      %v910 = vpop.f32.mrf.mxu0
      %911 = vmatprep.mubr.bf16.mxu0 0
      %912 = vmatmul.mubr.bf16.gmra.mxu0 %v629
      %v913 = vpop.f32.mrf.mxu0
      %v914 = vadd.f32 0.0, %v913
      %v915 = vpop.f32.mrf.mxu0
      %v916 = vpop.f32.mrf.mxu0
      %v917 = vadd.f32 0.0, %v916
      %v918 = vpop.f32.mrf.mxu0
      %919 = vmatprep.mubr.bf16.mxu0 0
      %920 = vmatmul.mubr.bf16.gmra.mxu0 %v630
      %v921 = vpop.f32.mrf.mxu0
      %v922 = vadd.f32 0.0, %v921
      %v923 = vpop.f32.mrf.mxu0
      %v924 = vpop.f32.mrf.mxu0
      %v925 = vadd.f32 0.0, %v924
      %v926 = vpop.f32.mrf.mxu0
      %927 = vmatprep.mubr.bf16.mxu0 0
      %928 = vmatmul.mubr.bf16.gmra.mxu0 %v631
      %v929 = vpop.f32.mrf.mxu0
      %v930 = vadd.f32 0.0, %v929
      %v931 = vpop.f32.mrf.mxu0
      %v932 = vpop.f32.mrf.mxu0
      %v933 = vadd.f32 0.0, %v932
      %v934 = vpop.f32.mrf.mxu0
      %935 = vmatprep.mubr.bf16.mxu0 0
      %936 = vmatmul.mubr.bf16.gmra.mxu0 %v632
      %v937 = vpop.f32.mrf.mxu0
      %v938 = vadd.f32 0.0, %v937
      %v939 = vpop.f32.mrf.mxu0
      %v940 = vpop.f32.mrf.mxu0
      %v941 = vadd.f32 0.0, %v940
      %v942 = vpop.f32.mrf.mxu0
      %943 = vmatprep.mubr.bf16.mxu0 0
      %944 = vmatmul.mubr.bf16.gmra.mxu0 %v633
      %v945 = vpop.f32.mrf.mxu0
      %v946 = vadd.f32 0.0, %v945
      %v947 = vpop.f32.mrf.mxu0
      %v948 = vpop.f32.mrf.mxu0
      %v949 = vadd.f32 0.0, %v948
      %v950 = vpop.f32.mrf.mxu0
      %951 = vmatprep.mubr.bf16.mxu0 0
      %952 = vmatmul.mubr.bf16.gmra.mxu0 %v634
      %v953 = vpop.f32.mrf.mxu0
      %v954 = vadd.f32 0.0, %v953
      %v955 = vpop.f32.mrf.mxu0
      %v956 = vpop.f32.mrf.mxu0
      %v957 = vadd.f32 0.0, %v956
      %v958 = vpop.f32.mrf.mxu0
      %959 = vmatprep.mubr.bf16.mxu0 0
      %960 = vmatmul.mubr.bf16.gmra.mxu0 %v635
      %v961 = vpop.f32.mrf.mxu0
      %v962 = vadd.f32 0.0, %v961
      %v963 = vpop.f32.mrf.mxu0
      %v964 = vpop.f32.mrf.mxu0
      %v965 = vadd.f32 0.0, %v964
      %v966 = vpop.f32.mrf.mxu0
      %967 = vmatprep.mubr.bf16.mxu0 0
      %968 = vmatmul.mubr.bf16.gmra.mxu0 %v636
      %v969 = vpop.f32.mrf.mxu0
      %v970 = vadd.f32 0.0, %v969
      %v971 = vpop.f32.mrf.mxu0
      %v972 = vpop.f32.mrf.mxu0
      %v973 = vadd.f32 0.0, %v972
      %v974 = vpop.f32.mrf.mxu0
      %975 = vmatprep.mubr.bf16.mxu0 0
      %976 = vmatmul.mubr.bf16.gmra.mxu0 %v637
      %v977 = vpop.f32.mrf.mxu0
      %v978 = vadd.f32 0.0, %v977
      %v979 = vpop.f32.mrf.mxu0
      %v980 = vpop.f32.mrf.mxu0
      %v981 = vadd.f32 0.0, %v980
      %v982 = vpop.f32.mrf.mxu0
      %983 = vmatprep.mubr.bf16.mxu0 0
      %984 = vmatmul.mubr.bf16.gmra.mxu0 %v638
      %v985 = vpop.f32.mrf.mxu0
      %v986 = vadd.f32 0.0, %v985
      %v987 = vpop.f32.mrf.mxu0
      %v988 = vpop.f32.mrf.mxu0
      %v989 = vadd.f32 0.0, %v988
      %v990 = vpop.f32.mrf.mxu0
      %991 = vdwg.mxu0
      %v992 = vpack.c.bf16 %v741, %v738
      %v993 = vpack.c.bf16 %v749, %v746
      %v994 = vpack.c.bf16 %v757, %v754
      %v995 = vpack.c.bf16 %v765, %v762
      %v996 = vpack.c.bf16 %v773, %v770
      %v997 = vpack.c.bf16 %v781, %v778
      %v998 = vpack.c.bf16 %v789, %v786
      %v999 = vpack.c.bf16 %v797, %v794
      %v1000 = vpack.c.bf16 %v805, %v802
      %v1001 = vpack.c.bf16 %v813, %v810
      %v1002 = vpack.c.bf16 %v821, %v818
      %v1003 = vpack.c.bf16 %v829, %v826
      %v1004 = vpack.c.bf16 %v837, %v834
      %v1005 = vpack.c.bf16 %v845, %v842
      %v1006 = vpack.c.bf16 %v853, %v850
      %v1007 = vpack.c.bf16 %v861, %v858
      %v1008 = vpack.c.bf16 %v869, %v866
      %v1009 = vpack.c.bf16 %v877, %v874
      %v1010 = vpack.c.bf16 %v885, %v882
      %v1011 = vpack.c.bf16 %v893, %v890
      %v1012 = vpack.c.bf16 %v901, %v898
      %v1013 = vpack.c.bf16 %v909, %v906
      %v1014 = vpack.c.bf16 %v917, %v914
      %v1015 = vpack.c.bf16 %v925, %v922
      %v1016 = vpack.c.bf16 %v933, %v930
      %v1017 = vpack.c.bf16 %v941, %v938
      %v1018 = vpack.c.bf16 %v949, %v946
      %v1019 = vpack.c.bf16 %v957, %v954
      %v1020 = vpack.c.bf16 %v965, %v962
      %v1021 = vpack.c.bf16 %v973, %v970
      %v1022 = vpack.c.bf16 %v981, %v978
      %v1023 = vpack.c.bf16 %v989, %v986
      %v1056 = vunpack.c.l.b16 %v992
      %v1057 = vunpack.c.h.b16 %v992
      %v1058 = vunpack.c.l.b16 %v993
      %v1059 = vunpack.c.h.b16 %v993
      %v1060 = vunpack.c.l.b16 %v994
      %v1061 = vunpack.c.h.b16 %v994
      %v1062 = vunpack.c.l.b16 %v995
      %v1063 = vunpack.c.h.b16 %v995
      %v1064 = vunpack.c.l.b16 %v996
      %v1065 = vunpack.c.h.b16 %v996
      %v1066 = vunpack.c.l.b16 %v997
      %v1067 = vunpack.c.h.b16 %v997
      %v1068 = vunpack.c.l.b16 %v998
      %v1069 = vunpack.c.h.b16 %v998
      %v1070 = vunpack.c.l.b16 %v999
      %v1071 = vunpack.c.h.b16 %v999
      %v1072 = vunpack.c.l.b16 %v1000
      %v1073 = vunpack.c.h.b16 %v1000
      %v1074 = vunpack.c.l.b16 %v1001
      %v1075 = vunpack.c.h.b16 %v1001
      %v1076 = vunpack.c.l.b16 %v1002
      %v1077 = vunpack.c.h.b16 %v1002
      %v1078 = vunpack.c.l.b16 %v1003
      %v1079 = vunpack.c.h.b16 %v1003
      %v1080 = vunpack.c.l.b16 %v1004
      %v1081 = vunpack.c.h.b16 %v1004
      %v1082 = vunpack.c.l.b16 %v1005
      %v1083 = vunpack.c.h.b16 %v1005
      %v1084 = vunpack.c.l.b16 %v1006
      %v1085 = vunpack.c.h.b16 %v1006
      %v1086 = vunpack.c.l.b16 %v1007
      %v1087 = vunpack.c.h.b16 %v1007
      %v1088 = vunpack.c.l.b16 %v1008
      %v1089 = vunpack.c.h.b16 %v1008
      %v1090 = vunpack.c.l.b16 %v1009
      %v1091 = vunpack.c.h.b16 %v1009
      %v1092 = vunpack.c.l.b16 %v1010
      %v1093 = vunpack.c.h.b16 %v1010
      %v1094 = vunpack.c.l.b16 %v1011
      %v1095 = vunpack.c.h.b16 %v1011
      %v1096 = vunpack.c.l.b16 %v1012
      %v1097 = vunpack.c.h.b16 %v1012
      %v1098 = vunpack.c.l.b16 %v1013
      %v1099 = vunpack.c.h.b16 %v1013
      %v1100 = vunpack.c.l.b16 %v1014
      %v1101 = vunpack.c.h.b16 %v1014
      %v1102 = vunpack.c.l.b16 %v1015
      %v1103 = vunpack.c.h.b16 %v1015
      %v1104 = vunpack.c.l.b16 %v1016
      %v1105 = vunpack.c.h.b16 %v1016
      %v1106 = vunpack.c.l.b16 %v1017
      %v1107 = vunpack.c.h.b16 %v1017
      %v1108 = vunpack.c.l.b16 %v1018
      %v1109 = vunpack.c.h.b16 %v1018
      %v1110 = vunpack.c.l.b16 %v1019
      %v1111 = vunpack.c.h.b16 %v1019
      %v1112 = vunpack.c.l.b16 %v1020
      %v1113 = vunpack.c.h.b16 %v1020
      %v1114 = vunpack.c.l.b16 %v1021
      %v1115 = vunpack.c.h.b16 %v1021
      %v1116 = vunpack.c.l.b16 %v1022
      %v1117 = vunpack.c.h.b16 %v1022
      %v1118 = vunpack.c.l.b16 %v1023
      %v1119 = vunpack.c.h.b16 %v1023
      %v1120 = vpack.c.b16 %v1056, %v1056
      %v1121 = vpack.c.b16 %v1057, %v1057
      %v1122 = vpack.c.b16 %v1058, %v1058
      %v1123 = vpack.c.b16 %v1059, %v1059
      %v1124 = vpack.c.b16 %v1060, %v1060
      %v1125 = vpack.c.b16 %v1061, %v1061
      %v1126 = vpack.c.b16 %v1062, %v1062
      %v1127 = vpack.c.b16 %v1063, %v1063
      %v1128 = vpack.c.b16 %v1064, %v1064
      %v1129 = vpack.c.b16 %v1065, %v1065
      %v1130 = vpack.c.b16 %v1066, %v1066
      %v1131 = vpack.c.b16 %v1067, %v1067
      %v1132 = vpack.c.b16 %v1068, %v1068
      %v1133 = vpack.c.b16 %v1069, %v1069
      %v1134 = vpack.c.b16 %v1070, %v1070
      %v1135 = vpack.c.b16 %v1071, %v1071
      %v1136 = vpack.c.b16 %v1072, %v1072
      %v1137 = vpack.c.b16 %v1073, %v1073
      %v1138 = vpack.c.b16 %v1074, %v1074
      %v1139 = vpack.c.b16 %v1075, %v1075
      %v1140 = vpack.c.b16 %v1076, %v1076
      %v1141 = vpack.c.b16 %v1077, %v1077
      %v1142 = vpack.c.b16 %v1078, %v1078
      %v1143 = vpack.c.b16 %v1079, %v1079
      %v1144 = vpack.c.b16 %v1080, %v1080
      %v1145 = vpack.c.b16 %v1081, %v1081
      %v1146 = vpack.c.b16 %v1082, %v1082
      %v1147 = vpack.c.b16 %v1083, %v1083
      %v1148 = vpack.c.b16 %v1084, %v1084
      %v1149 = vpack.c.b16 %v1085, %v1085
      %v1150 = vpack.c.b16 %v1086, %v1086
      %v1151 = vpack.c.b16 %v1087, %v1087
      %v1152 = vpack.c.b16 %v1088, %v1088
      %v1153 = vpack.c.b16 %v1089, %v1089
      %v1154 = vpack.c.b16 %v1090, %v1090
      %v1155 = vpack.c.b16 %v1091, %v1091
      %v1156 = vpack.c.b16 %v1092, %v1092
      %v1157 = vpack.c.b16 %v1093, %v1093
      %v1158 = vpack.c.b16 %v1094, %v1094
      %v1159 = vpack.c.b16 %v1095, %v1095
      %v1160 = vpack.c.b16 %v1096, %v1096
      %v1161 = vpack.c.b16 %v1097, %v1097
      %v1162 = vpack.c.b16 %v1098, %v1098
      %v1163 = vpack.c.b16 %v1099, %v1099
      %v1164 = vpack.c.b16 %v1100, %v1100
      %v1165 = vpack.c.b16 %v1101, %v1101
      %v1166 = vpack.c.b16 %v1102, %v1102
      %v1167 = vpack.c.b16 %v1103, %v1103
      %v1168 = vpack.c.b16 %v1104, %v1104
      %v1169 = vpack.c.b16 %v1105, %v1105
      %v1170 = vpack.c.b16 %v1106, %v1106
      %v1171 = vpack.c.b16 %v1107, %v1107
      %v1172 = vpack.c.b16 %v1108, %v1108
      %v1173 = vpack.c.b16 %v1109, %v1109
      %v1174 = vpack.c.b16 %v1110, %v1110
      %v1175 = vpack.c.b16 %v1111, %v1111
      %v1176 = vpack.c.b16 %v1112, %v1112
      %v1177 = vpack.c.b16 %v1113, %v1113
      %v1178 = vpack.c.b16 %v1114, %v1114
      %v1179 = vpack.c.b16 %v1115, %v1115
      %v1180 = vpack.c.b16 %v1116, %v1116
      %v1181 = vpack.c.b16 %v1117, %v1117
      %v1182 = vpack.c.b16 %v1118, %v1118
      %v1183 = vpack.c.b16 %v1119, %v1119
      %1248 = vst [vmem:[%s264] sm:$0xf] %v1120
      %1249 = vst [vmem:[%s264 + $0x4] sm:$0xf] %v1121
      %1250 = vst [vmem:[%s264 + $0x8] sm:$0xf] %v1122
      %1251 = vst [vmem:[%s264 + $0xc] sm:$0xf] %v1123
      %1252 = vst [vmem:[%s264 + $0x10] sm:$0xf] %v1124
      %1253 = vst [vmem:[%s264 + $0x14] sm:$0xf] %v1125
      %1254 = vst [vmem:[%s264 + $0x18] sm:$0xf] %v1126
      %1255 = vst [vmem:[%s264 + $0x1c] sm:$0xf] %v1127
      %1256 = vst [vmem:[%s264 + $0x20] sm:$0xf] %v1128
      %1257 = vst [vmem:[%s264 + $0x24] sm:$0xf] %v1129
      %1258 = vst [vmem:[%s264 + $0x28] sm:$0xf] %v1130
      %1259 = vst [vmem:[%s264 + $0x2c] sm:$0xf] %v1131
      %1260 = vst [vmem:[%s264 + $0x30] sm:$0xf] %v1132
      %1261 = vst [vmem:[%s264 + $0x34] sm:$0xf] %v1133
      %1262 = vst [vmem:[%s264 + $0x38] sm:$0xf] %v1134
      %1263 = vst [vmem:[%s264 + $0x3c] sm:$0xf] %v1135
      %1264 = vst [vmem:[%s264 + $0x40] sm:$0xf] %v1136
      %1265 = vst [vmem:[%s264 + $0x44] sm:$0xf] %v1137
      %1266 = vst [vmem:[%s264 + $0x48] sm:$0xf] %v1138
      %1267 = vst [vmem:[%s264 + $0x4c] sm:$0xf] %v1139
      %1268 = vst [vmem:[%s264 + $0x50] sm:$0xf] %v1140
      %1269 = vst [vmem:[%s264 + $0x54] sm:$0xf] %v1141
      %1270 = vst [vmem:[%s264 + $0x58] sm:$0xf] %v1142
      %1271 = vst [vmem:[%s264 + $0x5c] sm:$0xf] %v1143
      %1272 = vst [vmem:[%s264 + $0x60] sm:$0xf] %v1144
      %1273 = vst [vmem:[%s264 + $0x64] sm:$0xf] %v1145
      %1274 = vst [vmem:[%s264 + $0x68] sm:$0xf] %v1146
      %1275 = vst [vmem:[%s264 + $0x6c] sm:$0xf] %v1147
      %1276 = vst [vmem:[%s264 + $0x70] sm:$0xf] %v1148
      %1277 = vst [vmem:[%s264 + $0x74] sm:$0xf] %v1149
      %1278 = vst [vmem:[%s264 + $0x78] sm:$0xf] %v1150
      %1279 = vst [vmem:[%s264 + $0x7c] sm:$0xf] %v1151
      %1280 = vst [vmem:[%s264 + $0x80] sm:$0xf] %v1152
      %1281 = vst [vmem:[%s264 + $0x84] sm:$0xf] %v1153
      %1282 = vst [vmem:[%s264 + $0x88] sm:$0xf] %v1154
      %1283 = vst [vmem:[%s264 + $0x8c] sm:$0xf] %v1155
      %1284 = vst [vmem:[%s264 + $0x90] sm:$0xf] %v1156
      %1285 = vst [vmem:[%s264 + $0x94] sm:$0xf] %v1157
      %1286 = vst [vmem:[%s264 + $0x98] sm:$0xf] %v1158
      %1287 = vst [vmem:[%s264 + $0x9c] sm:$0xf] %v1159
      %1288 = vst [vmem:[%s264 + $0xa0] sm:$0xf] %v1160
      %1289 = vst [vmem:[%s264 + $0xa4] sm:$0xf] %v1161
      %1290 = vst [vmem:[%s264 + $0xa8] sm:$0xf] %v1162
      %1291 = vst [vmem:[%s264 + $0xac] sm:$0xf] %v1163
      %1292 = vst [vmem:[%s264 + $0xb0] sm:$0xf] %v1164
      %1293 = vst [vmem:[%s264 + $0xb4] sm:$0xf] %v1165
      %1294 = vst [vmem:[%s264 + $0xb8] sm:$0xf] %v1166
      %1295 = vst [vmem:[%s264 + $0xbc] sm:$0xf] %v1167
      %1296 = vst [vmem:[%s264 + $0xc0] sm:$0xf] %v1168
      %1297 = vst [vmem:[%s264 + $0xc4] sm:$0xf] %v1169
      %1298 = vst [vmem:[%s264 + $0xc8] sm:$0xf] %v1170
      %1299 = vst [vmem:[%s264 + $0xcc] sm:$0xf] %v1171
      %1300 = vst [vmem:[%s264 + $0xd0] sm:$0xf] %v1172
      %1301 = vst [vmem:[%s264 + $0xd4] sm:$0xf] %v1173
      %1302 = vst [vmem:[%s264 + $0xd8] sm:$0xf] %v1174
      %1303 = vst [vmem:[%s264 + $0xdc] sm:$0xf] %v1175
      %1304 = vst [vmem:[%s264 + $0xe0] sm:$0xf] %v1176
      %1305 = vst [vmem:[%s264 + $0xe4] sm:$0xf] %v1177
      %1306 = vst [vmem:[%s264 + $0xe8] sm:$0xf] %v1178
      %1307 = vst [vmem:[%s264 + $0xec] sm:$0xf] %v1179
      %1308 = vst [vmem:[%s264 + $0xf0] sm:$0xf] %v1180
      %1309 = vst [vmem:[%s264 + $0xf4] sm:$0xf] %v1181
      %1310 = vst [vmem:[%s264 + $0xf8] sm:$0xf] %v1182
      %1311 = vst [vmem:[%s264 + $0xfc] sm:$0xf] %v1183
      %v1312 = vadd.f32 %v738, %v741
      %v1313 = vadd.f32 %v1312, %v746
      %v1314 = vadd.f32 %v1313, %v749
      %v1315 = vadd.f32 %v1314, %v754
      %v1316 = vadd.f32 %v1315, %v757
      %v1317 = vadd.f32 %v1316, %v762
      %v1318 = vadd.f32 %v1317, %v765
      %v1319 = vadd.f32 %v1318, %v770
      %v1320 = vadd.f32 %v1319, %v773
      %v1321 = vadd.f32 %v1320, %v778
      %v1322 = vadd.f32 %v1321, %v781
      %v1323 = vadd.f32 %v1322, %v786
      %v1324 = vadd.f32 %v1323, %v789
      %v1325 = vadd.f32 %v1324, %v794
      %v1326 = vadd.f32 %v1325, %v797
      %v1327 = vadd.f32 %v1326, %v802
      %v1328 = vadd.f32 %v1327, %v805
      %v1329 = vadd.f32 %v1328, %v810
      %v1330 = vadd.f32 %v1329, %v813
      %v1331 = vadd.f32 %v1330, %v818
      %v1332 = vadd.f32 %v1331, %v821
      %v1333 = vadd.f32 %v1332, %v826
      %v1334 = vadd.f32 %v1333, %v829
      %v1335 = vadd.f32 %v1334, %v834
      %v1336 = vadd.f32 %v1335, %v837
      %v1337 = vadd.f32 %v1336, %v842
      %v1338 = vadd.f32 %v1337, %v845
      %v1339 = vadd.f32 %v1338, %v850
      %v1340 = vadd.f32 %v1339, %v853
      %v1341 = vadd.f32 %v1340, %v858
      %v1342 = vadd.f32 %v1341, %v861
      %v1343 = vadd.f32 %v1342, %v866
      %v1344 = vadd.f32 %v1343, %v869
      %v1345 = vadd.f32 %v1344, %v874
      %v1346 = vadd.f32 %v1345, %v877
      %v1347 = vadd.f32 %v1346, %v882
      %v1348 = vadd.f32 %v1347, %v885
      %v1349 = vadd.f32 %v1348, %v890
      %v1350 = vadd.f32 %v1349, %v893
      %v1351 = vadd.f32 %v1350, %v898
      %v1352 = vadd.f32 %v1351, %v901
      %v1353 = vadd.f32 %v1352, %v906
      %v1354 = vadd.f32 %v1353, %v909
      %v1355 = vadd.f32 %v1354, %v914
      %v1356 = vadd.f32 %v1355, %v917
      %v1357 = vadd.f32 %v1356, %v922
      %v1358 = vadd.f32 %v1357, %v925
      %v1359 = vadd.f32 %v1358, %v930
      %v1360 = vadd.f32 %v1359, %v933
      %v1361 = vadd.f32 %v1360, %v938
      %v1362 = vadd.f32 %v1361, %v941
      %v1363 = vadd.f32 %v1362, %v946
      %v1364 = vadd.f32 %v1363, %v949
      %v1365 = vadd.f32 %v1364, %v954
      %v1366 = vadd.f32 %v1365, %v957
      %v1367 = vadd.f32 %v1366, %v962
      %v1368 = vadd.f32 %v1367, %v965
      %v1369 = vadd.f32 %v1368, %v970
      %v1370 = vadd.f32 %v1369, %v973
      %v1371 = vadd.f32 %v1370, %v978
      %v1372 = vadd.f32 %v1371, %v981
      %v1373 = vadd.f32 %v1372, %v986
      %v1374 = vadd.f32 %v1373, %v989
      %v1375 = vrot.slane %v1374, 4
      %v1376 = vadd.f32 %v1374, %v1375
      %v1377 = vrot.slane %v1376, 2
      %v1378 = vadd.f32 %v1376, %v1377
      %v1379 = vrot.slane %v1378, 1
      %v1380 = vadd.f32 %v1378, %v1379
      %1381 = vst [vmem:[%s268] sm:$0x1] %v1380
      %v1382 = vmul.f32 %v738, %v738
      %v1383 = vmul.f32 %v741, %v741
      %v1384 = vmul.f32 %v746, %v746
      %v1385 = vmul.f32 %v749, %v749
      %v1386 = vmul.f32 %v754, %v754
      %v1387 = vmul.f32 %v757, %v757
      %v1388 = vmul.f32 %v762, %v762
      %v1389 = vmul.f32 %v765, %v765
      %v1390 = vmul.f32 %v770, %v770
      %v1391 = vmul.f32 %v773, %v773
      %v1392 = vmul.f32 %v778, %v778
      %v1393 = vmul.f32 %v781, %v781
      %v1394 = vmul.f32 %v786, %v786
      %v1395 = vmul.f32 %v789, %v789
      %v1396 = vmul.f32 %v794, %v794
      %v1397 = vmul.f32 %v797, %v797
      %v1398 = vmul.f32 %v802, %v802
      %v1399 = vmul.f32 %v805, %v805
      %v1400 = vmul.f32 %v810, %v810
      %v1401 = vmul.f32 %v813, %v813
      %v1402 = vmul.f32 %v818, %v818
      %v1403 = vmul.f32 %v821, %v821
      %v1404 = vmul.f32 %v826, %v826
      %v1405 = vmul.f32 %v829, %v829
      %v1406 = vmul.f32 %v834, %v834
      %v1407 = vmul.f32 %v837, %v837
      %v1408 = vmul.f32 %v842, %v842
      %v1409 = vmul.f32 %v845, %v845
      %v1410 = vmul.f32 %v850, %v850
      %v1411 = vmul.f32 %v853, %v853
      %v1412 = vmul.f32 %v858, %v858
      %v1413 = vmul.f32 %v861, %v861
      %v1414 = vmul.f32 %v866, %v866
      %v1415 = vmul.f32 %v869, %v869
      %v1416 = vmul.f32 %v874, %v874
      %v1417 = vmul.f32 %v877, %v877
      %v1418 = vmul.f32 %v882, %v882
      %v1419 = vmul.f32 %v885, %v885
      %v1420 = vmul.f32 %v890, %v890
      %v1421 = vmul.f32 %v893, %v893
      %v1422 = vmul.f32 %v898, %v898
      %v1423 = vmul.f32 %v901, %v901
      %v1424 = vmul.f32 %v906, %v906
      %v1425 = vmul.f32 %v909, %v909
      %v1426 = vmul.f32 %v914, %v914
      %v1427 = vmul.f32 %v917, %v917
      %v1428 = vmul.f32 %v922, %v922
      %v1429 = vmul.f32 %v925, %v925
      %v1430 = vmul.f32 %v930, %v930
      %v1431 = vmul.f32 %v933, %v933
      %v1432 = vmul.f32 %v938, %v938
      %v1433 = vmul.f32 %v941, %v941
      %v1434 = vmul.f32 %v946, %v946
      %v1435 = vmul.f32 %v949, %v949
      %v1436 = vmul.f32 %v954, %v954
      %v1437 = vmul.f32 %v957, %v957
      %v1438 = vmul.f32 %v962, %v962
      %v1439 = vmul.f32 %v965, %v965
      %v1440 = vmul.f32 %v970, %v970
      %v1441 = vmul.f32 %v973, %v973
      %v1442 = vmul.f32 %v978, %v978
      %v1443 = vmul.f32 %v981, %v981
      %v1444 = vmul.f32 %v986, %v986
      %v1445 = vmul.f32 %v989, %v989
      %v1446 = vadd.f32 %v1382, %v1383
      %v1447 = vadd.f32 %v1446, %v1384
      %v1448 = vadd.f32 %v1447, %v1385
      %v1449 = vadd.f32 %v1448, %v1386
      %v1450 = vadd.f32 %v1449, %v1387
      %v1451 = vadd.f32 %v1450, %v1388
      %v1452 = vadd.f32 %v1451, %v1389
      %v1453 = vadd.f32 %v1452, %v1390
      %v1454 = vadd.f32 %v1453, %v1391
      %v1455 = vadd.f32 %v1454, %v1392
      %v1456 = vadd.f32 %v1455, %v1393
      %v1457 = vadd.f32 %v1456, %v1394
      %v1458 = vadd.f32 %v1457, %v1395
      %v1459 = vadd.f32 %v1458, %v1396
      %v1460 = vadd.f32 %v1459, %v1397
      %v1461 = vadd.f32 %v1460, %v1398
      %v1462 = vadd.f32 %v1461, %v1399
      %v1463 = vadd.f32 %v1462, %v1400
      %v1464 = vadd.f32 %v1463, %v1401
      %v1465 = vadd.f32 %v1464, %v1402
      %v1466 = vadd.f32 %v1465, %v1403
      %v1467 = vadd.f32 %v1466, %v1404
      %v1468 = vadd.f32 %v1467, %v1405
      %v1469 = vadd.f32 %v1468, %v1406
      %v1470 = vadd.f32 %v1469, %v1407
      %v1471 = vadd.f32 %v1470, %v1408
      %v1472 = vadd.f32 %v1471, %v1409
      %v1473 = vadd.f32 %v1472, %v1410
      %v1474 = vadd.f32 %v1473, %v1411
      %v1475 = vadd.f32 %v1474, %v1412
      %v1476 = vadd.f32 %v1475, %v1413
      %v1477 = vadd.f32 %v1476, %v1414
      %v1478 = vadd.f32 %v1477, %v1415
      %v1479 = vadd.f32 %v1478, %v1416
      %v1480 = vadd.f32 %v1479, %v1417
      %v1481 = vadd.f32 %v1480, %v1418
      %v1482 = vadd.f32 %v1481, %v1419
      %v1483 = vadd.f32 %v1482, %v1420
      %v1484 = vadd.f32 %v1483, %v1421
      %v1485 = vadd.f32 %v1484, %v1422
      %v1486 = vadd.f32 %v1485, %v1423
      %v1487 = vadd.f32 %v1486, %v1424
      %v1488 = vadd.f32 %v1487, %v1425
      %v1489 = vadd.f32 %v1488, %v1426
      %v1490 = vadd.f32 %v1489, %v1427
      %v1491 = vadd.f32 %v1490, %v1428
      %v1492 = vadd.f32 %v1491, %v1429
      %v1493 = vadd.f32 %v1492, %v1430
      %v1494 = vadd.f32 %v1493, %v1431
      %v1495 = vadd.f32 %v1494, %v1432
      %v1496 = vadd.f32 %v1495, %v1433
      %v1497 = vadd.f32 %v1496, %v1434
      %v1498 = vadd.f32 %v1497, %v1435
      %v1499 = vadd.f32 %v1498, %v1436
      %v1500 = vadd.f32 %v1499, %v1437
      %v1501 = vadd.f32 %v1500, %v1438
      %v1502 = vadd.f32 %v1501, %v1439
      %v1503 = vadd.f32 %v1502, %v1440
      %v1504 = vadd.f32 %v1503, %v1441
      %v1505 = vadd.f32 %v1504, %v1442
      %v1506 = vadd.f32 %v1505, %v1443
      %v1507 = vadd.f32 %v1506, %v1444
      %v1508 = vadd.f32 %v1507, %v1445
      %v1509 = vrot.slane %v1508, 4
      %v1510 = vadd.f32 %v1508, %v1509
      %v1511 = vrot.slane %v1510, 2
      %v1512 = vadd.f32 %v1510, %v1511
      %v1513 = vrot.slane %v1512, 1
      %v1514 = vadd.f32 %v1512, %v1513
      %1515 = vst [vmem:[%s271] sm:$0x1] %v1514
      %s1516 = smul.u32 64, %s18
      %p1517 = scmp.lt.s32.totalorder %s1516, 127
      %s1518 = scalar_select %p1517, %s1516, 127
      %s1519 = smul.addr %s1518, 4
      %s1520 = scalar_lea.vmem %s4, %s1519
      %p1521 = scmp.lt.s32.totalorder %s18, 1
      %s1522 = scalar_select %p1521, %s18, 1
      %s1523 = scalar_lea.vmem %s5, %s1522
      %p1524 = scmp.lt.s32.totalorder %s18, 1
      %s1525 = scalar_select %p1524, %s18, 1
      %s1526 = scalar_lea.vmem %s6, %s1525
      // Predicated region
      $region37: #{bottleneck_block.6} parent=35 // pred_check
        %p1527 = pneg %p125
      $region38: #{bottleneck_block.6} parent=35 // pred_check_branch
        %1529 = sbr.rel (%p1527) target = $region40
      $region39: #{bottleneck_block.6} parent=35 // pred_region
        %s1530 = smul.u32 64, %s18
      $region40: #{bottleneck_block.6} parent=35 // pred_fallthru
        _
      // Predicated region
      $region41: #{bottleneck_block.6} parent=35 // pred_check
        %p1531 = pneg %p151
      $region42: #{bottleneck_block.6} parent=35 // pred_check_branch
        %1533 = sbr.rel (%p1531) target = $region44
      $region43: #{bottleneck_block.6} parent=35 // pred_region
        _
      $region44: #{bottleneck_block.6} parent=35 // pred_fallthru
        _
      // Predicated region
      $region45: #{bottleneck_block.6} parent=35 // pred_check
        %p1534 = pneg %p177
      $region46: #{bottleneck_block.6} parent=35 // pred_check_branch
        %1536 = sbr.rel (%p1534) target = $region48
      $region47: #{bottleneck_block.6} parent=35 // pred_region
        _
      $region48: #{bottleneck_block.6} parent=35 // pred_fallthru
        _
    $region36: #{bottleneck_block.6} parent=5 // pred_fallthru
      _
    %p1537 = scmp.le.s32.totalorder 2, %s13
    // Predicated region
    $region49: #{bottleneck_block.6} parent=5 // pred_check
      %p1538 = pneg %p1537
    $region50: #{bottleneck_block.6} parent=5 // pred_check_branch
      %1540 = sbr.rel (%p1538) target = $region52
    $region51: #{bottleneck_block.6} parent=5 // pred_region
      %s1541 = ssub.s32 %s13, 2
      // Predicated region
      $region53: #{bottleneck_block.6} parent=51 // pred_check
        %p1542 = pneg %p131
      $region54: #{bottleneck_block.6} parent=51 // pred_check_branch
        %1544 = sbr.rel (%p1542) target = $region56
      $region55: #{bottleneck_block.6} parent=51 // pred_region
        %s1545 = smul.u32 64, %s19
        %p1546 = scmp.lt.s32.totalorder %s1545, 127
        %s1547 = scalar_select %p1546, %s1545, 127
        %s1548 = smul.addr %s1547, 4
        %s1549 = scalar_lea.vmem %s4, %s1548
      $region56: #{bottleneck_block.6} parent=51 // pred_fallthru
        _
      // Predicated region
      $region57: #{bottleneck_block.6} parent=51 // pred_check
        %p1550 = pneg %p157
      $region58: #{bottleneck_block.6} parent=51 // pred_check_branch
        %1552 = sbr.rel (%p1550) target = $region60
      $region59: #{bottleneck_block.6} parent=51 // pred_region
        %p1553 = scmp.lt.s32.totalorder %s19, 1
        %s1554 = scalar_select %p1553, %s19, 1
        %s1555 = scalar_lea.vmem %s5, %s1554
      $region60: #{bottleneck_block.6} parent=51 // pred_fallthru
        _
      // Predicated region
      $region61: #{bottleneck_block.6} parent=51 // pred_check
        %p1556 = pneg %p183
      $region62: #{bottleneck_block.6} parent=51 // pred_check_branch
        %1558 = sbr.rel (%p1556) target = $region64
      $region63: #{bottleneck_block.6} parent=51 // pred_region
        %p1559 = scmp.lt.s32.totalorder %s19, 1
        %s1560 = scalar_select %p1559, %s19, 1
        %s1561 = scalar_lea.vmem %s6, %s1560
      $region64: #{bottleneck_block.6} parent=51 // pred_fallthru
        _
    $region52: #{bottleneck_block.6} parent=5 // pred_fallthru
      _
  $region6: #{bottleneck_block.6} parent=0 // loop_footer
    %s17 = sadd.s32 1, %s13
  $region7: #{bottleneck_block.6} parent=0 // loop_footer_branch
    %12 = sbr.rel target = $region3
  $region8: #{bottleneck_block.6} parent=0 // loop_exit
    _

// kernel: bottleneck_block.4
$region0: #{bottleneck_block.4}
  #allocation0 [shape = 'u32[]', space=smem, size = 0x4, offset = 0x4, fixed_abs, tag = 'smem constant byte address 0x4 - core index']
  #allocation1 [shape = 'u32[144,128]{1,0:T(1,128)}', space=vmem, size = 0x12000, scoped, tag = 'internal scratch']
  %s0 = inlined_call_operand.vmem [shape: f32[1024,128], index: 0, kind: input, shape index: {}]
  %s1 = inlined_call_operand.vmem [shape: bf16[128,128], index: 1, kind: input, shape index: {}]
  %s2 = inlined_call_operand.vmem [shape: bf16[128,128], index: 2, kind: input, shape index: {}]
  %s3 = inlined_call_operand.vmem [shape: bf16[1024,128], index: 3, kind: output, shape index: {0}]
  %s4 = inlined_call_operand.vmem [shape: bf16[1024,128], index: 4, kind: output, shape index: {1}]
  %s5 = inlined_call_operand.vmem [shape: f32[2,1,128], index: 5, kind: output, shape index: {2}]
  %s6 = inlined_call_operand.vmem [shape: f32[2,1,128], index: 6, kind: output, shape index: {3}]
  %s7 = inlined_call_operand.vmem [shape: f32[2,1,128], index: 7, kind: output, shape index: {4}]
  %s8 = inlined_call_operand.vmem [shape: f32[2,1,128], index: 8, kind: output, shape index: {5}]
  %9 = xla_tuple %s3, %s4, %s5, %s6, %s7, %s8
  %s10 = sld [smem:[#allocation0]]
  $region85: #{bottleneck_block.4} parent=0
    _
  %s12 = ssub.s32 1, %s10
  %s13 = scalar_select 0, %s12, %s10
  loop: start=0, step=1, limit=4
  $region2: #{bottleneck_block.4} parent=0 // loop_pre_header
    _
  $region3: #{bottleneck_block.4} parent=0 // loop_header
    %s15 = sphi 0, %s19
    %p16 = scmp.ge.s32.totalorder %s15, 4
    %s25 = sphi 0, %s27
    %s28 = sphi 0, %s25
    %s29 = sphi 0, %s28
    %s45 = sphi 0, %s29
    %s49 = sphi 0, %s49
    %s51 = sphi 0, %s49
    %s52 = sphi 0, %s51
    %s66 = sphi 0, %s52
    %s70 = sphi 0, %s70
    %s72 = sphi 0, %s70
    %s73 = sphi 0, %s72
    %s87 = sphi 0, %s73
    %s93 = sphi 0, %s95
    %s96 = sphi 0, %s93
    %s97 = sphi 0, %s96
    %s113 = sphi 0, %s97
    %s119 = sphi 0, %s121
    %s122 = sphi 0, %s119
    %s123 = sphi 0, %s122
    %s139 = sphi 0, %s123
    %s145 = sphi 0, %s147
    %s148 = sphi 0, %s145
    %s149 = sphi 0, %s148
    %s165 = sphi 0, %s149
    %s171 = sphi 0, %s173
    %s174 = sphi 0, %s171
    %s175 = sphi 0, %s174
    %s191 = sphi 0, %s175
    %s197 = sphi 0, %s199
    %s200 = sphi 0, %s197
    %s201 = sphi 0, %s200
    %s217 = sphi 0, %s201
    %s223 = sphi 0, %s225
    %s226 = sphi 0, %s223
    %s227 = sphi 0, %s226
    %s243 = sphi 0, %s227
  $region4: #{bottleneck_block.4} parent=0 // loop_header_branch
    %18 = sbr.rel (%p16) target = $region8
  $region5: #{bottleneck_block.4} parent=0 // loop_body
    %s20 = ssub.s32 %s15, 1
    %s21 = ssub.s32 %s15, 2
    %s22 = sadd.s32 %s15, 1
    %s23 = ssub.s32 %s15, %s22
    %p24 = scmp.eq.s32.totalorder %s23, 0
    %s26 = sadd.s32 %s25, 1
    %s27 = scalar_select %p24, %s25, %s26
    %p30 = pneg %p24
    %p31 = scmp.eq.s32.totalorder %s15, 1
    %p32 = por %p30, %p31
    %p33 = scmp.ne.s32.totalorder %s25, %s28
    %p34 = scmp.eq.s32.totalorder %s15, 0
    %p35 = por %p33, %p34
    %p36 = scmp.ne.s32.totalorder %s25, %s28
    %p37 = scmp.eq.s32.totalorder %s20, 1
    %p38 = por %p36, %p37
    %p39 = scmp.ne.s32.totalorder %s28, %s29
    %p40 = scmp.eq.s32.totalorder %s20, 0
    %p41 = por %p39, %p40
    %p42 = scmp.ne.s32.totalorder %s28, %s29
    %p43 = scmp.eq.s32.totalorder %s21, 1
    %p44 = por %p42, %p43
    %p46 = scmp.ne.s32.totalorder %s29, %s45
    %p47 = scmp.eq.s32.totalorder %s21, 0
    %p48 = por %p46, %p47
    %s50 = sadd.s32 %s49, 1
    %p53 = scmp.eq.s32.totalorder %s15, 1
    %p54 = scmp.ne.s32.totalorder %s49, %s51
    %p55 = scmp.eq.s32.totalorder %s15, 0
    %p56 = por %p54, %p55
    %p57 = scmp.ne.s32.totalorder %s49, %s51
    %p58 = scmp.eq.s32.totalorder %s20, 1
    %p59 = por %p57, %p58
    %p60 = scmp.ne.s32.totalorder %s51, %s52
    %p61 = scmp.eq.s32.totalorder %s20, 0
    %p62 = por %p60, %p61
    %p63 = scmp.ne.s32.totalorder %s51, %s52
    %p64 = scmp.eq.s32.totalorder %s21, 1
    %p65 = por %p63, %p64
    %p67 = scmp.ne.s32.totalorder %s52, %s66
    %p68 = scmp.eq.s32.totalorder %s21, 0
    %p69 = por %p67, %p68
    %s71 = sadd.s32 %s70, 1
    %p74 = scmp.eq.s32.totalorder %s15, 1
    %p75 = scmp.ne.s32.totalorder %s70, %s72
    %p76 = scmp.eq.s32.totalorder %s15, 0
    %p77 = por %p75, %p76
    %p78 = scmp.ne.s32.totalorder %s70, %s72
    %p79 = scmp.eq.s32.totalorder %s20, 1
    %p80 = por %p78, %p79
    %p81 = scmp.ne.s32.totalorder %s72, %s73
    %p82 = scmp.eq.s32.totalorder %s20, 0
    %p83 = por %p81, %p82
    %p84 = scmp.ne.s32.totalorder %s72, %s73
    %p85 = scmp.eq.s32.totalorder %s21, 1
    %p86 = por %p84, %p85
    %p88 = scmp.ne.s32.totalorder %s73, %s87
    %p89 = scmp.eq.s32.totalorder %s21, 0
    %p90 = por %p88, %p89
    %s91 = ssub.s32 %s15, %s22
    %p92 = scmp.eq.s32.totalorder %s91, 0
    %s94 = sadd.s32 %s93, 1
    %s95 = scalar_select %p92, %s93, %s94
    %p98 = pneg %p92
    %p99 = scmp.eq.s32.totalorder %s15, 1
    %p100 = por %p98, %p99
    %p101 = scmp.ne.s32.totalorder %s93, %s96
    %p102 = scmp.eq.s32.totalorder %s15, 0
    %p103 = por %p101, %p102
    %p104 = scmp.ne.s32.totalorder %s93, %s96
    %p105 = scmp.eq.s32.totalorder %s20, 1
    %p106 = por %p104, %p105
    %p107 = scmp.ne.s32.totalorder %s96, %s97
    %p108 = scmp.eq.s32.totalorder %s20, 0
    %p109 = por %p107, %p108
    %p110 = scmp.ne.s32.totalorder %s96, %s97
    %p111 = scmp.eq.s32.totalorder %s21, 1
    %p112 = por %p110, %p111
    %p114 = scmp.ne.s32.totalorder %s97, %s113
    %p115 = scmp.eq.s32.totalorder %s21, 0
    %p116 = por %p114, %p115
    %s117 = ssub.s32 %s15, %s22
    %p118 = scmp.eq.s32.totalorder %s117, 0
    %s120 = sadd.s32 %s119, 1
    %s121 = scalar_select %p118, %s119, %s120
    %p124 = pneg %p118
    %p125 = scmp.eq.s32.totalorder %s15, 1
    %p126 = por %p124, %p125
    %p127 = scmp.ne.s32.totalorder %s119, %s122
    %p128 = scmp.eq.s32.totalorder %s15, 0
    %p129 = por %p127, %p128
    %p130 = scmp.ne.s32.totalorder %s119, %s122
    %p131 = scmp.eq.s32.totalorder %s20, 1
    %p132 = por %p130, %p131
    %p133 = scmp.ne.s32.totalorder %s122, %s123
    %p134 = scmp.eq.s32.totalorder %s20, 0
    %p135 = por %p133, %p134
    %p136 = scmp.ne.s32.totalorder %s122, %s123
    %p137 = scmp.eq.s32.totalorder %s21, 1
    %p138 = por %p136, %p137
    %p140 = scmp.ne.s32.totalorder %s123, %s139
    %p141 = scmp.eq.s32.totalorder %s21, 0
    %p142 = por %p140, %p141
    %s143 = ssub.s32 %s15, %s22
    %p144 = scmp.eq.s32.totalorder %s143, 0
    %s146 = sadd.s32 %s145, 1
    %s147 = scalar_select %p144, %s145, %s146
    %p150 = pneg %p144
    %p151 = scmp.eq.s32.totalorder %s15, 1
    %p152 = por %p150, %p151
    %p153 = scmp.ne.s32.totalorder %s145, %s148
    %p154 = scmp.eq.s32.totalorder %s15, 0
    %p155 = por %p153, %p154
    %p156 = scmp.ne.s32.totalorder %s145, %s148
    %p157 = scmp.eq.s32.totalorder %s20, 1
    %p158 = por %p156, %p157
    %p159 = scmp.ne.s32.totalorder %s148, %s149
    %p160 = scmp.eq.s32.totalorder %s20, 0
    %p161 = por %p159, %p160
    %p162 = scmp.ne.s32.totalorder %s148, %s149
    %p163 = scmp.eq.s32.totalorder %s21, 1
    %p164 = por %p162, %p163
    %p166 = scmp.ne.s32.totalorder %s149, %s165
    %p167 = scmp.eq.s32.totalorder %s21, 0
    %p168 = por %p166, %p167
    %s169 = ssub.s32 %s15, %s22
    %p170 = scmp.eq.s32.totalorder %s169, 0
    %s172 = sadd.s32 %s171, 1
    %s173 = scalar_select %p170, %s171, %s172
    %p176 = pneg %p170
    %p177 = scmp.eq.s32.totalorder %s15, 1
    %p178 = por %p176, %p177
    %p179 = scmp.ne.s32.totalorder %s171, %s174
    %p180 = scmp.eq.s32.totalorder %s15, 0
    %p181 = por %p179, %p180
    %p182 = scmp.ne.s32.totalorder %s171, %s174
    %p183 = scmp.eq.s32.totalorder %s20, 1
    %p184 = por %p182, %p183
    %p185 = scmp.ne.s32.totalorder %s174, %s175
    %p186 = scmp.eq.s32.totalorder %s20, 0
    %p187 = por %p185, %p186
    %p188 = scmp.ne.s32.totalorder %s174, %s175
    %p189 = scmp.eq.s32.totalorder %s21, 1
    %p190 = por %p188, %p189
    %p192 = scmp.ne.s32.totalorder %s175, %s191
    %p193 = scmp.eq.s32.totalorder %s21, 0
    %p194 = por %p192, %p193
    %s195 = ssub.s32 %s15, %s22
    %p196 = scmp.eq.s32.totalorder %s195, 0
    %s198 = sadd.s32 %s197, 1
    %s199 = scalar_select %p196, %s197, %s198
    %p202 = pneg %p196
    %p203 = scmp.eq.s32.totalorder %s15, 1
    %p204 = por %p202, %p203
    %p205 = scmp.ne.s32.totalorder %s197, %s200
    %p206 = scmp.eq.s32.totalorder %s15, 0
    %p207 = por %p205, %p206
    %p208 = scmp.ne.s32.totalorder %s197, %s200
    %p209 = scmp.eq.s32.totalorder %s20, 1
    %p210 = por %p208, %p209
    %p211 = scmp.ne.s32.totalorder %s200, %s201
    %p212 = scmp.eq.s32.totalorder %s20, 0
    %p213 = por %p211, %p212
    %p214 = scmp.ne.s32.totalorder %s200, %s201
    %p215 = scmp.eq.s32.totalorder %s21, 1
    %p216 = por %p214, %p215
    %p218 = scmp.ne.s32.totalorder %s201, %s217
    %p219 = scmp.eq.s32.totalorder %s21, 0
    %p220 = por %p218, %p219
    %s221 = ssub.s32 %s15, %s22
    %p222 = scmp.eq.s32.totalorder %s221, 0
    %s224 = sadd.s32 %s223, 1
    %s225 = scalar_select %p222, %s223, %s224
    %p228 = pneg %p222
    %p229 = scmp.eq.s32.totalorder %s15, 1
    %p230 = por %p228, %p229
    %p231 = scmp.ne.s32.totalorder %s223, %s226
    %p232 = scmp.eq.s32.totalorder %s15, 0
    %p233 = por %p231, %p232
    %p234 = scmp.ne.s32.totalorder %s223, %s226
    %p235 = scmp.eq.s32.totalorder %s20, 1
    %p236 = por %p234, %p235
    %p237 = scmp.ne.s32.totalorder %s226, %s227
    %p238 = scmp.eq.s32.totalorder %s20, 0
    %p239 = por %p237, %p238
    %p240 = scmp.ne.s32.totalorder %s226, %s227
    %p241 = scmp.eq.s32.totalorder %s21, 1
    %p242 = por %p240, %p241
    %p244 = scmp.ne.s32.totalorder %s227, %s243
    %p245 = scmp.eq.s32.totalorder %s21, 0
    %p246 = por %p244, %p245
    %p247 = scmp.le.s32.totalorder 1, %s15
    %p248 = scmp.lt.s32.totalorder %s15, 3
    %p249 = pnand %p247, %p248
    %p250 = pneg %p249
    // Predicated region
    $region9: #{bottleneck_block.4} parent=5 // pred_check
      _
    $region10: #{bottleneck_block.4} parent=5 // pred_check_branch
      %252 = sbr.rel (%p249) target = $region12
    $region11: #{bottleneck_block.4} parent=5 // pred_region
      %s253 = ssub.s32 %s15, 1
      // Predicated region
      $region13: #{bottleneck_block.4} parent=11 // pred_check
        %p254 = pneg %p62
      $region14: #{bottleneck_block.4} parent=11 // pred_check_branch
        %256 = sbr.rel (%p254) target = $region16
      $region15: #{bottleneck_block.4} parent=11 // pred_region
        _
      $region16: #{bottleneck_block.4} parent=11 // pred_fallthru
        _
      // Predicated region
      $region17: #{bottleneck_block.4} parent=11 // pred_check
        %p257 = pneg %p83
      $region18: #{bottleneck_block.4} parent=11 // pred_check_branch
        %259 = sbr.rel (%p257) target = $region20
      $region19: #{bottleneck_block.4} parent=11 // pred_region
        _
      $region20: #{bottleneck_block.4} parent=11 // pred_fallthru
        _
    $region12: #{bottleneck_block.4} parent=5 // pred_fallthru
      _
    %p260 = scmp.lt.s32.totalorder %s15, 2
    // Predicated region
    $region21: #{bottleneck_block.4} parent=5 // pred_check
      %p261 = pneg %p260
    $region22: #{bottleneck_block.4} parent=5 // pred_check_branch
      %263 = sbr.rel (%p261) target = $region24
    $region23: #{bottleneck_block.4} parent=5 // pred_region
      // Predicated region
      $region25: #{bottleneck_block.4} parent=23 // pred_check
        %p264 = pneg %p35
      $region26: #{bottleneck_block.4} parent=23 // pred_check_branch
        %266 = sbr.rel (%p264) target = $region28
      $region27: #{bottleneck_block.4} parent=23 // pred_region
        %s267 = smul.u32 64, %s15
        %p268 = scmp.lt.s32.totalorder %s267, 127
        %s269 = scalar_select %p268, %s267, 127
        %s270 = smul.addr %s269, 8
        %s271 = scalar_lea.vmem %s0, %s270
        %s272 = smul.u32 64, %s15
      $region28: #{bottleneck_block.4} parent=23 // pred_fallthru
        _
    $region24: #{bottleneck_block.4} parent=5 // pred_fallthru
      _
    %p273 = scmp.le.s32.totalorder 1, %s15
    %p274 = scmp.lt.s32.totalorder %s15, 3
    %p275 = pnand %p273, %p274
    %p276 = pneg %p275
    // Predicated region
    $region29: #{bottleneck_block.4} parent=5 // pred_check
      _
    $region30: #{bottleneck_block.4} parent=5 // pred_check_branch
      %278 = sbr.rel (%p275) target = $region32
    $region31: #{bottleneck_block.4} parent=5 // pred_region
      %s279 = ssub.s32 %s15, 1
      %s280 = smul.u32 64, %s20
      %p281 = scmp.lt.s32.totalorder %s280, 127
      %s282 = scalar_select %p281, %s280, 127
      %s283 = smul.addr %s282, 8
      %s284 = scalar_lea.vmem %s0, %s283
      %p285 = pneg %p41
      %p286 = pneg %p38
      %p287 = pneg %p62
      %p288 = pneg %p59
      %p289 = pneg %p83
      %p290 = pneg %p80
      %p291 = pneg %p109
      %p292 = pneg %p106
      %s293 = smul.u32 64, %s20
      %p294 = scmp.lt.s32.totalorder %s293, 127
      %s295 = scalar_select %p294, %s293, 127
      %s296 = smul.addr %s295, 4
      %s297 = scalar_lea.vmem %s3, %s296
      %p298 = pneg %p135
      %p299 = pneg %p132
      %s300 = smul.u32 64, %s20
      %p301 = scmp.lt.s32.totalorder %s300, 127
      %s302 = scalar_select %p301, %s300, 127
      %s303 = smul.addr %s302, 4
      %s304 = scalar_lea.vmem %s4, %s303
      %p305 = pneg %p161
      %p306 = pneg %p158
      %p307 = scmp.lt.s32.totalorder %s20, 1
      %s308 = scalar_select %p307, %s20, 1
      %s309 = scalar_lea.vmem %s5, %s308
      %p310 = pneg %p187
      %p311 = pneg %p184
      %p312 = scmp.lt.s32.totalorder %s20, 1
      %s313 = scalar_select %p312, %s20, 1
      %s314 = scalar_lea.vmem %s6, %s313
      %p315 = pneg %p213
      %p316 = pneg %p210
      %p317 = scmp.lt.s32.totalorder %s20, 1
      %s318 = scalar_select %p317, %s20, 1
      %s319 = scalar_lea.vmem %s7, %s318
      %p320 = pneg %p239
      %p321 = pneg %p236
      %p322 = scmp.lt.s32.totalorder %s20, 1
      %s323 = scalar_select %p322, %s20, 1
      %s324 = scalar_lea.vmem %s8, %s323
      %s325 = smul.u32 64, %s20
      %p326 = scmp.lt.s32.totalorder %s325, 127
      %s327 = scalar_select %p326, %s325, 127
      %s328 = smul.addr %s327, 8
      %s329 = scalar_lea.vmem %s0, %s328
      %s330 = smul.u32 64, %s20
      %s331 = smul.u32 64, %s20
      %p332 = scmp.lt.s32.totalorder %s331, 127
      %s333 = scalar_select %p332, %s331, 127
      %s334 = smul.addr %s333, 4
      %s335 = scalar_lea.vmem %s3, %s334
      %s336 = smul.u32 64, %s20
      %s337 = smul.u32 64, %s20
      %p338 = scmp.lt.s32.totalorder %s337, 127
      %s339 = scalar_select %p338, %s337, 127
      %s340 = smul.addr %s339, 4
      %s341 = scalar_lea.vmem %s4, %s340
      %s342 = smul.u32 64, %s20
      %p343 = scmp.lt.s32.totalorder %s20, 1
      %s344 = scalar_select %p343, %s20, 1
      %s345 = scalar_lea.vmem %s5, %s344
      %p346 = scmp.lt.s32.totalorder %s20, 1
      %s347 = scalar_select %p346, %s20, 1
      %s348 = scalar_lea.vmem %s6, %s347
      %p349 = scmp.lt.s32.totalorder %s20, 1
      %s350 = scalar_select %p349, %s20, 1
      %s351 = scalar_lea.vmem %s7, %s350
      %p352 = scmp.lt.s32.totalorder %s20, 1
      %s353 = scalar_select %p352, %s20, 1
      %s354 = scalar_lea.vmem %s8, %s353
      %v356 = vld [vmem:[%s329] sm:$0xff]
      %v357 = vld [vmem:[%s329 + $0x8] sm:$0xff]
      %v358 = vld [vmem:[%s329 + $0x10] sm:$0xff]
      %v359 = vld [vmem:[%s329 + $0x18] sm:$0xff]
      %v360 = vld [vmem:[%s329 + $0x20] sm:$0xff]
      %v361 = vld [vmem:[%s329 + $0x28] sm:$0xff]
      %v362 = vld [vmem:[%s329 + $0x30] sm:$0xff]
      %v363 = vld [vmem:[%s329 + $0x38] sm:$0xff]
      %v364 = vld [vmem:[%s329 + $0x40] sm:$0xff]
      %v365 = vld [vmem:[%s329 + $0x48] sm:$0xff]
      %v366 = vld [vmem:[%s329 + $0x50] sm:$0xff]
      %v367 = vld [vmem:[%s329 + $0x58] sm:$0xff]
      %v368 = vld [vmem:[%s329 + $0x60] sm:$0xff]
      %v369 = vld [vmem:[%s329 + $0x68] sm:$0xff]
      %v370 = vld [vmem:[%s329 + $0x70] sm:$0xff]
      %v371 = vld [vmem:[%s329 + $0x78] sm:$0xff]
      %v372 = vld [vmem:[%s329 + $0x80] sm:$0xff]
      %v373 = vld [vmem:[%s329 + $0x88] sm:$0xff]
      %v374 = vld [vmem:[%s329 + $0x90] sm:$0xff]
      %v375 = vld [vmem:[%s329 + $0x98] sm:$0xff]
      %v376 = vld [vmem:[%s329 + $0xa0] sm:$0xff]
      %v377 = vld [vmem:[%s329 + $0xa8] sm:$0xff]
      %v378 = vld [vmem:[%s329 + $0xb0] sm:$0xff]
      %v379 = vld [vmem:[%s329 + $0xb8] sm:$0xff]
      %v380 = vld [vmem:[%s329 + $0xc0] sm:$0xff]
      %v381 = vld [vmem:[%s329 + $0xc8] sm:$0xff]
      %v382 = vld [vmem:[%s329 + $0xd0] sm:$0xff]
      %v383 = vld [vmem:[%s329 + $0xd8] sm:$0xff]
      %v384 = vld [vmem:[%s329 + $0xe0] sm:$0xff]
      %v385 = vld [vmem:[%s329 + $0xe8] sm:$0xff]
      %v386 = vld [vmem:[%s329 + $0xf0] sm:$0xff]
      %v387 = vld [vmem:[%s329 + $0xf8] sm:$0xff]
      %v388 = vld [vmem:[%s329 + $0x100] sm:$0xff]
      %v389 = vld [vmem:[%s329 + $0x108] sm:$0xff]
      %v390 = vld [vmem:[%s329 + $0x110] sm:$0xff]
      %v391 = vld [vmem:[%s329 + $0x118] sm:$0xff]
      %v392 = vld [vmem:[%s329 + $0x120] sm:$0xff]
      %v393 = vld [vmem:[%s329 + $0x128] sm:$0xff]
      %v394 = vld [vmem:[%s329 + $0x130] sm:$0xff]
      %v395 = vld [vmem:[%s329 + $0x138] sm:$0xff]
      %v396 = vld [vmem:[%s329 + $0x140] sm:$0xff]
      %v397 = vld [vmem:[%s329 + $0x148] sm:$0xff]
      %v398 = vld [vmem:[%s329 + $0x150] sm:$0xff]
      %v399 = vld [vmem:[%s329 + $0x158] sm:$0xff]
      %v400 = vld [vmem:[%s329 + $0x160] sm:$0xff]
      %v401 = vld [vmem:[%s329 + $0x168] sm:$0xff]
      %v402 = vld [vmem:[%s329 + $0x170] sm:$0xff]
      %v403 = vld [vmem:[%s329 + $0x178] sm:$0xff]
      %v404 = vld [vmem:[%s329 + $0x180] sm:$0xff]
      %v405 = vld [vmem:[%s329 + $0x188] sm:$0xff]
      %v406 = vld [vmem:[%s329 + $0x190] sm:$0xff]
      %v407 = vld [vmem:[%s329 + $0x198] sm:$0xff]
      %v408 = vld [vmem:[%s329 + $0x1a0] sm:$0xff]
      %v409 = vld [vmem:[%s329 + $0x1a8] sm:$0xff]
      %v410 = vld [vmem:[%s329 + $0x1b0] sm:$0xff]
      %v411 = vld [vmem:[%s329 + $0x1b8] sm:$0xff]
      %v412 = vld [vmem:[%s329 + $0x1c0] sm:$0xff]
      %v413 = vld [vmem:[%s329 + $0x1c8] sm:$0xff]
      %v414 = vld [vmem:[%s329 + $0x1d0] sm:$0xff]
      %v415 = vld [vmem:[%s329 + $0x1d8] sm:$0xff]
      %v416 = vld [vmem:[%s329 + $0x1e0] sm:$0xff]
      %v417 = vld [vmem:[%s329 + $0x1e8] sm:$0xff]
      %v418 = vld [vmem:[%s329 + $0x1f0] sm:$0xff]
      %v419 = vld [vmem:[%s329 + $0x1f8] sm:$0xff]
      %v420 = vpack.c.bf16 %v357, %v356
      %v421 = vpack.c.bf16 %v359, %v358
      %v422 = vpack.c.bf16 %v361, %v360
      %v423 = vpack.c.bf16 %v363, %v362
      %v424 = vpack.c.bf16 %v365, %v364
      %v425 = vpack.c.bf16 %v367, %v366
      %v426 = vpack.c.bf16 %v369, %v368
      %v427 = vpack.c.bf16 %v371, %v370
      %v428 = vpack.c.bf16 %v373, %v372
      %v429 = vpack.c.bf16 %v375, %v374
      %v430 = vpack.c.bf16 %v377, %v376
      %v431 = vpack.c.bf16 %v379, %v378
      %v432 = vpack.c.bf16 %v381, %v380
      %v433 = vpack.c.bf16 %v383, %v382
      %v434 = vpack.c.bf16 %v385, %v384
      %v435 = vpack.c.bf16 %v387, %v386
      %v436 = vpack.c.bf16 %v389, %v388
      %v437 = vpack.c.bf16 %v391, %v390
      %v438 = vpack.c.bf16 %v393, %v392
      %v439 = vpack.c.bf16 %v395, %v394
      %v440 = vpack.c.bf16 %v397, %v396
      %v441 = vpack.c.bf16 %v399, %v398
      %v442 = vpack.c.bf16 %v401, %v400
      %v443 = vpack.c.bf16 %v403, %v402
      %v444 = vpack.c.bf16 %v405, %v404
      %v445 = vpack.c.bf16 %v407, %v406
      %v446 = vpack.c.bf16 %v409, %v408
      %v447 = vpack.c.bf16 %v411, %v410
      %v448 = vpack.c.bf16 %v413, %v412
      %v449 = vpack.c.bf16 %v415, %v414
      %v450 = vpack.c.bf16 %v417, %v416
      %v451 = vpack.c.bf16 %v419, %v418
      %v452 = vld [vmem:[%s1] sm:$0xf]
      %v453 = vld [vmem:[%s1 + $0x4] sm:$0xf]
      %v454 = vld [vmem:[%s1 + $0x8] sm:$0xf]
      %v455 = vld [vmem:[%s1 + $0xc] sm:$0xf]
      %v456 = vld [vmem:[%s1 + $0x10] sm:$0xf]
      %v457 = vld [vmem:[%s1 + $0x14] sm:$0xf]
      %v458 = vld [vmem:[%s1 + $0x18] sm:$0xf]
      %v459 = vld [vmem:[%s1 + $0x1c] sm:$0xf]
      %v460 = vld [vmem:[%s1 + $0x20] sm:$0xf]
      %v461 = vld [vmem:[%s1 + $0x24] sm:$0xf]
      %v462 = vld [vmem:[%s1 + $0x28] sm:$0xf]
      %v463 = vld [vmem:[%s1 + $0x2c] sm:$0xf]
      %v464 = vld [vmem:[%s1 + $0x30] sm:$0xf]
      %v465 = vld [vmem:[%s1 + $0x34] sm:$0xf]
      %v466 = vld [vmem:[%s1 + $0x38] sm:$0xf]
      %v467 = vld [vmem:[%s1 + $0x3c] sm:$0xf]
      %v484 = vunpack.c.l.b16 %v452
      %v485 = vunpack.c.l.b16 %v453
      %v486 = vunpack.c.l.b16 %v454
      %v487 = vunpack.c.l.b16 %v455
      %v488 = vunpack.c.l.b16 %v456
      %v489 = vunpack.c.l.b16 %v457
      %v490 = vunpack.c.l.b16 %v458
      %v491 = vunpack.c.l.b16 %v459
      %v492 = vunpack.c.l.b16 %v460
      %v493 = vunpack.c.l.b16 %v461
      %v494 = vunpack.c.l.b16 %v462
      %v495 = vunpack.c.l.b16 %v463
      %v496 = vunpack.c.l.b16 %v464
      %v497 = vunpack.c.l.b16 %v465
      %v498 = vunpack.c.l.b16 %v466
      %v499 = vunpack.c.l.b16 %v467
      %v500 = vpack.c.b16 %v485, %v484
      %v501 = vpack.c.b16 %v487, %v486
      %v502 = vpack.c.b16 %v489, %v488
      %v503 = vpack.c.b16 %v491, %v490
      %v504 = vpack.c.b16 %v493, %v492
      %v505 = vpack.c.b16 %v495, %v494
      %v506 = vpack.c.b16 %v497, %v496
      %v507 = vpack.c.b16 %v499, %v498
      %516 = vmatprep.subr.bf16.mxu0 0
      %517 = vmatpush1.bf16.msra.mxu0 %v507
      %518 = vmatprep.subr.bf16.mxu0 0
      %519 = vmatpush1.bf16.msra.mxu0 %v506
      %520 = vmatprep.subr.bf16.mxu0 0
      %521 = vmatpush1.bf16.msra.mxu0 %v505
      %522 = vmatprep.subr.bf16.mxu0 0
      %523 = vmatpush1.bf16.msra.mxu0 %v504
      %524 = vmatprep.subr.bf16.mxu0 0
      %525 = vmatpush1.bf16.msra.mxu0 %v503
      %526 = vmatprep.subr.bf16.mxu0 0
      %527 = vmatpush1.bf16.msra.mxu0 %v502
      %528 = vmatprep.subr.bf16.mxu0 0
      %529 = vmatpush1.bf16.msra.mxu0 %v501
      %530 = vmatprep.subr.bf16.mxu0 0
      %531 = vmatpush1.bf16.msra.mxu0 %v500
      %532 = vmatprep.subr.bf16.mxu0 0
      %533 = vmatpush2.bf16.msra.mxu0 0
      %534 = vmatprep.subr.bf16.mxu0 0
      %535 = vmatpush2.bf16.msra.mxu0 0
      %536 = vmatprep.subr.bf16.mxu0 0
      %537 = vmatpush2.bf16.msra.mxu0 0
      %538 = vmatprep.subr.bf16.mxu0 0
      %539 = vmatpush2.bf16.msra.mxu0 0
      %540 = vmatprep.subr.bf16.mxu0 0
      %541 = vmatpush2.bf16.msra.mxu0 0
      %542 = vmatprep.subr.bf16.mxu0 0
      %543 = vmatpush2.bf16.msra.mxu0 0
      %544 = vmatprep.subr.bf16.mxu0 0
      %545 = vmatpush2.bf16.msra.mxu0 0
      %546 = vmatprep.subr.bf16.mxu0 0
      %547 = vmatpush2.bf16.msra.mxu0 0
      %548 = vmatprep.mubr.bf16.mxu0 0
      %549 = vmatmul.mubr.bf16.gmra.mxu0 %v420
      %v550 = vpop.f32.mrf.mxu0
      %v551 = vadd.f32 0.0, %v550
      %v552 = vpop.f32.mrf.mxu0
      %v553 = vpop.f32.mrf.mxu0
      %v554 = vadd.f32 0.0, %v553
      %v555 = vpop.f32.mrf.mxu0
      %556 = vmatprep.mubr.bf16.mxu0 0
      %557 = vmatmul.mubr.bf16.gmra.mxu0 %v421
      %v558 = vpop.f32.mrf.mxu0
      %v559 = vadd.f32 0.0, %v558
      %v560 = vpop.f32.mrf.mxu0
      %v561 = vpop.f32.mrf.mxu0
      %v562 = vadd.f32 0.0, %v561
      %v563 = vpop.f32.mrf.mxu0
      %564 = vmatprep.mubr.bf16.mxu0 0
      %565 = vmatmul.mubr.bf16.gmra.mxu0 %v422
      %v566 = vpop.f32.mrf.mxu0
      %v567 = vadd.f32 0.0, %v566
      %v568 = vpop.f32.mrf.mxu0
      %v569 = vpop.f32.mrf.mxu0
      %v570 = vadd.f32 0.0, %v569
      %v571 = vpop.f32.mrf.mxu0
      %572 = vmatprep.mubr.bf16.mxu0 0
      %573 = vmatmul.mubr.bf16.gmra.mxu0 %v423
      %v574 = vpop.f32.mrf.mxu0
      %v575 = vadd.f32 0.0, %v574
      %v576 = vpop.f32.mrf.mxu0
      %v577 = vpop.f32.mrf.mxu0
      %v578 = vadd.f32 0.0, %v577
      %v579 = vpop.f32.mrf.mxu0
      %580 = vmatprep.mubr.bf16.mxu0 0
      %581 = vmatmul.mubr.bf16.gmra.mxu0 %v424
      %v582 = vpop.f32.mrf.mxu0
      %v583 = vadd.f32 0.0, %v582
      %v584 = vpop.f32.mrf.mxu0
      %v585 = vpop.f32.mrf.mxu0
      %v586 = vadd.f32 0.0, %v585
      %v587 = vpop.f32.mrf.mxu0
      %588 = vmatprep.mubr.bf16.mxu0 0
      %589 = vmatmul.mubr.bf16.gmra.mxu0 %v425
      %v590 = vpop.f32.mrf.mxu0
      %v591 = vadd.f32 0.0, %v590
      %v592 = vpop.f32.mrf.mxu0
      %v593 = vpop.f32.mrf.mxu0
      %v594 = vadd.f32 0.0, %v593
      %v595 = vpop.f32.mrf.mxu0
      %596 = vmatprep.mubr.bf16.mxu0 0
      %597 = vmatmul.mubr.bf16.gmra.mxu0 %v426
      %v598 = vpop.f32.mrf.mxu0
      %v599 = vadd.f32 0.0, %v598
      %v600 = vpop.f32.mrf.mxu0
      %v601 = vpop.f32.mrf.mxu0
      %v602 = vadd.f32 0.0, %v601
      %v603 = vpop.f32.mrf.mxu0
      %604 = vmatprep.mubr.bf16.mxu0 0
      %605 = vmatmul.mubr.bf16.gmra.mxu0 %v427
      %v606 = vpop.f32.mrf.mxu0
      %v607 = vadd.f32 0.0, %v606
      %v608 = vpop.f32.mrf.mxu0
      %v609 = vpop.f32.mrf.mxu0
      %v610 = vadd.f32 0.0, %v609
      %v611 = vpop.f32.mrf.mxu0
      %612 = vmatprep.mubr.bf16.mxu0 0
      %613 = vmatmul.mubr.bf16.gmra.mxu0 %v428
      %v614 = vpop.f32.mrf.mxu0
      %v615 = vadd.f32 0.0, %v614
      %v616 = vpop.f32.mrf.mxu0
      %v617 = vpop.f32.mrf.mxu0
      %v618 = vadd.f32 0.0, %v617
      %v619 = vpop.f32.mrf.mxu0
      %620 = vmatprep.mubr.bf16.mxu0 0
      %621 = vmatmul.mubr.bf16.gmra.mxu0 %v429
      %v622 = vpop.f32.mrf.mxu0
      %v623 = vadd.f32 0.0, %v622
      %v624 = vpop.f32.mrf.mxu0
      %v625 = vpop.f32.mrf.mxu0
      %v626 = vadd.f32 0.0, %v625
      %v627 = vpop.f32.mrf.mxu0
      %628 = vmatprep.mubr.bf16.mxu0 0
      %629 = vmatmul.mubr.bf16.gmra.mxu0 %v430
      %v630 = vpop.f32.mrf.mxu0
      %v631 = vadd.f32 0.0, %v630
      %v632 = vpop.f32.mrf.mxu0
      %v633 = vpop.f32.mrf.mxu0
      %v634 = vadd.f32 0.0, %v633
      %v635 = vpop.f32.mrf.mxu0
      %636 = vmatprep.mubr.bf16.mxu0 0
      %637 = vmatmul.mubr.bf16.gmra.mxu0 %v431
      %v638 = vpop.f32.mrf.mxu0
      %v639 = vadd.f32 0.0, %v638
      %v640 = vpop.f32.mrf.mxu0
      %v641 = vpop.f32.mrf.mxu0
      %v642 = vadd.f32 0.0, %v641
      %v643 = vpop.f32.mrf.mxu0
      %644 = vmatprep.mubr.bf16.mxu0 0
      %645 = vmatmul.mubr.bf16.gmra.mxu0 %v432
      %v646 = vpop.f32.mrf.mxu0
      %v647 = vadd.f32 0.0, %v646
      %v648 = vpop.f32.mrf.mxu0
      %v649 = vpop.f32.mrf.mxu0
      %v650 = vadd.f32 0.0, %v649
      %v651 = vpop.f32.mrf.mxu0
      %652 = vmatprep.mubr.bf16.mxu0 0
      %653 = vmatmul.mubr.bf16.gmra.mxu0 %v433
      %v654 = vpop.f32.mrf.mxu0
      %v655 = vadd.f32 0.0, %v654
      %v656 = vpop.f32.mrf.mxu0
      %v657 = vpop.f32.mrf.mxu0
      %v658 = vadd.f32 0.0, %v657
      %v659 = vpop.f32.mrf.mxu0
      %660 = vmatprep.mubr.bf16.mxu0 0
      %661 = vmatmul.mubr.bf16.gmra.mxu0 %v434
      %v662 = vpop.f32.mrf.mxu0
      %v663 = vadd.f32 0.0, %v662
      %v664 = vpop.f32.mrf.mxu0
      %v665 = vpop.f32.mrf.mxu0
      %v666 = vadd.f32 0.0, %v665
      %v667 = vpop.f32.mrf.mxu0
      %668 = vmatprep.mubr.bf16.mxu0 0
      %669 = vmatmul.mubr.bf16.gmra.mxu0 %v435
      %v670 = vpop.f32.mrf.mxu0
      %v671 = vadd.f32 0.0, %v670
      %v672 = vpop.f32.mrf.mxu0
      %v673 = vpop.f32.mrf.mxu0
      %v674 = vadd.f32 0.0, %v673
      %v675 = vpop.f32.mrf.mxu0
      %676 = vmatprep.mubr.bf16.mxu0 0
      %677 = vmatmul.mubr.bf16.gmra.mxu0 %v436
      %v678 = vpop.f32.mrf.mxu0
      %v679 = vadd.f32 0.0, %v678
      %v680 = vpop.f32.mrf.mxu0
      %v681 = vpop.f32.mrf.mxu0
      %v682 = vadd.f32 0.0, %v681
      %v683 = vpop.f32.mrf.mxu0
      %684 = vmatprep.mubr.bf16.mxu0 0
      %685 = vmatmul.mubr.bf16.gmra.mxu0 %v437
      %v686 = vpop.f32.mrf.mxu0
      %v687 = vadd.f32 0.0, %v686
      %v688 = vpop.f32.mrf.mxu0
      %v689 = vpop.f32.mrf.mxu0
      %v690 = vadd.f32 0.0, %v689
      %v691 = vpop.f32.mrf.mxu0
      %692 = vmatprep.mubr.bf16.mxu0 0
      %693 = vmatmul.mubr.bf16.gmra.mxu0 %v438
      %v694 = vpop.f32.mrf.mxu0
      %v695 = vadd.f32 0.0, %v694
      %v696 = vpop.f32.mrf.mxu0
      %v697 = vpop.f32.mrf.mxu0
      %v698 = vadd.f32 0.0, %v697
      %v699 = vpop.f32.mrf.mxu0
      %700 = vmatprep.mubr.bf16.mxu0 0
      %701 = vmatmul.mubr.bf16.gmra.mxu0 %v439
      %v702 = vpop.f32.mrf.mxu0
      %v703 = vadd.f32 0.0, %v702
      %v704 = vpop.f32.mrf.mxu0
      %v705 = vpop.f32.mrf.mxu0
      %v706 = vadd.f32 0.0, %v705
      %v707 = vpop.f32.mrf.mxu0
      %708 = vmatprep.mubr.bf16.mxu0 0
      %709 = vmatmul.mubr.bf16.gmra.mxu0 %v440
      %v710 = vpop.f32.mrf.mxu0
      %v711 = vadd.f32 0.0, %v710
      %v712 = vpop.f32.mrf.mxu0
      %v713 = vpop.f32.mrf.mxu0
      %v714 = vadd.f32 0.0, %v713
      %v715 = vpop.f32.mrf.mxu0
      %716 = vmatprep.mubr.bf16.mxu0 0
      %717 = vmatmul.mubr.bf16.gmra.mxu0 %v441
      %v718 = vpop.f32.mrf.mxu0
      %v719 = vadd.f32 0.0, %v718
      %v720 = vpop.f32.mrf.mxu0
      %v721 = vpop.f32.mrf.mxu0
      %v722 = vadd.f32 0.0, %v721
      %v723 = vpop.f32.mrf.mxu0
      %724 = vmatprep.mubr.bf16.mxu0 0
      %725 = vmatmul.mubr.bf16.gmra.mxu0 %v442
      %v726 = vpop.f32.mrf.mxu0
      %v727 = vadd.f32 0.0, %v726
      %v728 = vpop.f32.mrf.mxu0
      %v729 = vpop.f32.mrf.mxu0
      %v730 = vadd.f32 0.0, %v729
      %v731 = vpop.f32.mrf.mxu0
      %732 = vmatprep.mubr.bf16.mxu0 0
      %733 = vmatmul.mubr.bf16.gmra.mxu0 %v443
      %v734 = vpop.f32.mrf.mxu0
      %v735 = vadd.f32 0.0, %v734
      %v736 = vpop.f32.mrf.mxu0
      %v737 = vpop.f32.mrf.mxu0
      %v738 = vadd.f32 0.0, %v737
      %v739 = vpop.f32.mrf.mxu0
      %740 = vmatprep.mubr.bf16.mxu0 0
      %741 = vmatmul.mubr.bf16.gmra.mxu0 %v444
      %v742 = vpop.f32.mrf.mxu0
      %v743 = vadd.f32 0.0, %v742
      %v744 = vpop.f32.mrf.mxu0
      %v745 = vpop.f32.mrf.mxu0
      %v746 = vadd.f32 0.0, %v745
      %v747 = vpop.f32.mrf.mxu0
      %748 = vmatprep.mubr.bf16.mxu0 0
      %749 = vmatmul.mubr.bf16.gmra.mxu0 %v445
      %v750 = vpop.f32.mrf.mxu0
      %v751 = vadd.f32 0.0, %v750
      %v752 = vpop.f32.mrf.mxu0
      %v753 = vpop.f32.mrf.mxu0
      %v754 = vadd.f32 0.0, %v753
      %v755 = vpop.f32.mrf.mxu0
      %756 = vmatprep.mubr.bf16.mxu0 0
      %757 = vmatmul.mubr.bf16.gmra.mxu0 %v446
      %v758 = vpop.f32.mrf.mxu0
      %v759 = vadd.f32 0.0, %v758
      %v760 = vpop.f32.mrf.mxu0
      %v761 = vpop.f32.mrf.mxu0
      %v762 = vadd.f32 0.0, %v761
      %v763 = vpop.f32.mrf.mxu0
      %764 = vmatprep.mubr.bf16.mxu0 0
      %765 = vmatmul.mubr.bf16.gmra.mxu0 %v447
      %v766 = vpop.f32.mrf.mxu0
      %v767 = vadd.f32 0.0, %v766
      %v768 = vpop.f32.mrf.mxu0
      %v769 = vpop.f32.mrf.mxu0
      %v770 = vadd.f32 0.0, %v769
      %v771 = vpop.f32.mrf.mxu0
      %772 = vmatprep.mubr.bf16.mxu0 0
      %773 = vmatmul.mubr.bf16.gmra.mxu0 %v448
      %v774 = vpop.f32.mrf.mxu0
      %v775 = vadd.f32 0.0, %v774
      %v776 = vpop.f32.mrf.mxu0
      %v777 = vpop.f32.mrf.mxu0
      %v778 = vadd.f32 0.0, %v777
      %v779 = vpop.f32.mrf.mxu0
      %780 = vmatprep.mubr.bf16.mxu0 0
      %781 = vmatmul.mubr.bf16.gmra.mxu0 %v449
      %v782 = vpop.f32.mrf.mxu0
      %v783 = vadd.f32 0.0, %v782
      %v784 = vpop.f32.mrf.mxu0
      %v785 = vpop.f32.mrf.mxu0
      %v786 = vadd.f32 0.0, %v785
      %v787 = vpop.f32.mrf.mxu0
      %788 = vmatprep.mubr.bf16.mxu0 0
      %789 = vmatmul.mubr.bf16.gmra.mxu0 %v450
      %v790 = vpop.f32.mrf.mxu0
      %v791 = vadd.f32 0.0, %v790
      %v792 = vpop.f32.mrf.mxu0
      %v793 = vpop.f32.mrf.mxu0
      %v794 = vadd.f32 0.0, %v793
      %v795 = vpop.f32.mrf.mxu0
      %796 = vmatprep.mubr.bf16.mxu0 0
      %797 = vmatmul.mubr.bf16.gmra.mxu0 %v451
      %v798 = vpop.f32.mrf.mxu0
      %v799 = vadd.f32 0.0, %v798
      %v800 = vpop.f32.mrf.mxu0
      %v801 = vpop.f32.mrf.mxu0
      %v802 = vadd.f32 0.0, %v801
      %v803 = vpop.f32.mrf.mxu0
      %804 = vdwg.mxu0
      %v805 = vpack.c.bf16 %v554, %v551
      %v806 = vpack.c.bf16 %v562, %v559
      %v807 = vpack.c.bf16 %v570, %v567
      %v808 = vpack.c.bf16 %v578, %v575
      %v809 = vpack.c.bf16 %v586, %v583
      %v810 = vpack.c.bf16 %v594, %v591
      %v811 = vpack.c.bf16 %v602, %v599
      %v812 = vpack.c.bf16 %v610, %v607
      %v813 = vpack.c.bf16 %v618, %v615
      %v814 = vpack.c.bf16 %v626, %v623
      %v815 = vpack.c.bf16 %v634, %v631
      %v816 = vpack.c.bf16 %v642, %v639
      %v817 = vpack.c.bf16 %v650, %v647
      %v818 = vpack.c.bf16 %v658, %v655
      %v819 = vpack.c.bf16 %v666, %v663
      %v820 = vpack.c.bf16 %v674, %v671
      %v821 = vpack.c.bf16 %v682, %v679
      %v822 = vpack.c.bf16 %v690, %v687
      %v823 = vpack.c.bf16 %v698, %v695
      %v824 = vpack.c.bf16 %v706, %v703
      %v825 = vpack.c.bf16 %v714, %v711
      %v826 = vpack.c.bf16 %v722, %v719
      %v827 = vpack.c.bf16 %v730, %v727
      %v828 = vpack.c.bf16 %v738, %v735
      %v829 = vpack.c.bf16 %v746, %v743
      %v830 = vpack.c.bf16 %v754, %v751
      %v831 = vpack.c.bf16 %v762, %v759
      %v832 = vpack.c.bf16 %v770, %v767
      %v833 = vpack.c.bf16 %v778, %v775
      %v834 = vpack.c.bf16 %v786, %v783
      %v835 = vpack.c.bf16 %v794, %v791
      %v836 = vpack.c.bf16 %v802, %v799
      %v869 = vunpack.c.l.b16 %v805
      %v870 = vunpack.c.h.b16 %v805
      %v871 = vunpack.c.l.b16 %v806
      %v872 = vunpack.c.h.b16 %v806
      %v873 = vunpack.c.l.b16 %v807
      %v874 = vunpack.c.h.b16 %v807
      %v875 = vunpack.c.l.b16 %v808
      %v876 = vunpack.c.h.b16 %v808
      %v877 = vunpack.c.l.b16 %v809
      %v878 = vunpack.c.h.b16 %v809
      %v879 = vunpack.c.l.b16 %v810
      %v880 = vunpack.c.h.b16 %v810
      %v881 = vunpack.c.l.b16 %v811
      %v882 = vunpack.c.h.b16 %v811
      %v883 = vunpack.c.l.b16 %v812
      %v884 = vunpack.c.h.b16 %v812
      %v885 = vunpack.c.l.b16 %v813
      %v886 = vunpack.c.h.b16 %v813
      %v887 = vunpack.c.l.b16 %v814
      %v888 = vunpack.c.h.b16 %v814
      %v889 = vunpack.c.l.b16 %v815
      %v890 = vunpack.c.h.b16 %v815
      %v891 = vunpack.c.l.b16 %v816
      %v892 = vunpack.c.h.b16 %v816
      %v893 = vunpack.c.l.b16 %v817
      %v894 = vunpack.c.h.b16 %v817
      %v895 = vunpack.c.l.b16 %v818
      %v896 = vunpack.c.h.b16 %v818
      %v897 = vunpack.c.l.b16 %v819
      %v898 = vunpack.c.h.b16 %v819
      %v899 = vunpack.c.l.b16 %v820
      %v900 = vunpack.c.h.b16 %v820
      %v901 = vunpack.c.l.b16 %v821
      %v902 = vunpack.c.h.b16 %v821
      %v903 = vunpack.c.l.b16 %v822
      %v904 = vunpack.c.h.b16 %v822
      %v905 = vunpack.c.l.b16 %v823
      %v906 = vunpack.c.h.b16 %v823
      %v907 = vunpack.c.l.b16 %v824
      %v908 = vunpack.c.h.b16 %v824
      %v909 = vunpack.c.l.b16 %v825
      %v910 = vunpack.c.h.b16 %v825
      %v911 = vunpack.c.l.b16 %v826
      %v912 = vunpack.c.h.b16 %v826
      %v913 = vunpack.c.l.b16 %v827
      %v914 = vunpack.c.h.b16 %v827
      %v915 = vunpack.c.l.b16 %v828
      %v916 = vunpack.c.h.b16 %v828
      %v917 = vunpack.c.l.b16 %v829
      %v918 = vunpack.c.h.b16 %v829
      %v919 = vunpack.c.l.b16 %v830
      %v920 = vunpack.c.h.b16 %v830
      %v921 = vunpack.c.l.b16 %v831
      %v922 = vunpack.c.h.b16 %v831
      %v923 = vunpack.c.l.b16 %v832
      %v924 = vunpack.c.h.b16 %v832
      %v925 = vunpack.c.l.b16 %v833
      %v926 = vunpack.c.h.b16 %v833
      %v927 = vunpack.c.l.b16 %v834
      %v928 = vunpack.c.h.b16 %v834
      %v929 = vunpack.c.l.b16 %v835
      %v930 = vunpack.c.h.b16 %v835
      %v931 = vunpack.c.l.b16 %v836
      %v932 = vunpack.c.h.b16 %v836
      %v933 = vpack.c.b16 %v869, %v869
      %v934 = vpack.c.b16 %v870, %v870
      %v935 = vpack.c.b16 %v871, %v871
      %v936 = vpack.c.b16 %v872, %v872
      %v937 = vpack.c.b16 %v873, %v873
      %v938 = vpack.c.b16 %v874, %v874
      %v939 = vpack.c.b16 %v875, %v875
      %v940 = vpack.c.b16 %v876, %v876
      %v941 = vpack.c.b16 %v877, %v877
      %v942 = vpack.c.b16 %v878, %v878
      %v943 = vpack.c.b16 %v879, %v879
      %v944 = vpack.c.b16 %v880, %v880
      %v945 = vpack.c.b16 %v881, %v881
      %v946 = vpack.c.b16 %v882, %v882
      %v947 = vpack.c.b16 %v883, %v883
      %v948 = vpack.c.b16 %v884, %v884
      %v949 = vpack.c.b16 %v885, %v885
      %v950 = vpack.c.b16 %v886, %v886
      %v951 = vpack.c.b16 %v887, %v887
      %v952 = vpack.c.b16 %v888, %v888
      %v953 = vpack.c.b16 %v889, %v889
      %v954 = vpack.c.b16 %v890, %v890
      %v955 = vpack.c.b16 %v891, %v891
      %v956 = vpack.c.b16 %v892, %v892
      %v957 = vpack.c.b16 %v893, %v893
      %v958 = vpack.c.b16 %v894, %v894
      %v959 = vpack.c.b16 %v895, %v895
      %v960 = vpack.c.b16 %v896, %v896
      %v961 = vpack.c.b16 %v897, %v897
      %v962 = vpack.c.b16 %v898, %v898
      %v963 = vpack.c.b16 %v899, %v899
      %v964 = vpack.c.b16 %v900, %v900
      %v965 = vpack.c.b16 %v901, %v901
      %v966 = vpack.c.b16 %v902, %v902
      %v967 = vpack.c.b16 %v903, %v903
      %v968 = vpack.c.b16 %v904, %v904
      %v969 = vpack.c.b16 %v905, %v905
      %v970 = vpack.c.b16 %v906, %v906
      %v971 = vpack.c.b16 %v907, %v907
      %v972 = vpack.c.b16 %v908, %v908
      %v973 = vpack.c.b16 %v909, %v909
      %v974 = vpack.c.b16 %v910, %v910
      %v975 = vpack.c.b16 %v911, %v911
      %v976 = vpack.c.b16 %v912, %v912
      %v977 = vpack.c.b16 %v913, %v913
      %v978 = vpack.c.b16 %v914, %v914
      %v979 = vpack.c.b16 %v915, %v915
      %v980 = vpack.c.b16 %v916, %v916
      %v981 = vpack.c.b16 %v917, %v917
      %v982 = vpack.c.b16 %v918, %v918
      %v983 = vpack.c.b16 %v919, %v919
      %v984 = vpack.c.b16 %v920, %v920
      %v985 = vpack.c.b16 %v921, %v921
      %v986 = vpack.c.b16 %v922, %v922
      %v987 = vpack.c.b16 %v923, %v923
      %v988 = vpack.c.b16 %v924, %v924
      %v989 = vpack.c.b16 %v925, %v925
      %v990 = vpack.c.b16 %v926, %v926
      %v991 = vpack.c.b16 %v927, %v927
      %v992 = vpack.c.b16 %v928, %v928
      %v993 = vpack.c.b16 %v929, %v929
      %v994 = vpack.c.b16 %v930, %v930
      %v995 = vpack.c.b16 %v931, %v931
      %v996 = vpack.c.b16 %v932, %v932
      %1061 = vst [vmem:[%s335] sm:$0xf] %v933
      %1062 = vst [vmem:[%s335 + $0x4] sm:$0xf] %v934
      %1063 = vst [vmem:[%s335 + $0x8] sm:$0xf] %v935
      %1064 = vst [vmem:[%s335 + $0xc] sm:$0xf] %v936
      %1065 = vst [vmem:[%s335 + $0x10] sm:$0xf] %v937
      %1066 = vst [vmem:[%s335 + $0x14] sm:$0xf] %v938
      %1067 = vst [vmem:[%s335 + $0x18] sm:$0xf] %v939
      %1068 = vst [vmem:[%s335 + $0x1c] sm:$0xf] %v940
      %1069 = vst [vmem:[%s335 + $0x20] sm:$0xf] %v941
      %1070 = vst [vmem:[%s335 + $0x24] sm:$0xf] %v942
      %1071 = vst [vmem:[%s335 + $0x28] sm:$0xf] %v943
      %1072 = vst [vmem:[%s335 + $0x2c] sm:$0xf] %v944
      %1073 = vst [vmem:[%s335 + $0x30] sm:$0xf] %v945
      %1074 = vst [vmem:[%s335 + $0x34] sm:$0xf] %v946
      %1075 = vst [vmem:[%s335 + $0x38] sm:$0xf] %v947
      %1076 = vst [vmem:[%s335 + $0x3c] sm:$0xf] %v948
      %1077 = vst [vmem:[%s335 + $0x40] sm:$0xf] %v949
      %1078 = vst [vmem:[%s335 + $0x44] sm:$0xf] %v950
      %1079 = vst [vmem:[%s335 + $0x48] sm:$0xf] %v951
      %1080 = vst [vmem:[%s335 + $0x4c] sm:$0xf] %v952
      %1081 = vst [vmem:[%s335 + $0x50] sm:$0xf] %v953
      %1082 = vst [vmem:[%s335 + $0x54] sm:$0xf] %v954
      %1083 = vst [vmem:[%s335 + $0x58] sm:$0xf] %v955
      %1084 = vst [vmem:[%s335 + $0x5c] sm:$0xf] %v956
      %1085 = vst [vmem:[%s335 + $0x60] sm:$0xf] %v957
      %1086 = vst [vmem:[%s335 + $0x64] sm:$0xf] %v958
      %1087 = vst [vmem:[%s335 + $0x68] sm:$0xf] %v959
      %1088 = vst [vmem:[%s335 + $0x6c] sm:$0xf] %v960
      %1089 = vst [vmem:[%s335 + $0x70] sm:$0xf] %v961
      %1090 = vst [vmem:[%s335 + $0x74] sm:$0xf] %v962
      %1091 = vst [vmem:[%s335 + $0x78] sm:$0xf] %v963
      %1092 = vst [vmem:[%s335 + $0x7c] sm:$0xf] %v964
      %1093 = vst [vmem:[%s335 + $0x80] sm:$0xf] %v965
      %1094 = vst [vmem:[%s335 + $0x84] sm:$0xf] %v966
      %1095 = vst [vmem:[%s335 + $0x88] sm:$0xf] %v967
      %1096 = vst [vmem:[%s335 + $0x8c] sm:$0xf] %v968
      %1097 = vst [vmem:[%s335 + $0x90] sm:$0xf] %v969
      %1098 = vst [vmem:[%s335 + $0x94] sm:$0xf] %v970
      %1099 = vst [vmem:[%s335 + $0x98] sm:$0xf] %v971
      %1100 = vst [vmem:[%s335 + $0x9c] sm:$0xf] %v972
      %1101 = vst [vmem:[%s335 + $0xa0] sm:$0xf] %v973
      %1102 = vst [vmem:[%s335 + $0xa4] sm:$0xf] %v974
      %1103 = vst [vmem:[%s335 + $0xa8] sm:$0xf] %v975
      %1104 = vst [vmem:[%s335 + $0xac] sm:$0xf] %v976
      %1105 = vst [vmem:[%s335 + $0xb0] sm:$0xf] %v977
      %1106 = vst [vmem:[%s335 + $0xb4] sm:$0xf] %v978
      %1107 = vst [vmem:[%s335 + $0xb8] sm:$0xf] %v979
      %1108 = vst [vmem:[%s335 + $0xbc] sm:$0xf] %v980
      %1109 = vst [vmem:[%s335 + $0xc0] sm:$0xf] %v981
      %1110 = vst [vmem:[%s335 + $0xc4] sm:$0xf] %v982
      %1111 = vst [vmem:[%s335 + $0xc8] sm:$0xf] %v983
      %1112 = vst [vmem:[%s335 + $0xcc] sm:$0xf] %v984
      %1113 = vst [vmem:[%s335 + $0xd0] sm:$0xf] %v985
      %1114 = vst [vmem:[%s335 + $0xd4] sm:$0xf] %v986
      %1115 = vst [vmem:[%s335 + $0xd8] sm:$0xf] %v987
      %1116 = vst [vmem:[%s335 + $0xdc] sm:$0xf] %v988
      %1117 = vst [vmem:[%s335 + $0xe0] sm:$0xf] %v989
      %1118 = vst [vmem:[%s335 + $0xe4] sm:$0xf] %v990
      %1119 = vst [vmem:[%s335 + $0xe8] sm:$0xf] %v991
      %1120 = vst [vmem:[%s335 + $0xec] sm:$0xf] %v992
      %1121 = vst [vmem:[%s335 + $0xf0] sm:$0xf] %v993
      %1122 = vst [vmem:[%s335 + $0xf4] sm:$0xf] %v994
      %1123 = vst [vmem:[%s335 + $0xf8] sm:$0xf] %v995
      %1124 = vst [vmem:[%s335 + $0xfc] sm:$0xf] %v996
      %v1125 = vadd.f32 %v551, %v554
      %v1126 = vadd.f32 %v1125, %v559
      %v1127 = vadd.f32 %v1126, %v562
      %v1128 = vadd.f32 %v1127, %v567
      %v1129 = vadd.f32 %v1128, %v570
      %v1130 = vadd.f32 %v1129, %v575
      %v1131 = vadd.f32 %v1130, %v578
      %v1132 = vadd.f32 %v1131, %v583
      %v1133 = vadd.f32 %v1132, %v586
      %v1134 = vadd.f32 %v1133, %v591
      %v1135 = vadd.f32 %v1134, %v594
      %v1136 = vadd.f32 %v1135, %v599
      %v1137 = vadd.f32 %v1136, %v602
      %v1138 = vadd.f32 %v1137, %v607
      %v1139 = vadd.f32 %v1138, %v610
      %v1140 = vadd.f32 %v1139, %v615
      %v1141 = vadd.f32 %v1140, %v618
      %v1142 = vadd.f32 %v1141, %v623
      %v1143 = vadd.f32 %v1142, %v626
      %v1144 = vadd.f32 %v1143, %v631
      %v1145 = vadd.f32 %v1144, %v634
      %v1146 = vadd.f32 %v1145, %v639
      %v1147 = vadd.f32 %v1146, %v642
      %v1148 = vadd.f32 %v1147, %v647
      %v1149 = vadd.f32 %v1148, %v650
      %v1150 = vadd.f32 %v1149, %v655
      %v1151 = vadd.f32 %v1150, %v658
      %v1152 = vadd.f32 %v1151, %v663
      %v1153 = vadd.f32 %v1152, %v666
      %v1154 = vadd.f32 %v1153, %v671
      %v1155 = vadd.f32 %v1154, %v674
      %v1156 = vadd.f32 %v1155, %v679
      %v1157 = vadd.f32 %v1156, %v682
      %v1158 = vadd.f32 %v1157, %v687
      %v1159 = vadd.f32 %v1158, %v690
      %v1160 = vadd.f32 %v1159, %v695
      %v1161 = vadd.f32 %v1160, %v698
      %v1162 = vadd.f32 %v1161, %v703
      %v1163 = vadd.f32 %v1162, %v706
      %v1164 = vadd.f32 %v1163, %v711
      %v1165 = vadd.f32 %v1164, %v714
      %v1166 = vadd.f32 %v1165, %v719
      %v1167 = vadd.f32 %v1166, %v722
      %v1168 = vadd.f32 %v1167, %v727
      %v1169 = vadd.f32 %v1168, %v730
      %v1170 = vadd.f32 %v1169, %v735
      %v1171 = vadd.f32 %v1170, %v738
      %v1172 = vadd.f32 %v1171, %v743
      %v1173 = vadd.f32 %v1172, %v746
      %v1174 = vadd.f32 %v1173, %v751
      %v1175 = vadd.f32 %v1174, %v754
      %v1176 = vadd.f32 %v1175, %v759
      %v1177 = vadd.f32 %v1176, %v762
      %v1178 = vadd.f32 %v1177, %v767
      %v1179 = vadd.f32 %v1178, %v770
      %v1180 = vadd.f32 %v1179, %v775
      %v1181 = vadd.f32 %v1180, %v778
      %v1182 = vadd.f32 %v1181, %v783
      %v1183 = vadd.f32 %v1182, %v786
      %v1184 = vadd.f32 %v1183, %v791
      %v1185 = vadd.f32 %v1184, %v794
      %v1186 = vadd.f32 %v1185, %v799
      %v1187 = vadd.f32 %v1186, %v802
      %v1188 = vrot.slane %v1187, 4
      %v1189 = vadd.f32 %v1187, %v1188
      %v1190 = vrot.slane %v1189, 2
      %v1191 = vadd.f32 %v1189, %v1190
      %v1192 = vrot.slane %v1191, 1
      %v1193 = vadd.f32 %v1191, %v1192
      %1194 = vst [vmem:[%s345] sm:$0x1] %v1193
      %v1195 = vmul.f32 %v551, %v551
      %v1196 = vmul.f32 %v554, %v554
      %v1197 = vmul.f32 %v559, %v559
      %v1198 = vmul.f32 %v562, %v562
      %v1199 = vmul.f32 %v567, %v567
      %v1200 = vmul.f32 %v570, %v570
      %v1201 = vmul.f32 %v575, %v575
      %v1202 = vmul.f32 %v578, %v578
      %v1203 = vmul.f32 %v583, %v583
      %v1204 = vmul.f32 %v586, %v586
      %v1205 = vmul.f32 %v591, %v591
      %v1206 = vmul.f32 %v594, %v594
      %v1207 = vmul.f32 %v599, %v599
      %v1208 = vmul.f32 %v602, %v602
      %v1209 = vmul.f32 %v607, %v607
      %v1210 = vmul.f32 %v610, %v610
      %v1211 = vmul.f32 %v615, %v615
      %v1212 = vmul.f32 %v618, %v618
      %v1213 = vmul.f32 %v623, %v623
      %v1214 = vmul.f32 %v626, %v626
      %v1215 = vmul.f32 %v631, %v631
      %v1216 = vmul.f32 %v634, %v634
      %v1217 = vmul.f32 %v639, %v639
      %v1218 = vmul.f32 %v642, %v642
      %v1219 = vmul.f32 %v647, %v647
      %v1220 = vmul.f32 %v650, %v650
      %v1221 = vmul.f32 %v655, %v655
      %v1222 = vmul.f32 %v658, %v658
      %v1223 = vmul.f32 %v663, %v663
      %v1224 = vmul.f32 %v666, %v666
      %v1225 = vmul.f32 %v671, %v671
      %v1226 = vmul.f32 %v674, %v674
      %v1227 = vmul.f32 %v679, %v679
      %v1228 = vmul.f32 %v682, %v682
      %v1229 = vmul.f32 %v687, %v687
      %v1230 = vmul.f32 %v690, %v690
      %v1231 = vmul.f32 %v695, %v695
      %v1232 = vmul.f32 %v698, %v698
      %v1233 = vmul.f32 %v703, %v703
      %v1234 = vmul.f32 %v706, %v706
      %v1235 = vmul.f32 %v711, %v711
      %v1236 = vmul.f32 %v714, %v714
      %v1237 = vmul.f32 %v719, %v719
      %v1238 = vmul.f32 %v722, %v722
      %v1239 = vmul.f32 %v727, %v727
      %v1240 = vmul.f32 %v730, %v730
      %v1241 = vmul.f32 %v735, %v735
      %v1242 = vmul.f32 %v738, %v738
      %v1243 = vmul.f32 %v743, %v743
      %v1244 = vmul.f32 %v746, %v746
      %v1245 = vmul.f32 %v751, %v751
      %v1246 = vmul.f32 %v754, %v754
      %v1247 = vmul.f32 %v759, %v759
      %v1248 = vmul.f32 %v762, %v762
      %v1249 = vmul.f32 %v767, %v767
      %v1250 = vmul.f32 %v770, %v770
      %v1251 = vmul.f32 %v775, %v775
      %v1252 = vmul.f32 %v778, %v778
      %v1253 = vmul.f32 %v783, %v783
      %v1254 = vmul.f32 %v786, %v786
      %v1255 = vmul.f32 %v791, %v791
      %v1256 = vmul.f32 %v794, %v794
      %v1257 = vmul.f32 %v799, %v799
      %v1258 = vmul.f32 %v802, %v802
      %v1259 = vadd.f32 %v1195, %v1196
      %v1260 = vadd.f32 %v1259, %v1197
      %v1261 = vadd.f32 %v1260, %v1198
      %v1262 = vadd.f32 %v1261, %v1199
      %v1263 = vadd.f32 %v1262, %v1200
      %v1264 = vadd.f32 %v1263, %v1201
      %v1265 = vadd.f32 %v1264, %v1202
      %v1266 = vadd.f32 %v1265, %v1203
      %v1267 = vadd.f32 %v1266, %v1204
      %v1268 = vadd.f32 %v1267, %v1205
      %v1269 = vadd.f32 %v1268, %v1206
      %v1270 = vadd.f32 %v1269, %v1207
      %v1271 = vadd.f32 %v1270, %v1208
      %v1272 = vadd.f32 %v1271, %v1209
      %v1273 = vadd.f32 %v1272, %v1210
      %v1274 = vadd.f32 %v1273, %v1211
      %v1275 = vadd.f32 %v1274, %v1212
      %v1276 = vadd.f32 %v1275, %v1213
      %v1277 = vadd.f32 %v1276, %v1214
      %v1278 = vadd.f32 %v1277, %v1215
      %v1279 = vadd.f32 %v1278, %v1216
      %v1280 = vadd.f32 %v1279, %v1217
      %v1281 = vadd.f32 %v1280, %v1218
      %v1282 = vadd.f32 %v1281, %v1219
      %v1283 = vadd.f32 %v1282, %v1220
      %v1284 = vadd.f32 %v1283, %v1221
      %v1285 = vadd.f32 %v1284, %v1222
      %v1286 = vadd.f32 %v1285, %v1223
      %v1287 = vadd.f32 %v1286, %v1224
      %v1288 = vadd.f32 %v1287, %v1225
      %v1289 = vadd.f32 %v1288, %v1226
      %v1290 = vadd.f32 %v1289, %v1227
      %v1291 = vadd.f32 %v1290, %v1228
      %v1292 = vadd.f32 %v1291, %v1229
      %v1293 = vadd.f32 %v1292, %v1230
      %v1294 = vadd.f32 %v1293, %v1231
      %v1295 = vadd.f32 %v1294, %v1232
      %v1296 = vadd.f32 %v1295, %v1233
      %v1297 = vadd.f32 %v1296, %v1234
      %v1298 = vadd.f32 %v1297, %v1235
      %v1299 = vadd.f32 %v1298, %v1236
      %v1300 = vadd.f32 %v1299, %v1237
      %v1301 = vadd.f32 %v1300, %v1238
      %v1302 = vadd.f32 %v1301, %v1239
      %v1303 = vadd.f32 %v1302, %v1240
      %v1304 = vadd.f32 %v1303, %v1241
      %v1305 = vadd.f32 %v1304, %v1242
      %v1306 = vadd.f32 %v1305, %v1243
      %v1307 = vadd.f32 %v1306, %v1244
      %v1308 = vadd.f32 %v1307, %v1245
      %v1309 = vadd.f32 %v1308, %v1246
      %v1310 = vadd.f32 %v1309, %v1247
      %v1311 = vadd.f32 %v1310, %v1248
      %v1312 = vadd.f32 %v1311, %v1249
      %v1313 = vadd.f32 %v1312, %v1250
      %v1314 = vadd.f32 %v1313, %v1251
      %v1315 = vadd.f32 %v1314, %v1252
      %v1316 = vadd.f32 %v1315, %v1253
      %v1317 = vadd.f32 %v1316, %v1254
      %v1318 = vadd.f32 %v1317, %v1255
      %v1319 = vadd.f32 %v1318, %v1256
      %v1320 = vadd.f32 %v1319, %v1257
      %v1321 = vadd.f32 %v1320, %v1258
      %v1322 = vrot.slane %v1321, 4
      %v1323 = vadd.f32 %v1321, %v1322
      %v1324 = vrot.slane %v1323, 2
      %v1325 = vadd.f32 %v1323, %v1324
      %v1326 = vrot.slane %v1325, 1
      %v1327 = vadd.f32 %v1325, %v1326
      %1328 = vst [vmem:[%s348] sm:$0x1] %v1327
      %v1329 = vld [vmem:[%s2] sm:$0xf]
      %v1330 = vld [vmem:[%s2 + $0x4] sm:$0xf]
      %v1331 = vld [vmem:[%s2 + $0x8] sm:$0xf]
      %v1332 = vld [vmem:[%s2 + $0xc] sm:$0xf]
      %v1333 = vld [vmem:[%s2 + $0x10] sm:$0xf]
      %v1334 = vld [vmem:[%s2 + $0x14] sm:$0xf]
      %v1335 = vld [vmem:[%s2 + $0x18] sm:$0xf]
      %v1336 = vld [vmem:[%s2 + $0x1c] sm:$0xf]
      %v1337 = vld [vmem:[%s2 + $0x20] sm:$0xf]
      %v1338 = vld [vmem:[%s2 + $0x24] sm:$0xf]
      %v1339 = vld [vmem:[%s2 + $0x28] sm:$0xf]
      %v1340 = vld [vmem:[%s2 + $0x2c] sm:$0xf]
      %v1341 = vld [vmem:[%s2 + $0x30] sm:$0xf]
      %v1342 = vld [vmem:[%s2 + $0x34] sm:$0xf]
      %v1343 = vld [vmem:[%s2 + $0x38] sm:$0xf]
      %v1344 = vld [vmem:[%s2 + $0x3c] sm:$0xf]
      %v1361 = vunpack.c.l.b16 %v1329
      %v1362 = vunpack.c.l.b16 %v1330
      %v1363 = vunpack.c.l.b16 %v1331
      %v1364 = vunpack.c.l.b16 %v1332
      %v1365 = vunpack.c.l.b16 %v1333
      %v1366 = vunpack.c.l.b16 %v1334
      %v1367 = vunpack.c.l.b16 %v1335
      %v1368 = vunpack.c.l.b16 %v1336
      %v1369 = vunpack.c.l.b16 %v1337
      %v1370 = vunpack.c.l.b16 %v1338
      %v1371 = vunpack.c.l.b16 %v1339
      %v1372 = vunpack.c.l.b16 %v1340
      %v1373 = vunpack.c.l.b16 %v1341
      %v1374 = vunpack.c.l.b16 %v1342
      %v1375 = vunpack.c.l.b16 %v1343
      %v1376 = vunpack.c.l.b16 %v1344
      %v1377 = vpack.c.b16 %v1362, %v1361
      %v1378 = vpack.c.b16 %v1364, %v1363
      %v1379 = vpack.c.b16 %v1366, %v1365
      %v1380 = vpack.c.b16 %v1368, %v1367
      %v1381 = vpack.c.b16 %v1370, %v1369
      %v1382 = vpack.c.b16 %v1372, %v1371
      %v1383 = vpack.c.b16 %v1374, %v1373
      %v1384 = vpack.c.b16 %v1376, %v1375
      %1393 = vmatprep.subr.bf16.mxu0 0
      %1394 = vmatpush1.bf16.msra.mxu0 %v1384
      %1395 = vmatprep.subr.bf16.mxu0 0
      %1396 = vmatpush1.bf16.msra.mxu0 %v1383
      %1397 = vmatprep.subr.bf16.mxu0 0
      %1398 = vmatpush1.bf16.msra.mxu0 %v1382
      %1399 = vmatprep.subr.bf16.mxu0 0
      %1400 = vmatpush1.bf16.msra.mxu0 %v1381
      %1401 = vmatprep.subr.bf16.mxu0 0
      %1402 = vmatpush1.bf16.msra.mxu0 %v1380
      %1403 = vmatprep.subr.bf16.mxu0 0
      %1404 = vmatpush1.bf16.msra.mxu0 %v1379
      %1405 = vmatprep.subr.bf16.mxu0 0
      %1406 = vmatpush1.bf16.msra.mxu0 %v1378
      %1407 = vmatprep.subr.bf16.mxu0 0
      %1408 = vmatpush1.bf16.msra.mxu0 %v1377
      %1409 = vmatprep.subr.bf16.mxu0 0
      %1410 = vmatpush2.bf16.msra.mxu0 0
      %1411 = vmatprep.subr.bf16.mxu0 0
      %1412 = vmatpush2.bf16.msra.mxu0 0
      %1413 = vmatprep.subr.bf16.mxu0 0
      %1414 = vmatpush2.bf16.msra.mxu0 0
      %1415 = vmatprep.subr.bf16.mxu0 0
      %1416 = vmatpush2.bf16.msra.mxu0 0
      %1417 = vmatprep.subr.bf16.mxu0 0
      %1418 = vmatpush2.bf16.msra.mxu0 0
      %1419 = vmatprep.subr.bf16.mxu0 0
      %1420 = vmatpush2.bf16.msra.mxu0 0
      %1421 = vmatprep.subr.bf16.mxu0 0
      %1422 = vmatpush2.bf16.msra.mxu0 0
      %1423 = vmatprep.subr.bf16.mxu0 0
      %1424 = vmatpush2.bf16.msra.mxu0 0
      %1425 = vmatprep.mubr.bf16.mxu0 0
      %1426 = vmatmul.mubr.bf16.gmra.mxu0 %v420
      %v1427 = vpop.f32.mrf.mxu0
      %v1428 = vadd.f32 0.0, %v1427
      %v1429 = vpop.f32.mrf.mxu0
      %v1430 = vpop.f32.mrf.mxu0
      %v1431 = vadd.f32 0.0, %v1430
      %v1432 = vpop.f32.mrf.mxu0
      %1433 = vmatprep.mubr.bf16.mxu0 0
      %1434 = vmatmul.mubr.bf16.gmra.mxu0 %v421
      %v1435 = vpop.f32.mrf.mxu0
      %v1436 = vadd.f32 0.0, %v1435
      %v1437 = vpop.f32.mrf.mxu0
      %v1438 = vpop.f32.mrf.mxu0
      %v1439 = vadd.f32 0.0, %v1438
      %v1440 = vpop.f32.mrf.mxu0
      %1441 = vmatprep.mubr.bf16.mxu0 0
      %1442 = vmatmul.mubr.bf16.gmra.mxu0 %v422
      %v1443 = vpop.f32.mrf.mxu0
      %v1444 = vadd.f32 0.0, %v1443
      %v1445 = vpop.f32.mrf.mxu0
      %v1446 = vpop.f32.mrf.mxu0
      %v1447 = vadd.f32 0.0, %v1446
      %v1448 = vpop.f32.mrf.mxu0
      %1449 = vmatprep.mubr.bf16.mxu0 0
      %1450 = vmatmul.mubr.bf16.gmra.mxu0 %v423
      %v1451 = vpop.f32.mrf.mxu0
      %v1452 = vadd.f32 0.0, %v1451
      %v1453 = vpop.f32.mrf.mxu0
      %v1454 = vpop.f32.mrf.mxu0
      %v1455 = vadd.f32 0.0, %v1454
      %v1456 = vpop.f32.mrf.mxu0
      %1457 = vmatprep.mubr.bf16.mxu0 0
      %1458 = vmatmul.mubr.bf16.gmra.mxu0 %v424
      %v1459 = vpop.f32.mrf.mxu0
      %v1460 = vadd.f32 0.0, %v1459
      %v1461 = vpop.f32.mrf.mxu0
      %v1462 = vpop.f32.mrf.mxu0
      %v1463 = vadd.f32 0.0, %v1462
      %v1464 = vpop.f32.mrf.mxu0
      %1465 = vmatprep.mubr.bf16.mxu0 0
      %1466 = vmatmul.mubr.bf16.gmra.mxu0 %v425
      %v1467 = vpop.f32.mrf.mxu0
      %v1468 = vadd.f32 0.0, %v1467
      %v1469 = vpop.f32.mrf.mxu0
      %v1470 = vpop.f32.mrf.mxu0
      %v1471 = vadd.f32 0.0, %v1470
      %v1472 = vpop.f32.mrf.mxu0
      %1473 = vmatprep.mubr.bf16.mxu0 0
      %1474 = vmatmul.mubr.bf16.gmra.mxu0 %v426
      %v1475 = vpop.f32.mrf.mxu0
      %v1476 = vadd.f32 0.0, %v1475
      %v1477 = vpop.f32.mrf.mxu0
      %v1478 = vpop.f32.mrf.mxu0
      %v1479 = vadd.f32 0.0, %v1478
      %v1480 = vpop.f32.mrf.mxu0
      %1481 = vmatprep.mubr.bf16.mxu0 0
      %1482 = vmatmul.mubr.bf16.gmra.mxu0 %v427
      %v1483 = vpop.f32.mrf.mxu0
      %v1484 = vadd.f32 0.0, %v1483
      %v1485 = vpop.f32.mrf.mxu0
      %v1486 = vpop.f32.mrf.mxu0
      %v1487 = vadd.f32 0.0, %v1486
      %v1488 = vpop.f32.mrf.mxu0
      %1489 = vmatprep.mubr.bf16.mxu0 0
      %1490 = vmatmul.mubr.bf16.gmra.mxu0 %v428
      %v1491 = vpop.f32.mrf.mxu0
      %v1492 = vadd.f32 0.0, %v1491
      %v1493 = vpop.f32.mrf.mxu0
      %v1494 = vpop.f32.mrf.mxu0
      %v1495 = vadd.f32 0.0, %v1494
      %v1496 = vpop.f32.mrf.mxu0
      %1497 = vmatprep.mubr.bf16.mxu0 0
      %1498 = vmatmul.mubr.bf16.gmra.mxu0 %v429
      %v1499 = vpop.f32.mrf.mxu0
      %v1500 = vadd.f32 0.0, %v1499
      %v1501 = vpop.f32.mrf.mxu0
      %v1502 = vpop.f32.mrf.mxu0
      %v1503 = vadd.f32 0.0, %v1502
      %v1504 = vpop.f32.mrf.mxu0
      %1505 = vmatprep.mubr.bf16.mxu0 0
      %1506 = vmatmul.mubr.bf16.gmra.mxu0 %v430
      %v1507 = vpop.f32.mrf.mxu0
      %v1508 = vadd.f32 0.0, %v1507
      %v1509 = vpop.f32.mrf.mxu0
      %v1510 = vpop.f32.mrf.mxu0
      %v1511 = vadd.f32 0.0, %v1510
      %v1512 = vpop.f32.mrf.mxu0
      %1513 = vmatprep.mubr.bf16.mxu0 0
      %1514 = vmatmul.mubr.bf16.gmra.mxu0 %v431
      %v1515 = vpop.f32.mrf.mxu0
      %v1516 = vadd.f32 0.0, %v1515
      %v1517 = vpop.f32.mrf.mxu0
      %v1518 = vpop.f32.mrf.mxu0
      %v1519 = vadd.f32 0.0, %v1518
      %v1520 = vpop.f32.mrf.mxu0
      %1521 = vmatprep.mubr.bf16.mxu0 0
      %1522 = vmatmul.mubr.bf16.gmra.mxu0 %v432
      %v1523 = vpop.f32.mrf.mxu0
      %v1524 = vadd.f32 0.0, %v1523
      %v1525 = vpop.f32.mrf.mxu0
      %v1526 = vpop.f32.mrf.mxu0
      %v1527 = vadd.f32 0.0, %v1526
      %v1528 = vpop.f32.mrf.mxu0
      %1529 = vmatprep.mubr.bf16.mxu0 0
      %1530 = vmatmul.mubr.bf16.gmra.mxu0 %v433
      %v1531 = vpop.f32.mrf.mxu0
      %v1532 = vadd.f32 0.0, %v1531
      %v1533 = vpop.f32.mrf.mxu0
      %v1534 = vpop.f32.mrf.mxu0
      %v1535 = vadd.f32 0.0, %v1534
      %v1536 = vpop.f32.mrf.mxu0
      %1537 = vmatprep.mubr.bf16.mxu0 0
      %1538 = vmatmul.mubr.bf16.gmra.mxu0 %v434
      %v1539 = vpop.f32.mrf.mxu0
      %v1540 = vadd.f32 0.0, %v1539
      %v1541 = vpop.f32.mrf.mxu0
      %v1542 = vpop.f32.mrf.mxu0
      %v1543 = vadd.f32 0.0, %v1542
      %v1544 = vpop.f32.mrf.mxu0
      %1545 = vmatprep.mubr.bf16.mxu0 0
      %1546 = vmatmul.mubr.bf16.gmra.mxu0 %v435
      %v1547 = vpop.f32.mrf.mxu0
      %v1548 = vadd.f32 0.0, %v1547
      %v1549 = vpop.f32.mrf.mxu0
      %v1550 = vpop.f32.mrf.mxu0
      %v1551 = vadd.f32 0.0, %v1550
      %v1552 = vpop.f32.mrf.mxu0
      %1553 = vmatprep.mubr.bf16.mxu0 0
      %1554 = vmatmul.mubr.bf16.gmra.mxu0 %v436
      %v1555 = vpop.f32.mrf.mxu0
      %v1556 = vadd.f32 0.0, %v1555
      %v1557 = vpop.f32.mrf.mxu0
      %v1558 = vpop.f32.mrf.mxu0
      %v1559 = vadd.f32 0.0, %v1558
      %v1560 = vpop.f32.mrf.mxu0
      %1561 = vmatprep.mubr.bf16.mxu0 0
      %1562 = vmatmul.mubr.bf16.gmra.mxu0 %v437
      %v1563 = vpop.f32.mrf.mxu0
      %v1564 = vadd.f32 0.0, %v1563
      %v1565 = vpop.f32.mrf.mxu0
      %v1566 = vpop.f32.mrf.mxu0
      %v1567 = vadd.f32 0.0, %v1566
      %v1568 = vpop.f32.mrf.mxu0
      %1569 = vmatprep.mubr.bf16.mxu0 0
      %1570 = vmatmul.mubr.bf16.gmra.mxu0 %v438
      %v1571 = vpop.f32.mrf.mxu0
      %v1572 = vadd.f32 0.0, %v1571
      %v1573 = vpop.f32.mrf.mxu0
      %v1574 = vpop.f32.mrf.mxu0
      %v1575 = vadd.f32 0.0, %v1574
      %v1576 = vpop.f32.mrf.mxu0
      %1577 = vmatprep.mubr.bf16.mxu0 0
      %1578 = vmatmul.mubr.bf16.gmra.mxu0 %v439
      %v1579 = vpop.f32.mrf.mxu0
      %v1580 = vadd.f32 0.0, %v1579
      %v1581 = vpop.f32.mrf.mxu0
      %v1582 = vpop.f32.mrf.mxu0
      %v1583 = vadd.f32 0.0, %v1582
      %v1584 = vpop.f32.mrf.mxu0
      %1585 = vmatprep.mubr.bf16.mxu0 0
      %1586 = vmatmul.mubr.bf16.gmra.mxu0 %v440
      %v1587 = vpop.f32.mrf.mxu0
      %v1588 = vadd.f32 0.0, %v1587
      %v1589 = vpop.f32.mrf.mxu0
      %v1590 = vpop.f32.mrf.mxu0
      %v1591 = vadd.f32 0.0, %v1590
      %v1592 = vpop.f32.mrf.mxu0
      %1593 = vmatprep.mubr.bf16.mxu0 0
      %1594 = vmatmul.mubr.bf16.gmra.mxu0 %v441
      %v1595 = vpop.f32.mrf.mxu0
      %v1596 = vadd.f32 0.0, %v1595
      %v1597 = vpop.f32.mrf.mxu0
      %v1598 = vpop.f32.mrf.mxu0
      %v1599 = vadd.f32 0.0, %v1598
      %v1600 = vpop.f32.mrf.mxu0
      %1601 = vmatprep.mubr.bf16.mxu0 0
      %1602 = vmatmul.mubr.bf16.gmra.mxu0 %v442
      %v1603 = vpop.f32.mrf.mxu0
      %v1604 = vadd.f32 0.0, %v1603
      %v1605 = vpop.f32.mrf.mxu0
      %v1606 = vpop.f32.mrf.mxu0
      %v1607 = vadd.f32 0.0, %v1606
      %v1608 = vpop.f32.mrf.mxu0
      %1609 = vmatprep.mubr.bf16.mxu0 0
      %1610 = vmatmul.mubr.bf16.gmra.mxu0 %v443
      %v1611 = vpop.f32.mrf.mxu0
      %v1612 = vadd.f32 0.0, %v1611
      %v1613 = vpop.f32.mrf.mxu0
      %v1614 = vpop.f32.mrf.mxu0
      %v1615 = vadd.f32 0.0, %v1614
      %v1616 = vpop.f32.mrf.mxu0
      %1617 = vmatprep.mubr.bf16.mxu0 0
      %1618 = vmatmul.mubr.bf16.gmra.mxu0 %v444
      %v1619 = vpop.f32.mrf.mxu0
      %v1620 = vadd.f32 0.0, %v1619
      %v1621 = vpop.f32.mrf.mxu0
      %v1622 = vpop.f32.mrf.mxu0
      %v1623 = vadd.f32 0.0, %v1622
      %v1624 = vpop.f32.mrf.mxu0
      %1625 = vmatprep.mubr.bf16.mxu0 0
      %1626 = vmatmul.mubr.bf16.gmra.mxu0 %v445
      %v1627 = vpop.f32.mrf.mxu0
      %v1628 = vadd.f32 0.0, %v1627
      %v1629 = vpop.f32.mrf.mxu0
      %v1630 = vpop.f32.mrf.mxu0
      %v1631 = vadd.f32 0.0, %v1630
      %v1632 = vpop.f32.mrf.mxu0
      %1633 = vmatprep.mubr.bf16.mxu0 0
      %1634 = vmatmul.mubr.bf16.gmra.mxu0 %v446
      %v1635 = vpop.f32.mrf.mxu0
      %v1636 = vadd.f32 0.0, %v1635
      %v1637 = vpop.f32.mrf.mxu0
      %v1638 = vpop.f32.mrf.mxu0
      %v1639 = vadd.f32 0.0, %v1638
      %v1640 = vpop.f32.mrf.mxu0
      %1641 = vmatprep.mubr.bf16.mxu0 0
      %1642 = vmatmul.mubr.bf16.gmra.mxu0 %v447
      %v1643 = vpop.f32.mrf.mxu0
      %v1644 = vadd.f32 0.0, %v1643
      %v1645 = vpop.f32.mrf.mxu0
      %v1646 = vpop.f32.mrf.mxu0
      %v1647 = vadd.f32 0.0, %v1646
      %v1648 = vpop.f32.mrf.mxu0
      %1649 = vmatprep.mubr.bf16.mxu0 0
      %1650 = vmatmul.mubr.bf16.gmra.mxu0 %v448
      %v1651 = vpop.f32.mrf.mxu0
      %v1652 = vadd.f32 0.0, %v1651
      %v1653 = vpop.f32.mrf.mxu0
      %v1654 = vpop.f32.mrf.mxu0
      %v1655 = vadd.f32 0.0, %v1654
      %v1656 = vpop.f32.mrf.mxu0
      %1657 = vmatprep.mubr.bf16.mxu0 0
      %1658 = vmatmul.mubr.bf16.gmra.mxu0 %v449
      %v1659 = vpop.f32.mrf.mxu0
      %v1660 = vadd.f32 0.0, %v1659
      %v1661 = vpop.f32.mrf.mxu0
      %v1662 = vpop.f32.mrf.mxu0
      %v1663 = vadd.f32 0.0, %v1662
      %v1664 = vpop.f32.mrf.mxu0
      %1665 = vmatprep.mubr.bf16.mxu0 0
      %1666 = vmatmul.mubr.bf16.gmra.mxu0 %v450
      %v1667 = vpop.f32.mrf.mxu0
      %v1668 = vadd.f32 0.0, %v1667
      %v1669 = vpop.f32.mrf.mxu0
      %v1670 = vpop.f32.mrf.mxu0
      %v1671 = vadd.f32 0.0, %v1670
      %v1672 = vpop.f32.mrf.mxu0
      %1673 = vmatprep.mubr.bf16.mxu0 0
      %1674 = vmatmul.mubr.bf16.gmra.mxu0 %v451
      %v1675 = vpop.f32.mrf.mxu0
      %v1676 = vadd.f32 0.0, %v1675
      %v1677 = vpop.f32.mrf.mxu0
      %v1678 = vpop.f32.mrf.mxu0
      %v1679 = vadd.f32 0.0, %v1678
      %v1680 = vpop.f32.mrf.mxu0
      %1681 = vdwg.mxu0
      %v1682 = vpack.c.bf16 %v1431, %v1428
      %v1683 = vpack.c.bf16 %v1439, %v1436
      %v1684 = vpack.c.bf16 %v1447, %v1444
      %v1685 = vpack.c.bf16 %v1455, %v1452
      %v1686 = vpack.c.bf16 %v1463, %v1460
      %v1687 = vpack.c.bf16 %v1471, %v1468
      %v1688 = vpack.c.bf16 %v1479, %v1476
      %v1689 = vpack.c.bf16 %v1487, %v1484
      %v1690 = vpack.c.bf16 %v1495, %v1492
      %v1691 = vpack.c.bf16 %v1503, %v1500
      %v1692 = vpack.c.bf16 %v1511, %v1508
      %v1693 = vpack.c.bf16 %v1519, %v1516
      %v1694 = vpack.c.bf16 %v1527, %v1524
      %v1695 = vpack.c.bf16 %v1535, %v1532
      %v1696 = vpack.c.bf16 %v1543, %v1540
      %v1697 = vpack.c.bf16 %v1551, %v1548
      %v1698 = vpack.c.bf16 %v1559, %v1556
      %v1699 = vpack.c.bf16 %v1567, %v1564
      %v1700 = vpack.c.bf16 %v1575, %v1572
      %v1701 = vpack.c.bf16 %v1583, %v1580
      %v1702 = vpack.c.bf16 %v1591, %v1588
      %v1703 = vpack.c.bf16 %v1599, %v1596
      %v1704 = vpack.c.bf16 %v1607, %v1604
      %v1705 = vpack.c.bf16 %v1615, %v1612
      %v1706 = vpack.c.bf16 %v1623, %v1620
      %v1707 = vpack.c.bf16 %v1631, %v1628
      %v1708 = vpack.c.bf16 %v1639, %v1636
      %v1709 = vpack.c.bf16 %v1647, %v1644
      %v1710 = vpack.c.bf16 %v1655, %v1652
      %v1711 = vpack.c.bf16 %v1663, %v1660
      %v1712 = vpack.c.bf16 %v1671, %v1668
      %v1713 = vpack.c.bf16 %v1679, %v1676
      %v1746 = vunpack.c.l.b16 %v1682
      %v1747 = vunpack.c.h.b16 %v1682
      %v1748 = vunpack.c.l.b16 %v1683
      %v1749 = vunpack.c.h.b16 %v1683
      %v1750 = vunpack.c.l.b16 %v1684
      %v1751 = vunpack.c.h.b16 %v1684
      %v1752 = vunpack.c.l.b16 %v1685
      %v1753 = vunpack.c.h.b16 %v1685
      %v1754 = vunpack.c.l.b16 %v1686
      %v1755 = vunpack.c.h.b16 %v1686
      %v1756 = vunpack.c.l.b16 %v1687
      %v1757 = vunpack.c.h.b16 %v1687
      %v1758 = vunpack.c.l.b16 %v1688
      %v1759 = vunpack.c.h.b16 %v1688
      %v1760 = vunpack.c.l.b16 %v1689
      %v1761 = vunpack.c.h.b16 %v1689
      %v1762 = vunpack.c.l.b16 %v1690
      %v1763 = vunpack.c.h.b16 %v1690
      %v1764 = vunpack.c.l.b16 %v1691
      %v1765 = vunpack.c.h.b16 %v1691
      %v1766 = vunpack.c.l.b16 %v1692
      %v1767 = vunpack.c.h.b16 %v1692
      %v1768 = vunpack.c.l.b16 %v1693
      %v1769 = vunpack.c.h.b16 %v1693
      %v1770 = vunpack.c.l.b16 %v1694
      %v1771 = vunpack.c.h.b16 %v1694
      %v1772 = vunpack.c.l.b16 %v1695
      %v1773 = vunpack.c.h.b16 %v1695
      %v1774 = vunpack.c.l.b16 %v1696
      %v1775 = vunpack.c.h.b16 %v1696
      %v1776 = vunpack.c.l.b16 %v1697
      %v1777 = vunpack.c.h.b16 %v1697
      %v1778 = vunpack.c.l.b16 %v1698
      %v1779 = vunpack.c.h.b16 %v1698
      %v1780 = vunpack.c.l.b16 %v1699
      %v1781 = vunpack.c.h.b16 %v1699
      %v1782 = vunpack.c.l.b16 %v1700
      %v1783 = vunpack.c.h.b16 %v1700
      %v1784 = vunpack.c.l.b16 %v1701
      %v1785 = vunpack.c.h.b16 %v1701
      %v1786 = vunpack.c.l.b16 %v1702
      %v1787 = vunpack.c.h.b16 %v1702
      %v1788 = vunpack.c.l.b16 %v1703
      %v1789 = vunpack.c.h.b16 %v1703
      %v1790 = vunpack.c.l.b16 %v1704
      %v1791 = vunpack.c.h.b16 %v1704
      %v1792 = vunpack.c.l.b16 %v1705
      %v1793 = vunpack.c.h.b16 %v1705
      %v1794 = vunpack.c.l.b16 %v1706
      %v1795 = vunpack.c.h.b16 %v1706
      %v1796 = vunpack.c.l.b16 %v1707
      %v1797 = vunpack.c.h.b16 %v1707
      %v1798 = vunpack.c.l.b16 %v1708
      %v1799 = vunpack.c.h.b16 %v1708
      %v1800 = vunpack.c.l.b16 %v1709
      %v1801 = vunpack.c.h.b16 %v1709
      %v1802 = vunpack.c.l.b16 %v1710
      %v1803 = vunpack.c.h.b16 %v1710
      %v1804 = vunpack.c.l.b16 %v1711
      %v1805 = vunpack.c.h.b16 %v1711
      %v1806 = vunpack.c.l.b16 %v1712
      %v1807 = vunpack.c.h.b16 %v1712
      %v1808 = vunpack.c.l.b16 %v1713
      %v1809 = vunpack.c.h.b16 %v1713
      %v1810 = vpack.c.b16 %v1746, %v1746
      %v1811 = vpack.c.b16 %v1747, %v1747
      %v1812 = vpack.c.b16 %v1748, %v1748
      %v1813 = vpack.c.b16 %v1749, %v1749
      %v1814 = vpack.c.b16 %v1750, %v1750
      %v1815 = vpack.c.b16 %v1751, %v1751
      %v1816 = vpack.c.b16 %v1752, %v1752
      %v1817 = vpack.c.b16 %v1753, %v1753
      %v1818 = vpack.c.b16 %v1754, %v1754
      %v1819 = vpack.c.b16 %v1755, %v1755
      %v1820 = vpack.c.b16 %v1756, %v1756
      %v1821 = vpack.c.b16 %v1757, %v1757
      %v1822 = vpack.c.b16 %v1758, %v1758
      %v1823 = vpack.c.b16 %v1759, %v1759
      %v1824 = vpack.c.b16 %v1760, %v1760
      %v1825 = vpack.c.b16 %v1761, %v1761
      %v1826 = vpack.c.b16 %v1762, %v1762
      %v1827 = vpack.c.b16 %v1763, %v1763
      %v1828 = vpack.c.b16 %v1764, %v1764
      %v1829 = vpack.c.b16 %v1765, %v1765
      %v1830 = vpack.c.b16 %v1766, %v1766
      %v1831 = vpack.c.b16 %v1767, %v1767
      %v1832 = vpack.c.b16 %v1768, %v1768
      %v1833 = vpack.c.b16 %v1769, %v1769
      %v1834 = vpack.c.b16 %v1770, %v1770
      %v1835 = vpack.c.b16 %v1771, %v1771
      %v1836 = vpack.c.b16 %v1772, %v1772
      %v1837 = vpack.c.b16 %v1773, %v1773
      %v1838 = vpack.c.b16 %v1774, %v1774
      %v1839 = vpack.c.b16 %v1775, %v1775
      %v1840 = vpack.c.b16 %v1776, %v1776
      %v1841 = vpack.c.b16 %v1777, %v1777
      %v1842 = vpack.c.b16 %v1778, %v1778
      %v1843 = vpack.c.b16 %v1779, %v1779
      %v1844 = vpack.c.b16 %v1780, %v1780
      %v1845 = vpack.c.b16 %v1781, %v1781
      %v1846 = vpack.c.b16 %v1782, %v1782
      %v1847 = vpack.c.b16 %v1783, %v1783
      %v1848 = vpack.c.b16 %v1784, %v1784
      %v1849 = vpack.c.b16 %v1785, %v1785
      %v1850 = vpack.c.b16 %v1786, %v1786
      %v1851 = vpack.c.b16 %v1787, %v1787
      %v1852 = vpack.c.b16 %v1788, %v1788
      %v1853 = vpack.c.b16 %v1789, %v1789
      %v1854 = vpack.c.b16 %v1790, %v1790
      %v1855 = vpack.c.b16 %v1791, %v1791
      %v1856 = vpack.c.b16 %v1792, %v1792
      %v1857 = vpack.c.b16 %v1793, %v1793
      %v1858 = vpack.c.b16 %v1794, %v1794
      %v1859 = vpack.c.b16 %v1795, %v1795
      %v1860 = vpack.c.b16 %v1796, %v1796
      %v1861 = vpack.c.b16 %v1797, %v1797
      %v1862 = vpack.c.b16 %v1798, %v1798
      %v1863 = vpack.c.b16 %v1799, %v1799
      %v1864 = vpack.c.b16 %v1800, %v1800
      %v1865 = vpack.c.b16 %v1801, %v1801
      %v1866 = vpack.c.b16 %v1802, %v1802
      %v1867 = vpack.c.b16 %v1803, %v1803
      %v1868 = vpack.c.b16 %v1804, %v1804
      %v1869 = vpack.c.b16 %v1805, %v1805
      %v1870 = vpack.c.b16 %v1806, %v1806
      %v1871 = vpack.c.b16 %v1807, %v1807
      %v1872 = vpack.c.b16 %v1808, %v1808
      %v1873 = vpack.c.b16 %v1809, %v1809
      %1938 = vst [vmem:[%s341] sm:$0xf] %v1810
      %1939 = vst [vmem:[%s341 + $0x4] sm:$0xf] %v1811
      %1940 = vst [vmem:[%s341 + $0x8] sm:$0xf] %v1812
      %1941 = vst [vmem:[%s341 + $0xc] sm:$0xf] %v1813
      %1942 = vst [vmem:[%s341 + $0x10] sm:$0xf] %v1814
      %1943 = vst [vmem:[%s341 + $0x14] sm:$0xf] %v1815
      %1944 = vst [vmem:[%s341 + $0x18] sm:$0xf] %v1816
      %1945 = vst [vmem:[%s341 + $0x1c] sm:$0xf] %v1817
      %1946 = vst [vmem:[%s341 + $0x20] sm:$0xf] %v1818
      %1947 = vst [vmem:[%s341 + $0x24] sm:$0xf] %v1819
      %1948 = vst [vmem:[%s341 + $0x28] sm:$0xf] %v1820
      %1949 = vst [vmem:[%s341 + $0x2c] sm:$0xf] %v1821
      %1950 = vst [vmem:[%s341 + $0x30] sm:$0xf] %v1822
      %1951 = vst [vmem:[%s341 + $0x34] sm:$0xf] %v1823
      %1952 = vst [vmem:[%s341 + $0x38] sm:$0xf] %v1824
      %1953 = vst [vmem:[%s341 + $0x3c] sm:$0xf] %v1825
      %1954 = vst [vmem:[%s341 + $0x40] sm:$0xf] %v1826
      %1955 = vst [vmem:[%s341 + $0x44] sm:$0xf] %v1827
      %1956 = vst [vmem:[%s341 + $0x48] sm:$0xf] %v1828
      %1957 = vst [vmem:[%s341 + $0x4c] sm:$0xf] %v1829
      %1958 = vst [vmem:[%s341 + $0x50] sm:$0xf] %v1830
      %1959 = vst [vmem:[%s341 + $0x54] sm:$0xf] %v1831
      %1960 = vst [vmem:[%s341 + $0x58] sm:$0xf] %v1832
      %1961 = vst [vmem:[%s341 + $0x5c] sm:$0xf] %v1833
      %1962 = vst [vmem:[%s341 + $0x60] sm:$0xf] %v1834
      %1963 = vst [vmem:[%s341 + $0x64] sm:$0xf] %v1835
      %1964 = vst [vmem:[%s341 + $0x68] sm:$0xf] %v1836
      %1965 = vst [vmem:[%s341 + $0x6c] sm:$0xf] %v1837
      %1966 = vst [vmem:[%s341 + $0x70] sm:$0xf] %v1838
      %1967 = vst [vmem:[%s341 + $0x74] sm:$0xf] %v1839
      %1968 = vst [vmem:[%s341 + $0x78] sm:$0xf] %v1840
      %1969 = vst [vmem:[%s341 + $0x7c] sm:$0xf] %v1841
      %1970 = vst [vmem:[%s341 + $0x80] sm:$0xf] %v1842
      %1971 = vst [vmem:[%s341 + $0x84] sm:$0xf] %v1843
      %1972 = vst [vmem:[%s341 + $0x88] sm:$0xf] %v1844
      %1973 = vst [vmem:[%s341 + $0x8c] sm:$0xf] %v1845
      %1974 = vst [vmem:[%s341 + $0x90] sm:$0xf] %v1846
      %1975 = vst [vmem:[%s341 + $0x94] sm:$0xf] %v1847
      %1976 = vst [vmem:[%s341 + $0x98] sm:$0xf] %v1848
      %1977 = vst [vmem:[%s341 + $0x9c] sm:$0xf] %v1849
      %1978 = vst [vmem:[%s341 + $0xa0] sm:$0xf] %v1850
      %1979 = vst [vmem:[%s341 + $0xa4] sm:$0xf] %v1851
      %1980 = vst [vmem:[%s341 + $0xa8] sm:$0xf] %v1852
      %1981 = vst [vmem:[%s341 + $0xac] sm:$0xf] %v1853
      %1982 = vst [vmem:[%s341 + $0xb0] sm:$0xf] %v1854
      %1983 = vst [vmem:[%s341 + $0xb4] sm:$0xf] %v1855
      %1984 = vst [vmem:[%s341 + $0xb8] sm:$0xf] %v1856
      %1985 = vst [vmem:[%s341 + $0xbc] sm:$0xf] %v1857
      %1986 = vst [vmem:[%s341 + $0xc0] sm:$0xf] %v1858
      %1987 = vst [vmem:[%s341 + $0xc4] sm:$0xf] %v1859
      %1988 = vst [vmem:[%s341 + $0xc8] sm:$0xf] %v1860
      %1989 = vst [vmem:[%s341 + $0xcc] sm:$0xf] %v1861
      %1990 = vst [vmem:[%s341 + $0xd0] sm:$0xf] %v1862
      %1991 = vst [vmem:[%s341 + $0xd4] sm:$0xf] %v1863
      %1992 = vst [vmem:[%s341 + $0xd8] sm:$0xf] %v1864
      %1993 = vst [vmem:[%s341 + $0xdc] sm:$0xf] %v1865
      %1994 = vst [vmem:[%s341 + $0xe0] sm:$0xf] %v1866
      %1995 = vst [vmem:[%s341 + $0xe4] sm:$0xf] %v1867
      %1996 = vst [vmem:[%s341 + $0xe8] sm:$0xf] %v1868
      %1997 = vst [vmem:[%s341 + $0xec] sm:$0xf] %v1869
      %1998 = vst [vmem:[%s341 + $0xf0] sm:$0xf] %v1870
      %1999 = vst [vmem:[%s341 + $0xf4] sm:$0xf] %v1871
      %2000 = vst [vmem:[%s341 + $0xf8] sm:$0xf] %v1872
      %2001 = vst [vmem:[%s341 + $0xfc] sm:$0xf] %v1873
      %v2002 = vadd.f32 %v1428, %v1431
      %v2003 = vadd.f32 %v2002, %v1436
      %v2004 = vadd.f32 %v2003, %v1439
      %v2005 = vadd.f32 %v2004, %v1444
      %v2006 = vadd.f32 %v2005, %v1447
      %v2007 = vadd.f32 %v2006, %v1452
      %v2008 = vadd.f32 %v2007, %v1455
      %v2009 = vadd.f32 %v2008, %v1460
      %v2010 = vadd.f32 %v2009, %v1463
      %v2011 = vadd.f32 %v2010, %v1468
      %v2012 = vadd.f32 %v2011, %v1471
      %v2013 = vadd.f32 %v2012, %v1476
      %v2014 = vadd.f32 %v2013, %v1479
      %v2015 = vadd.f32 %v2014, %v1484
      %v2016 = vadd.f32 %v2015, %v1487
      %v2017 = vadd.f32 %v2016, %v1492
      %v2018 = vadd.f32 %v2017, %v1495
      %v2019 = vadd.f32 %v2018, %v1500
      %v2020 = vadd.f32 %v2019, %v1503
      %v2021 = vadd.f32 %v2020, %v1508
      %v2022 = vadd.f32 %v2021, %v1511
      %v2023 = vadd.f32 %v2022, %v1516
      %v2024 = vadd.f32 %v2023, %v1519
      %v2025 = vadd.f32 %v2024, %v1524
      %v2026 = vadd.f32 %v2025, %v1527
      %v2027 = vadd.f32 %v2026, %v1532
      %v2028 = vadd.f32 %v2027, %v1535
      %v2029 = vadd.f32 %v2028, %v1540
      %v2030 = vadd.f32 %v2029, %v1543
      %v2031 = vadd.f32 %v2030, %v1548
      %v2032 = vadd.f32 %v2031, %v1551
      %v2033 = vadd.f32 %v2032, %v1556
      %v2034 = vadd.f32 %v2033, %v1559
      %v2035 = vadd.f32 %v2034, %v1564
      %v2036 = vadd.f32 %v2035, %v1567
      %v2037 = vadd.f32 %v2036, %v1572
      %v2038 = vadd.f32 %v2037, %v1575
      %v2039 = vadd.f32 %v2038, %v1580
      %v2040 = vadd.f32 %v2039, %v1583
      %v2041 = vadd.f32 %v2040, %v1588
      %v2042 = vadd.f32 %v2041, %v1591
      %v2043 = vadd.f32 %v2042, %v1596
      %v2044 = vadd.f32 %v2043, %v1599
      %v2045 = vadd.f32 %v2044, %v1604
      %v2046 = vadd.f32 %v2045, %v1607
      %v2047 = vadd.f32 %v2046, %v1612
      %v2048 = vadd.f32 %v2047, %v1615
      %v2049 = vadd.f32 %v2048, %v1620
      %v2050 = vadd.f32 %v2049, %v1623
      %v2051 = vadd.f32 %v2050, %v1628
      %v2052 = vadd.f32 %v2051, %v1631
      %v2053 = vadd.f32 %v2052, %v1636
      %v2054 = vadd.f32 %v2053, %v1639
      %v2055 = vadd.f32 %v2054, %v1644
      %v2056 = vadd.f32 %v2055, %v1647
      %v2057 = vadd.f32 %v2056, %v1652
      %v2058 = vadd.f32 %v2057, %v1655
      %v2059 = vadd.f32 %v2058, %v1660
      %v2060 = vadd.f32 %v2059, %v1663
      %v2061 = vadd.f32 %v2060, %v1668
      %v2062 = vadd.f32 %v2061, %v1671
      %v2063 = vadd.f32 %v2062, %v1676
      %v2064 = vadd.f32 %v2063, %v1679
      %v2065 = vrot.slane %v2064, 4
      %v2066 = vadd.f32 %v2064, %v2065
      %v2067 = vrot.slane %v2066, 2
      %v2068 = vadd.f32 %v2066, %v2067
      %v2069 = vrot.slane %v2068, 1
      %v2070 = vadd.f32 %v2068, %v2069
      %2071 = vst [vmem:[%s351] sm:$0x1] %v2070
      %v2072 = vmul.f32 %v1428, %v1428
      %v2073 = vmul.f32 %v1431, %v1431
      %v2074 = vmul.f32 %v1436, %v1436
      %v2075 = vmul.f32 %v1439, %v1439
      %v2076 = vmul.f32 %v1444, %v1444
      %v2077 = vmul.f32 %v1447, %v1447
      %v2078 = vmul.f32 %v1452, %v1452
      %v2079 = vmul.f32 %v1455, %v1455
      %v2080 = vmul.f32 %v1460, %v1460
      %v2081 = vmul.f32 %v1463, %v1463
      %v2082 = vmul.f32 %v1468, %v1468
      %v2083 = vmul.f32 %v1471, %v1471
      %v2084 = vmul.f32 %v1476, %v1476
      %v2085 = vmul.f32 %v1479, %v1479
      %v2086 = vmul.f32 %v1484, %v1484
      %v2087 = vmul.f32 %v1487, %v1487
      %v2088 = vmul.f32 %v1492, %v1492
      %v2089 = vmul.f32 %v1495, %v1495
      %v2090 = vmul.f32 %v1500, %v1500
      %v2091 = vmul.f32 %v1503, %v1503
      %v2092 = vmul.f32 %v1508, %v1508
      %v2093 = vmul.f32 %v1511, %v1511
      %v2094 = vmul.f32 %v1516, %v1516
      %v2095 = vmul.f32 %v1519, %v1519
      %v2096 = vmul.f32 %v1524, %v1524
      %v2097 = vmul.f32 %v1527, %v1527
      %v2098 = vmul.f32 %v1532, %v1532
      %v2099 = vmul.f32 %v1535, %v1535
      %v2100 = vmul.f32 %v1540, %v1540
      %v2101 = vmul.f32 %v1543, %v1543
      %v2102 = vmul.f32 %v1548, %v1548
      %v2103 = vmul.f32 %v1551, %v1551
      %v2104 = vmul.f32 %v1556, %v1556
      %v2105 = vmul.f32 %v1559, %v1559
      %v2106 = vmul.f32 %v1564, %v1564
      %v2107 = vmul.f32 %v1567, %v1567
      %v2108 = vmul.f32 %v1572, %v1572
      %v2109 = vmul.f32 %v1575, %v1575
      %v2110 = vmul.f32 %v1580, %v1580
      %v2111 = vmul.f32 %v1583, %v1583
      %v2112 = vmul.f32 %v1588, %v1588
      %v2113 = vmul.f32 %v1591, %v1591
      %v2114 = vmul.f32 %v1596, %v1596
      %v2115 = vmul.f32 %v1599, %v1599
      %v2116 = vmul.f32 %v1604, %v1604
      %v2117 = vmul.f32 %v1607, %v1607
      %v2118 = vmul.f32 %v1612, %v1612
      %v2119 = vmul.f32 %v1615, %v1615
      %v2120 = vmul.f32 %v1620, %v1620
      %v2121 = vmul.f32 %v1623, %v1623
      %v2122 = vmul.f32 %v1628, %v1628
      %v2123 = vmul.f32 %v1631, %v1631
      %v2124 = vmul.f32 %v1636, %v1636
      %v2125 = vmul.f32 %v1639, %v1639
      %v2126 = vmul.f32 %v1644, %v1644
      %v2127 = vmul.f32 %v1647, %v1647
      %v2128 = vmul.f32 %v1652, %v1652
      %v2129 = vmul.f32 %v1655, %v1655
      %v2130 = vmul.f32 %v1660, %v1660
      %v2131 = vmul.f32 %v1663, %v1663
      %v2132 = vmul.f32 %v1668, %v1668
      %v2133 = vmul.f32 %v1671, %v1671
      %v2134 = vmul.f32 %v1676, %v1676
      %v2135 = vmul.f32 %v1679, %v1679
      %v2136 = vadd.f32 %v2072, %v2073
      %v2137 = vadd.f32 %v2136, %v2074
      %v2138 = vadd.f32 %v2137, %v2075
      %v2139 = vadd.f32 %v2138, %v2076
      %v2140 = vadd.f32 %v2139, %v2077
      %v2141 = vadd.f32 %v2140, %v2078
      %v2142 = vadd.f32 %v2141, %v2079
      %v2143 = vadd.f32 %v2142, %v2080
      %v2144 = vadd.f32 %v2143, %v2081
      %v2145 = vadd.f32 %v2144, %v2082
      %v2146 = vadd.f32 %v2145, %v2083
      %v2147 = vadd.f32 %v2146, %v2084
      %v2148 = vadd.f32 %v2147, %v2085
      %v2149 = vadd.f32 %v2148, %v2086
      %v2150 = vadd.f32 %v2149, %v2087
      %v2151 = vadd.f32 %v2150, %v2088
      %v2152 = vadd.f32 %v2151, %v2089
      %v2153 = vadd.f32 %v2152, %v2090
      %v2154 = vadd.f32 %v2153, %v2091
      %v2155 = vadd.f32 %v2154, %v2092
      %v2156 = vadd.f32 %v2155, %v2093
      %v2157 = vadd.f32 %v2156, %v2094
      %v2158 = vadd.f32 %v2157, %v2095
      %v2159 = vadd.f32 %v2158, %v2096
      %v2160 = vadd.f32 %v2159, %v2097
      %v2161 = vadd.f32 %v2160, %v2098
      %v2162 = vadd.f32 %v2161, %v2099
      %v2163 = vadd.f32 %v2162, %v2100
      %v2164 = vadd.f32 %v2163, %v2101
      %v2165 = vadd.f32 %v2164, %v2102
      %v2166 = vadd.f32 %v2165, %v2103
      %v2167 = vadd.f32 %v2166, %v2104
      %v2168 = vadd.f32 %v2167, %v2105
      %v2169 = vadd.f32 %v2168, %v2106
      %v2170 = vadd.f32 %v2169, %v2107
      %v2171 = vadd.f32 %v2170, %v2108
      %v2172 = vadd.f32 %v2171, %v2109
      %v2173 = vadd.f32 %v2172, %v2110
      %v2174 = vadd.f32 %v2173, %v2111
      %v2175 = vadd.f32 %v2174, %v2112
      %v2176 = vadd.f32 %v2175, %v2113
      %v2177 = vadd.f32 %v2176, %v2114
      %v2178 = vadd.f32 %v2177, %v2115
      %v2179 = vadd.f32 %v2178, %v2116
      %v2180 = vadd.f32 %v2179, %v2117
      %v2181 = vadd.f32 %v2180, %v2118
      %v2182 = vadd.f32 %v2181, %v2119
      %v2183 = vadd.f32 %v2182, %v2120
      %v2184 = vadd.f32 %v2183, %v2121
      %v2185 = vadd.f32 %v2184, %v2122
      %v2186 = vadd.f32 %v2185, %v2123
      %v2187 = vadd.f32 %v2186, %v2124
      %v2188 = vadd.f32 %v2187, %v2125
      %v2189 = vadd.f32 %v2188, %v2126
      %v2190 = vadd.f32 %v2189, %v2127
      %v2191 = vadd.f32 %v2190, %v2128
      %v2192 = vadd.f32 %v2191, %v2129
      %v2193 = vadd.f32 %v2192, %v2130
      %v2194 = vadd.f32 %v2193, %v2131
      %v2195 = vadd.f32 %v2194, %v2132
      %v2196 = vadd.f32 %v2195, %v2133
      %v2197 = vadd.f32 %v2196, %v2134
      %v2198 = vadd.f32 %v2197, %v2135
      %v2199 = vrot.slane %v2198, 4
      %v2200 = vadd.f32 %v2198, %v2199
      %v2201 = vrot.slane %v2200, 2
      %v2202 = vadd.f32 %v2200, %v2201
      %v2203 = vrot.slane %v2202, 1
      %v2204 = vadd.f32 %v2202, %v2203
      %2205 = vst [vmem:[%s354] sm:$0x1] %v2204
      %s2206 = smul.u32 64, %s20
      %p2207 = scmp.lt.s32.totalorder %s2206, 127
      %s2208 = scalar_select %p2207, %s2206, 127
      %s2209 = smul.addr %s2208, 4
      %s2210 = scalar_lea.vmem %s3, %s2209
      %s2211 = smul.u32 64, %s20
      %p2212 = scmp.lt.s32.totalorder %s2211, 127
      %s2213 = scalar_select %p2212, %s2211, 127
      %s2214 = smul.addr %s2213, 4
      %s2215 = scalar_lea.vmem %s4, %s2214
      %p2216 = scmp.lt.s32.totalorder %s20, 1
      %s2217 = scalar_select %p2216, %s20, 1
      %s2218 = scalar_lea.vmem %s5, %s2217
      %p2219 = scmp.lt.s32.totalorder %s20, 1
      %s2220 = scalar_select %p2219, %s20, 1
      %s2221 = scalar_lea.vmem %s6, %s2220
      %p2222 = scmp.lt.s32.totalorder %s20, 1
      %s2223 = scalar_select %p2222, %s20, 1
      %s2224 = scalar_lea.vmem %s7, %s2223
      %p2225 = scmp.lt.s32.totalorder %s20, 1
      %s2226 = scalar_select %p2225, %s20, 1
      %s2227 = scalar_lea.vmem %s8, %s2226
      // Predicated region
      $region33: #{bottleneck_block.4} parent=31 // pred_check
        %p2228 = pneg %p106
      $region34: #{bottleneck_block.4} parent=31 // pred_check_branch
        %2230 = sbr.rel (%p2228) target = $region36
      $region35: #{bottleneck_block.4} parent=31 // pred_region
        %s2231 = smul.u32 64, %s20
      $region36: #{bottleneck_block.4} parent=31 // pred_fallthru
        _
      // Predicated region
      $region37: #{bottleneck_block.4} parent=31 // pred_check
        %p2232 = pneg %p132
      $region38: #{bottleneck_block.4} parent=31 // pred_check_branch
        %2234 = sbr.rel (%p2232) target = $region40
      $region39: #{bottleneck_block.4} parent=31 // pred_region
        %s2235 = smul.u32 64, %s20
      $region40: #{bottleneck_block.4} parent=31 // pred_fallthru
        _
      // Predicated region
      $region41: #{bottleneck_block.4} parent=31 // pred_check
        %p2236 = pneg %p158
      $region42: #{bottleneck_block.4} parent=31 // pred_check_branch
        %2238 = sbr.rel (%p2236) target = $region44
      $region43: #{bottleneck_block.4} parent=31 // pred_region
        _
      $region44: #{bottleneck_block.4} parent=31 // pred_fallthru
        _
      // Predicated region
      $region45: #{bottleneck_block.4} parent=31 // pred_check
        %p2239 = pneg %p184
      $region46: #{bottleneck_block.4} parent=31 // pred_check_branch
        %2241 = sbr.rel (%p2239) target = $region48
      $region47: #{bottleneck_block.4} parent=31 // pred_region
        _
      $region48: #{bottleneck_block.4} parent=31 // pred_fallthru
        _
      // Predicated region
      $region49: #{bottleneck_block.4} parent=31 // pred_check
        %p2242 = pneg %p210
      $region50: #{bottleneck_block.4} parent=31 // pred_check_branch
        %2244 = sbr.rel (%p2242) target = $region52
      $region51: #{bottleneck_block.4} parent=31 // pred_region
        _
      $region52: #{bottleneck_block.4} parent=31 // pred_fallthru
        _
      // Predicated region
      $region53: #{bottleneck_block.4} parent=31 // pred_check
        %p2245 = pneg %p236
      $region54: #{bottleneck_block.4} parent=31 // pred_check_branch
        %2247 = sbr.rel (%p2245) target = $region56
      $region55: #{bottleneck_block.4} parent=31 // pred_region
        _
      $region56: #{bottleneck_block.4} parent=31 // pred_fallthru
        _
    $region32: #{bottleneck_block.4} parent=5 // pred_fallthru
      _
    %p2248 = scmp.le.s32.totalorder 2, %s15
    // Predicated region
    $region57: #{bottleneck_block.4} parent=5 // pred_check
      %p2249 = pneg %p2248
    $region58: #{bottleneck_block.4} parent=5 // pred_check_branch
      %2251 = sbr.rel (%p2249) target = $region60
    $region59: #{bottleneck_block.4} parent=5 // pred_region
      %s2252 = ssub.s32 %s15, 2
      // Predicated region
      $region61: #{bottleneck_block.4} parent=59 // pred_check
        %p2253 = pneg %p112
      $region62: #{bottleneck_block.4} parent=59 // pred_check_branch
        %2255 = sbr.rel (%p2253) target = $region64
      $region63: #{bottleneck_block.4} parent=59 // pred_region
        %s2256 = smul.u32 64, %s21
        %p2257 = scmp.lt.s32.totalorder %s2256, 127
        %s2258 = scalar_select %p2257, %s2256, 127
        %s2259 = smul.addr %s2258, 4
        %s2260 = scalar_lea.vmem %s3, %s2259
      $region64: #{bottleneck_block.4} parent=59 // pred_fallthru
        _
      // Predicated region
      $region65: #{bottleneck_block.4} parent=59 // pred_check
        %p2261 = pneg %p138
      $region66: #{bottleneck_block.4} parent=59 // pred_check_branch
        %2263 = sbr.rel (%p2261) target = $region68
      $region67: #{bottleneck_block.4} parent=59 // pred_region
        %s2264 = smul.u32 64, %s21
        %p2265 = scmp.lt.s32.totalorder %s2264, 127
        %s2266 = scalar_select %p2265, %s2264, 127
        %s2267 = smul.addr %s2266, 4
        %s2268 = scalar_lea.vmem %s4, %s2267
      $region68: #{bottleneck_block.4} parent=59 // pred_fallthru
        _
      // Predicated region
      $region69: #{bottleneck_block.4} parent=59 // pred_check
        %p2269 = pneg %p164
      $region70: #{bottleneck_block.4} parent=59 // pred_check_branch
        %2271 = sbr.rel (%p2269) target = $region72
      $region71: #{bottleneck_block.4} parent=59 // pred_region
        %p2272 = scmp.lt.s32.totalorder %s21, 1
        %s2273 = scalar_select %p2272, %s21, 1
        %s2274 = scalar_lea.vmem %s5, %s2273
      $region72: #{bottleneck_block.4} parent=59 // pred_fallthru
        _
      // Predicated region
      $region73: #{bottleneck_block.4} parent=59 // pred_check
        %p2275 = pneg %p190
      $region74: #{bottleneck_block.4} parent=59 // pred_check_branch
        %2277 = sbr.rel (%p2275) target = $region76
      $region75: #{bottleneck_block.4} parent=59 // pred_region
        %p2278 = scmp.lt.s32.totalorder %s21, 1
        %s2279 = scalar_select %p2278, %s21, 1
        %s2280 = scalar_lea.vmem %s6, %s2279
      $region76: #{bottleneck_block.4} parent=59 // pred_fallthru
        _
      // Predicated region
      $region77: #{bottleneck_block.4} parent=59 // pred_check
        %p2281 = pneg %p216
      $region78: #{bottleneck_block.4} parent=59 // pred_check_branch
        %2283 = sbr.rel (%p2281) target = $region80
      $region79: #{bottleneck_block.4} parent=59 // pred_region
        %p2284 = scmp.lt.s32.totalorder %s21, 1
        %s2285 = scalar_select %p2284, %s21, 1
        %s2286 = scalar_lea.vmem %s7, %s2285
      $region80: #{bottleneck_block.4} parent=59 // pred_fallthru
        _
      // Predicated region
      $region81: #{bottleneck_block.4} parent=59 // pred_check
        %p2287 = pneg %p242
      $region82: #{bottleneck_block.4} parent=59 // pred_check_branch
        %2289 = sbr.rel (%p2287) target = $region84
      $region83: #{bottleneck_block.4} parent=59 // pred_region
        %p2290 = scmp.lt.s32.totalorder %s21, 1
        %s2291 = scalar_select %p2290, %s21, 1
        %s2292 = scalar_lea.vmem %s8, %s2291
      $region84: #{bottleneck_block.4} parent=59 // pred_fallthru
        _
    $region60: #{bottleneck_block.4} parent=5 // pred_fallthru
      _
  $region6: #{bottleneck_block.4} parent=0 // loop_footer
    %s19 = sadd.s32 1, %s15
  $region7: #{bottleneck_block.4} parent=0 // loop_footer_branch
    %14 = sbr.rel target = $region3
  $region8: #{bottleneck_block.4} parent=0 // loop_exit
    _

// kernel: bottleneck_block.7
$region0: #{bottleneck_block.7}
  #allocation0 [shape = 'u32[]', space=smem, size = 0x4, offset = 0x4, fixed_abs, tag = 'smem constant byte address 0x4 - core index']
  #allocation1 [shape = 'u32[144,128]{1,0:T(1,128)}', space=vmem, size = 0x12000, scoped, tag = 'internal scratch']
  %s0 = inlined_call_operand.vmem [shape: bf16[1024,128], index: 0, kind: input, shape index: {}]
  %s1 = inlined_call_operand.vmem [shape: f32[1,128], index: 1, kind: input, shape index: {}]
  %s2 = inlined_call_operand.vmem [shape: f32[1,128], index: 2, kind: input, shape index: {}]
  %s3 = inlined_call_operand.vmem [shape: bf16[1024,128], index: 3, kind: input, shape index: {}]
  %s4 = inlined_call_operand.vmem [shape: f32[1,128], index: 4, kind: input, shape index: {}]
  %s5 = inlined_call_operand.vmem [shape: f32[1,128], index: 5, kind: input, shape index: {}]
  %s6 = inlined_call_operand.hbm [shape: f32[1024,16], index: 6, kind: output, shape index: {}]
  %s7 = sld [smem:[#allocation0]]
  $region34: #{bottleneck_block.7} parent=0
    _
  %s9 = ssub.s32 1, %s7
  %s10 = scalar_select 0, %s9, %s7
  $region1: #{bottleneck_block.7} parent=0
    #allocation2 [shape = 'u8[524288]{0}', space=vmem, size = 0x80000, scoped, tag = 'output window, operand 0, single buffered']
    #allocation3 [shape = 's32[1]{0}', space=sflag, size = 0x4, scoped, tag = 'scoped memory for bottleneck_block.7']
    %11 = vsyncpa [#allocation3], 0
    // Predicated region
    $region2: #{bottleneck_block.7} parent=1 // pred_check
      _
    $region3: #{bottleneck_block.7} parent=1 // pred_check_branch
      %13 = sbr.rel (0) target = $region5
    $region4: #{bottleneck_block.7} parent=1 // pred_region
      _
    $region5: #{bottleneck_block.7} parent=1 // pred_fallthru
      _
    // Predicated region
    $region6: #{bottleneck_block.7} parent=1 // pred_check
      _
    $region7: #{bottleneck_block.7} parent=1 // pred_check_branch
      %15 = sbr.rel (0) target = $region9
    $region8: #{bottleneck_block.7} parent=1 // pred_region
      _
    $region9: #{bottleneck_block.7} parent=1 // pred_fallthru
      _
    // Predicated region
    $region10: #{bottleneck_block.7} parent=1 // pred_check
      _
    $region11: #{bottleneck_block.7} parent=1 // pred_check_branch
      %17 = sbr.rel (0) target = $region13
    $region12: #{bottleneck_block.7} parent=1 // pred_region
      _
    $region13: #{bottleneck_block.7} parent=1 // pred_fallthru
      _
    // Predicated region
    $region14: #{bottleneck_block.7} parent=1 // pred_check
      _
    $region15: #{bottleneck_block.7} parent=1 // pred_check_branch
      %19 = sbr.rel (0) target = $region17
    $region16: #{bottleneck_block.7} parent=1 // pred_region
      _
    $region17: #{bottleneck_block.7} parent=1 // pred_fallthru
      _
    // Predicated region
    $region18: #{bottleneck_block.7} parent=1 // pred_check
      _
    $region19: #{bottleneck_block.7} parent=1 // pred_check_branch
      %21 = sbr.rel (0) target = $region21
    $region20: #{bottleneck_block.7} parent=1 // pred_region
      _
    $region21: #{bottleneck_block.7} parent=1 // pred_fallthru
      _
    // Predicated region
    $region22: #{bottleneck_block.7} parent=1 // pred_check
      _
    $region23: #{bottleneck_block.7} parent=1 // pred_check_branch
      %23 = sbr.rel (0) target = $region25
    $region24: #{bottleneck_block.7} parent=1 // pred_region
      _
    $region25: #{bottleneck_block.7} parent=1 // pred_fallthru
      _
    %v24 = vld [vmem:[%s0] sm:$0xf]
    %v25 = vld [vmem:[%s0 + $0x4] sm:$0xf]
    %v26 = vld [vmem:[%s0 + $0x8] sm:$0xf]
    %v27 = vld [vmem:[%s0 + $0xc] sm:$0xf]
    %v28 = vld [vmem:[%s0 + $0x10] sm:$0xf]
    %v29 = vld [vmem:[%s0 + $0x14] sm:$0xf]
    %v30 = vld [vmem:[%s0 + $0x18] sm:$0xf]
    %v31 = vld [vmem:[%s0 + $0x1c] sm:$0xf]
    %v32 = vld [vmem:[%s0 + $0x20] sm:$0xf]
    %v33 = vld [vmem:[%s0 + $0x24] sm:$0xf]
    %v34 = vld [vmem:[%s0 + $0x28] sm:$0xf]
    %v35 = vld [vmem:[%s0 + $0x2c] sm:$0xf]
    %v36 = vld [vmem:[%s0 + $0x30] sm:$0xf]
    %v37 = vld [vmem:[%s0 + $0x34] sm:$0xf]
    %v38 = vld [vmem:[%s0 + $0x38] sm:$0xf]
    %v39 = vld [vmem:[%s0 + $0x3c] sm:$0xf]
    %v40 = vld [vmem:[%s0 + $0x40] sm:$0xf]
    %v41 = vld [vmem:[%s0 + $0x44] sm:$0xf]
    %v42 = vld [vmem:[%s0 + $0x48] sm:$0xf]
    %v43 = vld [vmem:[%s0 + $0x4c] sm:$0xf]
    %v44 = vld [vmem:[%s0 + $0x50] sm:$0xf]
    %v45 = vld [vmem:[%s0 + $0x54] sm:$0xf]
    %v46 = vld [vmem:[%s0 + $0x58] sm:$0xf]
    %v47 = vld [vmem:[%s0 + $0x5c] sm:$0xf]
    %v48 = vld [vmem:[%s0 + $0x60] sm:$0xf]
    %v49 = vld [vmem:[%s0 + $0x64] sm:$0xf]
    %v50 = vld [vmem:[%s0 + $0x68] sm:$0xf]
    %v51 = vld [vmem:[%s0 + $0x6c] sm:$0xf]
    %v52 = vld [vmem:[%s0 + $0x70] sm:$0xf]
    %v53 = vld [vmem:[%s0 + $0x74] sm:$0xf]
    %v54 = vld [vmem:[%s0 + $0x78] sm:$0xf]
    %v55 = vld [vmem:[%s0 + $0x7c] sm:$0xf]
    %v56 = vld [vmem:[%s0 + $0x80] sm:$0xf]
    %v57 = vld [vmem:[%s0 + $0x84] sm:$0xf]
    %v58 = vld [vmem:[%s0 + $0x88] sm:$0xf]
    %v59 = vld [vmem:[%s0 + $0x8c] sm:$0xf]
    %v60 = vld [vmem:[%s0 + $0x90] sm:$0xf]
    %v61 = vld [vmem:[%s0 + $0x94] sm:$0xf]
    %v62 = vld [vmem:[%s0 + $0x98] sm:$0xf]
    %v63 = vld [vmem:[%s0 + $0x9c] sm:$0xf]
    %v64 = vld [vmem:[%s0 + $0xa0] sm:$0xf]
    %v65 = vld [vmem:[%s0 + $0xa4] sm:$0xf]
    %v66 = vld [vmem:[%s0 + $0xa8] sm:$0xf]
    %v67 = vld [vmem:[%s0 + $0xac] sm:$0xf]
    %v68 = vld [vmem:[%s0 + $0xb0] sm:$0xf]
    %v69 = vld [vmem:[%s0 + $0xb4] sm:$0xf]
    %v70 = vld [vmem:[%s0 + $0xb8] sm:$0xf]
    %v71 = vld [vmem:[%s0 + $0xbc] sm:$0xf]
    %v72 = vld [vmem:[%s0 + $0xc0] sm:$0xf]
    %v73 = vld [vmem:[%s0 + $0xc4] sm:$0xf]
    %v74 = vld [vmem:[%s0 + $0xc8] sm:$0xf]
    %v75 = vld [vmem:[%s0 + $0xcc] sm:$0xf]
    %v76 = vld [vmem:[%s0 + $0xd0] sm:$0xf]
    %v77 = vld [vmem:[%s0 + $0xd4] sm:$0xf]
    %v78 = vld [vmem:[%s0 + $0xd8] sm:$0xf]
    %v79 = vld [vmem:[%s0 + $0xdc] sm:$0xf]
    %v80 = vld [vmem:[%s0 + $0xe0] sm:$0xf]
    %v81 = vld [vmem:[%s0 + $0xe4] sm:$0xf]
    %v82 = vld [vmem:[%s0 + $0xe8] sm:$0xf]
    %v83 = vld [vmem:[%s0 + $0xec] sm:$0xf]
    %v84 = vld [vmem:[%s0 + $0xf0] sm:$0xf]
    %v85 = vld [vmem:[%s0 + $0xf4] sm:$0xf]
    %v86 = vld [vmem:[%s0 + $0xf8] sm:$0xf]
    %v87 = vld [vmem:[%s0 + $0xfc] sm:$0xf]
    %v88 = vld [vmem:[%s0 + $0x100] sm:$0xf]
    %v89 = vld [vmem:[%s0 + $0x104] sm:$0xf]
    %v90 = vld [vmem:[%s0 + $0x108] sm:$0xf]
    %v91 = vld [vmem:[%s0 + $0x10c] sm:$0xf]
    %v92 = vld [vmem:[%s0 + $0x110] sm:$0xf]
    %v93 = vld [vmem:[%s0 + $0x114] sm:$0xf]
    %v94 = vld [vmem:[%s0 + $0x118] sm:$0xf]
    %v95 = vld [vmem:[%s0 + $0x11c] sm:$0xf]
    %v96 = vld [vmem:[%s0 + $0x120] sm:$0xf]
    %v97 = vld [vmem:[%s0 + $0x124] sm:$0xf]
    %v98 = vld [vmem:[%s0 + $0x128] sm:$0xf]
    %v99 = vld [vmem:[%s0 + $0x12c] sm:$0xf]
    %v100 = vld [vmem:[%s0 + $0x130] sm:$0xf]
    %v101 = vld [vmem:[%s0 + $0x134] sm:$0xf]
    %v102 = vld [vmem:[%s0 + $0x138] sm:$0xf]
    %v103 = vld [vmem:[%s0 + $0x13c] sm:$0xf]
    %v104 = vld [vmem:[%s0 + $0x140] sm:$0xf]
    %v105 = vld [vmem:[%s0 + $0x144] sm:$0xf]
    %v106 = vld [vmem:[%s0 + $0x148] sm:$0xf]
    %v107 = vld [vmem:[%s0 + $0x14c] sm:$0xf]
    %v108 = vld [vmem:[%s0 + $0x150] sm:$0xf]
    %v109 = vld [vmem:[%s0 + $0x154] sm:$0xf]
    %v110 = vld [vmem:[%s0 + $0x158] sm:$0xf]
    %v111 = vld [vmem:[%s0 + $0x15c] sm:$0xf]
    %v112 = vld [vmem:[%s0 + $0x160] sm:$0xf]
    %v113 = vld [vmem:[%s0 + $0x164] sm:$0xf]
    %v114 = vld [vmem:[%s0 + $0x168] sm:$0xf]
    %v115 = vld [vmem:[%s0 + $0x16c] sm:$0xf]
    %v116 = vld [vmem:[%s0 + $0x170] sm:$0xf]
    %v117 = vld [vmem:[%s0 + $0x174] sm:$0xf]
    %v118 = vld [vmem:[%s0 + $0x178] sm:$0xf]
    %v119 = vld [vmem:[%s0 + $0x17c] sm:$0xf]
    %v120 = vld [vmem:[%s0 + $0x180] sm:$0xf]
    %v121 = vld [vmem:[%s0 + $0x184] sm:$0xf]
    %v122 = vld [vmem:[%s0 + $0x188] sm:$0xf]
    %v123 = vld [vmem:[%s0 + $0x18c] sm:$0xf]
    %v124 = vld [vmem:[%s0 + $0x190] sm:$0xf]
    %v125 = vld [vmem:[%s0 + $0x194] sm:$0xf]
    %v126 = vld [vmem:[%s0 + $0x198] sm:$0xf]
    %v127 = vld [vmem:[%s0 + $0x19c] sm:$0xf]
    %v128 = vld [vmem:[%s0 + $0x1a0] sm:$0xf]
    %v129 = vld [vmem:[%s0 + $0x1a4] sm:$0xf]
    %v130 = vld [vmem:[%s0 + $0x1a8] sm:$0xf]
    %v131 = vld [vmem:[%s0 + $0x1ac] sm:$0xf]
    %v132 = vld [vmem:[%s0 + $0x1b0] sm:$0xf]
    %v133 = vld [vmem:[%s0 + $0x1b4] sm:$0xf]
    %v134 = vld [vmem:[%s0 + $0x1b8] sm:$0xf]
    %v135 = vld [vmem:[%s0 + $0x1bc] sm:$0xf]
    %v136 = vld [vmem:[%s0 + $0x1c0] sm:$0xf]
    %v137 = vld [vmem:[%s0 + $0x1c4] sm:$0xf]
    %v138 = vld [vmem:[%s0 + $0x1c8] sm:$0xf]
    %v139 = vld [vmem:[%s0 + $0x1cc] sm:$0xf]
    %v140 = vld [vmem:[%s0 + $0x1d0] sm:$0xf]
    %v141 = vld [vmem:[%s0 + $0x1d4] sm:$0xf]
    %v142 = vld [vmem:[%s0 + $0x1d8] sm:$0xf]
    %v143 = vld [vmem:[%s0 + $0x1dc] sm:$0xf]
    %v144 = vld [vmem:[%s0 + $0x1e0] sm:$0xf]
    %v145 = vld [vmem:[%s0 + $0x1e4] sm:$0xf]
    %v146 = vld [vmem:[%s0 + $0x1e8] sm:$0xf]
    %v147 = vld [vmem:[%s0 + $0x1ec] sm:$0xf]
    %v148 = vld [vmem:[%s0 + $0x1f0] sm:$0xf]
    %v149 = vld [vmem:[%s0 + $0x1f4] sm:$0xf]
    %v150 = vld [vmem:[%s0 + $0x1f8] sm:$0xf]
    %v151 = vld [vmem:[%s0 + $0x1fc] sm:$0xf]
    %v152 = vunpack.c.l.bf16 %v24
    %v153 = vunpack.c.l.bf16 %v25
    %v154 = vunpack.c.l.bf16 %v26
    %v155 = vunpack.c.l.bf16 %v27
    %v156 = vunpack.c.l.bf16 %v28
    %v157 = vunpack.c.l.bf16 %v29
    %v158 = vunpack.c.l.bf16 %v30
    %v159 = vunpack.c.l.bf16 %v31
    %v160 = vunpack.c.l.bf16 %v32
    %v161 = vunpack.c.l.bf16 %v33
    %v162 = vunpack.c.l.bf16 %v34
    %v163 = vunpack.c.l.bf16 %v35
    %v164 = vunpack.c.l.bf16 %v36
    %v165 = vunpack.c.l.bf16 %v37
    %v166 = vunpack.c.l.bf16 %v38
    %v167 = vunpack.c.l.bf16 %v39
    %v168 = vunpack.c.l.bf16 %v40
    %v169 = vunpack.c.l.bf16 %v41
    %v170 = vunpack.c.l.bf16 %v42
    %v171 = vunpack.c.l.bf16 %v43
    %v172 = vunpack.c.l.bf16 %v44
    %v173 = vunpack.c.l.bf16 %v45
    %v174 = vunpack.c.l.bf16 %v46
    %v175 = vunpack.c.l.bf16 %v47
    %v176 = vunpack.c.l.bf16 %v48
    %v177 = vunpack.c.l.bf16 %v49
    %v178 = vunpack.c.l.bf16 %v50
    %v179 = vunpack.c.l.bf16 %v51
    %v180 = vunpack.c.l.bf16 %v52
    %v181 = vunpack.c.l.bf16 %v53
    %v182 = vunpack.c.l.bf16 %v54
    %v183 = vunpack.c.l.bf16 %v55
    %v184 = vunpack.c.l.bf16 %v56
    %v185 = vunpack.c.l.bf16 %v57
    %v186 = vunpack.c.l.bf16 %v58
    %v187 = vunpack.c.l.bf16 %v59
    %v188 = vunpack.c.l.bf16 %v60
    %v189 = vunpack.c.l.bf16 %v61
    %v190 = vunpack.c.l.bf16 %v62
    %v191 = vunpack.c.l.bf16 %v63
    %v192 = vunpack.c.l.bf16 %v64
    %v193 = vunpack.c.l.bf16 %v65
    %v194 = vunpack.c.l.bf16 %v66
    %v195 = vunpack.c.l.bf16 %v67
    %v196 = vunpack.c.l.bf16 %v68
    %v197 = vunpack.c.l.bf16 %v69
    %v198 = vunpack.c.l.bf16 %v70
    %v199 = vunpack.c.l.bf16 %v71
    %v200 = vunpack.c.l.bf16 %v72
    %v201 = vunpack.c.l.bf16 %v73
    %v202 = vunpack.c.l.bf16 %v74
    %v203 = vunpack.c.l.bf16 %v75
    %v204 = vunpack.c.l.bf16 %v76
    %v205 = vunpack.c.l.bf16 %v77
    %v206 = vunpack.c.l.bf16 %v78
    %v207 = vunpack.c.l.bf16 %v79
    %v208 = vunpack.c.l.bf16 %v80
    %v209 = vunpack.c.l.bf16 %v81
    %v210 = vunpack.c.l.bf16 %v82
    %v211 = vunpack.c.l.bf16 %v83
    %v212 = vunpack.c.l.bf16 %v84
    %v213 = vunpack.c.l.bf16 %v85
    %v214 = vunpack.c.l.bf16 %v86
    %v215 = vunpack.c.l.bf16 %v87
    %v216 = vunpack.c.l.bf16 %v88
    %v217 = vunpack.c.l.bf16 %v89
    %v218 = vunpack.c.l.bf16 %v90
    %v219 = vunpack.c.l.bf16 %v91
    %v220 = vunpack.c.l.bf16 %v92
    %v221 = vunpack.c.l.bf16 %v93
    %v222 = vunpack.c.l.bf16 %v94
    %v223 = vunpack.c.l.bf16 %v95
    %v224 = vunpack.c.l.bf16 %v96
    %v225 = vunpack.c.l.bf16 %v97
    %v226 = vunpack.c.l.bf16 %v98
    %v227 = vunpack.c.l.bf16 %v99
    %v228 = vunpack.c.l.bf16 %v100
    %v229 = vunpack.c.l.bf16 %v101
    %v230 = vunpack.c.l.bf16 %v102
    %v231 = vunpack.c.l.bf16 %v103
    %v232 = vunpack.c.l.bf16 %v104
    %v233 = vunpack.c.l.bf16 %v105
    %v234 = vunpack.c.l.bf16 %v106
    %v235 = vunpack.c.l.bf16 %v107
    %v236 = vunpack.c.l.bf16 %v108
    %v237 = vunpack.c.l.bf16 %v109
    %v238 = vunpack.c.l.bf16 %v110
    %v239 = vunpack.c.l.bf16 %v111
    %v240 = vunpack.c.l.bf16 %v112
    %v241 = vunpack.c.l.bf16 %v113
    %v242 = vunpack.c.l.bf16 %v114
    %v243 = vunpack.c.l.bf16 %v115
    %v244 = vunpack.c.l.bf16 %v116
    %v245 = vunpack.c.l.bf16 %v117
    %v246 = vunpack.c.l.bf16 %v118
    %v247 = vunpack.c.l.bf16 %v119
    %v248 = vunpack.c.l.bf16 %v120
    %v249 = vunpack.c.l.bf16 %v121
    %v250 = vunpack.c.l.bf16 %v122
    %v251 = vunpack.c.l.bf16 %v123
    %v252 = vunpack.c.l.bf16 %v124
    %v253 = vunpack.c.l.bf16 %v125
    %v254 = vunpack.c.l.bf16 %v126
    %v255 = vunpack.c.l.bf16 %v127
    %v256 = vunpack.c.l.bf16 %v128
    %v257 = vunpack.c.l.bf16 %v129
    %v258 = vunpack.c.l.bf16 %v130
    %v259 = vunpack.c.l.bf16 %v131
    %v260 = vunpack.c.l.bf16 %v132
    %v261 = vunpack.c.l.bf16 %v133
    %v262 = vunpack.c.l.bf16 %v134
    %v263 = vunpack.c.l.bf16 %v135
    %v264 = vunpack.c.l.bf16 %v136
    %v265 = vunpack.c.l.bf16 %v137
    %v266 = vunpack.c.l.bf16 %v138
    %v267 = vunpack.c.l.bf16 %v139
    %v268 = vunpack.c.l.bf16 %v140
    %v269 = vunpack.c.l.bf16 %v141
    %v270 = vunpack.c.l.bf16 %v142
    %v271 = vunpack.c.l.bf16 %v143
    %v272 = vunpack.c.l.bf16 %v144
    %v273 = vunpack.c.l.bf16 %v145
    %v274 = vunpack.c.l.bf16 %v146
    %v275 = vunpack.c.l.bf16 %v147
    %v276 = vunpack.c.l.bf16 %v148
    %v277 = vunpack.c.l.bf16 %v149
    %v278 = vunpack.c.l.bf16 %v150
    %v279 = vunpack.c.l.bf16 %v151
    %v280 = vld [vmem:[%s1] sm:$0x1]
    %v282 = vlaneseq
    %v283 = vshrl.u32 %v282, 7
    %v284 = vsub.s32 0, %v283
    %v285 = vrot.slane %v280, %v284
    %v287 = vmul.f32 %v152, %v285
    %v288 = vmul.f32 %v153, %v285
    %v289 = vmul.f32 %v154, %v285
    %v290 = vmul.f32 %v155, %v285
    %v291 = vmul.f32 %v156, %v285
    %v292 = vmul.f32 %v157, %v285
    %v293 = vmul.f32 %v158, %v285
    %v294 = vmul.f32 %v159, %v285
    %v295 = vmul.f32 %v160, %v285
    %v296 = vmul.f32 %v161, %v285
    %v297 = vmul.f32 %v162, %v285
    %v298 = vmul.f32 %v163, %v285
    %v299 = vmul.f32 %v164, %v285
    %v300 = vmul.f32 %v165, %v285
    %v301 = vmul.f32 %v166, %v285
    %v302 = vmul.f32 %v167, %v285
    %v303 = vmul.f32 %v168, %v285
    %v304 = vmul.f32 %v169, %v285
    %v305 = vmul.f32 %v170, %v285
    %v306 = vmul.f32 %v171, %v285
    %v307 = vmul.f32 %v172, %v285
    %v308 = vmul.f32 %v173, %v285
    %v309 = vmul.f32 %v174, %v285
    %v310 = vmul.f32 %v175, %v285
    %v311 = vmul.f32 %v176, %v285
    %v312 = vmul.f32 %v177, %v285
    %v313 = vmul.f32 %v178, %v285
    %v314 = vmul.f32 %v179, %v285
    %v315 = vmul.f32 %v180, %v285
    %v316 = vmul.f32 %v181, %v285
    %v317 = vmul.f32 %v182, %v285
    %v318 = vmul.f32 %v183, %v285
    %v319 = vmul.f32 %v184, %v285
    %v320 = vmul.f32 %v185, %v285
    %v321 = vmul.f32 %v186, %v285
    %v322 = vmul.f32 %v187, %v285
    %v323 = vmul.f32 %v188, %v285
    %v324 = vmul.f32 %v189, %v285
    %v325 = vmul.f32 %v190, %v285
    %v326 = vmul.f32 %v191, %v285
    %v327 = vmul.f32 %v192, %v285
    %v328 = vmul.f32 %v193, %v285
    %v329 = vmul.f32 %v194, %v285
    %v330 = vmul.f32 %v195, %v285
    %v331 = vmul.f32 %v196, %v285
    %v332 = vmul.f32 %v197, %v285
    %v333 = vmul.f32 %v198, %v285
    %v334 = vmul.f32 %v199, %v285
    %v335 = vmul.f32 %v200, %v285
    %v336 = vmul.f32 %v201, %v285
    %v337 = vmul.f32 %v202, %v285
    %v338 = vmul.f32 %v203, %v285
    %v339 = vmul.f32 %v204, %v285
    %v340 = vmul.f32 %v205, %v285
    %v341 = vmul.f32 %v206, %v285
    %v342 = vmul.f32 %v207, %v285
    %v343 = vmul.f32 %v208, %v285
    %v344 = vmul.f32 %v209, %v285
    %v345 = vmul.f32 %v210, %v285
    %v346 = vmul.f32 %v211, %v285
    %v347 = vmul.f32 %v212, %v285
    %v348 = vmul.f32 %v213, %v285
    %v349 = vmul.f32 %v214, %v285
    %v350 = vmul.f32 %v215, %v285
    %v351 = vmul.f32 %v216, %v285
    %v352 = vmul.f32 %v217, %v285
    %v353 = vmul.f32 %v218, %v285
    %v354 = vmul.f32 %v219, %v285
    %v355 = vmul.f32 %v220, %v285
    %v356 = vmul.f32 %v221, %v285
    %v357 = vmul.f32 %v222, %v285
    %v358 = vmul.f32 %v223, %v285
    %v359 = vmul.f32 %v224, %v285
    %v360 = vmul.f32 %v225, %v285
    %v361 = vmul.f32 %v226, %v285
    %v362 = vmul.f32 %v227, %v285
    %v363 = vmul.f32 %v228, %v285
    %v364 = vmul.f32 %v229, %v285
    %v365 = vmul.f32 %v230, %v285
    %v366 = vmul.f32 %v231, %v285
    %v367 = vmul.f32 %v232, %v285
    %v368 = vmul.f32 %v233, %v285
    %v369 = vmul.f32 %v234, %v285
    %v370 = vmul.f32 %v235, %v285
    %v371 = vmul.f32 %v236, %v285
    %v372 = vmul.f32 %v237, %v285
    %v373 = vmul.f32 %v238, %v285
    %v374 = vmul.f32 %v239, %v285
    %v375 = vmul.f32 %v240, %v285
    %v376 = vmul.f32 %v241, %v285
    %v377 = vmul.f32 %v242, %v285
    %v378 = vmul.f32 %v243, %v285
    %v379 = vmul.f32 %v244, %v285
    %v380 = vmul.f32 %v245, %v285
    %v381 = vmul.f32 %v246, %v285
    %v382 = vmul.f32 %v247, %v285
    %v383 = vmul.f32 %v248, %v285
    %v384 = vmul.f32 %v249, %v285
    %v385 = vmul.f32 %v250, %v285
    %v386 = vmul.f32 %v251, %v285
    %v387 = vmul.f32 %v252, %v285
    %v388 = vmul.f32 %v253, %v285
    %v389 = vmul.f32 %v254, %v285
    %v390 = vmul.f32 %v255, %v285
    %v391 = vmul.f32 %v256, %v285
    %v392 = vmul.f32 %v257, %v285
    %v393 = vmul.f32 %v258, %v285
    %v394 = vmul.f32 %v259, %v285
    %v395 = vmul.f32 %v260, %v285
    %v396 = vmul.f32 %v261, %v285
    %v397 = vmul.f32 %v262, %v285
    %v398 = vmul.f32 %v263, %v285
    %v399 = vmul.f32 %v264, %v285
    %v400 = vmul.f32 %v265, %v285
    %v401 = vmul.f32 %v266, %v285
    %v402 = vmul.f32 %v267, %v285
    %v403 = vmul.f32 %v268, %v285
    %v404 = vmul.f32 %v269, %v285
    %v405 = vmul.f32 %v270, %v285
    %v406 = vmul.f32 %v271, %v285
    %v407 = vmul.f32 %v272, %v285
    %v408 = vmul.f32 %v273, %v285
    %v409 = vmul.f32 %v274, %v285
    %v410 = vmul.f32 %v275, %v285
    %v411 = vmul.f32 %v276, %v285
    %v412 = vmul.f32 %v277, %v285
    %v413 = vmul.f32 %v278, %v285
    %v414 = vmul.f32 %v279, %v285
    %v415 = vld [vmem:[%s2] sm:$0x1]
    %v417 = vlaneseq
    %v418 = vshrl.u32 %v417, 7
    %v419 = vsub.s32 0, %v418
    %v420 = vrot.slane %v415, %v419
    %v422 = vadd.f32 %v287, %v420
    %v423 = vadd.f32 %v288, %v420
    %v424 = vadd.f32 %v289, %v420
    %v425 = vadd.f32 %v290, %v420
    %v426 = vadd.f32 %v291, %v420
    %v427 = vadd.f32 %v292, %v420
    %v428 = vadd.f32 %v293, %v420
    %v429 = vadd.f32 %v294, %v420
    %v430 = vadd.f32 %v295, %v420
    %v431 = vadd.f32 %v296, %v420
    %v432 = vadd.f32 %v297, %v420
    %v433 = vadd.f32 %v298, %v420
    %v434 = vadd.f32 %v299, %v420
    %v435 = vadd.f32 %v300, %v420
    %v436 = vadd.f32 %v301, %v420
    %v437 = vadd.f32 %v302, %v420
    %v438 = vadd.f32 %v303, %v420
    %v439 = vadd.f32 %v304, %v420
    %v440 = vadd.f32 %v305, %v420
    %v441 = vadd.f32 %v306, %v420
    %v442 = vadd.f32 %v307, %v420
    %v443 = vadd.f32 %v308, %v420
    %v444 = vadd.f32 %v309, %v420
    %v445 = vadd.f32 %v310, %v420
    %v446 = vadd.f32 %v311, %v420
    %v447 = vadd.f32 %v312, %v420
    %v448 = vadd.f32 %v313, %v420
    %v449 = vadd.f32 %v314, %v420
    %v450 = vadd.f32 %v315, %v420
    %v451 = vadd.f32 %v316, %v420
    %v452 = vadd.f32 %v317, %v420
    %v453 = vadd.f32 %v318, %v420
    %v454 = vadd.f32 %v319, %v420
    %v455 = vadd.f32 %v320, %v420
    %v456 = vadd.f32 %v321, %v420
    %v457 = vadd.f32 %v322, %v420
    %v458 = vadd.f32 %v323, %v420
    %v459 = vadd.f32 %v324, %v420
    %v460 = vadd.f32 %v325, %v420
    %v461 = vadd.f32 %v326, %v420
    %v462 = vadd.f32 %v327, %v420
    %v463 = vadd.f32 %v328, %v420
    %v464 = vadd.f32 %v329, %v420
    %v465 = vadd.f32 %v330, %v420
    %v466 = vadd.f32 %v331, %v420
    %v467 = vadd.f32 %v332, %v420
    %v468 = vadd.f32 %v333, %v420
    %v469 = vadd.f32 %v334, %v420
    %v470 = vadd.f32 %v335, %v420
    %v471 = vadd.f32 %v336, %v420
    %v472 = vadd.f32 %v337, %v420
    %v473 = vadd.f32 %v338, %v420
    %v474 = vadd.f32 %v339, %v420
    %v475 = vadd.f32 %v340, %v420
    %v476 = vadd.f32 %v341, %v420
    %v477 = vadd.f32 %v342, %v420
    %v478 = vadd.f32 %v343, %v420
    %v479 = vadd.f32 %v344, %v420
    %v480 = vadd.f32 %v345, %v420
    %v481 = vadd.f32 %v346, %v420
    %v482 = vadd.f32 %v347, %v420
    %v483 = vadd.f32 %v348, %v420
    %v484 = vadd.f32 %v349, %v420
    %v485 = vadd.f32 %v350, %v420
    %v486 = vadd.f32 %v351, %v420
    %v487 = vadd.f32 %v352, %v420
    %v488 = vadd.f32 %v353, %v420
    %v489 = vadd.f32 %v354, %v420
    %v490 = vadd.f32 %v355, %v420
    %v491 = vadd.f32 %v356, %v420
    %v492 = vadd.f32 %v357, %v420
    %v493 = vadd.f32 %v358, %v420
    %v494 = vadd.f32 %v359, %v420
    %v495 = vadd.f32 %v360, %v420
    %v496 = vadd.f32 %v361, %v420
    %v497 = vadd.f32 %v362, %v420
    %v498 = vadd.f32 %v363, %v420
    %v499 = vadd.f32 %v364, %v420
    %v500 = vadd.f32 %v365, %v420
    %v501 = vadd.f32 %v366, %v420
    %v502 = vadd.f32 %v367, %v420
    %v503 = vadd.f32 %v368, %v420
    %v504 = vadd.f32 %v369, %v420
    %v505 = vadd.f32 %v370, %v420
    %v506 = vadd.f32 %v371, %v420
    %v507 = vadd.f32 %v372, %v420
    %v508 = vadd.f32 %v373, %v420
    %v509 = vadd.f32 %v374, %v420
    %v510 = vadd.f32 %v375, %v420
    %v511 = vadd.f32 %v376, %v420
    %v512 = vadd.f32 %v377, %v420
    %v513 = vadd.f32 %v378, %v420
    %v514 = vadd.f32 %v379, %v420
    %v515 = vadd.f32 %v380, %v420
    %v516 = vadd.f32 %v381, %v420
    %v517 = vadd.f32 %v382, %v420
    %v518 = vadd.f32 %v383, %v420
    %v519 = vadd.f32 %v384, %v420
    %v520 = vadd.f32 %v385, %v420
    %v521 = vadd.f32 %v386, %v420
    %v522 = vadd.f32 %v387, %v420
    %v523 = vadd.f32 %v388, %v420
    %v524 = vadd.f32 %v389, %v420
    %v525 = vadd.f32 %v390, %v420
    %v526 = vadd.f32 %v391, %v420
    %v527 = vadd.f32 %v392, %v420
    %v528 = vadd.f32 %v393, %v420
    %v529 = vadd.f32 %v394, %v420
    %v530 = vadd.f32 %v395, %v420
    %v531 = vadd.f32 %v396, %v420
    %v532 = vadd.f32 %v397, %v420
    %v533 = vadd.f32 %v398, %v420
    %v534 = vadd.f32 %v399, %v420
    %v535 = vadd.f32 %v400, %v420
    %v536 = vadd.f32 %v401, %v420
    %v537 = vadd.f32 %v402, %v420
    %v538 = vadd.f32 %v403, %v420
    %v539 = vadd.f32 %v404, %v420
    %v540 = vadd.f32 %v405, %v420
    %v541 = vadd.f32 %v406, %v420
    %v542 = vadd.f32 %v407, %v420
    %v543 = vadd.f32 %v408, %v420
    %v544 = vadd.f32 %v409, %v420
    %v545 = vadd.f32 %v410, %v420
    %v546 = vadd.f32 %v411, %v420
    %v547 = vadd.f32 %v412, %v420
    %v548 = vadd.f32 %v413, %v420
    %v549 = vadd.f32 %v414, %v420
    %v550 = vld [vmem:[%s3] sm:$0xf]
    %v551 = vld [vmem:[%s3 + $0x4] sm:$0xf]
    %v552 = vld [vmem:[%s3 + $0x8] sm:$0xf]
    %v553 = vld [vmem:[%s3 + $0xc] sm:$0xf]
    %v554 = vld [vmem:[%s3 + $0x10] sm:$0xf]
    %v555 = vld [vmem:[%s3 + $0x14] sm:$0xf]
    %v556 = vld [vmem:[%s3 + $0x18] sm:$0xf]
    %v557 = vld [vmem:[%s3 + $0x1c] sm:$0xf]
    %v558 = vld [vmem:[%s3 + $0x20] sm:$0xf]
    %v559 = vld [vmem:[%s3 + $0x24] sm:$0xf]
    %v560 = vld [vmem:[%s3 + $0x28] sm:$0xf]
    %v561 = vld [vmem:[%s3 + $0x2c] sm:$0xf]
    %v562 = vld [vmem:[%s3 + $0x30] sm:$0xf]
    %v563 = vld [vmem:[%s3 + $0x34] sm:$0xf]
    %v564 = vld [vmem:[%s3 + $0x38] sm:$0xf]
    %v565 = vld [vmem:[%s3 + $0x3c] sm:$0xf]
    %v566 = vld [vmem:[%s3 + $0x40] sm:$0xf]
    %v567 = vld [vmem:[%s3 + $0x44] sm:$0xf]
    %v568 = vld [vmem:[%s3 + $0x48] sm:$0xf]
    %v569 = vld [vmem:[%s3 + $0x4c] sm:$0xf]
    %v570 = vld [vmem:[%s3 + $0x50] sm:$0xf]
    %v571 = vld [vmem:[%s3 + $0x54] sm:$0xf]
    %v572 = vld [vmem:[%s3 + $0x58] sm:$0xf]
    %v573 = vld [vmem:[%s3 + $0x5c] sm:$0xf]
    %v574 = vld [vmem:[%s3 + $0x60] sm:$0xf]
    %v575 = vld [vmem:[%s3 + $0x64] sm:$0xf]
    %v576 = vld [vmem:[%s3 + $0x68] sm:$0xf]
    %v577 = vld [vmem:[%s3 + $0x6c] sm:$0xf]
    %v578 = vld [vmem:[%s3 + $0x70] sm:$0xf]
    %v579 = vld [vmem:[%s3 + $0x74] sm:$0xf]
    %v580 = vld [vmem:[%s3 + $0x78] sm:$0xf]
    %v581 = vld [vmem:[%s3 + $0x7c] sm:$0xf]
    %v582 = vld [vmem:[%s3 + $0x80] sm:$0xf]
    %v583 = vld [vmem:[%s3 + $0x84] sm:$0xf]
    %v584 = vld [vmem:[%s3 + $0x88] sm:$0xf]
    %v585 = vld [vmem:[%s3 + $0x8c] sm:$0xf]
    %v586 = vld [vmem:[%s3 + $0x90] sm:$0xf]
    %v587 = vld [vmem:[%s3 + $0x94] sm:$0xf]
    %v588 = vld [vmem:[%s3 + $0x98] sm:$0xf]
    %v589 = vld [vmem:[%s3 + $0x9c] sm:$0xf]
    %v590 = vld [vmem:[%s3 + $0xa0] sm:$0xf]
    %v591 = vld [vmem:[%s3 + $0xa4] sm:$0xf]
    %v592 = vld [vmem:[%s3 + $0xa8] sm:$0xf]
    %v593 = vld [vmem:[%s3 + $0xac] sm:$0xf]
    %v594 = vld [vmem:[%s3 + $0xb0] sm:$0xf]
    %v595 = vld [vmem:[%s3 + $0xb4] sm:$0xf]
    %v596 = vld [vmem:[%s3 + $0xb8] sm:$0xf]
    %v597 = vld [vmem:[%s3 + $0xbc] sm:$0xf]
    %v598 = vld [vmem:[%s3 + $0xc0] sm:$0xf]
    %v599 = vld [vmem:[%s3 + $0xc4] sm:$0xf]
    %v600 = vld [vmem:[%s3 + $0xc8] sm:$0xf]
    %v601 = vld [vmem:[%s3 + $0xcc] sm:$0xf]
    %v602 = vld [vmem:[%s3 + $0xd0] sm:$0xf]
    %v603 = vld [vmem:[%s3 + $0xd4] sm:$0xf]
    %v604 = vld [vmem:[%s3 + $0xd8] sm:$0xf]
    %v605 = vld [vmem:[%s3 + $0xdc] sm:$0xf]
    %v606 = vld [vmem:[%s3 + $0xe0] sm:$0xf]
    %v607 = vld [vmem:[%s3 + $0xe4] sm:$0xf]
    %v608 = vld [vmem:[%s3 + $0xe8] sm:$0xf]
    %v609 = vld [vmem:[%s3 + $0xec] sm:$0xf]
    %v610 = vld [vmem:[%s3 + $0xf0] sm:$0xf]
    %v611 = vld [vmem:[%s3 + $0xf4] sm:$0xf]
    %v612 = vld [vmem:[%s3 + $0xf8] sm:$0xf]
    %v613 = vld [vmem:[%s3 + $0xfc] sm:$0xf]
    %v614 = vld [vmem:[%s3 + $0x100] sm:$0xf]
    %v615 = vld [vmem:[%s3 + $0x104] sm:$0xf]
    %v616 = vld [vmem:[%s3 + $0x108] sm:$0xf]
    %v617 = vld [vmem:[%s3 + $0x10c] sm:$0xf]
    %v618 = vld [vmem:[%s3 + $0x110] sm:$0xf]
    %v619 = vld [vmem:[%s3 + $0x114] sm:$0xf]
    %v620 = vld [vmem:[%s3 + $0x118] sm:$0xf]
    %v621 = vld [vmem:[%s3 + $0x11c] sm:$0xf]
    %v622 = vld [vmem:[%s3 + $0x120] sm:$0xf]
    %v623 = vld [vmem:[%s3 + $0x124] sm:$0xf]
    %v624 = vld [vmem:[%s3 + $0x128] sm:$0xf]
    %v625 = vld [vmem:[%s3 + $0x12c] sm:$0xf]
    %v626 = vld [vmem:[%s3 + $0x130] sm:$0xf]
    %v627 = vld [vmem:[%s3 + $0x134] sm:$0xf]
    %v628 = vld [vmem:[%s3 + $0x138] sm:$0xf]
    %v629 = vld [vmem:[%s3 + $0x13c] sm:$0xf]
    %v630 = vld [vmem:[%s3 + $0x140] sm:$0xf]
    %v631 = vld [vmem:[%s3 + $0x144] sm:$0xf]
    %v632 = vld [vmem:[%s3 + $0x148] sm:$0xf]
    %v633 = vld [vmem:[%s3 + $0x14c] sm:$0xf]
    %v634 = vld [vmem:[%s3 + $0x150] sm:$0xf]
    %v635 = vld [vmem:[%s3 + $0x154] sm:$0xf]
    %v636 = vld [vmem:[%s3 + $0x158] sm:$0xf]
    %v637 = vld [vmem:[%s3 + $0x15c] sm:$0xf]
    %v638 = vld [vmem:[%s3 + $0x160] sm:$0xf]
    %v639 = vld [vmem:[%s3 + $0x164] sm:$0xf]
    %v640 = vld [vmem:[%s3 + $0x168] sm:$0xf]
    %v641 = vld [vmem:[%s3 + $0x16c] sm:$0xf]
    %v642 = vld [vmem:[%s3 + $0x170] sm:$0xf]
    %v643 = vld [vmem:[%s3 + $0x174] sm:$0xf]
    %v644 = vld [vmem:[%s3 + $0x178] sm:$0xf]
    %v645 = vld [vmem:[%s3 + $0x17c] sm:$0xf]
    %v646 = vld [vmem:[%s3 + $0x180] sm:$0xf]
    %v647 = vld [vmem:[%s3 + $0x184] sm:$0xf]
    %v648 = vld [vmem:[%s3 + $0x188] sm:$0xf]
    %v649 = vld [vmem:[%s3 + $0x18c] sm:$0xf]
    %v650 = vld [vmem:[%s3 + $0x190] sm:$0xf]
    %v651 = vld [vmem:[%s3 + $0x194] sm:$0xf]
    %v652 = vld [vmem:[%s3 + $0x198] sm:$0xf]
    %v653 = vld [vmem:[%s3 + $0x19c] sm:$0xf]
    %v654 = vld [vmem:[%s3 + $0x1a0] sm:$0xf]
    %v655 = vld [vmem:[%s3 + $0x1a4] sm:$0xf]
    %v656 = vld [vmem:[%s3 + $0x1a8] sm:$0xf]
    %v657 = vld [vmem:[%s3 + $0x1ac] sm:$0xf]
    %v658 = vld [vmem:[%s3 + $0x1b0] sm:$0xf]
    %v659 = vld [vmem:[%s3 + $0x1b4] sm:$0xf]
    %v660 = vld [vmem:[%s3 + $0x1b8] sm:$0xf]
    %v661 = vld [vmem:[%s3 + $0x1bc] sm:$0xf]
    %v662 = vld [vmem:[%s3 + $0x1c0] sm:$0xf]
    %v663 = vld [vmem:[%s3 + $0x1c4] sm:$0xf]
    %v664 = vld [vmem:[%s3 + $0x1c8] sm:$0xf]
    %v665 = vld [vmem:[%s3 + $0x1cc] sm:$0xf]
    %v666 = vld [vmem:[%s3 + $0x1d0] sm:$0xf]
    %v667 = vld [vmem:[%s3 + $0x1d4] sm:$0xf]
    %v668 = vld [vmem:[%s3 + $0x1d8] sm:$0xf]
    %v669 = vld [vmem:[%s3 + $0x1dc] sm:$0xf]
    %v670 = vld [vmem:[%s3 + $0x1e0] sm:$0xf]
    %v671 = vld [vmem:[%s3 + $0x1e4] sm:$0xf]
    %v672 = vld [vmem:[%s3 + $0x1e8] sm:$0xf]
    %v673 = vld [vmem:[%s3 + $0x1ec] sm:$0xf]
    %v674 = vld [vmem:[%s3 + $0x1f0] sm:$0xf]
    %v675 = vld [vmem:[%s3 + $0x1f4] sm:$0xf]
    %v676 = vld [vmem:[%s3 + $0x1f8] sm:$0xf]
    %v677 = vld [vmem:[%s3 + $0x1fc] sm:$0xf]
    %v678 = vunpack.c.l.bf16 %v550
    %v679 = vunpack.c.l.bf16 %v551
    %v680 = vunpack.c.l.bf16 %v552
    %v681 = vunpack.c.l.bf16 %v553
    %v682 = vunpack.c.l.bf16 %v554
    %v683 = vunpack.c.l.bf16 %v555
    %v684 = vunpack.c.l.bf16 %v556
    %v685 = vunpack.c.l.bf16 %v557
    %v686 = vunpack.c.l.bf16 %v558
    %v687 = vunpack.c.l.bf16 %v559
    %v688 = vunpack.c.l.bf16 %v560
    %v689 = vunpack.c.l.bf16 %v561
    %v690 = vunpack.c.l.bf16 %v562
    %v691 = vunpack.c.l.bf16 %v563
    %v692 = vunpack.c.l.bf16 %v564
    %v693 = vunpack.c.l.bf16 %v565
    %v694 = vunpack.c.l.bf16 %v566
    %v695 = vunpack.c.l.bf16 %v567
    %v696 = vunpack.c.l.bf16 %v568
    %v697 = vunpack.c.l.bf16 %v569
    %v698 = vunpack.c.l.bf16 %v570
    %v699 = vunpack.c.l.bf16 %v571
    %v700 = vunpack.c.l.bf16 %v572
    %v701 = vunpack.c.l.bf16 %v573
    %v702 = vunpack.c.l.bf16 %v574
    %v703 = vunpack.c.l.bf16 %v575
    %v704 = vunpack.c.l.bf16 %v576
    %v705 = vunpack.c.l.bf16 %v577
    %v706 = vunpack.c.l.bf16 %v578
    %v707 = vunpack.c.l.bf16 %v579
    %v708 = vunpack.c.l.bf16 %v580
    %v709 = vunpack.c.l.bf16 %v581
    %v710 = vunpack.c.l.bf16 %v582
    %v711 = vunpack.c.l.bf16 %v583
    %v712 = vunpack.c.l.bf16 %v584
    %v713 = vunpack.c.l.bf16 %v585
    %v714 = vunpack.c.l.bf16 %v586
    %v715 = vunpack.c.l.bf16 %v587
    %v716 = vunpack.c.l.bf16 %v588
    %v717 = vunpack.c.l.bf16 %v589
    %v718 = vunpack.c.l.bf16 %v590
    %v719 = vunpack.c.l.bf16 %v591
    %v720 = vunpack.c.l.bf16 %v592
    %v721 = vunpack.c.l.bf16 %v593
    %v722 = vunpack.c.l.bf16 %v594
    %v723 = vunpack.c.l.bf16 %v595
    %v724 = vunpack.c.l.bf16 %v596
    %v725 = vunpack.c.l.bf16 %v597
    %v726 = vunpack.c.l.bf16 %v598
    %v727 = vunpack.c.l.bf16 %v599
    %v728 = vunpack.c.l.bf16 %v600
    %v729 = vunpack.c.l.bf16 %v601
    %v730 = vunpack.c.l.bf16 %v602
    %v731 = vunpack.c.l.bf16 %v603
    %v732 = vunpack.c.l.bf16 %v604
    %v733 = vunpack.c.l.bf16 %v605
    %v734 = vunpack.c.l.bf16 %v606
    %v735 = vunpack.c.l.bf16 %v607
    %v736 = vunpack.c.l.bf16 %v608
    %v737 = vunpack.c.l.bf16 %v609
    %v738 = vunpack.c.l.bf16 %v610
    %v739 = vunpack.c.l.bf16 %v611
    %v740 = vunpack.c.l.bf16 %v612
    %v741 = vunpack.c.l.bf16 %v613
    %v742 = vunpack.c.l.bf16 %v614
    %v743 = vunpack.c.l.bf16 %v615
    %v744 = vunpack.c.l.bf16 %v616
    %v745 = vunpack.c.l.bf16 %v617
    %v746 = vunpack.c.l.bf16 %v618
    %v747 = vunpack.c.l.bf16 %v619
    %v748 = vunpack.c.l.bf16 %v620
    %v749 = vunpack.c.l.bf16 %v621
    %v750 = vunpack.c.l.bf16 %v622
    %v751 = vunpack.c.l.bf16 %v623
    %v752 = vunpack.c.l.bf16 %v624
    %v753 = vunpack.c.l.bf16 %v625
    %v754 = vunpack.c.l.bf16 %v626
    %v755 = vunpack.c.l.bf16 %v627
    %v756 = vunpack.c.l.bf16 %v628
    %v757 = vunpack.c.l.bf16 %v629
    %v758 = vunpack.c.l.bf16 %v630
    %v759 = vunpack.c.l.bf16 %v631
    %v760 = vunpack.c.l.bf16 %v632
    %v761 = vunpack.c.l.bf16 %v633
    %v762 = vunpack.c.l.bf16 %v634
    %v763 = vunpack.c.l.bf16 %v635
    %v764 = vunpack.c.l.bf16 %v636
    %v765 = vunpack.c.l.bf16 %v637
    %v766 = vunpack.c.l.bf16 %v638
    %v767 = vunpack.c.l.bf16 %v639
    %v768 = vunpack.c.l.bf16 %v640
    %v769 = vunpack.c.l.bf16 %v641
    %v770 = vunpack.c.l.bf16 %v642
    %v771 = vunpack.c.l.bf16 %v643
    %v772 = vunpack.c.l.bf16 %v644
    %v773 = vunpack.c.l.bf16 %v645
    %v774 = vunpack.c.l.bf16 %v646
    %v775 = vunpack.c.l.bf16 %v647
    %v776 = vunpack.c.l.bf16 %v648
    %v777 = vunpack.c.l.bf16 %v649
    %v778 = vunpack.c.l.bf16 %v650
    %v779 = vunpack.c.l.bf16 %v651
    %v780 = vunpack.c.l.bf16 %v652
    %v781 = vunpack.c.l.bf16 %v653
    %v782 = vunpack.c.l.bf16 %v654
    %v783 = vunpack.c.l.bf16 %v655
    %v784 = vunpack.c.l.bf16 %v656
    %v785 = vunpack.c.l.bf16 %v657
    %v786 = vunpack.c.l.bf16 %v658
    %v787 = vunpack.c.l.bf16 %v659
    %v788 = vunpack.c.l.bf16 %v660
    %v789 = vunpack.c.l.bf16 %v661
    %v790 = vunpack.c.l.bf16 %v662
    %v791 = vunpack.c.l.bf16 %v663
    %v792 = vunpack.c.l.bf16 %v664
    %v793 = vunpack.c.l.bf16 %v665
    %v794 = vunpack.c.l.bf16 %v666
    %v795 = vunpack.c.l.bf16 %v667
    %v796 = vunpack.c.l.bf16 %v668
    %v797 = vunpack.c.l.bf16 %v669
    %v798 = vunpack.c.l.bf16 %v670
    %v799 = vunpack.c.l.bf16 %v671
    %v800 = vunpack.c.l.bf16 %v672
    %v801 = vunpack.c.l.bf16 %v673
    %v802 = vunpack.c.l.bf16 %v674
    %v803 = vunpack.c.l.bf16 %v675
    %v804 = vunpack.c.l.bf16 %v676
    %v805 = vunpack.c.l.bf16 %v677
    %v806 = vld [vmem:[%s4] sm:$0x1]
    %v808 = vlaneseq
    %v809 = vshrl.u32 %v808, 7
    %v810 = vsub.s32 0, %v809
    %v811 = vrot.slane %v806, %v810
    %v813 = vmul.f32 %v678, %v811
    %v814 = vmul.f32 %v679, %v811
    %v815 = vmul.f32 %v680, %v811
    %v816 = vmul.f32 %v681, %v811
    %v817 = vmul.f32 %v682, %v811
    %v818 = vmul.f32 %v683, %v811
    %v819 = vmul.f32 %v684, %v811
    %v820 = vmul.f32 %v685, %v811
    %v821 = vmul.f32 %v686, %v811
    %v822 = vmul.f32 %v687, %v811
    %v823 = vmul.f32 %v688, %v811
    %v824 = vmul.f32 %v689, %v811
    %v825 = vmul.f32 %v690, %v811
    %v826 = vmul.f32 %v691, %v811
    %v827 = vmul.f32 %v692, %v811
    %v828 = vmul.f32 %v693, %v811
    %v829 = vmul.f32 %v694, %v811
    %v830 = vmul.f32 %v695, %v811
    %v831 = vmul.f32 %v696, %v811
    %v832 = vmul.f32 %v697, %v811
    %v833 = vmul.f32 %v698, %v811
    %v834 = vmul.f32 %v699, %v811
    %v835 = vmul.f32 %v700, %v811
    %v836 = vmul.f32 %v701, %v811
    %v837 = vmul.f32 %v702, %v811
    %v838 = vmul.f32 %v703, %v811
    %v839 = vmul.f32 %v704, %v811
    %v840 = vmul.f32 %v705, %v811
    %v841 = vmul.f32 %v706, %v811
    %v842 = vmul.f32 %v707, %v811
    %v843 = vmul.f32 %v708, %v811
    %v844 = vmul.f32 %v709, %v811
    %v845 = vmul.f32 %v710, %v811
    %v846 = vmul.f32 %v711, %v811
    %v847 = vmul.f32 %v712, %v811
    %v848 = vmul.f32 %v713, %v811
    %v849 = vmul.f32 %v714, %v811
    %v850 = vmul.f32 %v715, %v811
    %v851 = vmul.f32 %v716, %v811
    %v852 = vmul.f32 %v717, %v811
    %v853 = vmul.f32 %v718, %v811
    %v854 = vmul.f32 %v719, %v811
    %v855 = vmul.f32 %v720, %v811
    %v856 = vmul.f32 %v721, %v811
    %v857 = vmul.f32 %v722, %v811
    %v858 = vmul.f32 %v723, %v811
    %v859 = vmul.f32 %v724, %v811
    %v860 = vmul.f32 %v725, %v811
    %v861 = vmul.f32 %v726, %v811
    %v862 = vmul.f32 %v727, %v811
    %v863 = vmul.f32 %v728, %v811
    %v864 = vmul.f32 %v729, %v811
    %v865 = vmul.f32 %v730, %v811
    %v866 = vmul.f32 %v731, %v811
    %v867 = vmul.f32 %v732, %v811
    %v868 = vmul.f32 %v733, %v811
    %v869 = vmul.f32 %v734, %v811
    %v870 = vmul.f32 %v735, %v811
    %v871 = vmul.f32 %v736, %v811
    %v872 = vmul.f32 %v737, %v811
    %v873 = vmul.f32 %v738, %v811
    %v874 = vmul.f32 %v739, %v811
    %v875 = vmul.f32 %v740, %v811
    %v876 = vmul.f32 %v741, %v811
    %v877 = vmul.f32 %v742, %v811
    %v878 = vmul.f32 %v743, %v811
    %v879 = vmul.f32 %v744, %v811
    %v880 = vmul.f32 %v745, %v811
    %v881 = vmul.f32 %v746, %v811
    %v882 = vmul.f32 %v747, %v811
    %v883 = vmul.f32 %v748, %v811
    %v884 = vmul.f32 %v749, %v811
    %v885 = vmul.f32 %v750, %v811
    %v886 = vmul.f32 %v751, %v811
    %v887 = vmul.f32 %v752, %v811
    %v888 = vmul.f32 %v753, %v811
    %v889 = vmul.f32 %v754, %v811
    %v890 = vmul.f32 %v755, %v811
    %v891 = vmul.f32 %v756, %v811
    %v892 = vmul.f32 %v757, %v811
    %v893 = vmul.f32 %v758, %v811
    %v894 = vmul.f32 %v759, %v811
    %v895 = vmul.f32 %v760, %v811
    %v896 = vmul.f32 %v761, %v811
    %v897 = vmul.f32 %v762, %v811
    %v898 = vmul.f32 %v763, %v811
    %v899 = vmul.f32 %v764, %v811
    %v900 = vmul.f32 %v765, %v811
    %v901 = vmul.f32 %v766, %v811
    %v902 = vmul.f32 %v767, %v811
    %v903 = vmul.f32 %v768, %v811
    %v904 = vmul.f32 %v769, %v811
    %v905 = vmul.f32 %v770, %v811
    %v906 = vmul.f32 %v771, %v811
    %v907 = vmul.f32 %v772, %v811
    %v908 = vmul.f32 %v773, %v811
    %v909 = vmul.f32 %v774, %v811
    %v910 = vmul.f32 %v775, %v811
    %v911 = vmul.f32 %v776, %v811
    %v912 = vmul.f32 %v777, %v811
    %v913 = vmul.f32 %v778, %v811
    %v914 = vmul.f32 %v779, %v811
    %v915 = vmul.f32 %v780, %v811
    %v916 = vmul.f32 %v781, %v811
    %v917 = vmul.f32 %v782, %v811
    %v918 = vmul.f32 %v783, %v811
    %v919 = vmul.f32 %v784, %v811
    %v920 = vmul.f32 %v785, %v811
    %v921 = vmul.f32 %v786, %v811
    %v922 = vmul.f32 %v787, %v811
    %v923 = vmul.f32 %v788, %v811
    %v924 = vmul.f32 %v789, %v811
    %v925 = vmul.f32 %v790, %v811
    %v926 = vmul.f32 %v791, %v811
    %v927 = vmul.f32 %v792, %v811
    %v928 = vmul.f32 %v793, %v811
    %v929 = vmul.f32 %v794, %v811
    %v930 = vmul.f32 %v795, %v811
    %v931 = vmul.f32 %v796, %v811
    %v932 = vmul.f32 %v797, %v811
    %v933 = vmul.f32 %v798, %v811
    %v934 = vmul.f32 %v799, %v811
    %v935 = vmul.f32 %v800, %v811
    %v936 = vmul.f32 %v801, %v811
    %v937 = vmul.f32 %v802, %v811
    %v938 = vmul.f32 %v803, %v811
    %v939 = vmul.f32 %v804, %v811
    %v940 = vmul.f32 %v805, %v811
    %v941 = vld [vmem:[%s5] sm:$0x1]
    %v943 = vlaneseq
    %v944 = vshrl.u32 %v943, 7
    %v945 = vsub.s32 0, %v944
    %v946 = vrot.slane %v941, %v945
    %v948 = vadd.f32 %v813, %v946
    %v949 = vadd.f32 %v814, %v946
    %v950 = vadd.f32 %v815, %v946
    %v951 = vadd.f32 %v816, %v946
    %v952 = vadd.f32 %v817, %v946
    %v953 = vadd.f32 %v818, %v946
    %v954 = vadd.f32 %v819, %v946
    %v955 = vadd.f32 %v820, %v946
    %v956 = vadd.f32 %v821, %v946
    %v957 = vadd.f32 %v822, %v946
    %v958 = vadd.f32 %v823, %v946
    %v959 = vadd.f32 %v824, %v946
    %v960 = vadd.f32 %v825, %v946
    %v961 = vadd.f32 %v826, %v946
    %v962 = vadd.f32 %v827, %v946
    %v963 = vadd.f32 %v828, %v946
    %v964 = vadd.f32 %v829, %v946
    %v965 = vadd.f32 %v830, %v946
    %v966 = vadd.f32 %v831, %v946
    %v967 = vadd.f32 %v832, %v946
    %v968 = vadd.f32 %v833, %v946
    %v969 = vadd.f32 %v834, %v946
    %v970 = vadd.f32 %v835, %v946
    %v971 = vadd.f32 %v836, %v946
    %v972 = vadd.f32 %v837, %v946
    %v973 = vadd.f32 %v838, %v946
    %v974 = vadd.f32 %v839, %v946
    %v975 = vadd.f32 %v840, %v946
    %v976 = vadd.f32 %v841, %v946
    %v977 = vadd.f32 %v842, %v946
    %v978 = vadd.f32 %v843, %v946
    %v979 = vadd.f32 %v844, %v946
    %v980 = vadd.f32 %v845, %v946
    %v981 = vadd.f32 %v846, %v946
    %v982 = vadd.f32 %v847, %v946
    %v983 = vadd.f32 %v848, %v946
    %v984 = vadd.f32 %v849, %v946
    %v985 = vadd.f32 %v850, %v946
    %v986 = vadd.f32 %v851, %v946
    %v987 = vadd.f32 %v852, %v946
    %v988 = vadd.f32 %v853, %v946
    %v989 = vadd.f32 %v854, %v946
    %v990 = vadd.f32 %v855, %v946
    %v991 = vadd.f32 %v856, %v946
    %v992 = vadd.f32 %v857, %v946
    %v993 = vadd.f32 %v858, %v946
    %v994 = vadd.f32 %v859, %v946
    %v995 = vadd.f32 %v860, %v946
    %v996 = vadd.f32 %v861, %v946
    %v997 = vadd.f32 %v862, %v946
    %v998 = vadd.f32 %v863, %v946
    %v999 = vadd.f32 %v864, %v946
    %v1000 = vadd.f32 %v865, %v946
    %v1001 = vadd.f32 %v866, %v946
    %v1002 = vadd.f32 %v867, %v946
    %v1003 = vadd.f32 %v868, %v946
    %v1004 = vadd.f32 %v869, %v946
    %v1005 = vadd.f32 %v870, %v946
    %v1006 = vadd.f32 %v871, %v946
    %v1007 = vadd.f32 %v872, %v946
    %v1008 = vadd.f32 %v873, %v946
    %v1009 = vadd.f32 %v874, %v946
    %v1010 = vadd.f32 %v875, %v946
    %v1011 = vadd.f32 %v876, %v946
    %v1012 = vadd.f32 %v877, %v946
    %v1013 = vadd.f32 %v878, %v946
    %v1014 = vadd.f32 %v879, %v946
    %v1015 = vadd.f32 %v880, %v946
    %v1016 = vadd.f32 %v881, %v946
    %v1017 = vadd.f32 %v882, %v946
    %v1018 = vadd.f32 %v883, %v946
    %v1019 = vadd.f32 %v884, %v946
    %v1020 = vadd.f32 %v885, %v946
    %v1021 = vadd.f32 %v886, %v946
    %v1022 = vadd.f32 %v887, %v946
    %v1023 = vadd.f32 %v888, %v946
    %v1024 = vadd.f32 %v889, %v946
    %v1025 = vadd.f32 %v890, %v946
    %v1026 = vadd.f32 %v891, %v946
    %v1027 = vadd.f32 %v892, %v946
    %v1028 = vadd.f32 %v893, %v946
    %v1029 = vadd.f32 %v894, %v946
    %v1030 = vadd.f32 %v895, %v946
    %v1031 = vadd.f32 %v896, %v946
    %v1032 = vadd.f32 %v897, %v946
    %v1033 = vadd.f32 %v898, %v946
    %v1034 = vadd.f32 %v899, %v946
    %v1035 = vadd.f32 %v900, %v946
    %v1036 = vadd.f32 %v901, %v946
    %v1037 = vadd.f32 %v902, %v946
    %v1038 = vadd.f32 %v903, %v946
    %v1039 = vadd.f32 %v904, %v946
    %v1040 = vadd.f32 %v905, %v946
    %v1041 = vadd.f32 %v906, %v946
    %v1042 = vadd.f32 %v907, %v946
    %v1043 = vadd.f32 %v908, %v946
    %v1044 = vadd.f32 %v909, %v946
    %v1045 = vadd.f32 %v910, %v946
    %v1046 = vadd.f32 %v911, %v946
    %v1047 = vadd.f32 %v912, %v946
    %v1048 = vadd.f32 %v913, %v946
    %v1049 = vadd.f32 %v914, %v946
    %v1050 = vadd.f32 %v915, %v946
    %v1051 = vadd.f32 %v916, %v946
    %v1052 = vadd.f32 %v917, %v946
    %v1053 = vadd.f32 %v918, %v946
    %v1054 = vadd.f32 %v919, %v946
    %v1055 = vadd.f32 %v920, %v946
    %v1056 = vadd.f32 %v921, %v946
    %v1057 = vadd.f32 %v922, %v946
    %v1058 = vadd.f32 %v923, %v946
    %v1059 = vadd.f32 %v924, %v946
    %v1060 = vadd.f32 %v925, %v946
    %v1061 = vadd.f32 %v926, %v946
    %v1062 = vadd.f32 %v927, %v946
    %v1063 = vadd.f32 %v928, %v946
    %v1064 = vadd.f32 %v929, %v946
    %v1065 = vadd.f32 %v930, %v946
    %v1066 = vadd.f32 %v931, %v946
    %v1067 = vadd.f32 %v932, %v946
    %v1068 = vadd.f32 %v933, %v946
    %v1069 = vadd.f32 %v934, %v946
    %v1070 = vadd.f32 %v935, %v946
    %v1071 = vadd.f32 %v936, %v946
    %v1072 = vadd.f32 %v937, %v946
    %v1073 = vadd.f32 %v938, %v946
    %v1074 = vadd.f32 %v939, %v946
    %v1075 = vadd.f32 %v940, %v946
    %v1076 = vadd.f32 %v422, %v948
    %v1077 = vadd.f32 %v423, %v949
    %v1078 = vadd.f32 %v424, %v950
    %v1079 = vadd.f32 %v425, %v951
    %v1080 = vadd.f32 %v426, %v952
    %v1081 = vadd.f32 %v427, %v953
    %v1082 = vadd.f32 %v428, %v954
    %v1083 = vadd.f32 %v429, %v955
    %v1084 = vadd.f32 %v430, %v956
    %v1085 = vadd.f32 %v431, %v957
    %v1086 = vadd.f32 %v432, %v958
    %v1087 = vadd.f32 %v433, %v959
    %v1088 = vadd.f32 %v434, %v960
    %v1089 = vadd.f32 %v435, %v961
    %v1090 = vadd.f32 %v436, %v962
    %v1091 = vadd.f32 %v437, %v963
    %v1092 = vadd.f32 %v438, %v964
    %v1093 = vadd.f32 %v439, %v965
    %v1094 = vadd.f32 %v440, %v966
    %v1095 = vadd.f32 %v441, %v967
    %v1096 = vadd.f32 %v442, %v968
    %v1097 = vadd.f32 %v443, %v969
    %v1098 = vadd.f32 %v444, %v970
    %v1099 = vadd.f32 %v445, %v971
    %v1100 = vadd.f32 %v446, %v972
    %v1101 = vadd.f32 %v447, %v973
    %v1102 = vadd.f32 %v448, %v974
    %v1103 = vadd.f32 %v449, %v975
    %v1104 = vadd.f32 %v450, %v976
    %v1105 = vadd.f32 %v451, %v977
    %v1106 = vadd.f32 %v452, %v978
    %v1107 = vadd.f32 %v453, %v979
    %v1108 = vadd.f32 %v454, %v980
    %v1109 = vadd.f32 %v455, %v981
    %v1110 = vadd.f32 %v456, %v982
    %v1111 = vadd.f32 %v457, %v983
    %v1112 = vadd.f32 %v458, %v984
    %v1113 = vadd.f32 %v459, %v985
    %v1114 = vadd.f32 %v460, %v986
    %v1115 = vadd.f32 %v461, %v987
    %v1116 = vadd.f32 %v462, %v988
    %v1117 = vadd.f32 %v463, %v989
    %v1118 = vadd.f32 %v464, %v990
    %v1119 = vadd.f32 %v465, %v991
    %v1120 = vadd.f32 %v466, %v992
    %v1121 = vadd.f32 %v467, %v993
    %v1122 = vadd.f32 %v468, %v994
    %v1123 = vadd.f32 %v469, %v995
    %v1124 = vadd.f32 %v470, %v996
    %v1125 = vadd.f32 %v471, %v997
    %v1126 = vadd.f32 %v472, %v998
    %v1127 = vadd.f32 %v473, %v999
    %v1128 = vadd.f32 %v474, %v1000
    %v1129 = vadd.f32 %v475, %v1001
    %v1130 = vadd.f32 %v476, %v1002
    %v1131 = vadd.f32 %v477, %v1003
    %v1132 = vadd.f32 %v478, %v1004
    %v1133 = vadd.f32 %v479, %v1005
    %v1134 = vadd.f32 %v480, %v1006
    %v1135 = vadd.f32 %v481, %v1007
    %v1136 = vadd.f32 %v482, %v1008
    %v1137 = vadd.f32 %v483, %v1009
    %v1138 = vadd.f32 %v484, %v1010
    %v1139 = vadd.f32 %v485, %v1011
    %v1140 = vadd.f32 %v486, %v1012
    %v1141 = vadd.f32 %v487, %v1013
    %v1142 = vadd.f32 %v488, %v1014
    %v1143 = vadd.f32 %v489, %v1015
    %v1144 = vadd.f32 %v490, %v1016
    %v1145 = vadd.f32 %v491, %v1017
    %v1146 = vadd.f32 %v492, %v1018
    %v1147 = vadd.f32 %v493, %v1019
    %v1148 = vadd.f32 %v494, %v1020
    %v1149 = vadd.f32 %v495, %v1021
    %v1150 = vadd.f32 %v496, %v1022
    %v1151 = vadd.f32 %v497, %v1023
    %v1152 = vadd.f32 %v498, %v1024
    %v1153 = vadd.f32 %v499, %v1025
    %v1154 = vadd.f32 %v500, %v1026
    %v1155 = vadd.f32 %v501, %v1027
    %v1156 = vadd.f32 %v502, %v1028
    %v1157 = vadd.f32 %v503, %v1029
    %v1158 = vadd.f32 %v504, %v1030
    %v1159 = vadd.f32 %v505, %v1031
    %v1160 = vadd.f32 %v506, %v1032
    %v1161 = vadd.f32 %v507, %v1033
    %v1162 = vadd.f32 %v508, %v1034
    %v1163 = vadd.f32 %v509, %v1035
    %v1164 = vadd.f32 %v510, %v1036
    %v1165 = vadd.f32 %v511, %v1037
    %v1166 = vadd.f32 %v512, %v1038
    %v1167 = vadd.f32 %v513, %v1039
    %v1168 = vadd.f32 %v514, %v1040
    %v1169 = vadd.f32 %v515, %v1041
    %v1170 = vadd.f32 %v516, %v1042
    %v1171 = vadd.f32 %v517, %v1043
    %v1172 = vadd.f32 %v518, %v1044
    %v1173 = vadd.f32 %v519, %v1045
    %v1174 = vadd.f32 %v520, %v1046
    %v1175 = vadd.f32 %v521, %v1047
    %v1176 = vadd.f32 %v522, %v1048
    %v1177 = vadd.f32 %v523, %v1049
    %v1178 = vadd.f32 %v524, %v1050
    %v1179 = vadd.f32 %v525, %v1051
    %v1180 = vadd.f32 %v526, %v1052
    %v1181 = vadd.f32 %v527, %v1053
    %v1182 = vadd.f32 %v528, %v1054
    %v1183 = vadd.f32 %v529, %v1055
    %v1184 = vadd.f32 %v530, %v1056
    %v1185 = vadd.f32 %v531, %v1057
    %v1186 = vadd.f32 %v532, %v1058
    %v1187 = vadd.f32 %v533, %v1059
    %v1188 = vadd.f32 %v534, %v1060
    %v1189 = vadd.f32 %v535, %v1061
    %v1190 = vadd.f32 %v536, %v1062
    %v1191 = vadd.f32 %v537, %v1063
    %v1192 = vadd.f32 %v538, %v1064
    %v1193 = vadd.f32 %v539, %v1065
    %v1194 = vadd.f32 %v540, %v1066
    %v1195 = vadd.f32 %v541, %v1067
    %v1196 = vadd.f32 %v542, %v1068
    %v1197 = vadd.f32 %v543, %v1069
    %v1198 = vadd.f32 %v544, %v1070
    %v1199 = vadd.f32 %v545, %v1071
    %v1200 = vadd.f32 %v546, %v1072
    %v1201 = vadd.f32 %v547, %v1073
    %v1202 = vadd.f32 %v548, %v1074
    %v1203 = vadd.f32 %v549, %v1075
    %v1204 = vmax.f32 %v1076, 0.0
    %v1205 = vmax.f32 %v1077, 0.0
    %v1206 = vmax.f32 %v1078, 0.0
    %v1207 = vmax.f32 %v1079, 0.0
    %v1208 = vmax.f32 %v1080, 0.0
    %v1209 = vmax.f32 %v1081, 0.0
    %v1210 = vmax.f32 %v1082, 0.0
    %v1211 = vmax.f32 %v1083, 0.0
    %v1212 = vmax.f32 %v1084, 0.0
    %v1213 = vmax.f32 %v1085, 0.0
    %v1214 = vmax.f32 %v1086, 0.0
    %v1215 = vmax.f32 %v1087, 0.0
    %v1216 = vmax.f32 %v1088, 0.0
    %v1217 = vmax.f32 %v1089, 0.0
    %v1218 = vmax.f32 %v1090, 0.0
    %v1219 = vmax.f32 %v1091, 0.0
    %v1220 = vmax.f32 %v1092, 0.0
    %v1221 = vmax.f32 %v1093, 0.0
    %v1222 = vmax.f32 %v1094, 0.0
    %v1223 = vmax.f32 %v1095, 0.0
    %v1224 = vmax.f32 %v1096, 0.0
    %v1225 = vmax.f32 %v1097, 0.0
    %v1226 = vmax.f32 %v1098, 0.0
    %v1227 = vmax.f32 %v1099, 0.0
    %v1228 = vmax.f32 %v1100, 0.0
    %v1229 = vmax.f32 %v1101, 0.0
    %v1230 = vmax.f32 %v1102, 0.0
    %v1231 = vmax.f32 %v1103, 0.0
    %v1232 = vmax.f32 %v1104, 0.0
    %v1233 = vmax.f32 %v1105, 0.0
    %v1234 = vmax.f32 %v1106, 0.0
    %v1235 = vmax.f32 %v1107, 0.0
    %v1236 = vmax.f32 %v1108, 0.0
    %v1237 = vmax.f32 %v1109, 0.0
    %v1238 = vmax.f32 %v1110, 0.0
    %v1239 = vmax.f32 %v1111, 0.0
    %v1240 = vmax.f32 %v1112, 0.0
    %v1241 = vmax.f32 %v1113, 0.0
    %v1242 = vmax.f32 %v1114, 0.0
    %v1243 = vmax.f32 %v1115, 0.0
    %v1244 = vmax.f32 %v1116, 0.0
    %v1245 = vmax.f32 %v1117, 0.0
    %v1246 = vmax.f32 %v1118, 0.0
    %v1247 = vmax.f32 %v1119, 0.0
    %v1248 = vmax.f32 %v1120, 0.0
    %v1249 = vmax.f32 %v1121, 0.0
    %v1250 = vmax.f32 %v1122, 0.0
    %v1251 = vmax.f32 %v1123, 0.0
    %v1252 = vmax.f32 %v1124, 0.0
    %v1253 = vmax.f32 %v1125, 0.0
    %v1254 = vmax.f32 %v1126, 0.0
    %v1255 = vmax.f32 %v1127, 0.0
    %v1256 = vmax.f32 %v1128, 0.0
    %v1257 = vmax.f32 %v1129, 0.0
    %v1258 = vmax.f32 %v1130, 0.0
    %v1259 = vmax.f32 %v1131, 0.0
    %v1260 = vmax.f32 %v1132, 0.0
    %v1261 = vmax.f32 %v1133, 0.0
    %v1262 = vmax.f32 %v1134, 0.0
    %v1263 = vmax.f32 %v1135, 0.0
    %v1264 = vmax.f32 %v1136, 0.0
    %v1265 = vmax.f32 %v1137, 0.0
    %v1266 = vmax.f32 %v1138, 0.0
    %v1267 = vmax.f32 %v1139, 0.0
    %v1268 = vmax.f32 %v1140, 0.0
    %v1269 = vmax.f32 %v1141, 0.0
    %v1270 = vmax.f32 %v1142, 0.0
    %v1271 = vmax.f32 %v1143, 0.0
    %v1272 = vmax.f32 %v1144, 0.0
    %v1273 = vmax.f32 %v1145, 0.0
    %v1274 = vmax.f32 %v1146, 0.0
    %v1275 = vmax.f32 %v1147, 0.0
    %v1276 = vmax.f32 %v1148, 0.0
    %v1277 = vmax.f32 %v1149, 0.0
    %v1278 = vmax.f32 %v1150, 0.0
    %v1279 = vmax.f32 %v1151, 0.0
    %v1280 = vmax.f32 %v1152, 0.0
    %v1281 = vmax.f32 %v1153, 0.0
    %v1282 = vmax.f32 %v1154, 0.0
    %v1283 = vmax.f32 %v1155, 0.0
    %v1284 = vmax.f32 %v1156, 0.0
    %v1285 = vmax.f32 %v1157, 0.0
    %v1286 = vmax.f32 %v1158, 0.0
    %v1287 = vmax.f32 %v1159, 0.0
    %v1288 = vmax.f32 %v1160, 0.0
    %v1289 = vmax.f32 %v1161, 0.0
    %v1290 = vmax.f32 %v1162, 0.0
    %v1291 = vmax.f32 %v1163, 0.0
    %v1292 = vmax.f32 %v1164, 0.0
    %v1293 = vmax.f32 %v1165, 0.0
    %v1294 = vmax.f32 %v1166, 0.0
    %v1295 = vmax.f32 %v1167, 0.0
    %v1296 = vmax.f32 %v1168, 0.0
    %v1297 = vmax.f32 %v1169, 0.0
    %v1298 = vmax.f32 %v1170, 0.0
    %v1299 = vmax.f32 %v1171, 0.0
    %v1300 = vmax.f32 %v1172, 0.0
    %v1301 = vmax.f32 %v1173, 0.0
    %v1302 = vmax.f32 %v1174, 0.0
    %v1303 = vmax.f32 %v1175, 0.0
    %v1304 = vmax.f32 %v1176, 0.0
    %v1305 = vmax.f32 %v1177, 0.0
    %v1306 = vmax.f32 %v1178, 0.0
    %v1307 = vmax.f32 %v1179, 0.0
    %v1308 = vmax.f32 %v1180, 0.0
    %v1309 = vmax.f32 %v1181, 0.0
    %v1310 = vmax.f32 %v1182, 0.0
    %v1311 = vmax.f32 %v1183, 0.0
    %v1312 = vmax.f32 %v1184, 0.0
    %v1313 = vmax.f32 %v1185, 0.0
    %v1314 = vmax.f32 %v1186, 0.0
    %v1315 = vmax.f32 %v1187, 0.0
    %v1316 = vmax.f32 %v1188, 0.0
    %v1317 = vmax.f32 %v1189, 0.0
    %v1318 = vmax.f32 %v1190, 0.0
    %v1319 = vmax.f32 %v1191, 0.0
    %v1320 = vmax.f32 %v1192, 0.0
    %v1321 = vmax.f32 %v1193, 0.0
    %v1322 = vmax.f32 %v1194, 0.0
    %v1323 = vmax.f32 %v1195, 0.0
    %v1324 = vmax.f32 %v1196, 0.0
    %v1325 = vmax.f32 %v1197, 0.0
    %v1326 = vmax.f32 %v1198, 0.0
    %v1327 = vmax.f32 %v1199, 0.0
    %v1328 = vmax.f32 %v1200, 0.0
    %v1329 = vmax.f32 %v1201, 0.0
    %v1330 = vmax.f32 %v1202, 0.0
    %v1331 = vmax.f32 %v1203, 0.0
    %vm1332 = vcmask 130048
    %1333 = vst.msk [vmem:[#allocation2] sm:$0xff] %vm1332, %v1204
    %1334 = vst.msk [vmem:[#allocation2 + $0x8] sm:$0xff] %vm1332, %v1205
    %1335 = vst.msk [vmem:[#allocation2 + $0x10] sm:$0xff] %vm1332, %v1206
    %1336 = vst.msk [vmem:[#allocation2 + $0x18] sm:$0xff] %vm1332, %v1207
    %1337 = vst.msk [vmem:[#allocation2 + $0x20] sm:$0xff] %vm1332, %v1208
    %1338 = vst.msk [vmem:[#allocation2 + $0x28] sm:$0xff] %vm1332, %v1209
    %1339 = vst.msk [vmem:[#allocation2 + $0x30] sm:$0xff] %vm1332, %v1210
    %1340 = vst.msk [vmem:[#allocation2 + $0x38] sm:$0xff] %vm1332, %v1211
    %1341 = vst.msk [vmem:[#allocation2 + $0x40] sm:$0xff] %vm1332, %v1212
    %1342 = vst.msk [vmem:[#allocation2 + $0x48] sm:$0xff] %vm1332, %v1213
    %1343 = vst.msk [vmem:[#allocation2 + $0x50] sm:$0xff] %vm1332, %v1214
    %1344 = vst.msk [vmem:[#allocation2 + $0x58] sm:$0xff] %vm1332, %v1215
    %1345 = vst.msk [vmem:[#allocation2 + $0x60] sm:$0xff] %vm1332, %v1216
    %1346 = vst.msk [vmem:[#allocation2 + $0x68] sm:$0xff] %vm1332, %v1217
    %1347 = vst.msk [vmem:[#allocation2 + $0x70] sm:$0xff] %vm1332, %v1218
    %1348 = vst.msk [vmem:[#allocation2 + $0x78] sm:$0xff] %vm1332, %v1219
    %1349 = vst.msk [vmem:[#allocation2 + $0x80] sm:$0xff] %vm1332, %v1220
    %1350 = vst.msk [vmem:[#allocation2 + $0x88] sm:$0xff] %vm1332, %v1221
    %1351 = vst.msk [vmem:[#allocation2 + $0x90] sm:$0xff] %vm1332, %v1222
    %1352 = vst.msk [vmem:[#allocation2 + $0x98] sm:$0xff] %vm1332, %v1223
    %1353 = vst.msk [vmem:[#allocation2 + $0xa0] sm:$0xff] %vm1332, %v1224
    %1354 = vst.msk [vmem:[#allocation2 + $0xa8] sm:$0xff] %vm1332, %v1225
    %1355 = vst.msk [vmem:[#allocation2 + $0xb0] sm:$0xff] %vm1332, %v1226
    %1356 = vst.msk [vmem:[#allocation2 + $0xb8] sm:$0xff] %vm1332, %v1227
    %1357 = vst.msk [vmem:[#allocation2 + $0xc0] sm:$0xff] %vm1332, %v1228
    %1358 = vst.msk [vmem:[#allocation2 + $0xc8] sm:$0xff] %vm1332, %v1229
    %1359 = vst.msk [vmem:[#allocation2 + $0xd0] sm:$0xff] %vm1332, %v1230
    %1360 = vst.msk [vmem:[#allocation2 + $0xd8] sm:$0xff] %vm1332, %v1231
    %1361 = vst.msk [vmem:[#allocation2 + $0xe0] sm:$0xff] %vm1332, %v1232
    %1362 = vst.msk [vmem:[#allocation2 + $0xe8] sm:$0xff] %vm1332, %v1233
    %1363 = vst.msk [vmem:[#allocation2 + $0xf0] sm:$0xff] %vm1332, %v1234
    %1364 = vst.msk [vmem:[#allocation2 + $0xf8] sm:$0xff] %vm1332, %v1235
    %1365 = vst.msk [vmem:[#allocation2 + $0x100] sm:$0xff] %vm1332, %v1236
    %1366 = vst.msk [vmem:[#allocation2 + $0x108] sm:$0xff] %vm1332, %v1237
    %1367 = vst.msk [vmem:[#allocation2 + $0x110] sm:$0xff] %vm1332, %v1238
    %1368 = vst.msk [vmem:[#allocation2 + $0x118] sm:$0xff] %vm1332, %v1239
    %1369 = vst.msk [vmem:[#allocation2 + $0x120] sm:$0xff] %vm1332, %v1240
    %1370 = vst.msk [vmem:[#allocation2 + $0x128] sm:$0xff] %vm1332, %v1241
    %1371 = vst.msk [vmem:[#allocation2 + $0x130] sm:$0xff] %vm1332, %v1242
    %1372 = vst.msk [vmem:[#allocation2 + $0x138] sm:$0xff] %vm1332, %v1243
    %1373 = vst.msk [vmem:[#allocation2 + $0x140] sm:$0xff] %vm1332, %v1244
    %1374 = vst.msk [vmem:[#allocation2 + $0x148] sm:$0xff] %vm1332, %v1245
    %1375 = vst.msk [vmem:[#allocation2 + $0x150] sm:$0xff] %vm1332, %v1246
    %1376 = vst.msk [vmem:[#allocation2 + $0x158] sm:$0xff] %vm1332, %v1247
    %1377 = vst.msk [vmem:[#allocation2 + $0x160] sm:$0xff] %vm1332, %v1248
    %1378 = vst.msk [vmem:[#allocation2 + $0x168] sm:$0xff] %vm1332, %v1249
    %1379 = vst.msk [vmem:[#allocation2 + $0x170] sm:$0xff] %vm1332, %v1250
    %1380 = vst.msk [vmem:[#allocation2 + $0x178] sm:$0xff] %vm1332, %v1251
    %1381 = vst.msk [vmem:[#allocation2 + $0x180] sm:$0xff] %vm1332, %v1252
    %1382 = vst.msk [vmem:[#allocation2 + $0x188] sm:$0xff] %vm1332, %v1253
    %1383 = vst.msk [vmem:[#allocation2 + $0x190] sm:$0xff] %vm1332, %v1254
    %1384 = vst.msk [vmem:[#allocation2 + $0x198] sm:$0xff] %vm1332, %v1255
    %1385 = vst.msk [vmem:[#allocation2 + $0x1a0] sm:$0xff] %vm1332, %v1256
    %1386 = vst.msk [vmem:[#allocation2 + $0x1a8] sm:$0xff] %vm1332, %v1257
    %1387 = vst.msk [vmem:[#allocation2 + $0x1b0] sm:$0xff] %vm1332, %v1258
    %1388 = vst.msk [vmem:[#allocation2 + $0x1b8] sm:$0xff] %vm1332, %v1259
    %1389 = vst.msk [vmem:[#allocation2 + $0x1c0] sm:$0xff] %vm1332, %v1260
    %1390 = vst.msk [vmem:[#allocation2 + $0x1c8] sm:$0xff] %vm1332, %v1261
    %1391 = vst.msk [vmem:[#allocation2 + $0x1d0] sm:$0xff] %vm1332, %v1262
    %1392 = vst.msk [vmem:[#allocation2 + $0x1d8] sm:$0xff] %vm1332, %v1263
    %1393 = vst.msk [vmem:[#allocation2 + $0x1e0] sm:$0xff] %vm1332, %v1264
    %1394 = vst.msk [vmem:[#allocation2 + $0x1e8] sm:$0xff] %vm1332, %v1265
    %1395 = vst.msk [vmem:[#allocation2 + $0x1f0] sm:$0xff] %vm1332, %v1266
    %1396 = vst.msk [vmem:[#allocation2 + $0x1f8] sm:$0xff] %vm1332, %v1267
    %1397 = vst.msk [vmem:[#allocation2 + $0x200] sm:$0xff] %vm1332, %v1268
    %1398 = vst.msk [vmem:[#allocation2 + $0x208] sm:$0xff] %vm1332, %v1269
    %1399 = vst.msk [vmem:[#allocation2 + $0x210] sm:$0xff] %vm1332, %v1270
    %1400 = vst.msk [vmem:[#allocation2 + $0x218] sm:$0xff] %vm1332, %v1271
    %1401 = vst.msk [vmem:[#allocation2 + $0x220] sm:$0xff] %vm1332, %v1272
    %1402 = vst.msk [vmem:[#allocation2 + $0x228] sm:$0xff] %vm1332, %v1273
    %1403 = vst.msk [vmem:[#allocation2 + $0x230] sm:$0xff] %vm1332, %v1274
    %1404 = vst.msk [vmem:[#allocation2 + $0x238] sm:$0xff] %vm1332, %v1275
    %1405 = vst.msk [vmem:[#allocation2 + $0x240] sm:$0xff] %vm1332, %v1276
    %1406 = vst.msk [vmem:[#allocation2 + $0x248] sm:$0xff] %vm1332, %v1277
    %1407 = vst.msk [vmem:[#allocation2 + $0x250] sm:$0xff] %vm1332, %v1278
    %1408 = vst.msk [vmem:[#allocation2 + $0x258] sm:$0xff] %vm1332, %v1279
    %1409 = vst.msk [vmem:[#allocation2 + $0x260] sm:$0xff] %vm1332, %v1280
    %1410 = vst.msk [vmem:[#allocation2 + $0x268] sm:$0xff] %vm1332, %v1281
    %1411 = vst.msk [vmem:[#allocation2 + $0x270] sm:$0xff] %vm1332, %v1282
    %1412 = vst.msk [vmem:[#allocation2 + $0x278] sm:$0xff] %vm1332, %v1283
    %1413 = vst.msk [vmem:[#allocation2 + $0x280] sm:$0xff] %vm1332, %v1284
    %1414 = vst.msk [vmem:[#allocation2 + $0x288] sm:$0xff] %vm1332, %v1285
    %1415 = vst.msk [vmem:[#allocation2 + $0x290] sm:$0xff] %vm1332, %v1286
    %1416 = vst.msk [vmem:[#allocation2 + $0x298] sm:$0xff] %vm1332, %v1287
    %1417 = vst.msk [vmem:[#allocation2 + $0x2a0] sm:$0xff] %vm1332, %v1288
    %1418 = vst.msk [vmem:[#allocation2 + $0x2a8] sm:$0xff] %vm1332, %v1289
    %1419 = vst.msk [vmem:[#allocation2 + $0x2b0] sm:$0xff] %vm1332, %v1290
    %1420 = vst.msk [vmem:[#allocation2 + $0x2b8] sm:$0xff] %vm1332, %v1291
    %1421 = vst.msk [vmem:[#allocation2 + $0x2c0] sm:$0xff] %vm1332, %v1292
    %1422 = vst.msk [vmem:[#allocation2 + $0x2c8] sm:$0xff] %vm1332, %v1293
    %1423 = vst.msk [vmem:[#allocation2 + $0x2d0] sm:$0xff] %vm1332, %v1294
    %1424 = vst.msk [vmem:[#allocation2 + $0x2d8] sm:$0xff] %vm1332, %v1295
    %1425 = vst.msk [vmem:[#allocation2 + $0x2e0] sm:$0xff] %vm1332, %v1296
    %1426 = vst.msk [vmem:[#allocation2 + $0x2e8] sm:$0xff] %vm1332, %v1297
    %1427 = vst.msk [vmem:[#allocation2 + $0x2f0] sm:$0xff] %vm1332, %v1298
    %1428 = vst.msk [vmem:[#allocation2 + $0x2f8] sm:$0xff] %vm1332, %v1299
    %1429 = vst.msk [vmem:[#allocation2 + $0x300] sm:$0xff] %vm1332, %v1300
    %1430 = vst.msk [vmem:[#allocation2 + $0x308] sm:$0xff] %vm1332, %v1301
    %1431 = vst.msk [vmem:[#allocation2 + $0x310] sm:$0xff] %vm1332, %v1302
    %1432 = vst.msk [vmem:[#allocation2 + $0x318] sm:$0xff] %vm1332, %v1303
    %1433 = vst.msk [vmem:[#allocation2 + $0x320] sm:$0xff] %vm1332, %v1304
    %1434 = vst.msk [vmem:[#allocation2 + $0x328] sm:$0xff] %vm1332, %v1305
    %1435 = vst.msk [vmem:[#allocation2 + $0x330] sm:$0xff] %vm1332, %v1306
    %1436 = vst.msk [vmem:[#allocation2 + $0x338] sm:$0xff] %vm1332, %v1307
    %1437 = vst.msk [vmem:[#allocation2 + $0x340] sm:$0xff] %vm1332, %v1308
    %1438 = vst.msk [vmem:[#allocation2 + $0x348] sm:$0xff] %vm1332, %v1309
    %1439 = vst.msk [vmem:[#allocation2 + $0x350] sm:$0xff] %vm1332, %v1310
    %1440 = vst.msk [vmem:[#allocation2 + $0x358] sm:$0xff] %vm1332, %v1311
    %1441 = vst.msk [vmem:[#allocation2 + $0x360] sm:$0xff] %vm1332, %v1312
    %1442 = vst.msk [vmem:[#allocation2 + $0x368] sm:$0xff] %vm1332, %v1313
    %1443 = vst.msk [vmem:[#allocation2 + $0x370] sm:$0xff] %vm1332, %v1314
    %1444 = vst.msk [vmem:[#allocation2 + $0x378] sm:$0xff] %vm1332, %v1315
    %1445 = vst.msk [vmem:[#allocation2 + $0x380] sm:$0xff] %vm1332, %v1316
    %1446 = vst.msk [vmem:[#allocation2 + $0x388] sm:$0xff] %vm1332, %v1317
    %1447 = vst.msk [vmem:[#allocation2 + $0x390] sm:$0xff] %vm1332, %v1318
    %1448 = vst.msk [vmem:[#allocation2 + $0x398] sm:$0xff] %vm1332, %v1319
    %1449 = vst.msk [vmem:[#allocation2 + $0x3a0] sm:$0xff] %vm1332, %v1320
    %1450 = vst.msk [vmem:[#allocation2 + $0x3a8] sm:$0xff] %vm1332, %v1321
    %1451 = vst.msk [vmem:[#allocation2 + $0x3b0] sm:$0xff] %vm1332, %v1322
    %1452 = vst.msk [vmem:[#allocation2 + $0x3b8] sm:$0xff] %vm1332, %v1323
    %1453 = vst.msk [vmem:[#allocation2 + $0x3c0] sm:$0xff] %vm1332, %v1324
    %1454 = vst.msk [vmem:[#allocation2 + $0x3c8] sm:$0xff] %vm1332, %v1325
    %1455 = vst.msk [vmem:[#allocation2 + $0x3d0] sm:$0xff] %vm1332, %v1326
    %1456 = vst.msk [vmem:[#allocation2 + $0x3d8] sm:$0xff] %vm1332, %v1327
    %1457 = vst.msk [vmem:[#allocation2 + $0x3e0] sm:$0xff] %vm1332, %v1328
    %1458 = vst.msk [vmem:[#allocation2 + $0x3e8] sm:$0xff] %vm1332, %v1329
    %1459 = vst.msk [vmem:[#allocation2 + $0x3f0] sm:$0xff] %vm1332, %v1330
    %1460 = vst.msk [vmem:[#allocation2 + $0x3f8] sm:$0xff] %vm1332, %v1331
    // Predicated region
    $region26: #{bottleneck_block.7} parent=1 // pred_check
      _
    $region27: #{bottleneck_block.7} parent=1 // pred_check_branch
      %1462 = sbr.rel (0) target = $region29
    $region28: #{bottleneck_block.7} parent=1 // pred_region
      %s1464 = ssub.s32 16384, 16384
      %1465 = vsyncadd [#allocation3], %s1464
      %s1466 = sshll.u32 [#allocation2], 4
      %s1467 = int_to_ptr.vmem [resolvable:$true] %s1466
      %1472 = dma.vmem_to_hbm [thread:$0]  %s1467, 16384, %s6, [#allocation3], 128, 128, 8
    $region29: #{bottleneck_block.7} parent=1 // pred_fallthru
      _
    // Predicated region
    $region30: #{bottleneck_block.7} parent=1 // pred_check
      _
    $region31: #{bottleneck_block.7} parent=1 // pred_check_branch
      %1474 = sbr.rel (0) target = $region33
    $region32: #{bottleneck_block.7} parent=1 // pred_region
      %1475 = dma.done [#allocation3], 16384
    $region33: #{bottleneck_block.7} parent=1 // pred_fallthru
      _
    %1476 = vsyncpa [#allocation3], 1

// kernel: bottleneck_block.5
$region0: #{bottleneck_block.5}
  #allocation0 [shape = 'u32[]', space=smem, size = 0x4, offset = 0x4, fixed_abs, tag = 'smem constant byte address 0x4 - core index']
  #allocation1 [shape = 'u32[144,128]{1,0:T(1,128)}', space=vmem, size = 0x12000, scoped, tag = 'internal scratch']
  #allocation2 [shape = 'bf16[3,10,10,128]{3,2,1,0:T(8,128)(2,1)}', space=vmem, size = 0x1e000, scoped, tag = 'scratch operand']
  #allocation3 [shape = 'f32[64,128]{1,0:T(8,128)}', space=vmem, size = 0x8000, scoped, tag = 'scratch operand']
  %s0 = inlined_call_operand.vmem [shape: bf16[2,8,8,8,128], index: 0, kind: input, shape index: {}, may-alias: {0,1,2}]
  %s1 = inlined_call_operand.vmem [shape: bf16[2,8,8,8,128], index: 1, kind: input, shape index: {}, may-alias: {0,1,2}]
  %s2 = inlined_call_operand.vmem [shape: bf16[2,8,8,8,128], index: 2, kind: input, shape index: {}, may-alias: {0,1,2}]
  %s3 = inlined_call_operand.vmem [shape: f32[1,128], index: 3, kind: input, shape index: {}]
  %s4 = inlined_call_operand.vmem [shape: f32[1,128], index: 4, kind: input, shape index: {}]
  %s5 = inlined_call_operand.vmem [shape: bf16[9,384,128], index: 5, kind: input, shape index: {}]
  %s6 = inlined_call_operand.vmem [shape: bf16[2,8,8,8,128], index: 6, kind: output, shape index: {0}]
  %s7 = inlined_call_operand.vmem [shape: f32[2,8,1,128], index: 7, kind: output, shape index: {1}]
  %s8 = inlined_call_operand.vmem [shape: f32[2,8,1,128], index: 8, kind: output, shape index: {2}]
  %9 = xla_tuple %s6, %s7, %s8
  %s10 = sld [smem:[#allocation0]]
  $region73: #{bottleneck_block.5} parent=0
    _
  %s12 = ssub.s32 1, %s10
  %s13 = scalar_select 0, %s12, %s10
  loop: start=0, step=1, limit=18
  $region2: #{bottleneck_block.5} parent=0 // loop_pre_header
    _
  $region3: #{bottleneck_block.5} parent=0 // loop_header
    %s15 = sphi 0, %s19
    %p16 = scmp.ge.s32.totalorder %s15, 18
    %s22 = sphi 0, %s34
    %s23 = sphi 0, %s30
    %s24 = sphi 0, %s22
    %s25 = sphi 0, %s23
    %s26 = sphi 0, %s24
    %s27 = sphi 0, %s25
    %s49 = sphi 0, %s51
    %s52 = sphi 0, %s49
    %s53 = sphi 0, %s52
    %s69 = sphi 0, %s53
    %s85 = sphi 0, %s87
    %s88 = sphi 0, %s85
    %s89 = sphi 0, %s88
    %s105 = sphi 0, %s89
    %s123 = sphi 0, %s125
    %s126 = sphi 0, %s123
    %s127 = sphi 0, %s126
    %s143 = sphi 0, %s127
    %s147 = sphi 0, %s147
    %s149 = sphi 0, %s147
    %s150 = sphi 0, %s149
    %s164 = sphi 0, %s150
    %s168 = sphi 0, %s168
    %s170 = sphi 0, %s168
    %s171 = sphi 0, %s170
    %s185 = sphi 0, %s171
    %s189 = sphi 0, %s189
    %s191 = sphi 0, %s189
    %s192 = sphi 0, %s191
    %s206 = sphi 0, %s192
    %s214 = sphi 0, %s216
    %s217 = sphi 0, %s214
    %s218 = sphi 0, %s217
    %s234 = sphi 0, %s218
    %s242 = sphi 0, %s244
    %s245 = sphi 0, %s242
    %s246 = sphi 0, %s245
    %s262 = sphi 0, %s246
    %s270 = sphi 0, %s272
    %s273 = sphi 0, %s270
    %s274 = sphi 0, %s273
    %s290 = sphi 0, %s274
  $region4: #{bottleneck_block.5} parent=0 // loop_header_branch
    %18 = sbr.rel (%p16) target = $region8
  $region5: #{bottleneck_block.5} parent=0 // loop_body
    %s20 = ssub.s32 %s15, 1
    %s21 = ssub.s32 %s15, 2
    %s28 = sadd.s32 1, %s23
    %p29 = scmp.ge.s32.totalorder %s28, 8
    %s30 = scalar_select %p29, 0, %s28
    %s31 = sadd.s32 1, %s22
    %s32 = scalar_select %p29, %s31, %s22
    %p33 = scmp.ge.s32.totalorder %s32, 2
    %s34 = scalar_select %p33, 0, %s32
    %s35 = sadd.s32 %s23, 4294967295
    %p36 = scmp.gt.s32.totalorder %s35, 0
    %s37 = scalar_select %p36, %s35, 0
    %p38 = scmp.lt.s32.totalorder %s37, 7
    %s39 = scalar_select %p38, %s37, 7
    %s40 = sadd.s32 %s30, 4294967295
    %p41 = scmp.gt.s32.totalorder %s40, 0
    %s42 = scalar_select %p41, %s40, 0
    %p43 = scmp.lt.s32.totalorder %s42, 7
    %s44 = scalar_select %p43, %s42, 7
    %s45 = ssub.s32 %s22, %s34
    %s46 = ssub.s32 %s39, %s44
    %s47 = sor.u32 %s45, %s46
    %p48 = scmp.eq.s32.totalorder %s47, 0
    %s50 = sadd.s32 %s49, 1
    %s51 = scalar_select %p48, %s49, %s50
    %p54 = pneg %p48
    %p55 = scmp.eq.s32.totalorder %s15, 15
    %p56 = por %p54, %p55
    %p57 = scmp.ne.s32.totalorder %s49, %s52
    %p58 = scmp.eq.s32.totalorder %s15, 0
    %p59 = por %p57, %p58
    %p60 = scmp.ne.s32.totalorder %s49, %s52
    %p61 = scmp.eq.s32.totalorder %s20, 15
    %p62 = por %p60, %p61
    %p63 = scmp.ne.s32.totalorder %s52, %s53
    %p64 = scmp.eq.s32.totalorder %s20, 0
    %p65 = por %p63, %p64
    %p66 = scmp.ne.s32.totalorder %s52, %s53
    %p67 = scmp.eq.s32.totalorder %s21, 15
    %p68 = por %p66, %p67
    %p70 = scmp.ne.s32.totalorder %s53, %s69
    %p71 = scmp.eq.s32.totalorder %s21, 0
    %p72 = por %p70, %p71
    %p73 = scmp.gt.s32.totalorder %s23, 0
    %s74 = scalar_select %p73, %s23, 0
    %p75 = scmp.lt.s32.totalorder %s74, 7
    %s76 = scalar_select %p75, %s74, 7
    %p77 = scmp.gt.s32.totalorder %s30, 0
    %s78 = scalar_select %p77, %s30, 0
    %p79 = scmp.lt.s32.totalorder %s78, 7
    %s80 = scalar_select %p79, %s78, 7
    %s81 = ssub.s32 %s22, %s34
    %s82 = ssub.s32 %s76, %s80
    %s83 = sor.u32 %s81, %s82
    %p84 = scmp.eq.s32.totalorder %s83, 0
    %s86 = sadd.s32 %s85, 1
    %s87 = scalar_select %p84, %s85, %s86
    %p90 = pneg %p84
    %p91 = scmp.eq.s32.totalorder %s15, 15
    %p92 = por %p90, %p91
    %p93 = scmp.ne.s32.totalorder %s85, %s88
    %p94 = scmp.eq.s32.totalorder %s15, 0
    %p95 = por %p93, %p94
    %p96 = scmp.ne.s32.totalorder %s85, %s88
    %p97 = scmp.eq.s32.totalorder %s20, 15
    %p98 = por %p96, %p97
    %p99 = scmp.ne.s32.totalorder %s88, %s89
    %p100 = scmp.eq.s32.totalorder %s20, 0
    %p101 = por %p99, %p100
    %p102 = scmp.ne.s32.totalorder %s88, %s89
    %p103 = scmp.eq.s32.totalorder %s21, 15
    %p104 = por %p102, %p103
    %p106 = scmp.ne.s32.totalorder %s89, %s105
    %p107 = scmp.eq.s32.totalorder %s21, 0
    %p108 = por %p106, %p107
    %s109 = sadd.s32 %s23, 1
    %p110 = scmp.gt.s32.totalorder %s109, 0
    %s111 = scalar_select %p110, %s109, 0
    %p112 = scmp.lt.s32.totalorder %s111, 7
    %s113 = scalar_select %p112, %s111, 7
    %s114 = sadd.s32 %s30, 1
    %p115 = scmp.gt.s32.totalorder %s114, 0
    %s116 = scalar_select %p115, %s114, 0
    %p117 = scmp.lt.s32.totalorder %s116, 7
    %s118 = scalar_select %p117, %s116, 7
    %s119 = ssub.s32 %s22, %s34
    %s120 = ssub.s32 %s113, %s118
    %s121 = sor.u32 %s119, %s120
    %p122 = scmp.eq.s32.totalorder %s121, 0
    %s124 = sadd.s32 %s123, 1
    %s125 = scalar_select %p122, %s123, %s124
    %p128 = pneg %p122
    %p129 = scmp.eq.s32.totalorder %s15, 15
    %p130 = por %p128, %p129
    %p131 = scmp.ne.s32.totalorder %s123, %s126
    %p132 = scmp.eq.s32.totalorder %s15, 0
    %p133 = por %p131, %p132
    %p134 = scmp.ne.s32.totalorder %s123, %s126
    %p135 = scmp.eq.s32.totalorder %s20, 15
    %p136 = por %p134, %p135
    %p137 = scmp.ne.s32.totalorder %s126, %s127
    %p138 = scmp.eq.s32.totalorder %s20, 0
    %p139 = por %p137, %p138
    %p140 = scmp.ne.s32.totalorder %s126, %s127
    %p141 = scmp.eq.s32.totalorder %s21, 15
    %p142 = por %p140, %p141
    %p144 = scmp.ne.s32.totalorder %s127, %s143
    %p145 = scmp.eq.s32.totalorder %s21, 0
    %p146 = por %p144, %p145
    %s148 = sadd.s32 %s147, 1
    %p151 = scmp.eq.s32.totalorder %s15, 15
    %p152 = scmp.ne.s32.totalorder %s147, %s149
    %p153 = scmp.eq.s32.totalorder %s15, 0
    %p154 = por %p152, %p153
    %p155 = scmp.ne.s32.totalorder %s147, %s149
    %p156 = scmp.eq.s32.totalorder %s20, 15
    %p157 = por %p155, %p156
    %p158 = scmp.ne.s32.totalorder %s149, %s150
    %p159 = scmp.eq.s32.totalorder %s20, 0
    %p160 = por %p158, %p159
    %p161 = scmp.ne.s32.totalorder %s149, %s150
    %p162 = scmp.eq.s32.totalorder %s21, 15
    %p163 = por %p161, %p162
    %p165 = scmp.ne.s32.totalorder %s150, %s164
    %p166 = scmp.eq.s32.totalorder %s21, 0
    %p167 = por %p165, %p166
    %s169 = sadd.s32 %s168, 1
    %p172 = scmp.eq.s32.totalorder %s15, 15
    %p173 = scmp.ne.s32.totalorder %s168, %s170
    %p174 = scmp.eq.s32.totalorder %s15, 0
    %p175 = por %p173, %p174
    %p176 = scmp.ne.s32.totalorder %s168, %s170
    %p177 = scmp.eq.s32.totalorder %s20, 15
    %p178 = por %p176, %p177
    %p179 = scmp.ne.s32.totalorder %s170, %s171
    %p180 = scmp.eq.s32.totalorder %s20, 0
    %p181 = por %p179, %p180
    %p182 = scmp.ne.s32.totalorder %s170, %s171
    %p183 = scmp.eq.s32.totalorder %s21, 15
    %p184 = por %p182, %p183
    %p186 = scmp.ne.s32.totalorder %s171, %s185
    %p187 = scmp.eq.s32.totalorder %s21, 0
    %p188 = por %p186, %p187
    %s190 = sadd.s32 %s189, 1
    %p193 = scmp.eq.s32.totalorder %s15, 15
    %p194 = scmp.ne.s32.totalorder %s189, %s191
    %p195 = scmp.eq.s32.totalorder %s15, 0
    %p196 = por %p194, %p195
    %p197 = scmp.ne.s32.totalorder %s189, %s191
    %p198 = scmp.eq.s32.totalorder %s20, 15
    %p199 = por %p197, %p198
    %p200 = scmp.ne.s32.totalorder %s191, %s192
    %p201 = scmp.eq.s32.totalorder %s20, 0
    %p202 = por %p200, %p201
    %p203 = scmp.ne.s32.totalorder %s191, %s192
    %p204 = scmp.eq.s32.totalorder %s21, 15
    %p205 = por %p203, %p204
    %p207 = scmp.ne.s32.totalorder %s192, %s206
    %p208 = scmp.eq.s32.totalorder %s21, 0
    %p209 = por %p207, %p208
    %s210 = ssub.s32 %s22, %s34
    %s211 = ssub.s32 %s23, %s30
    %s212 = sor.u32 %s210, %s211
    %p213 = scmp.eq.s32.totalorder %s212, 0
    %s215 = sadd.s32 %s214, 1
    %s216 = scalar_select %p213, %s214, %s215
    %p219 = pneg %p213
    %p220 = scmp.eq.s32.totalorder %s15, 15
    %p221 = por %p219, %p220
    %p222 = scmp.ne.s32.totalorder %s214, %s217
    %p223 = scmp.eq.s32.totalorder %s15, 0
    %p224 = por %p222, %p223
    %p225 = scmp.ne.s32.totalorder %s214, %s217
    %p226 = scmp.eq.s32.totalorder %s20, 15
    %p227 = por %p225, %p226
    %p228 = scmp.ne.s32.totalorder %s217, %s218
    %p229 = scmp.eq.s32.totalorder %s20, 0
    %p230 = por %p228, %p229
    %p231 = scmp.ne.s32.totalorder %s217, %s218
    %p232 = scmp.eq.s32.totalorder %s21, 15
    %p233 = por %p231, %p232
    %p235 = scmp.ne.s32.totalorder %s218, %s234
    %p236 = scmp.eq.s32.totalorder %s21, 0
    %p237 = por %p235, %p236
    %s238 = ssub.s32 %s22, %s34
    %s239 = ssub.s32 %s23, %s30
    %s240 = sor.u32 %s238, %s239
    %p241 = scmp.eq.s32.totalorder %s240, 0
    %s243 = sadd.s32 %s242, 1
    %s244 = scalar_select %p241, %s242, %s243
    %p247 = pneg %p241
    %p248 = scmp.eq.s32.totalorder %s15, 15
    %p249 = por %p247, %p248
    %p250 = scmp.ne.s32.totalorder %s242, %s245
    %p251 = scmp.eq.s32.totalorder %s15, 0
    %p252 = por %p250, %p251
    %p253 = scmp.ne.s32.totalorder %s242, %s245
    %p254 = scmp.eq.s32.totalorder %s20, 15
    %p255 = por %p253, %p254
    %p256 = scmp.ne.s32.totalorder %s245, %s246
    %p257 = scmp.eq.s32.totalorder %s20, 0
    %p258 = por %p256, %p257
    %p259 = scmp.ne.s32.totalorder %s245, %s246
    %p260 = scmp.eq.s32.totalorder %s21, 15
    %p261 = por %p259, %p260
    %p263 = scmp.ne.s32.totalorder %s246, %s262
    %p264 = scmp.eq.s32.totalorder %s21, 0
    %p265 = por %p263, %p264
    %s266 = ssub.s32 %s22, %s34
    %s267 = ssub.s32 %s23, %s30
    %s268 = sor.u32 %s266, %s267
    %p269 = scmp.eq.s32.totalorder %s268, 0
    %s271 = sadd.s32 %s270, 1
    %s272 = scalar_select %p269, %s270, %s271
    %p275 = pneg %p269
    %p276 = scmp.eq.s32.totalorder %s15, 15
    %p277 = por %p275, %p276
    %p278 = scmp.ne.s32.totalorder %s270, %s273
    %p279 = scmp.eq.s32.totalorder %s15, 0
    %p280 = por %p278, %p279
    %p281 = scmp.ne.s32.totalorder %s270, %s273
    %p282 = scmp.eq.s32.totalorder %s20, 15
    %p283 = por %p281, %p282
    %p284 = scmp.ne.s32.totalorder %s273, %s274
    %p285 = scmp.eq.s32.totalorder %s20, 0
    %p286 = por %p284, %p285
    %p287 = scmp.ne.s32.totalorder %s273, %s274
    %p288 = scmp.eq.s32.totalorder %s21, 15
    %p289 = por %p287, %p288
    %p291 = scmp.ne.s32.totalorder %s274, %s290
    %p292 = scmp.eq.s32.totalorder %s21, 0
    %p293 = por %p291, %p292
    %p294 = scmp.le.s32.totalorder 1, %s15
    %p295 = scmp.lt.s32.totalorder %s15, 17
    %p296 = pnand %p294, %p295
    %p297 = pneg %p296
    // Predicated region
    $region9: #{bottleneck_block.5} parent=5 // pred_check
      _
    $region10: #{bottleneck_block.5} parent=5 // pred_check_branch
      %299 = sbr.rel (%p296) target = $region12
    $region11: #{bottleneck_block.5} parent=5 // pred_region
      %s300 = ssub.s32 %s15, 1
      // Predicated region
      $region13: #{bottleneck_block.5} parent=11 // pred_check
        %p301 = pneg %p160
      $region14: #{bottleneck_block.5} parent=11 // pred_check_branch
        %303 = sbr.rel (%p301) target = $region16
      $region15: #{bottleneck_block.5} parent=11 // pred_region
        _
      $region16: #{bottleneck_block.5} parent=11 // pred_fallthru
        _
      // Predicated region
      $region17: #{bottleneck_block.5} parent=11 // pred_check
        %p304 = pneg %p181
      $region18: #{bottleneck_block.5} parent=11 // pred_check_branch
        %306 = sbr.rel (%p304) target = $region20
      $region19: #{bottleneck_block.5} parent=11 // pred_region
        _
      $region20: #{bottleneck_block.5} parent=11 // pred_fallthru
        _
      // Predicated region
      $region21: #{bottleneck_block.5} parent=11 // pred_check
        %p307 = pneg %p202
      $region22: #{bottleneck_block.5} parent=11 // pred_check_branch
        %309 = sbr.rel (%p307) target = $region24
      $region23: #{bottleneck_block.5} parent=11 // pred_region
        _
      $region24: #{bottleneck_block.5} parent=11 // pred_fallthru
        _
    $region12: #{bottleneck_block.5} parent=5 // pred_fallthru
      _
    %p310 = scmp.lt.s32.totalorder %s15, 16
    // Predicated region
    $region25: #{bottleneck_block.5} parent=5 // pred_check
      %p311 = pneg %p310
    $region26: #{bottleneck_block.5} parent=5 // pred_check_branch
      %313 = sbr.rel (%p311) target = $region28
    $region27: #{bottleneck_block.5} parent=5 // pred_region
      // Predicated region
      $region29: #{bottleneck_block.5} parent=27 // pred_check
        %p314 = pneg %p59
      $region30: #{bottleneck_block.5} parent=27 // pred_check_branch
        %316 = sbr.rel (%p314) target = $region32
      $region31: #{bottleneck_block.5} parent=27 // pred_region
        %s317 = sadd.s32 %s23, 4294967295
        %p318 = scmp.gt.s32.totalorder %s317, 0
        %s319 = scalar_select %p318, %s317, 0
        %p320 = scmp.lt.s32.totalorder %s319, 7
        %s321 = scalar_select %p320, %s319, 7
        %p322 = scmp.lt.s32.totalorder %s22, 1
        %s323 = scalar_select %p322, %s22, 1
        %p324 = scmp.lt.s32.totalorder %s321, 7
        %s325 = scalar_select %p324, %s321, 7
        %s326 = smul.addr %s325, 8
        %s327 = smul.addr %s323, 64
        %s328 = sadd.s32 %s326, %s327
        %s329 = smul.addr %s328, 4
        %s330 = scalar_lea.vmem %s0, %s329
        %s331 = sadd.s32 %s23, 4294967295
        %p332 = scmp.gt.s32.totalorder %s331, 0
        %s333 = scalar_select %p332, %s331, 0
        %p334 = scmp.lt.s32.totalorder %s333, 7
        %s335 = scalar_select %p334, %s333, 7
      $region32: #{bottleneck_block.5} parent=27 // pred_fallthru
        _
      // Predicated region
      $region33: #{bottleneck_block.5} parent=27 // pred_check
        %p336 = pneg %p95
      $region34: #{bottleneck_block.5} parent=27 // pred_check_branch
        %338 = sbr.rel (%p336) target = $region36
      $region35: #{bottleneck_block.5} parent=27 // pred_region
        %p339 = scmp.gt.s32.totalorder %s23, 0
        %s340 = scalar_select %p339, %s23, 0
        %p341 = scmp.lt.s32.totalorder %s340, 7
        %s342 = scalar_select %p341, %s340, 7
        %p343 = scmp.lt.s32.totalorder %s22, 1
        %s344 = scalar_select %p343, %s22, 1
        %p345 = scmp.lt.s32.totalorder %s342, 7
        %s346 = scalar_select %p345, %s342, 7
        %s347 = smul.addr %s346, 8
        %s348 = smul.addr %s344, 64
        %s349 = sadd.s32 %s347, %s348
        %s350 = smul.addr %s349, 4
        %s351 = scalar_lea.vmem %s1, %s350
        %p352 = scmp.gt.s32.totalorder %s23, 0
        %s353 = scalar_select %p352, %s23, 0
        %p354 = scmp.lt.s32.totalorder %s353, 7
        %s355 = scalar_select %p354, %s353, 7
      $region36: #{bottleneck_block.5} parent=27 // pred_fallthru
        _
      // Predicated region
      $region37: #{bottleneck_block.5} parent=27 // pred_check
        %p356 = pneg %p133
      $region38: #{bottleneck_block.5} parent=27 // pred_check_branch
        %358 = sbr.rel (%p356) target = $region40
      $region39: #{bottleneck_block.5} parent=27 // pred_region
        %s359 = sadd.s32 %s23, 1
        %p360 = scmp.gt.s32.totalorder %s359, 0
        %s361 = scalar_select %p360, %s359, 0
        %p362 = scmp.lt.s32.totalorder %s361, 7
        %s363 = scalar_select %p362, %s361, 7
        %p364 = scmp.lt.s32.totalorder %s22, 1
        %s365 = scalar_select %p364, %s22, 1
        %p366 = scmp.lt.s32.totalorder %s363, 7
        %s367 = scalar_select %p366, %s363, 7
        %s368 = smul.addr %s367, 8
        %s369 = smul.addr %s365, 64
        %s370 = sadd.s32 %s368, %s369
        %s371 = smul.addr %s370, 4
        %s372 = scalar_lea.vmem %s2, %s371
        %s373 = sadd.s32 %s23, 1
        %p374 = scmp.gt.s32.totalorder %s373, 0
        %s375 = scalar_select %p374, %s373, 0
        %p376 = scmp.lt.s32.totalorder %s375, 7
        %s377 = scalar_select %p376, %s375, 7
      $region40: #{bottleneck_block.5} parent=27 // pred_fallthru
        _
    $region28: #{bottleneck_block.5} parent=5 // pred_fallthru
      _
    %p378 = scmp.le.s32.totalorder 1, %s15
    %p379 = scmp.lt.s32.totalorder %s15, 17
    %p380 = pnand %p378, %p379
    %p381 = pneg %p380
    // Predicated region
    $region41: #{bottleneck_block.5} parent=5 // pred_check
      _
    $region42: #{bottleneck_block.5} parent=5 // pred_check_branch
      %383 = sbr.rel (%p380) target = $region44
    $region43: #{bottleneck_block.5} parent=5 // pred_region
      %s384 = ssub.s32 %s15, 1
      %s385 = sadd.s32 %s25, 4294967295
      %p386 = scmp.gt.s32.totalorder %s385, 0
      %s387 = scalar_select %p386, %s385, 0
      %p388 = scmp.lt.s32.totalorder %s387, 7
      %s389 = scalar_select %p388, %s387, 7
      %p390 = scmp.lt.s32.totalorder %s24, 1
      %s391 = scalar_select %p390, %s24, 1
      %p392 = scmp.lt.s32.totalorder %s389, 7
      %s393 = scalar_select %p392, %s389, 7
      %s394 = smul.addr %s393, 8
      %s395 = smul.addr %s391, 64
      %s396 = sadd.s32 %s394, %s395
      %s397 = smul.addr %s396, 4
      %s398 = scalar_lea.vmem %s0, %s397
      %p399 = pneg %p65
      %p400 = pneg %p62
      %p401 = scmp.gt.s32.totalorder %s25, 0
      %s402 = scalar_select %p401, %s25, 0
      %p403 = scmp.lt.s32.totalorder %s402, 7
      %s404 = scalar_select %p403, %s402, 7
      %p405 = scmp.lt.s32.totalorder %s24, 1
      %s406 = scalar_select %p405, %s24, 1
      %p407 = scmp.lt.s32.totalorder %s404, 7
      %s408 = scalar_select %p407, %s404, 7
      %s409 = smul.addr %s408, 8
      %s410 = smul.addr %s406, 64
      %s411 = sadd.s32 %s409, %s410
      %s412 = smul.addr %s411, 4
      %s413 = scalar_lea.vmem %s1, %s412
      %p414 = pneg %p101
      %p415 = pneg %p98
      %s416 = sadd.s32 %s25, 1
      %p417 = scmp.gt.s32.totalorder %s416, 0
      %s418 = scalar_select %p417, %s416, 0
      %p419 = scmp.lt.s32.totalorder %s418, 7
      %s420 = scalar_select %p419, %s418, 7
      %p421 = scmp.lt.s32.totalorder %s24, 1
      %s422 = scalar_select %p421, %s24, 1
      %p423 = scmp.lt.s32.totalorder %s420, 7
      %s424 = scalar_select %p423, %s420, 7
      %s425 = smul.addr %s424, 8
      %s426 = smul.addr %s422, 64
      %s427 = sadd.s32 %s425, %s426
      %s428 = smul.addr %s427, 4
      %s429 = scalar_lea.vmem %s2, %s428
      %p430 = pneg %p139
      %p431 = pneg %p136
      %p432 = pneg %p160
      %p433 = pneg %p157
      %p434 = pneg %p181
      %p435 = pneg %p178
      %p436 = pneg %p202
      %p437 = pneg %p199
      %p438 = pneg %p230
      %p439 = pneg %p227
      %p440 = scmp.lt.s32.totalorder %s24, 1
      %s441 = scalar_select %p440, %s24, 1
      %p442 = scmp.lt.s32.totalorder %s25, 7
      %s443 = scalar_select %p442, %s25, 7
      %s444 = smul.addr %s443, 8
      %s445 = smul.addr %s441, 64
      %s446 = sadd.s32 %s444, %s445
      %s447 = smul.addr %s446, 4
      %s448 = scalar_lea.vmem %s6, %s447
      %p449 = pneg %p258
      %p450 = pneg %p255
      %p451 = scmp.lt.s32.totalorder %s24, 1
      %s452 = scalar_select %p451, %s24, 1
      %p453 = scmp.lt.s32.totalorder %s25, 7
      %s454 = scalar_select %p453, %s25, 7
      %s455 = smul.addr %s452, 8
      %s456 = sadd.s32 %s454, %s455
      %s457 = scalar_lea.vmem %s7, %s456
      %p458 = pneg %p286
      %p459 = pneg %p283
      %p460 = scmp.lt.s32.totalorder %s24, 1
      %s461 = scalar_select %p460, %s24, 1
      %p462 = scmp.lt.s32.totalorder %s25, 7
      %s463 = scalar_select %p462, %s25, 7
      %s464 = smul.addr %s461, 8
      %s465 = sadd.s32 %s463, %s464
      %s466 = scalar_lea.vmem %s8, %s465
      %s467 = sadd.s32 %s25, 4294967295
      %p468 = scmp.gt.s32.totalorder %s467, 0
      %s469 = scalar_select %p468, %s467, 0
      %p470 = scmp.lt.s32.totalorder %s469, 7
      %s471 = scalar_select %p470, %s469, 7
      %p472 = scmp.lt.s32.totalorder %s24, 1
      %s473 = scalar_select %p472, %s24, 1
      %p474 = scmp.lt.s32.totalorder %s471, 7
      %s475 = scalar_select %p474, %s471, 7
      %s476 = smul.addr %s475, 8
      %s477 = smul.addr %s473, 64
      %s478 = sadd.s32 %s476, %s477
      %s479 = smul.addr %s478, 4
      %s480 = scalar_lea.vmem %s0, %s479
      %s481 = sadd.s32 %s25, 4294967295
      %p482 = scmp.gt.s32.totalorder %s481, 0
      %s483 = scalar_select %p482, %s481, 0
      %p484 = scmp.lt.s32.totalorder %s483, 7
      %s485 = scalar_select %p484, %s483, 7
      %p486 = scmp.gt.s32.totalorder %s25, 0
      %s487 = scalar_select %p486, %s25, 0
      %p488 = scmp.lt.s32.totalorder %s487, 7
      %s489 = scalar_select %p488, %s487, 7
      %p490 = scmp.lt.s32.totalorder %s24, 1
      %s491 = scalar_select %p490, %s24, 1
      %p492 = scmp.lt.s32.totalorder %s489, 7
      %s493 = scalar_select %p492, %s489, 7
      %s494 = smul.addr %s493, 8
      %s495 = smul.addr %s491, 64
      %s496 = sadd.s32 %s494, %s495
      %s497 = smul.addr %s496, 4
      %s498 = scalar_lea.vmem %s1, %s497
      %p499 = scmp.gt.s32.totalorder %s25, 0
      %s500 = scalar_select %p499, %s25, 0
      %p501 = scmp.lt.s32.totalorder %s500, 7
      %s502 = scalar_select %p501, %s500, 7
      %s503 = sadd.s32 %s25, 1
      %p504 = scmp.gt.s32.totalorder %s503, 0
      %s505 = scalar_select %p504, %s503, 0
      %p506 = scmp.lt.s32.totalorder %s505, 7
      %s507 = scalar_select %p506, %s505, 7
      %p508 = scmp.lt.s32.totalorder %s24, 1
      %s509 = scalar_select %p508, %s24, 1
      %p510 = scmp.lt.s32.totalorder %s507, 7
      %s511 = scalar_select %p510, %s507, 7
      %s512 = smul.addr %s511, 8
      %s513 = smul.addr %s509, 64
      %s514 = sadd.s32 %s512, %s513
      %s515 = smul.addr %s514, 4
      %s516 = scalar_lea.vmem %s2, %s515
      %s517 = sadd.s32 %s25, 1
      %p518 = scmp.gt.s32.totalorder %s517, 0
      %s519 = scalar_select %p518, %s517, 0
      %p520 = scmp.lt.s32.totalorder %s519, 7
      %s521 = scalar_select %p520, %s519, 7
      %p522 = scmp.lt.s32.totalorder %s24, 1
      %s523 = scalar_select %p522, %s24, 1
      %p524 = scmp.lt.s32.totalorder %s25, 7
      %s525 = scalar_select %p524, %s25, 7
      %s526 = smul.addr %s525, 8
      %s527 = smul.addr %s523, 64
      %s528 = sadd.s32 %s526, %s527
      %s529 = smul.addr %s528, 4
      %s530 = scalar_lea.vmem %s6, %s529
      %p531 = scmp.lt.s32.totalorder %s24, 1
      %s532 = scalar_select %p531, %s24, 1
      %p533 = scmp.lt.s32.totalorder %s25, 7
      %s534 = scalar_select %p533, %s25, 7
      %s535 = smul.addr %s532, 8
      %s536 = sadd.s32 %s534, %s535
      %s537 = scalar_lea.vmem %s7, %s536
      %p538 = scmp.lt.s32.totalorder %s24, 1
      %s539 = scalar_select %p538, %s24, 1
      %p540 = scmp.lt.s32.totalorder %s25, 7
      %s541 = scalar_select %p540, %s25, 7
      %s542 = smul.addr %s539, 8
      %s543 = sadd.s32 %s541, %s542
      %s544 = scalar_lea.vmem %s8, %s543
      %v546 = vld [vmem:[%s3] sm:$0x1]
      %v547 = vld [vmem:[%s4] sm:$0x1]
      %548 = vst [vmem:[#allocation2] sm:$0xf] 0
      %549 = vst [vmem:[#allocation2 + $0x4] sm:$0x1] 0
      %550 = vst [vmem:[#allocation2 + $0x8] sm:$0xf] 0
      %551 = vst [vmem:[#allocation2 + $0xc] sm:$0x1] 0
      %552 = vst [vmem:[#allocation2 + $0x10] sm:$0xf] 0
      %553 = vst [vmem:[#allocation2 + $0x14] sm:$0x1] 0
      %554 = vst [vmem:[#allocation2 + $0x18] sm:$0xf] 0
      %555 = vst [vmem:[#allocation2 + $0x1c] sm:$0x1] 0
      %556 = vst [vmem:[#allocation2 + $0x20] sm:$0xf] 0
      %557 = vst [vmem:[#allocation2 + $0x24] sm:$0x1] 0
      %558 = vst [vmem:[#allocation2 + $0x28] sm:$0xf] 0
      %559 = vst [vmem:[#allocation2 + $0x2c] sm:$0x1] 0
      %560 = vst [vmem:[#allocation2 + $0x30] sm:$0xf] 0
      %561 = vst [vmem:[#allocation2 + $0x34] sm:$0x1] 0
      %562 = vst [vmem:[#allocation2 + $0x38] sm:$0xf] 0
      %563 = vst [vmem:[#allocation2 + $0x3c] sm:$0x1] 0
      %564 = vst [vmem:[#allocation2 + $0x40] sm:$0xf] 0
      %565 = vst [vmem:[#allocation2 + $0x44] sm:$0x1] 0
      %566 = vst [vmem:[#allocation2 + $0x48] sm:$0xf] 0
      %567 = vst [vmem:[#allocation2 + $0x4c] sm:$0x1] 0
      %568 = vst [vmem:[#allocation2 + $0x50] sm:$0xf] 0
      %569 = vst [vmem:[#allocation2 + $0x54] sm:$0x1] 0
      %570 = vst [vmem:[#allocation2 + $0x58] sm:$0xf] 0
      %571 = vst [vmem:[#allocation2 + $0x5c] sm:$0x1] 0
      %572 = vst [vmem:[#allocation2 + $0x60] sm:$0xf] 0
      %573 = vst [vmem:[#allocation2 + $0x64] sm:$0x1] 0
      %574 = vst [vmem:[#allocation2 + $0x68] sm:$0xf] 0
      %575 = vst [vmem:[#allocation2 + $0x6c] sm:$0x1] 0
      %576 = vst [vmem:[#allocation2 + $0x70] sm:$0xf] 0
      %577 = vst [vmem:[#allocation2 + $0x74] sm:$0x1] 0
      %578 = vst [vmem:[#allocation2 + $0x78] sm:$0xf] 0
      %579 = vst [vmem:[#allocation2 + $0x7c] sm:$0x1] 0
      %580 = vst [vmem:[#allocation2 + $0x80] sm:$0xf] 0
      %581 = vst [vmem:[#allocation2 + $0x84] sm:$0x1] 0
      %582 = vst [vmem:[#allocation2 + $0x88] sm:$0xf] 0
      %583 = vst [vmem:[#allocation2 + $0x8c] sm:$0x1] 0
      %584 = vst [vmem:[#allocation2 + $0x90] sm:$0xf] 0
      %585 = vst [vmem:[#allocation2 + $0x94] sm:$0x1] 0
      %586 = vst [vmem:[#allocation2 + $0x98] sm:$0xf] 0
      %587 = vst [vmem:[#allocation2 + $0x9c] sm:$0x1] 0
      %588 = vst [vmem:[#allocation2 + $0xa0] sm:$0xf] 0
      %589 = vst [vmem:[#allocation2 + $0xa4] sm:$0x1] 0
      %590 = vst [vmem:[#allocation2 + $0xa8] sm:$0xf] 0
      %591 = vst [vmem:[#allocation2 + $0xac] sm:$0x1] 0
      %592 = vst [vmem:[#allocation2 + $0xb0] sm:$0xf] 0
      %593 = vst [vmem:[#allocation2 + $0xb4] sm:$0x1] 0
      %594 = vst [vmem:[#allocation2 + $0xb8] sm:$0xf] 0
      %595 = vst [vmem:[#allocation2 + $0xbc] sm:$0x1] 0
      %596 = vst [vmem:[#allocation2 + $0xc0] sm:$0xf] 0
      %597 = vst [vmem:[#allocation2 + $0xc4] sm:$0x1] 0
      %598 = vst [vmem:[#allocation2 + $0xc8] sm:$0xf] 0
      %599 = vst [vmem:[#allocation2 + $0xcc] sm:$0x1] 0
      %600 = vst [vmem:[#allocation2 + $0xd0] sm:$0xf] 0
      %601 = vst [vmem:[#allocation2 + $0xd4] sm:$0x1] 0
      %602 = vst [vmem:[#allocation2 + $0xd8] sm:$0xf] 0
      %603 = vst [vmem:[#allocation2 + $0xdc] sm:$0x1] 0
      %604 = vst [vmem:[#allocation2 + $0xe0] sm:$0xf] 0
      %605 = vst [vmem:[#allocation2 + $0xe4] sm:$0x1] 0
      %606 = vst [vmem:[#allocation2 + $0xe8] sm:$0xf] 0
      %607 = vst [vmem:[#allocation2 + $0xec] sm:$0x1] 0
      %v608 = vld [vmem:[%s480] sm:$0xf]
      %v609 = vld [vmem:[%s480 + $0x4] sm:$0xf]
      %v610 = vld [vmem:[%s480 + $0x8] sm:$0xf]
      %v611 = vld [vmem:[%s480 + $0xc] sm:$0xf]
      %v612 = vld [vmem:[%s480 + $0x10] sm:$0xf]
      %v613 = vld [vmem:[%s480 + $0x14] sm:$0xf]
      %v614 = vld [vmem:[%s480 + $0x18] sm:$0xf]
      %v615 = vld [vmem:[%s480 + $0x1c] sm:$0xf]
      %v616 = vunpack.c.l.bf16 %v608
      %v617 = vunpack.c.l.bf16 %v609
      %v618 = vunpack.c.l.bf16 %v610
      %v619 = vunpack.c.l.bf16 %v611
      %v620 = vunpack.c.l.bf16 %v612
      %v621 = vunpack.c.l.bf16 %v613
      %v622 = vunpack.c.l.bf16 %v614
      %v623 = vunpack.c.l.bf16 %v615
      %v625 = vlaneseq
      %v626 = vshrl.u32 %v625, 7
      %v627 = vsub.s32 0, %v626
      %v628 = vrot.slane %v546, %v627
      %v630 = vmul.f32 %v616, %v628
      %v631 = vmul.f32 %v617, %v628
      %v632 = vmul.f32 %v618, %v628
      %v633 = vmul.f32 %v619, %v628
      %v634 = vmul.f32 %v620, %v628
      %v635 = vmul.f32 %v621, %v628
      %v636 = vmul.f32 %v622, %v628
      %v637 = vmul.f32 %v623, %v628
      %v639 = vlaneseq
      %v640 = vshrl.u32 %v639, 7
      %v641 = vsub.s32 0, %v640
      %v642 = vrot.slane %v547, %v641
      %v644 = vadd.f32 %v630, %v642
      %v645 = vadd.f32 %v631, %v642
      %v646 = vadd.f32 %v632, %v642
      %v647 = vadd.f32 %v633, %v642
      %v648 = vadd.f32 %v634, %v642
      %v649 = vadd.f32 %v635, %v642
      %v650 = vadd.f32 %v636, %v642
      %v651 = vadd.f32 %v637, %v642
      %v652 = vmax.f32 %v644, 0.0
      %v653 = vmax.f32 %v645, 0.0
      %v654 = vmax.f32 %v646, 0.0
      %v655 = vmax.f32 %v647, 0.0
      %v656 = vmax.f32 %v648, 0.0
      %v657 = vmax.f32 %v649, 0.0
      %v658 = vmax.f32 %v650, 0.0
      %v659 = vmax.f32 %v651, 0.0
      %s660 = sadd.s32 %s25, 4294967295
      %p661 = scmp.ge.s32.totalorder %s660, 0
      %p662 = scmp.lt.s32.totalorder %s660, 8
      %p663 = pnand %p661, %p662
      %p664 = pneg %p663
      %s665 = scalar_select %p664, 1, 0
      %s666 = scvt.s32.f32 %s665
      %v667 = vstv %s666
      %v668 = vmul.f32 %v652, %v667
      %v669 = vmul.f32 %v653, %v667
      %v670 = vmul.f32 %v654, %v667
      %v671 = vmul.f32 %v655, %v667
      %v672 = vmul.f32 %v656, %v667
      %v673 = vmul.f32 %v657, %v667
      %v674 = vmul.f32 %v658, %v667
      %v675 = vmul.f32 %v659, %v667
      %v676 = vpack.c.bf16 %v668, %v668
      %v677 = vpack.c.bf16 %v669, %v669
      %v678 = vpack.c.bf16 %v670, %v670
      %v679 = vpack.c.bf16 %v671, %v671
      %v680 = vpack.c.bf16 %v672, %v672
      %v681 = vpack.c.bf16 %v673, %v673
      %v682 = vpack.c.bf16 %v674, %v674
      %v683 = vpack.c.bf16 %v675, %v675
      %v692 = vunpack.c.l.b16 %v676
      %v693 = vunpack.c.l.b16 %v677
      %v694 = vunpack.c.l.b16 %v678
      %v695 = vunpack.c.l.b16 %v679
      %v696 = vunpack.c.l.b16 %v680
      %v697 = vunpack.c.l.b16 %v681
      %v698 = vunpack.c.l.b16 %v682
      %v699 = vunpack.c.l.b16 %v683
      %v700 = vpack.c.b16 %v692, %v692
      %v701 = vpack.c.b16 %v693, %v693
      %v702 = vpack.c.b16 %v694, %v694
      %v703 = vpack.c.b16 %v695, %v695
      %v704 = vpack.c.b16 %v696, %v696
      %v705 = vpack.c.b16 %v697, %v697
      %v706 = vpack.c.b16 %v698, %v698
      %v707 = vpack.c.b16 %v699, %v699
      %v709 = vshrl.u32 %v700, 16
      %v711 = vrot.slane %v709, 7
      %v712 = vshll.u32 %v700, 16
      %v714 = vor.u32 %v711, %v712
      %v715 = vrot.slane %v711, 4
      %v717 = vshrl.u32 %v701, 16
      %v719 = vrot.slane %v717, 7
      %v720 = vshll.u32 %v701, 16
      %v722 = vor.u32 %v719, %v720
      %v723 = vrot.slane %v719, 4
      %v725 = vshrl.u32 %v702, 16
      %v727 = vrot.slane %v725, 7
      %v728 = vshll.u32 %v702, 16
      %v730 = vor.u32 %v727, %v728
      %v731 = vrot.slane %v727, 4
      %v733 = vshrl.u32 %v703, 16
      %v735 = vrot.slane %v733, 7
      %v736 = vshll.u32 %v703, 16
      %v738 = vor.u32 %v735, %v736
      %v739 = vrot.slane %v735, 4
      %v741 = vshrl.u32 %v704, 16
      %v743 = vrot.slane %v741, 7
      %v744 = vshll.u32 %v704, 16
      %v746 = vor.u32 %v743, %v744
      %v747 = vrot.slane %v743, 4
      %v749 = vshrl.u32 %v705, 16
      %v751 = vrot.slane %v749, 7
      %v752 = vshll.u32 %v705, 16
      %v754 = vor.u32 %v751, %v752
      %v755 = vrot.slane %v751, 4
      %v757 = vshrl.u32 %v706, 16
      %v759 = vrot.slane %v757, 7
      %v760 = vshll.u32 %v706, 16
      %v762 = vor.u32 %v759, %v760
      %v763 = vrot.slane %v759, 4
      %v765 = vshrl.u32 %v707, 16
      %v767 = vrot.slane %v765, 7
      %v768 = vshll.u32 %v707, 16
      %v770 = vor.u32 %v767, %v768
      %v771 = vrot.slane %v767, 4
      %s788 = scalar_lea.vmem [#allocation2], 8
      %vm789 = vcmask 1043456
      %vm790 = vsmask.f32 7938
      %vm791 = vmand %vm789, %vm790
      %v792 = vld [vmem:[%s788] sm:$0xf]
      %v793 = vsel %vm791, %v714, %v792
      %794 = vst [vmem:[%s788] sm:$0xf] %v793
      %vm795 = vcmask 1040384
      %vm796 = vsmask.f32 256
      %vm797 = vmand %vm795, %vm796
      %v798 = vld [vmem:[%s788 + $0x4] sm:$0x1]
      %v799 = vsel %vm797, %v715, %v798
      %800 = vst [vmem:[%s788 + $0x4] sm:$0x1] %v799
      %v801 = vld [vmem:[%s788 + $0x8] sm:$0xf]
      %v802 = vsel %vm791, %v722, %v801
      %803 = vst [vmem:[%s788 + $0x8] sm:$0xf] %v802
      %v804 = vld [vmem:[%s788 + $0xc] sm:$0x1]
      %v805 = vsel %vm797, %v723, %v804
      %806 = vst [vmem:[%s788 + $0xc] sm:$0x1] %v805
      %v807 = vld [vmem:[%s788 + $0x10] sm:$0xf]
      %v808 = vsel %vm791, %v730, %v807
      %809 = vst [vmem:[%s788 + $0x10] sm:$0xf] %v808
      %v810 = vld [vmem:[%s788 + $0x14] sm:$0x1]
      %v811 = vsel %vm797, %v731, %v810
      %812 = vst [vmem:[%s788 + $0x14] sm:$0x1] %v811
      %v813 = vld [vmem:[%s788 + $0x18] sm:$0xf]
      %v814 = vsel %vm791, %v738, %v813
      %815 = vst [vmem:[%s788 + $0x18] sm:$0xf] %v814
      %v816 = vld [vmem:[%s788 + $0x1c] sm:$0x1]
      %v817 = vsel %vm797, %v739, %v816
      %818 = vst [vmem:[%s788 + $0x1c] sm:$0x1] %v817
      %v819 = vld [vmem:[%s788 + $0x20] sm:$0xf]
      %v820 = vsel %vm791, %v746, %v819
      %821 = vst [vmem:[%s788 + $0x20] sm:$0xf] %v820
      %v822 = vld [vmem:[%s788 + $0x24] sm:$0x1]
      %v823 = vsel %vm797, %v747, %v822
      %824 = vst [vmem:[%s788 + $0x24] sm:$0x1] %v823
      %v825 = vld [vmem:[%s788 + $0x28] sm:$0xf]
      %v826 = vsel %vm791, %v754, %v825
      %827 = vst [vmem:[%s788 + $0x28] sm:$0xf] %v826
      %v828 = vld [vmem:[%s788 + $0x2c] sm:$0x1]
      %v829 = vsel %vm797, %v755, %v828
      %830 = vst [vmem:[%s788 + $0x2c] sm:$0x1] %v829
      %v831 = vld [vmem:[%s788 + $0x30] sm:$0xf]
      %v832 = vsel %vm791, %v762, %v831
      %833 = vst [vmem:[%s788 + $0x30] sm:$0xf] %v832
      %v834 = vld [vmem:[%s788 + $0x34] sm:$0x1]
      %v835 = vsel %vm797, %v763, %v834
      %836 = vst [vmem:[%s788 + $0x34] sm:$0x1] %v835
      %v837 = vld [vmem:[%s788 + $0x38] sm:$0xf]
      %v838 = vsel %vm791, %v770, %v837
      %839 = vst [vmem:[%s788 + $0x38] sm:$0xf] %v838
      %v840 = vld [vmem:[%s788 + $0x3c] sm:$0x1]
      %v841 = vsel %vm797, %v771, %v840
      %842 = vst [vmem:[%s788 + $0x3c] sm:$0x1] %v841
      %v843 = vld [vmem:[%s498] sm:$0xf]
      %v844 = vld [vmem:[%s498 + $0x4] sm:$0xf]
      %v845 = vld [vmem:[%s498 + $0x8] sm:$0xf]
      %v846 = vld [vmem:[%s498 + $0xc] sm:$0xf]
      %v847 = vld [vmem:[%s498 + $0x10] sm:$0xf]
      %v848 = vld [vmem:[%s498 + $0x14] sm:$0xf]
      %v849 = vld [vmem:[%s498 + $0x18] sm:$0xf]
      %v850 = vld [vmem:[%s498 + $0x1c] sm:$0xf]
      %v851 = vunpack.c.l.bf16 %v843
      %v852 = vunpack.c.l.bf16 %v844
      %v853 = vunpack.c.l.bf16 %v845
      %v854 = vunpack.c.l.bf16 %v846
      %v855 = vunpack.c.l.bf16 %v847
      %v856 = vunpack.c.l.bf16 %v848
      %v857 = vunpack.c.l.bf16 %v849
      %v858 = vunpack.c.l.bf16 %v850
      %v859 = vmul.f32 %v851, %v628
      %v860 = vmul.f32 %v852, %v628
      %v861 = vmul.f32 %v853, %v628
      %v862 = vmul.f32 %v854, %v628
      %v863 = vmul.f32 %v855, %v628
      %v864 = vmul.f32 %v856, %v628
      %v865 = vmul.f32 %v857, %v628
      %v866 = vmul.f32 %v858, %v628
      %v867 = vadd.f32 %v859, %v642
      %v868 = vadd.f32 %v860, %v642
      %v869 = vadd.f32 %v861, %v642
      %v870 = vadd.f32 %v862, %v642
      %v871 = vadd.f32 %v863, %v642
      %v872 = vadd.f32 %v864, %v642
      %v873 = vadd.f32 %v865, %v642
      %v874 = vadd.f32 %v866, %v642
      %v875 = vmax.f32 %v867, 0.0
      %v876 = vmax.f32 %v868, 0.0
      %v877 = vmax.f32 %v869, 0.0
      %v878 = vmax.f32 %v870, 0.0
      %v879 = vmax.f32 %v871, 0.0
      %v880 = vmax.f32 %v872, 0.0
      %v881 = vmax.f32 %v873, 0.0
      %v882 = vmax.f32 %v874, 0.0
      %v883 = vpack.c.bf16 %v875, %v875
      %v884 = vpack.c.bf16 %v876, %v876
      %v885 = vpack.c.bf16 %v877, %v877
      %v886 = vpack.c.bf16 %v878, %v878
      %v887 = vpack.c.bf16 %v879, %v879
      %v888 = vpack.c.bf16 %v880, %v880
      %v889 = vpack.c.bf16 %v881, %v881
      %v890 = vpack.c.bf16 %v882, %v882
      %v899 = vunpack.c.l.b16 %v883
      %v900 = vunpack.c.l.b16 %v884
      %v901 = vunpack.c.l.b16 %v885
      %v902 = vunpack.c.l.b16 %v886
      %v903 = vunpack.c.l.b16 %v887
      %v904 = vunpack.c.l.b16 %v888
      %v905 = vunpack.c.l.b16 %v889
      %v906 = vunpack.c.l.b16 %v890
      %v907 = vpack.c.b16 %v899, %v899
      %v908 = vpack.c.b16 %v900, %v900
      %v909 = vpack.c.b16 %v901, %v901
      %v910 = vpack.c.b16 %v902, %v902
      %v911 = vpack.c.b16 %v903, %v903
      %v912 = vpack.c.b16 %v904, %v904
      %v913 = vpack.c.b16 %v905, %v905
      %v914 = vpack.c.b16 %v906, %v906
      %v916 = vshrl.u32 %v907, 16
      %v918 = vrot.slane %v916, 7
      %v919 = vshll.u32 %v907, 16
      %v921 = vor.u32 %v918, %v919
      %v922 = vrot.slane %v918, 4
      %v924 = vshrl.u32 %v908, 16
      %v926 = vrot.slane %v924, 7
      %v927 = vshll.u32 %v908, 16
      %v929 = vor.u32 %v926, %v927
      %v930 = vrot.slane %v926, 4
      %v932 = vshrl.u32 %v909, 16
      %v934 = vrot.slane %v932, 7
      %v935 = vshll.u32 %v909, 16
      %v937 = vor.u32 %v934, %v935
      %v938 = vrot.slane %v934, 4
      %v940 = vshrl.u32 %v910, 16
      %v942 = vrot.slane %v940, 7
      %v943 = vshll.u32 %v910, 16
      %v945 = vor.u32 %v942, %v943
      %v946 = vrot.slane %v942, 4
      %v948 = vshrl.u32 %v911, 16
      %v950 = vrot.slane %v948, 7
      %v951 = vshll.u32 %v911, 16
      %v953 = vor.u32 %v950, %v951
      %v954 = vrot.slane %v950, 4
      %v956 = vshrl.u32 %v912, 16
      %v958 = vrot.slane %v956, 7
      %v959 = vshll.u32 %v912, 16
      %v961 = vor.u32 %v958, %v959
      %v962 = vrot.slane %v958, 4
      %v964 = vshrl.u32 %v913, 16
      %v966 = vrot.slane %v964, 7
      %v967 = vshll.u32 %v913, 16
      %v969 = vor.u32 %v966, %v967
      %v970 = vrot.slane %v966, 4
      %v972 = vshrl.u32 %v914, 16
      %v974 = vrot.slane %v972, 7
      %v975 = vshll.u32 %v914, 16
      %v977 = vor.u32 %v974, %v975
      %v978 = vrot.slane %v974, 4
      %s995 = scalar_lea.vmem [#allocation2], 88
      %v996 = vld [vmem:[%s995] sm:$0xf]
      %v997 = vsel %vm791, %v921, %v996
      %998 = vst [vmem:[%s995] sm:$0xf] %v997
      %v999 = vld [vmem:[%s995 + $0x4] sm:$0x1]
      %v1000 = vsel %vm797, %v922, %v999
      %1001 = vst [vmem:[%s995 + $0x4] sm:$0x1] %v1000
      %v1002 = vld [vmem:[%s995 + $0x8] sm:$0xf]
      %v1003 = vsel %vm791, %v929, %v1002
      %1004 = vst [vmem:[%s995 + $0x8] sm:$0xf] %v1003
      %v1005 = vld [vmem:[%s995 + $0xc] sm:$0x1]
      %v1006 = vsel %vm797, %v930, %v1005
      %1007 = vst [vmem:[%s995 + $0xc] sm:$0x1] %v1006
      %v1008 = vld [vmem:[%s995 + $0x10] sm:$0xf]
      %v1009 = vsel %vm791, %v937, %v1008
      %1010 = vst [vmem:[%s995 + $0x10] sm:$0xf] %v1009
      %v1011 = vld [vmem:[%s995 + $0x14] sm:$0x1]
      %v1012 = vsel %vm797, %v938, %v1011
      %1013 = vst [vmem:[%s995 + $0x14] sm:$0x1] %v1012
      %v1014 = vld [vmem:[%s995 + $0x18] sm:$0xf]
      %v1015 = vsel %vm791, %v945, %v1014
      %1016 = vst [vmem:[%s995 + $0x18] sm:$0xf] %v1015
      %v1017 = vld [vmem:[%s995 + $0x1c] sm:$0x1]
      %v1018 = vsel %vm797, %v946, %v1017
      %1019 = vst [vmem:[%s995 + $0x1c] sm:$0x1] %v1018
      %v1020 = vld [vmem:[%s995 + $0x20] sm:$0xf]
      %v1021 = vsel %vm791, %v953, %v1020
      %1022 = vst [vmem:[%s995 + $0x20] sm:$0xf] %v1021
      %v1023 = vld [vmem:[%s995 + $0x24] sm:$0x1]
      %v1024 = vsel %vm797, %v954, %v1023
      %1025 = vst [vmem:[%s995 + $0x24] sm:$0x1] %v1024
      %v1026 = vld [vmem:[%s995 + $0x28] sm:$0xf]
      %v1027 = vsel %vm791, %v961, %v1026
      %1028 = vst [vmem:[%s995 + $0x28] sm:$0xf] %v1027
      %v1029 = vld [vmem:[%s995 + $0x2c] sm:$0x1]
      %v1030 = vsel %vm797, %v962, %v1029
      %1031 = vst [vmem:[%s995 + $0x2c] sm:$0x1] %v1030
      %v1032 = vld [vmem:[%s995 + $0x30] sm:$0xf]
      %v1033 = vsel %vm791, %v969, %v1032
      %1034 = vst [vmem:[%s995 + $0x30] sm:$0xf] %v1033
      %v1035 = vld [vmem:[%s995 + $0x34] sm:$0x1]
      %v1036 = vsel %vm797, %v970, %v1035
      %1037 = vst [vmem:[%s995 + $0x34] sm:$0x1] %v1036
      %v1038 = vld [vmem:[%s995 + $0x38] sm:$0xf]
      %v1039 = vsel %vm791, %v977, %v1038
      %1040 = vst [vmem:[%s995 + $0x38] sm:$0xf] %v1039
      %v1041 = vld [vmem:[%s995 + $0x3c] sm:$0x1]
      %v1042 = vsel %vm797, %v978, %v1041
      %1043 = vst [vmem:[%s995 + $0x3c] sm:$0x1] %v1042
      %v1044 = vld [vmem:[%s516] sm:$0xf]
      %v1045 = vld [vmem:[%s516 + $0x4] sm:$0xf]
      %v1046 = vld [vmem:[%s516 + $0x8] sm:$0xf]
      %v1047 = vld [vmem:[%s516 + $0xc] sm:$0xf]
      %v1048 = vld [vmem:[%s516 + $0x10] sm:$0xf]
      %v1049 = vld [vmem:[%s516 + $0x14] sm:$0xf]
      %v1050 = vld [vmem:[%s516 + $0x18] sm:$0xf]
      %v1051 = vld [vmem:[%s516 + $0x1c] sm:$0xf]
      %v1052 = vunpack.c.l.bf16 %v1044
      %v1053 = vunpack.c.l.bf16 %v1045
      %v1054 = vunpack.c.l.bf16 %v1046
      %v1055 = vunpack.c.l.bf16 %v1047
      %v1056 = vunpack.c.l.bf16 %v1048
      %v1057 = vunpack.c.l.bf16 %v1049
      %v1058 = vunpack.c.l.bf16 %v1050
      %v1059 = vunpack.c.l.bf16 %v1051
      %v1060 = vmul.f32 %v1052, %v628
      %v1061 = vmul.f32 %v1053, %v628
      %v1062 = vmul.f32 %v1054, %v628
      %v1063 = vmul.f32 %v1055, %v628
      %v1064 = vmul.f32 %v1056, %v628
      %v1065 = vmul.f32 %v1057, %v628
      %v1066 = vmul.f32 %v1058, %v628
      %v1067 = vmul.f32 %v1059, %v628
      %v1068 = vadd.f32 %v1060, %v642
      %v1069 = vadd.f32 %v1061, %v642
      %v1070 = vadd.f32 %v1062, %v642
      %v1071 = vadd.f32 %v1063, %v642
      %v1072 = vadd.f32 %v1064, %v642
      %v1073 = vadd.f32 %v1065, %v642
      %v1074 = vadd.f32 %v1066, %v642
      %v1075 = vadd.f32 %v1067, %v642
      %v1076 = vmax.f32 %v1068, 0.0
      %v1077 = vmax.f32 %v1069, 0.0
      %v1078 = vmax.f32 %v1070, 0.0
      %v1079 = vmax.f32 %v1071, 0.0
      %v1080 = vmax.f32 %v1072, 0.0
      %v1081 = vmax.f32 %v1073, 0.0
      %v1082 = vmax.f32 %v1074, 0.0
      %v1083 = vmax.f32 %v1075, 0.0
      %s1084 = sadd.s32 %s25, 1
      %p1085 = scmp.ge.s32.totalorder %s1084, 0
      %p1086 = scmp.lt.s32.totalorder %s1084, 8
      %p1087 = pnand %p1085, %p1086
      %p1088 = pneg %p1087
      %s1089 = scalar_select %p1088, 1, 0
      %s1090 = scvt.s32.f32 %s1089
      %v1091 = vstv %s1090
      %v1092 = vmul.f32 %v1076, %v1091
      %v1093 = vmul.f32 %v1077, %v1091
      %v1094 = vmul.f32 %v1078, %v1091
      %v1095 = vmul.f32 %v1079, %v1091
      %v1096 = vmul.f32 %v1080, %v1091
      %v1097 = vmul.f32 %v1081, %v1091
      %v1098 = vmul.f32 %v1082, %v1091
      %v1099 = vmul.f32 %v1083, %v1091
      %v1100 = vpack.c.bf16 %v1092, %v1092
      %v1101 = vpack.c.bf16 %v1093, %v1093
      %v1102 = vpack.c.bf16 %v1094, %v1094
      %v1103 = vpack.c.bf16 %v1095, %v1095
      %v1104 = vpack.c.bf16 %v1096, %v1096
      %v1105 = vpack.c.bf16 %v1097, %v1097
      %v1106 = vpack.c.bf16 %v1098, %v1098
      %v1107 = vpack.c.bf16 %v1099, %v1099
      %v1116 = vunpack.c.l.b16 %v1100
      %v1117 = vunpack.c.l.b16 %v1101
      %v1118 = vunpack.c.l.b16 %v1102
      %v1119 = vunpack.c.l.b16 %v1103
      %v1120 = vunpack.c.l.b16 %v1104
      %v1121 = vunpack.c.l.b16 %v1105
      %v1122 = vunpack.c.l.b16 %v1106
      %v1123 = vunpack.c.l.b16 %v1107
      %v1124 = vpack.c.b16 %v1116, %v1116
      %v1125 = vpack.c.b16 %v1117, %v1117
      %v1126 = vpack.c.b16 %v1118, %v1118
      %v1127 = vpack.c.b16 %v1119, %v1119
      %v1128 = vpack.c.b16 %v1120, %v1120
      %v1129 = vpack.c.b16 %v1121, %v1121
      %v1130 = vpack.c.b16 %v1122, %v1122
      %v1131 = vpack.c.b16 %v1123, %v1123
      %v1133 = vshrl.u32 %v1124, 16
      %v1135 = vrot.slane %v1133, 7
      %v1136 = vshll.u32 %v1124, 16
      %v1138 = vor.u32 %v1135, %v1136
      %v1139 = vrot.slane %v1135, 4
      %v1141 = vshrl.u32 %v1125, 16
      %v1143 = vrot.slane %v1141, 7
      %v1144 = vshll.u32 %v1125, 16
      %v1146 = vor.u32 %v1143, %v1144
      %v1147 = vrot.slane %v1143, 4
      %v1149 = vshrl.u32 %v1126, 16
      %v1151 = vrot.slane %v1149, 7
      %v1152 = vshll.u32 %v1126, 16
      %v1154 = vor.u32 %v1151, %v1152
      %v1155 = vrot.slane %v1151, 4
      %v1157 = vshrl.u32 %v1127, 16
      %v1159 = vrot.slane %v1157, 7
      %v1160 = vshll.u32 %v1127, 16
      %v1162 = vor.u32 %v1159, %v1160
      %v1163 = vrot.slane %v1159, 4
      %v1165 = vshrl.u32 %v1128, 16
      %v1167 = vrot.slane %v1165, 7
      %v1168 = vshll.u32 %v1128, 16
      %v1170 = vor.u32 %v1167, %v1168
      %v1171 = vrot.slane %v1167, 4
      %v1173 = vshrl.u32 %v1129, 16
      %v1175 = vrot.slane %v1173, 7
      %v1176 = vshll.u32 %v1129, 16
      %v1178 = vor.u32 %v1175, %v1176
      %v1179 = vrot.slane %v1175, 4
      %v1181 = vshrl.u32 %v1130, 16
      %v1183 = vrot.slane %v1181, 7
      %v1184 = vshll.u32 %v1130, 16
      %v1186 = vor.u32 %v1183, %v1184
      %v1187 = vrot.slane %v1183, 4
      %v1189 = vshrl.u32 %v1131, 16
      %v1191 = vrot.slane %v1189, 7
      %v1192 = vshll.u32 %v1131, 16
      %v1194 = vor.u32 %v1191, %v1192
      %v1195 = vrot.slane %v1191, 4
      %s1212 = scalar_lea.vmem [#allocation2], 168
      %v1213 = vld [vmem:[%s1212] sm:$0xf]
      %v1214 = vsel %vm791, %v1138, %v1213
      %1215 = vst [vmem:[%s1212] sm:$0xf] %v1214
      %v1216 = vld [vmem:[%s1212 + $0x4] sm:$0x1]
      %v1217 = vsel %vm797, %v1139, %v1216
      %1218 = vst [vmem:[%s1212 + $0x4] sm:$0x1] %v1217
      %v1219 = vld [vmem:[%s1212 + $0x8] sm:$0xf]
      %v1220 = vsel %vm791, %v1146, %v1219
      %1221 = vst [vmem:[%s1212 + $0x8] sm:$0xf] %v1220
      %v1222 = vld [vmem:[%s1212 + $0xc] sm:$0x1]
      %v1223 = vsel %vm797, %v1147, %v1222
      %1224 = vst [vmem:[%s1212 + $0xc] sm:$0x1] %v1223
      %v1225 = vld [vmem:[%s1212 + $0x10] sm:$0xf]
      %v1226 = vsel %vm791, %v1154, %v1225
      %1227 = vst [vmem:[%s1212 + $0x10] sm:$0xf] %v1226
      %v1228 = vld [vmem:[%s1212 + $0x14] sm:$0x1]
      %v1229 = vsel %vm797, %v1155, %v1228
      %1230 = vst [vmem:[%s1212 + $0x14] sm:$0x1] %v1229
      %v1231 = vld [vmem:[%s1212 + $0x18] sm:$0xf]
      %v1232 = vsel %vm791, %v1162, %v1231
      %1233 = vst [vmem:[%s1212 + $0x18] sm:$0xf] %v1232
      %v1234 = vld [vmem:[%s1212 + $0x1c] sm:$0x1]
      %v1235 = vsel %vm797, %v1163, %v1234
      %1236 = vst [vmem:[%s1212 + $0x1c] sm:$0x1] %v1235
      %v1237 = vld [vmem:[%s1212 + $0x20] sm:$0xf]
      %v1238 = vsel %vm791, %v1170, %v1237
      %1239 = vst [vmem:[%s1212 + $0x20] sm:$0xf] %v1238
      %v1240 = vld [vmem:[%s1212 + $0x24] sm:$0x1]
      %v1241 = vsel %vm797, %v1171, %v1240
      %1242 = vst [vmem:[%s1212 + $0x24] sm:$0x1] %v1241
      %v1243 = vld [vmem:[%s1212 + $0x28] sm:$0xf]
      %v1244 = vsel %vm791, %v1178, %v1243
      %1245 = vst [vmem:[%s1212 + $0x28] sm:$0xf] %v1244
      %v1246 = vld [vmem:[%s1212 + $0x2c] sm:$0x1]
      %v1247 = vsel %vm797, %v1179, %v1246
      %1248 = vst [vmem:[%s1212 + $0x2c] sm:$0x1] %v1247
      %v1249 = vld [vmem:[%s1212 + $0x30] sm:$0xf]
      %v1250 = vsel %vm791, %v1186, %v1249
      %1251 = vst [vmem:[%s1212 + $0x30] sm:$0xf] %v1250
      %v1252 = vld [vmem:[%s1212 + $0x34] sm:$0x1]
      %v1253 = vsel %vm797, %v1187, %v1252
      %1254 = vst [vmem:[%s1212 + $0x34] sm:$0x1] %v1253
      %v1255 = vld [vmem:[%s1212 + $0x38] sm:$0xf]
      %v1256 = vsel %vm791, %v1194, %v1255
      %1257 = vst [vmem:[%s1212 + $0x38] sm:$0xf] %v1256
      %v1258 = vld [vmem:[%s1212 + $0x3c] sm:$0x1]
      %v1259 = vsel %vm797, %v1195, %v1258
      %1260 = vst [vmem:[%s1212 + $0x3c] sm:$0x1] %v1259
      %v1261 = vld [vmem:[#allocation2] sm:$0xf]
      %v1262 = vld [vmem:[#allocation2 + $0x8] sm:$0xf]
      %v1263 = vld [vmem:[#allocation2 + $0x10] sm:$0xf]
      %v1264 = vld [vmem:[#allocation2 + $0x18] sm:$0xf]
      %v1265 = vld [vmem:[#allocation2 + $0x20] sm:$0xf]
      %v1266 = vld [vmem:[#allocation2 + $0x28] sm:$0xf]
      %v1267 = vld [vmem:[#allocation2 + $0x30] sm:$0xf]
      %v1268 = vld [vmem:[#allocation2 + $0x38] sm:$0xf]
      %v1269 = vld [vmem:[#allocation2 + $0x40] sm:$0xf]
      %v1270 = vld [vmem:[#allocation2 + $0x48] sm:$0xf]
      %v1271 = vld [vmem:[#allocation2 + $0x4] sm:$0x1]
      %v1272 = vld [vmem:[#allocation2 + $0xc] sm:$0x1]
      %v1273 = vld [vmem:[#allocation2 + $0x14] sm:$0x1]
      %v1274 = vld [vmem:[#allocation2 + $0x1c] sm:$0x1]
      %v1275 = vld [vmem:[#allocation2 + $0x24] sm:$0x1]
      %v1276 = vld [vmem:[#allocation2 + $0x2c] sm:$0x1]
      %v1277 = vld [vmem:[#allocation2 + $0x34] sm:$0x1]
      %v1278 = vld [vmem:[#allocation2 + $0x3c] sm:$0x1]
      %v1279 = vld [vmem:[#allocation2 + $0x44] sm:$0x1]
      %v1280 = vld [vmem:[#allocation2 + $0x4c] sm:$0x1]
      %v1281 = vld [vmem:[#allocation2] sm:$0xe]
      %v1282 = vld [vmem:[#allocation2 + $0x8] sm:$0xe]
      %v1283 = vld [vmem:[#allocation2 + $0x10] sm:$0xe]
      %v1284 = vld [vmem:[#allocation2 + $0x18] sm:$0xe]
      %v1285 = vld [vmem:[#allocation2 + $0x20] sm:$0xe]
      %v1286 = vld [vmem:[#allocation2 + $0x28] sm:$0xe]
      %v1287 = vld [vmem:[#allocation2 + $0x30] sm:$0xe]
      %v1288 = vld [vmem:[#allocation2 + $0x38] sm:$0xe]
      %v1289 = vld [vmem:[#allocation2 + $0x40] sm:$0xe]
      %v1290 = vld [vmem:[#allocation2 + $0x48] sm:$0xe]
      %v1311 = vunpack.c.l.b16 %v1261
      %v1312 = vunpack.c.l.b16 %v1271
      %v1313 = vunpack.c.l.b16 %v1262
      %v1314 = vunpack.c.l.b16 %v1272
      %v1315 = vunpack.c.l.b16 %v1263
      %v1316 = vunpack.c.l.b16 %v1273
      %v1317 = vunpack.c.l.b16 %v1264
      %v1318 = vunpack.c.l.b16 %v1274
      %v1319 = vunpack.c.l.b16 %v1265
      %v1320 = vunpack.c.l.b16 %v1275
      %v1321 = vunpack.c.l.b16 %v1266
      %v1322 = vunpack.c.l.b16 %v1276
      %v1323 = vunpack.c.l.b16 %v1267
      %v1324 = vunpack.c.l.b16 %v1277
      %v1325 = vunpack.c.l.b16 %v1268
      %v1326 = vunpack.c.l.b16 %v1278
      %v1327 = vunpack.c.l.b16 %v1269
      %v1328 = vunpack.c.l.b16 %v1279
      %v1329 = vunpack.c.l.b16 %v1270
      %v1330 = vunpack.c.l.b16 %v1280
      %v1331 = vpack.c.b16 %v1312, %v1311
      %v1332 = vpack.c.b16 %v1314, %v1313
      %v1333 = vpack.c.b16 %v1316, %v1315
      %v1334 = vpack.c.b16 %v1318, %v1317
      %v1335 = vpack.c.b16 %v1320, %v1319
      %v1336 = vpack.c.b16 %v1322, %v1321
      %v1337 = vpack.c.b16 %v1324, %v1323
      %v1338 = vpack.c.b16 %v1326, %v1325
      %v1339 = vpack.c.b16 %v1328, %v1327
      %v1340 = vpack.c.b16 %v1330, %v1329
      %v1342 = vshrl.u32 %v1331, 16
      %v1344 = vshll.u32 %v1331, 16
      %v1346 = vrot.slane %v1344, 1
      %v1347 = vor.u32 %v1342, %v1346
      %v1349 = vshrl.u32 %v1332, 16
      %v1351 = vshll.u32 %v1332, 16
      %v1353 = vrot.slane %v1351, 1
      %v1354 = vor.u32 %v1349, %v1353
      %v1356 = vshrl.u32 %v1333, 16
      %v1358 = vshll.u32 %v1333, 16
      %v1360 = vrot.slane %v1358, 1
      %v1361 = vor.u32 %v1356, %v1360
      %v1363 = vshrl.u32 %v1334, 16
      %v1365 = vshll.u32 %v1334, 16
      %v1367 = vrot.slane %v1365, 1
      %v1368 = vor.u32 %v1363, %v1367
      %v1370 = vshrl.u32 %v1335, 16
      %v1372 = vshll.u32 %v1335, 16
      %v1374 = vrot.slane %v1372, 1
      %v1375 = vor.u32 %v1370, %v1374
      %v1377 = vshrl.u32 %v1336, 16
      %v1379 = vshll.u32 %v1336, 16
      %v1381 = vrot.slane %v1379, 1
      %v1382 = vor.u32 %v1377, %v1381
      %v1384 = vshrl.u32 %v1337, 16
      %v1386 = vshll.u32 %v1337, 16
      %v1388 = vrot.slane %v1386, 1
      %v1389 = vor.u32 %v1384, %v1388
      %v1391 = vshrl.u32 %v1338, 16
      %v1393 = vshll.u32 %v1338, 16
      %v1395 = vrot.slane %v1393, 1
      %v1396 = vor.u32 %v1391, %v1395
      %v1398 = vshrl.u32 %v1339, 16
      %v1400 = vshll.u32 %v1339, 16
      %v1402 = vrot.slane %v1400, 1
      %v1403 = vor.u32 %v1398, %v1402
      %v1405 = vshrl.u32 %v1340, 16
      %v1407 = vshll.u32 %v1340, 16
      %v1409 = vrot.slane %v1407, 1
      %v1410 = vor.u32 %v1405, %v1409
      %v1421 = vunpack.c.l.b16 %v1281
      %v1422 = vunpack.c.l.b16 %v1282
      %v1423 = vunpack.c.l.b16 %v1283
      %v1424 = vunpack.c.l.b16 %v1284
      %v1425 = vunpack.c.l.b16 %v1285
      %v1426 = vunpack.c.l.b16 %v1286
      %v1427 = vunpack.c.l.b16 %v1287
      %v1428 = vunpack.c.l.b16 %v1288
      %v1429 = vunpack.c.l.b16 %v1289
      %v1430 = vunpack.c.l.b16 %v1290
      %v1431 = vpack.c.b16 %v1312, %v1421
      %v1432 = vpack.c.b16 %v1314, %v1422
      %v1433 = vpack.c.b16 %v1316, %v1423
      %v1434 = vpack.c.b16 %v1318, %v1424
      %v1435 = vpack.c.b16 %v1320, %v1425
      %v1436 = vpack.c.b16 %v1322, %v1426
      %v1437 = vpack.c.b16 %v1324, %v1427
      %v1438 = vpack.c.b16 %v1326, %v1428
      %v1439 = vpack.c.b16 %v1328, %v1429
      %v1440 = vpack.c.b16 %v1330, %v1430
      %v1441 = vrot.slane %v1431, 1
      %v1442 = vrot.slane %v1432, 1
      %v1443 = vrot.slane %v1433, 1
      %v1444 = vrot.slane %v1434, 1
      %v1445 = vrot.slane %v1435, 1
      %v1446 = vrot.slane %v1436, 1
      %v1447 = vrot.slane %v1437, 1
      %v1448 = vrot.slane %v1438, 1
      %v1449 = vrot.slane %v1439, 1
      %v1450 = vrot.slane %v1440, 1
      %v1451 = vunpack.c.l.b16 %v1347
      %v1452 = vunpack.c.l.b16 %v1441
      %v1453 = vunpack.c.l.b16 %v1354
      %v1454 = vunpack.c.l.b16 %v1442
      %v1455 = vunpack.c.l.b16 %v1361
      %v1456 = vunpack.c.l.b16 %v1443
      %v1457 = vunpack.c.l.b16 %v1368
      %v1458 = vunpack.c.l.b16 %v1444
      %v1459 = vunpack.c.l.b16 %v1375
      %v1460 = vunpack.c.l.b16 %v1445
      %v1461 = vunpack.c.l.b16 %v1382
      %v1462 = vunpack.c.l.b16 %v1446
      %v1463 = vunpack.c.l.b16 %v1389
      %v1464 = vunpack.c.l.b16 %v1447
      %v1465 = vunpack.c.l.b16 %v1396
      %v1466 = vunpack.c.l.b16 %v1448
      %v1467 = vld [vmem:[%s5] sm:$0xf]
      %v1468 = vld [vmem:[%s5 + $0x4] sm:$0xf]
      %v1469 = vld [vmem:[%s5 + $0x8] sm:$0xf]
      %v1470 = vld [vmem:[%s5 + $0xc] sm:$0xf]
      %v1471 = vld [vmem:[%s5 + $0x10] sm:$0xf]
      %v1472 = vld [vmem:[%s5 + $0x14] sm:$0xf]
      %v1473 = vld [vmem:[%s5 + $0x18] sm:$0xf]
      %v1474 = vld [vmem:[%s5 + $0x1c] sm:$0xf]
      %v1475 = vld [vmem:[%s5 + $0x20] sm:$0xf]
      %v1476 = vld [vmem:[%s5 + $0x24] sm:$0xf]
      %v1477 = vld [vmem:[%s5 + $0x28] sm:$0xf]
      %v1478 = vld [vmem:[%s5 + $0x2c] sm:$0xf]
      %v1479 = vld [vmem:[%s5 + $0x30] sm:$0xf]
      %v1480 = vld [vmem:[%s5 + $0x34] sm:$0xf]
      %v1481 = vld [vmem:[%s5 + $0x38] sm:$0xf]
      %v1482 = vld [vmem:[%s5 + $0x3c] sm:$0xf]
      %v1483 = vld [vmem:[%s5 + $0x40] sm:$0xf]
      %v1484 = vld [vmem:[%s5 + $0x44] sm:$0xf]
      %v1485 = vld [vmem:[%s5 + $0x48] sm:$0xf]
      %v1486 = vld [vmem:[%s5 + $0x4c] sm:$0xf]
      %v1487 = vld [vmem:[%s5 + $0x50] sm:$0xf]
      %v1488 = vld [vmem:[%s5 + $0x54] sm:$0xf]
      %v1489 = vld [vmem:[%s5 + $0x58] sm:$0xf]
      %v1490 = vld [vmem:[%s5 + $0x5c] sm:$0xf]
      %v1491 = vld [vmem:[%s5 + $0x60] sm:$0xf]
      %v1492 = vld [vmem:[%s5 + $0x64] sm:$0xf]
      %v1493 = vld [vmem:[%s5 + $0x68] sm:$0xf]
      %v1494 = vld [vmem:[%s5 + $0x6c] sm:$0xf]
      %v1495 = vld [vmem:[%s5 + $0x70] sm:$0xf]
      %v1496 = vld [vmem:[%s5 + $0x74] sm:$0xf]
      %v1497 = vld [vmem:[%s5 + $0x78] sm:$0xf]
      %v1498 = vld [vmem:[%s5 + $0x7c] sm:$0xf]
      %v1499 = vld [vmem:[%s5 + $0x80] sm:$0xf]
      %v1500 = vld [vmem:[%s5 + $0x84] sm:$0xf]
      %v1501 = vld [vmem:[%s5 + $0x88] sm:$0xf]
      %v1502 = vld [vmem:[%s5 + $0x8c] sm:$0xf]
      %v1503 = vld [vmem:[%s5 + $0x90] sm:$0xf]
      %v1504 = vld [vmem:[%s5 + $0x94] sm:$0xf]
      %v1505 = vld [vmem:[%s5 + $0x98] sm:$0xf]
      %v1506 = vld [vmem:[%s5 + $0x9c] sm:$0xf]
      %v1507 = vld [vmem:[%s5 + $0xa0] sm:$0xf]
      %v1508 = vld [vmem:[%s5 + $0xa4] sm:$0xf]
      %v1509 = vld [vmem:[%s5 + $0xa8] sm:$0xf]
      %v1510 = vld [vmem:[%s5 + $0xac] sm:$0xf]
      %v1511 = vld [vmem:[%s5 + $0xb0] sm:$0xf]
      %v1512 = vld [vmem:[%s5 + $0xb4] sm:$0xf]
      %v1513 = vld [vmem:[%s5 + $0xb8] sm:$0xf]
      %v1514 = vld [vmem:[%s5 + $0xbc] sm:$0xf]
      %v1515 = vpack.c.b16 %v1313, %v1311
      %v1516 = vpack.c.b16 %v1453, %v1451
      %v1517 = vpack.c.b16 %v1454, %v1452
      %v1518 = vpack.c.b16 %v1317, %v1315
      %v1519 = vpack.c.b16 %v1457, %v1455
      %v1520 = vpack.c.b16 %v1458, %v1456
      %v1521 = vpack.c.b16 %v1321, %v1319
      %v1522 = vpack.c.b16 %v1461, %v1459
      %v1523 = vpack.c.b16 %v1462, %v1460
      %v1524 = vpack.c.b16 %v1325, %v1323
      %v1525 = vpack.c.b16 %v1465, %v1463
      %v1526 = vpack.c.b16 %v1466, %v1464
      %v1587 = vunpack.c.l.b16 %v1467
      %v1588 = vunpack.c.l.b16 %v1468
      %v1589 = vunpack.c.l.b16 %v1469
      %v1590 = vunpack.c.l.b16 %v1470
      %v1591 = vunpack.c.l.b16 %v1471
      %v1592 = vunpack.c.l.b16 %v1472
      %v1593 = vunpack.c.l.b16 %v1473
      %v1594 = vunpack.c.l.b16 %v1474
      %v1595 = vunpack.c.l.b16 %v1475
      %v1596 = vunpack.c.l.b16 %v1476
      %v1597 = vunpack.c.l.b16 %v1477
      %v1598 = vunpack.c.l.b16 %v1478
      %v1599 = vunpack.c.l.b16 %v1479
      %v1600 = vunpack.c.l.b16 %v1480
      %v1601 = vunpack.c.l.b16 %v1481
      %v1602 = vunpack.c.l.b16 %v1482
      %v1603 = vunpack.c.l.b16 %v1483
      %v1604 = vunpack.c.l.b16 %v1484
      %v1605 = vunpack.c.l.b16 %v1485
      %v1606 = vunpack.c.l.b16 %v1486
      %v1607 = vunpack.c.l.b16 %v1487
      %v1608 = vunpack.c.l.b16 %v1488
      %v1609 = vunpack.c.l.b16 %v1489
      %v1610 = vunpack.c.l.b16 %v1490
      %v1611 = vunpack.c.l.b16 %v1491
      %v1612 = vunpack.c.l.b16 %v1492
      %v1613 = vunpack.c.l.b16 %v1493
      %v1614 = vunpack.c.l.b16 %v1494
      %v1615 = vunpack.c.l.b16 %v1495
      %v1616 = vunpack.c.l.b16 %v1496
      %v1617 = vunpack.c.l.b16 %v1497
      %v1618 = vunpack.c.l.b16 %v1498
      %v1619 = vunpack.c.l.b16 %v1499
      %v1620 = vunpack.c.l.b16 %v1500
      %v1621 = vunpack.c.l.b16 %v1501
      %v1622 = vunpack.c.l.b16 %v1502
      %v1623 = vunpack.c.l.b16 %v1503
      %v1624 = vunpack.c.l.b16 %v1504
      %v1625 = vunpack.c.l.b16 %v1505
      %v1626 = vunpack.c.l.b16 %v1506
      %v1627 = vunpack.c.l.b16 %v1507
      %v1628 = vunpack.c.l.b16 %v1508
      %v1629 = vunpack.c.l.b16 %v1509
      %v1630 = vunpack.c.l.b16 %v1510
      %v1631 = vunpack.c.l.b16 %v1511
      %v1632 = vunpack.c.l.b16 %v1512
      %v1633 = vunpack.c.l.b16 %v1513
      %v1634 = vunpack.c.l.b16 %v1514
      %v1635 = vpack.c.b16 %v1588, %v1587
      %v1636 = vpack.c.b16 %v1590, %v1589
      %v1637 = vpack.c.b16 %v1592, %v1591
      %v1638 = vpack.c.b16 %v1594, %v1593
      %v1639 = vpack.c.b16 %v1596, %v1595
      %v1640 = vpack.c.b16 %v1598, %v1597
      %v1641 = vpack.c.b16 %v1600, %v1599
      %v1642 = vpack.c.b16 %v1602, %v1601
      %v1643 = vpack.c.b16 %v1604, %v1603
      %v1644 = vpack.c.b16 %v1606, %v1605
      %v1645 = vpack.c.b16 %v1608, %v1607
      %v1646 = vpack.c.b16 %v1610, %v1609
      %v1647 = vpack.c.b16 %v1612, %v1611
      %v1648 = vpack.c.b16 %v1614, %v1613
      %v1649 = vpack.c.b16 %v1616, %v1615
      %v1650 = vpack.c.b16 %v1618, %v1617
      %v1651 = vpack.c.b16 %v1620, %v1619
      %v1652 = vpack.c.b16 %v1622, %v1621
      %v1653 = vpack.c.b16 %v1624, %v1623
      %v1654 = vpack.c.b16 %v1626, %v1625
      %v1655 = vpack.c.b16 %v1628, %v1627
      %v1656 = vpack.c.b16 %v1630, %v1629
      %v1657 = vpack.c.b16 %v1632, %v1631
      %v1658 = vpack.c.b16 %v1634, %v1633
      %1683 = vmatprep.subr.bf16.mxu0 0
      %1684 = vmatpush1.bf16.msra.mxu0 %v1642
      %1685 = vmatprep.subr.bf16.mxu0 0
      %1686 = vmatpush1.bf16.msra.mxu0 %v1641
      %1687 = vmatprep.subr.bf16.mxu0 0
      %1688 = vmatpush1.bf16.msra.mxu0 %v1640
      %1689 = vmatprep.subr.bf16.mxu0 0
      %1690 = vmatpush1.bf16.msra.mxu0 %v1639
      %1691 = vmatprep.subr.bf16.mxu0 0
      %1692 = vmatpush1.bf16.msra.mxu0 %v1638
      %1693 = vmatprep.subr.bf16.mxu0 0
      %1694 = vmatpush1.bf16.msra.mxu0 %v1637
      %1695 = vmatprep.subr.bf16.mxu0 0
      %1696 = vmatpush1.bf16.msra.mxu0 %v1636
      %1697 = vmatprep.subr.bf16.mxu0 0
      %1698 = vmatpush1.bf16.msra.mxu0 %v1635
      %1699 = vmatprep.subr.bf16.mxu0 0
      %1700 = vmatpush2.bf16.msra.mxu0 %v1650
      %1701 = vmatprep.subr.bf16.mxu0 0
      %1702 = vmatpush2.bf16.msra.mxu0 %v1649
      %1703 = vmatprep.subr.bf16.mxu0 0
      %1704 = vmatpush2.bf16.msra.mxu0 %v1648
      %1705 = vmatprep.subr.bf16.mxu0 0
      %1706 = vmatpush2.bf16.msra.mxu0 %v1647
      %1707 = vmatprep.subr.bf16.mxu0 0
      %1708 = vmatpush2.bf16.msra.mxu0 %v1646
      %1709 = vmatprep.subr.bf16.mxu0 0
      %1710 = vmatpush2.bf16.msra.mxu0 %v1645
      %1711 = vmatprep.subr.bf16.mxu0 0
      %1712 = vmatpush2.bf16.msra.mxu0 %v1644
      %1713 = vmatprep.subr.bf16.mxu0 0
      %1714 = vmatpush2.bf16.msra.mxu0 %v1643
      %1715 = vmatprep.mubr.bf16.mxu0 %v1516
      %1716 = vmatmul.mubr.bf16.gmra.mxu0 %v1515
      %v1717 = vpop.f32.mrf.mxu0
      %v1718 = vadd.f32 0.0, %v1717
      %v1719 = vpop.f32.mrf.mxu0
      %v1720 = vpop.f32.mrf.mxu0
      %v1721 = vadd.f32 0.0, %v1720
      %v1722 = vpop.f32.mrf.mxu0
      %1723 = vmatprep.mubr.bf16.mxu0 %v1519
      %1724 = vmatmul.mubr.bf16.gmra.mxu0 %v1518
      %v1725 = vpop.f32.mrf.mxu0
      %v1726 = vadd.f32 0.0, %v1725
      %v1727 = vpop.f32.mrf.mxu0
      %v1728 = vpop.f32.mrf.mxu0
      %v1729 = vadd.f32 0.0, %v1728
      %v1730 = vpop.f32.mrf.mxu0
      %1731 = vmatprep.mubr.bf16.mxu0 %v1522
      %1732 = vmatmul.mubr.bf16.gmra.mxu0 %v1521
      %v1733 = vpop.f32.mrf.mxu0
      %v1734 = vadd.f32 0.0, %v1733
      %v1735 = vpop.f32.mrf.mxu0
      %v1736 = vpop.f32.mrf.mxu0
      %v1737 = vadd.f32 0.0, %v1736
      %v1738 = vpop.f32.mrf.mxu0
      %1739 = vmatprep.mubr.bf16.mxu0 %v1525
      %1740 = vmatmul.mubr.bf16.gmra.mxu0 %v1524
      %v1741 = vpop.f32.mrf.mxu0
      %v1742 = vadd.f32 0.0, %v1741
      %v1743 = vpop.f32.mrf.mxu0
      %v1744 = vpop.f32.mrf.mxu0
      %v1745 = vadd.f32 0.0, %v1744
      %v1746 = vpop.f32.mrf.mxu0
      %1747 = vdwg.mxu0
      %1748 = vmatprep.subr.bf16.mxu0 0
      %1749 = vmatpush1.bf16.msra.mxu0 %v1658
      %1750 = vmatprep.subr.bf16.mxu0 0
      %1751 = vmatpush1.bf16.msra.mxu0 %v1657
      %1752 = vmatprep.subr.bf16.mxu0 0
      %1753 = vmatpush1.bf16.msra.mxu0 %v1656
      %1754 = vmatprep.subr.bf16.mxu0 0
      %1755 = vmatpush1.bf16.msra.mxu0 %v1655
      %1756 = vmatprep.subr.bf16.mxu0 0
      %1757 = vmatpush1.bf16.msra.mxu0 %v1654
      %1758 = vmatprep.subr.bf16.mxu0 0
      %1759 = vmatpush1.bf16.msra.mxu0 %v1653
      %1760 = vmatprep.subr.bf16.mxu0 0
      %1761 = vmatpush1.bf16.msra.mxu0 %v1652
      %1762 = vmatprep.subr.bf16.mxu0 0
      %1763 = vmatpush1.bf16.msra.mxu0 %v1651
      %1764 = vmatprep.subr.bf16.mxu0 0
      %1765 = vmatpush2.bf16.msra.mxu0 0
      %1766 = vmatprep.subr.bf16.mxu0 0
      %1767 = vmatpush2.bf16.msra.mxu0 0
      %1768 = vmatprep.subr.bf16.mxu0 0
      %1769 = vmatpush2.bf16.msra.mxu0 0
      %1770 = vmatprep.subr.bf16.mxu0 0
      %1771 = vmatpush2.bf16.msra.mxu0 0
      %1772 = vmatprep.subr.bf16.mxu0 0
      %1773 = vmatpush2.bf16.msra.mxu0 0
      %1774 = vmatprep.subr.bf16.mxu0 0
      %1775 = vmatpush2.bf16.msra.mxu0 0
      %1776 = vmatprep.subr.bf16.mxu0 0
      %1777 = vmatpush2.bf16.msra.mxu0 0
      %1778 = vmatprep.subr.bf16.mxu0 0
      %1779 = vmatpush2.bf16.msra.mxu0 0
      %1780 = vmatprep.mubr.bf16.mxu0 0
      %1781 = vmatmul.mubr.bf16.gmra.mxu0 %v1517
      %v1782 = vpop.f32.mrf.mxu0
      %v1783 = vadd.f32 %v1718, %v1782
      %v1784 = vpop.f32.mrf.mxu0
      %v1785 = vpop.f32.mrf.mxu0
      %v1786 = vadd.f32 %v1721, %v1785
      %v1787 = vpop.f32.mrf.mxu0
      %1788 = vmatprep.mubr.bf16.mxu0 0
      %1789 = vmatmul.mubr.bf16.gmra.mxu0 %v1520
      %v1790 = vpop.f32.mrf.mxu0
      %v1791 = vadd.f32 %v1726, %v1790
      %v1792 = vpop.f32.mrf.mxu0
      %v1793 = vpop.f32.mrf.mxu0
      %v1794 = vadd.f32 %v1729, %v1793
      %v1795 = vpop.f32.mrf.mxu0
      %1796 = vmatprep.mubr.bf16.mxu0 0
      %1797 = vmatmul.mubr.bf16.gmra.mxu0 %v1523
      %v1798 = vpop.f32.mrf.mxu0
      %v1799 = vadd.f32 %v1734, %v1798
      %v1800 = vpop.f32.mrf.mxu0
      %v1801 = vpop.f32.mrf.mxu0
      %v1802 = vadd.f32 %v1737, %v1801
      %v1803 = vpop.f32.mrf.mxu0
      %1804 = vmatprep.mubr.bf16.mxu0 0
      %1805 = vmatmul.mubr.bf16.gmra.mxu0 %v1526
      %v1806 = vpop.f32.mrf.mxu0
      %v1807 = vadd.f32 %v1742, %v1806
      %v1808 = vpop.f32.mrf.mxu0
      %v1809 = vpop.f32.mrf.mxu0
      %v1810 = vadd.f32 %v1745, %v1809
      %v1811 = vpop.f32.mrf.mxu0
      %1812 = vdwg.mxu0
      %1813 = vst [vmem:[#allocation3] sm:$0xff] %v1783
      %1814 = vst [vmem:[#allocation3 + $0x8] sm:$0xff] %v1786
      %1815 = vst [vmem:[#allocation3 + $0x10] sm:$0xff] %v1791
      %1816 = vst [vmem:[#allocation3 + $0x18] sm:$0xff] %v1794
      %1817 = vst [vmem:[#allocation3 + $0x20] sm:$0xff] %v1799
      %1818 = vst [vmem:[#allocation3 + $0x28] sm:$0xff] %v1802
      %1819 = vst [vmem:[#allocation3 + $0x30] sm:$0xff] %v1807
      %1820 = vst [vmem:[#allocation3 + $0x38] sm:$0xff] %v1810
      %v1821 = vunpack.c.l.b16 %v1403
      %v1822 = vunpack.c.l.b16 %v1449
      %s1823 = scalar_lea.vmem %s5, 192
      %v1824 = vld [vmem:[%s1823] sm:$0xf]
      %v1825 = vld [vmem:[%s1823 + $0x4] sm:$0xf]
      %v1826 = vld [vmem:[%s1823 + $0x8] sm:$0xf]
      %v1827 = vld [vmem:[%s1823 + $0xc] sm:$0xf]
      %v1828 = vld [vmem:[%s1823 + $0x10] sm:$0xf]
      %v1829 = vld [vmem:[%s1823 + $0x14] sm:$0xf]
      %v1830 = vld [vmem:[%s1823 + $0x18] sm:$0xf]
      %v1831 = vld [vmem:[%s1823 + $0x1c] sm:$0xf]
      %v1832 = vld [vmem:[%s1823 + $0x20] sm:$0xf]
      %v1833 = vld [vmem:[%s1823 + $0x24] sm:$0xf]
      %v1834 = vld [vmem:[%s1823 + $0x28] sm:$0xf]
      %v1835 = vld [vmem:[%s1823 + $0x2c] sm:$0xf]
      %v1836 = vld [vmem:[%s1823 + $0x30] sm:$0xf]
      %v1837 = vld [vmem:[%s1823 + $0x34] sm:$0xf]
      %v1838 = vld [vmem:[%s1823 + $0x38] sm:$0xf]
      %v1839 = vld [vmem:[%s1823 + $0x3c] sm:$0xf]
      %v1840 = vld [vmem:[%s1823 + $0x40] sm:$0xf]
      %v1841 = vld [vmem:[%s1823 + $0x44] sm:$0xf]
      %v1842 = vld [vmem:[%s1823 + $0x48] sm:$0xf]
      %v1843 = vld [vmem:[%s1823 + $0x4c] sm:$0xf]
      %v1844 = vld [vmem:[%s1823 + $0x50] sm:$0xf]
      %v1845 = vld [vmem:[%s1823 + $0x54] sm:$0xf]
      %v1846 = vld [vmem:[%s1823 + $0x58] sm:$0xf]
      %v1847 = vld [vmem:[%s1823 + $0x5c] sm:$0xf]
      %v1848 = vld [vmem:[%s1823 + $0x60] sm:$0xf]
      %v1849 = vld [vmem:[%s1823 + $0x64] sm:$0xf]
      %v1850 = vld [vmem:[%s1823 + $0x68] sm:$0xf]
      %v1851 = vld [vmem:[%s1823 + $0x6c] sm:$0xf]
      %v1852 = vld [vmem:[%s1823 + $0x70] sm:$0xf]
      %v1853 = vld [vmem:[%s1823 + $0x74] sm:$0xf]
      %v1854 = vld [vmem:[%s1823 + $0x78] sm:$0xf]
      %v1855 = vld [vmem:[%s1823 + $0x7c] sm:$0xf]
      %v1856 = vld [vmem:[%s1823 + $0x80] sm:$0xf]
      %v1857 = vld [vmem:[%s1823 + $0x84] sm:$0xf]
      %v1858 = vld [vmem:[%s1823 + $0x88] sm:$0xf]
      %v1859 = vld [vmem:[%s1823 + $0x8c] sm:$0xf]
      %v1860 = vld [vmem:[%s1823 + $0x90] sm:$0xf]
      %v1861 = vld [vmem:[%s1823 + $0x94] sm:$0xf]
      %v1862 = vld [vmem:[%s1823 + $0x98] sm:$0xf]
      %v1863 = vld [vmem:[%s1823 + $0x9c] sm:$0xf]
      %v1864 = vld [vmem:[%s1823 + $0xa0] sm:$0xf]
      %v1865 = vld [vmem:[%s1823 + $0xa4] sm:$0xf]
      %v1866 = vld [vmem:[%s1823 + $0xa8] sm:$0xf]
      %v1867 = vld [vmem:[%s1823 + $0xac] sm:$0xf]
      %v1868 = vld [vmem:[%s1823 + $0xb0] sm:$0xf]
      %v1869 = vld [vmem:[%s1823 + $0xb4] sm:$0xf]
      %v1870 = vld [vmem:[%s1823 + $0xb8] sm:$0xf]
      %v1871 = vld [vmem:[%s1823 + $0xbc] sm:$0xf]
      %v1872 = vpack.c.b16 %v1315, %v1313
      %v1873 = vpack.c.b16 %v1455, %v1453
      %v1874 = vpack.c.b16 %v1456, %v1454
      %v1875 = vpack.c.b16 %v1319, %v1317
      %v1876 = vpack.c.b16 %v1459, %v1457
      %v1877 = vpack.c.b16 %v1460, %v1458
      %v1878 = vpack.c.b16 %v1323, %v1321
      %v1879 = vpack.c.b16 %v1463, %v1461
      %v1880 = vpack.c.b16 %v1464, %v1462
      %v1881 = vpack.c.b16 %v1327, %v1325
      %v1882 = vpack.c.b16 %v1821, %v1465
      %v1883 = vpack.c.b16 %v1822, %v1466
      %v1944 = vunpack.c.l.b16 %v1824
      %v1945 = vunpack.c.l.b16 %v1825
      %v1946 = vunpack.c.l.b16 %v1826
      %v1947 = vunpack.c.l.b16 %v1827
      %v1948 = vunpack.c.l.b16 %v1828
      %v1949 = vunpack.c.l.b16 %v1829
      %v1950 = vunpack.c.l.b16 %v1830
      %v1951 = vunpack.c.l.b16 %v1831
      %v1952 = vunpack.c.l.b16 %v1832
      %v1953 = vunpack.c.l.b16 %v1833
      %v1954 = vunpack.c.l.b16 %v1834
      %v1955 = vunpack.c.l.b16 %v1835
      %v1956 = vunpack.c.l.b16 %v1836
      %v1957 = vunpack.c.l.b16 %v1837
      %v1958 = vunpack.c.l.b16 %v1838
      %v1959 = vunpack.c.l.b16 %v1839
      %v1960 = vunpack.c.l.b16 %v1840
      %v1961 = vunpack.c.l.b16 %v1841
      %v1962 = vunpack.c.l.b16 %v1842
      %v1963 = vunpack.c.l.b16 %v1843
      %v1964 = vunpack.c.l.b16 %v1844
      %v1965 = vunpack.c.l.b16 %v1845
      %v1966 = vunpack.c.l.b16 %v1846
      %v1967 = vunpack.c.l.b16 %v1847
      %v1968 = vunpack.c.l.b16 %v1848
      %v1969 = vunpack.c.l.b16 %v1849
      %v1970 = vunpack.c.l.b16 %v1850
      %v1971 = vunpack.c.l.b16 %v1851
      %v1972 = vunpack.c.l.b16 %v1852
      %v1973 = vunpack.c.l.b16 %v1853
      %v1974 = vunpack.c.l.b16 %v1854
      %v1975 = vunpack.c.l.b16 %v1855
      %v1976 = vunpack.c.l.b16 %v1856
      %v1977 = vunpack.c.l.b16 %v1857
      %v1978 = vunpack.c.l.b16 %v1858
      %v1979 = vunpack.c.l.b16 %v1859
      %v1980 = vunpack.c.l.b16 %v1860
      %v1981 = vunpack.c.l.b16 %v1861
      %v1982 = vunpack.c.l.b16 %v1862
      %v1983 = vunpack.c.l.b16 %v1863
      %v1984 = vunpack.c.l.b16 %v1864
      %v1985 = vunpack.c.l.b16 %v1865
      %v1986 = vunpack.c.l.b16 %v1866
      %v1987 = vunpack.c.l.b16 %v1867
      %v1988 = vunpack.c.l.b16 %v1868
      %v1989 = vunpack.c.l.b16 %v1869
      %v1990 = vunpack.c.l.b16 %v1870
      %v1991 = vunpack.c.l.b16 %v1871
      %v1992 = vpack.c.b16 %v1945, %v1944
      %v1993 = vpack.c.b16 %v1947, %v1946
      %v1994 = vpack.c.b16 %v1949, %v1948
      %v1995 = vpack.c.b16 %v1951, %v1950
      %v1996 = vpack.c.b16 %v1953, %v1952
      %v1997 = vpack.c.b16 %v1955, %v1954
      %v1998 = vpack.c.b16 %v1957, %v1956
      %v1999 = vpack.c.b16 %v1959, %v1958
      %v2000 = vpack.c.b16 %v1961, %v1960
      %v2001 = vpack.c.b16 %v1963, %v1962
      %v2002 = vpack.c.b16 %v1965, %v1964
      %v2003 = vpack.c.b16 %v1967, %v1966
      %v2004 = vpack.c.b16 %v1969, %v1968
      %v2005 = vpack.c.b16 %v1971, %v1970
      %v2006 = vpack.c.b16 %v1973, %v1972
      %v2007 = vpack.c.b16 %v1975, %v1974
      %v2008 = vpack.c.b16 %v1977, %v1976
      %v2009 = vpack.c.b16 %v1979, %v1978
      %v2010 = vpack.c.b16 %v1981, %v1980
      %v2011 = vpack.c.b16 %v1983, %v1982
      %v2012 = vpack.c.b16 %v1985, %v1984
      %v2013 = vpack.c.b16 %v1987, %v1986
      %v2014 = vpack.c.b16 %v1989, %v1988
      %v2015 = vpack.c.b16 %v1991, %v1990
      %2040 = vmatprep.subr.bf16.mxu0 0
      %2041 = vmatpush1.bf16.msra.mxu0 %v1999
      %2042 = vmatprep.subr.bf16.mxu0 0
      %2043 = vmatpush1.bf16.msra.mxu0 %v1998
      %2044 = vmatprep.subr.bf16.mxu0 0
      %2045 = vmatpush1.bf16.msra.mxu0 %v1997
      %2046 = vmatprep.subr.bf16.mxu0 0
      %2047 = vmatpush1.bf16.msra.mxu0 %v1996
      %2048 = vmatprep.subr.bf16.mxu0 0
      %2049 = vmatpush1.bf16.msra.mxu0 %v1995
      %2050 = vmatprep.subr.bf16.mxu0 0
      %2051 = vmatpush1.bf16.msra.mxu0 %v1994
      %2052 = vmatprep.subr.bf16.mxu0 0
      %2053 = vmatpush1.bf16.msra.mxu0 %v1993
      %2054 = vmatprep.subr.bf16.mxu0 0
      %2055 = vmatpush1.bf16.msra.mxu0 %v1992
      %2056 = vmatprep.subr.bf16.mxu0 0
      %2057 = vmatpush2.bf16.msra.mxu0 %v2007
      %2058 = vmatprep.subr.bf16.mxu0 0
      %2059 = vmatpush2.bf16.msra.mxu0 %v2006
      %2060 = vmatprep.subr.bf16.mxu0 0
      %2061 = vmatpush2.bf16.msra.mxu0 %v2005
      %2062 = vmatprep.subr.bf16.mxu0 0
      %2063 = vmatpush2.bf16.msra.mxu0 %v2004
      %2064 = vmatprep.subr.bf16.mxu0 0
      %2065 = vmatpush2.bf16.msra.mxu0 %v2003
      %2066 = vmatprep.subr.bf16.mxu0 0
      %2067 = vmatpush2.bf16.msra.mxu0 %v2002
      %2068 = vmatprep.subr.bf16.mxu0 0
      %2069 = vmatpush2.bf16.msra.mxu0 %v2001
      %2070 = vmatprep.subr.bf16.mxu0 0
      %2071 = vmatpush2.bf16.msra.mxu0 %v2000
      %2072 = vmatprep.mubr.bf16.mxu0 %v1873
      %2073 = vmatmul.mubr.bf16.gmra.mxu0 %v1872
      %v2074 = vpop.f32.mrf.mxu0
      %v2075 = vadd.f32 0.0, %v2074
      %v2076 = vpop.f32.mrf.mxu0
      %v2077 = vpop.f32.mrf.mxu0
      %v2078 = vadd.f32 0.0, %v2077
      %v2079 = vpop.f32.mrf.mxu0
      %2080 = vmatprep.mubr.bf16.mxu0 %v1876
      %2081 = vmatmul.mubr.bf16.gmra.mxu0 %v1875
      %v2082 = vpop.f32.mrf.mxu0
      %v2083 = vadd.f32 0.0, %v2082
      %v2084 = vpop.f32.mrf.mxu0
      %v2085 = vpop.f32.mrf.mxu0
      %v2086 = vadd.f32 0.0, %v2085
      %v2087 = vpop.f32.mrf.mxu0
      %2088 = vmatprep.mubr.bf16.mxu0 %v1879
      %2089 = vmatmul.mubr.bf16.gmra.mxu0 %v1878
      %v2090 = vpop.f32.mrf.mxu0
      %v2091 = vadd.f32 0.0, %v2090
      %v2092 = vpop.f32.mrf.mxu0
      %v2093 = vpop.f32.mrf.mxu0
      %v2094 = vadd.f32 0.0, %v2093
      %v2095 = vpop.f32.mrf.mxu0
      %2096 = vmatprep.mubr.bf16.mxu0 %v1882
      %2097 = vmatmul.mubr.bf16.gmra.mxu0 %v1881
      %v2098 = vpop.f32.mrf.mxu0
      %v2099 = vadd.f32 0.0, %v2098
      %v2100 = vpop.f32.mrf.mxu0
      %v2101 = vpop.f32.mrf.mxu0
      %v2102 = vadd.f32 0.0, %v2101
      %v2103 = vpop.f32.mrf.mxu0
      %2104 = vdwg.mxu0
      %2105 = vmatprep.subr.bf16.mxu0 0
      %2106 = vmatpush1.bf16.msra.mxu0 %v2015
      %2107 = vmatprep.subr.bf16.mxu0 0
      %2108 = vmatpush1.bf16.msra.mxu0 %v2014
      %2109 = vmatprep.subr.bf16.mxu0 0
      %2110 = vmatpush1.bf16.msra.mxu0 %v2013
      %2111 = vmatprep.subr.bf16.mxu0 0
      %2112 = vmatpush1.bf16.msra.mxu0 %v2012
      %2113 = vmatprep.subr.bf16.mxu0 0
      %2114 = vmatpush1.bf16.msra.mxu0 %v2011
      %2115 = vmatprep.subr.bf16.mxu0 0
      %2116 = vmatpush1.bf16.msra.mxu0 %v2010
      %2117 = vmatprep.subr.bf16.mxu0 0
      %2118 = vmatpush1.bf16.msra.mxu0 %v2009
      %2119 = vmatprep.subr.bf16.mxu0 0
      %2120 = vmatpush1.bf16.msra.mxu0 %v2008
      %2121 = vmatprep.subr.bf16.mxu0 0
      %2122 = vmatpush2.bf16.msra.mxu0 0
      %2123 = vmatprep.subr.bf16.mxu0 0
      %2124 = vmatpush2.bf16.msra.mxu0 0
      %2125 = vmatprep.subr.bf16.mxu0 0
      %2126 = vmatpush2.bf16.msra.mxu0 0
      %2127 = vmatprep.subr.bf16.mxu0 0
      %2128 = vmatpush2.bf16.msra.mxu0 0
      %2129 = vmatprep.subr.bf16.mxu0 0
      %2130 = vmatpush2.bf16.msra.mxu0 0
      %2131 = vmatprep.subr.bf16.mxu0 0
      %2132 = vmatpush2.bf16.msra.mxu0 0
      %2133 = vmatprep.subr.bf16.mxu0 0
      %2134 = vmatpush2.bf16.msra.mxu0 0
      %2135 = vmatprep.subr.bf16.mxu0 0
      %2136 = vmatpush2.bf16.msra.mxu0 0
      %2137 = vmatprep.mubr.bf16.mxu0 0
      %2138 = vmatmul.mubr.bf16.gmra.mxu0 %v1874
      %v2139 = vpop.f32.mrf.mxu0
      %v2140 = vadd.f32 %v2075, %v2139
      %v2141 = vpop.f32.mrf.mxu0
      %v2142 = vpop.f32.mrf.mxu0
      %v2143 = vadd.f32 %v2078, %v2142
      %v2144 = vpop.f32.mrf.mxu0
      %2145 = vmatprep.mubr.bf16.mxu0 0
      %2146 = vmatmul.mubr.bf16.gmra.mxu0 %v1877
      %v2147 = vpop.f32.mrf.mxu0
      %v2148 = vadd.f32 %v2083, %v2147
      %v2149 = vpop.f32.mrf.mxu0
      %v2150 = vpop.f32.mrf.mxu0
      %v2151 = vadd.f32 %v2086, %v2150
      %v2152 = vpop.f32.mrf.mxu0
      %2153 = vmatprep.mubr.bf16.mxu0 0
      %2154 = vmatmul.mubr.bf16.gmra.mxu0 %v1880
      %v2155 = vpop.f32.mrf.mxu0
      %v2156 = vadd.f32 %v2091, %v2155
      %v2157 = vpop.f32.mrf.mxu0
      %v2158 = vpop.f32.mrf.mxu0
      %v2159 = vadd.f32 %v2094, %v2158
      %v2160 = vpop.f32.mrf.mxu0
      %2161 = vmatprep.mubr.bf16.mxu0 0
      %2162 = vmatmul.mubr.bf16.gmra.mxu0 %v1883
      %v2163 = vpop.f32.mrf.mxu0
      %v2164 = vadd.f32 %v2099, %v2163
      %v2165 = vpop.f32.mrf.mxu0
      %v2166 = vpop.f32.mrf.mxu0
      %v2167 = vadd.f32 %v2102, %v2166
      %v2168 = vpop.f32.mrf.mxu0
      %2169 = vdwg.mxu0
      %v2170 = vld [vmem:[#allocation3] sm:$0xff]
      %v2171 = vld [vmem:[#allocation3 + $0x8] sm:$0xff]
      %v2172 = vld [vmem:[#allocation3 + $0x10] sm:$0xff]
      %v2173 = vld [vmem:[#allocation3 + $0x18] sm:$0xff]
      %v2174 = vld [vmem:[#allocation3 + $0x20] sm:$0xff]
      %v2175 = vld [vmem:[#allocation3 + $0x28] sm:$0xff]
      %v2176 = vld [vmem:[#allocation3 + $0x30] sm:$0xff]
      %v2177 = vld [vmem:[#allocation3 + $0x38] sm:$0xff]
      %v2178 = vadd.f32 %v2170, %v2140
      %v2179 = vadd.f32 %v2171, %v2143
      %v2180 = vadd.f32 %v2172, %v2148
      %v2181 = vadd.f32 %v2173, %v2151
      %v2182 = vadd.f32 %v2174, %v2156
      %v2183 = vadd.f32 %v2175, %v2159
      %v2184 = vadd.f32 %v2176, %v2164
      %v2185 = vadd.f32 %v2177, %v2167
      %2186 = vst [vmem:[#allocation3] sm:$0xff] %v2178
      %2187 = vst [vmem:[#allocation3 + $0x8] sm:$0xff] %v2179
      %2188 = vst [vmem:[#allocation3 + $0x10] sm:$0xff] %v2180
      %2189 = vst [vmem:[#allocation3 + $0x18] sm:$0xff] %v2181
      %2190 = vst [vmem:[#allocation3 + $0x20] sm:$0xff] %v2182
      %2191 = vst [vmem:[#allocation3 + $0x28] sm:$0xff] %v2183
      %2192 = vst [vmem:[#allocation3 + $0x30] sm:$0xff] %v2184
      %2193 = vst [vmem:[#allocation3 + $0x38] sm:$0xff] %v2185
      %v2194 = vunpack.c.l.b16 %v1410
      %v2195 = vunpack.c.l.b16 %v1450
      %s2196 = scalar_lea.vmem %s5, 384
      %v2197 = vld [vmem:[%s2196] sm:$0xf]
      %v2198 = vld [vmem:[%s2196 + $0x4] sm:$0xf]
      %v2199 = vld [vmem:[%s2196 + $0x8] sm:$0xf]
      %v2200 = vld [vmem:[%s2196 + $0xc] sm:$0xf]
      %v2201 = vld [vmem:[%s2196 + $0x10] sm:$0xf]
      %v2202 = vld [vmem:[%s2196 + $0x14] sm:$0xf]
      %v2203 = vld [vmem:[%s2196 + $0x18] sm:$0xf]
      %v2204 = vld [vmem:[%s2196 + $0x1c] sm:$0xf]
      %v2205 = vld [vmem:[%s2196 + $0x20] sm:$0xf]
      %v2206 = vld [vmem:[%s2196 + $0x24] sm:$0xf]
      %v2207 = vld [vmem:[%s2196 + $0x28] sm:$0xf]
      %v2208 = vld [vmem:[%s2196 + $0x2c] sm:$0xf]
      %v2209 = vld [vmem:[%s2196 + $0x30] sm:$0xf]
      %v2210 = vld [vmem:[%s2196 + $0x34] sm:$0xf]
      %v2211 = vld [vmem:[%s2196 + $0x38] sm:$0xf]
      %v2212 = vld [vmem:[%s2196 + $0x3c] sm:$0xf]
      %v2213 = vld [vmem:[%s2196 + $0x40] sm:$0xf]
      %v2214 = vld [vmem:[%s2196 + $0x44] sm:$0xf]
      %v2215 = vld [vmem:[%s2196 + $0x48] sm:$0xf]
      %v2216 = vld [vmem:[%s2196 + $0x4c] sm:$0xf]
      %v2217 = vld [vmem:[%s2196 + $0x50] sm:$0xf]
      %v2218 = vld [vmem:[%s2196 + $0x54] sm:$0xf]
      %v2219 = vld [vmem:[%s2196 + $0x58] sm:$0xf]
      %v2220 = vld [vmem:[%s2196 + $0x5c] sm:$0xf]
      %v2221 = vld [vmem:[%s2196 + $0x60] sm:$0xf]
      %v2222 = vld [vmem:[%s2196 + $0x64] sm:$0xf]
      %v2223 = vld [vmem:[%s2196 + $0x68] sm:$0xf]
      %v2224 = vld [vmem:[%s2196 + $0x6c] sm:$0xf]
      %v2225 = vld [vmem:[%s2196 + $0x70] sm:$0xf]
      %v2226 = vld [vmem:[%s2196 + $0x74] sm:$0xf]
      %v2227 = vld [vmem:[%s2196 + $0x78] sm:$0xf]
      %v2228 = vld [vmem:[%s2196 + $0x7c] sm:$0xf]
      %v2229 = vld [vmem:[%s2196 + $0x80] sm:$0xf]
      %v2230 = vld [vmem:[%s2196 + $0x84] sm:$0xf]
      %v2231 = vld [vmem:[%s2196 + $0x88] sm:$0xf]
      %v2232 = vld [vmem:[%s2196 + $0x8c] sm:$0xf]
      %v2233 = vld [vmem:[%s2196 + $0x90] sm:$0xf]
      %v2234 = vld [vmem:[%s2196 + $0x94] sm:$0xf]
      %v2235 = vld [vmem:[%s2196 + $0x98] sm:$0xf]
      %v2236 = vld [vmem:[%s2196 + $0x9c] sm:$0xf]
      %v2237 = vld [vmem:[%s2196 + $0xa0] sm:$0xf]
      %v2238 = vld [vmem:[%s2196 + $0xa4] sm:$0xf]
      %v2239 = vld [vmem:[%s2196 + $0xa8] sm:$0xf]
      %v2240 = vld [vmem:[%s2196 + $0xac] sm:$0xf]
      %v2241 = vld [vmem:[%s2196 + $0xb0] sm:$0xf]
      %v2242 = vld [vmem:[%s2196 + $0xb4] sm:$0xf]
      %v2243 = vld [vmem:[%s2196 + $0xb8] sm:$0xf]
      %v2244 = vld [vmem:[%s2196 + $0xbc] sm:$0xf]
      %v2245 = vpack.c.b16 %v1329, %v1327
      %v2246 = vpack.c.b16 %v2194, %v1821
      %v2247 = vpack.c.b16 %v2195, %v1822
      %v2299 = vunpack.c.l.b16 %v2197
      %v2300 = vunpack.c.l.b16 %v2198
      %v2301 = vunpack.c.l.b16 %v2199
      %v2302 = vunpack.c.l.b16 %v2200
      %v2303 = vunpack.c.l.b16 %v2201
      %v2304 = vunpack.c.l.b16 %v2202
      %v2305 = vunpack.c.l.b16 %v2203
      %v2306 = vunpack.c.l.b16 %v2204
      %v2307 = vunpack.c.l.b16 %v2205
      %v2308 = vunpack.c.l.b16 %v2206
      %v2309 = vunpack.c.l.b16 %v2207
      %v2310 = vunpack.c.l.b16 %v2208
      %v2311 = vunpack.c.l.b16 %v2209
      %v2312 = vunpack.c.l.b16 %v2210
      %v2313 = vunpack.c.l.b16 %v2211
      %v2314 = vunpack.c.l.b16 %v2212
      %v2315 = vunpack.c.l.b16 %v2213
      %v2316 = vunpack.c.l.b16 %v2214
      %v2317 = vunpack.c.l.b16 %v2215
      %v2318 = vunpack.c.l.b16 %v2216
      %v2319 = vunpack.c.l.b16 %v2217
      %v2320 = vunpack.c.l.b16 %v2218
      %v2321 = vunpack.c.l.b16 %v2219
      %v2322 = vunpack.c.l.b16 %v2220
      %v2323 = vunpack.c.l.b16 %v2221
      %v2324 = vunpack.c.l.b16 %v2222
      %v2325 = vunpack.c.l.b16 %v2223
      %v2326 = vunpack.c.l.b16 %v2224
      %v2327 = vunpack.c.l.b16 %v2225
      %v2328 = vunpack.c.l.b16 %v2226
      %v2329 = vunpack.c.l.b16 %v2227
      %v2330 = vunpack.c.l.b16 %v2228
      %v2331 = vunpack.c.l.b16 %v2229
      %v2332 = vunpack.c.l.b16 %v2230
      %v2333 = vunpack.c.l.b16 %v2231
      %v2334 = vunpack.c.l.b16 %v2232
      %v2335 = vunpack.c.l.b16 %v2233
      %v2336 = vunpack.c.l.b16 %v2234
      %v2337 = vunpack.c.l.b16 %v2235
      %v2338 = vunpack.c.l.b16 %v2236
      %v2339 = vunpack.c.l.b16 %v2237
      %v2340 = vunpack.c.l.b16 %v2238
      %v2341 = vunpack.c.l.b16 %v2239
      %v2342 = vunpack.c.l.b16 %v2240
      %v2343 = vunpack.c.l.b16 %v2241
      %v2344 = vunpack.c.l.b16 %v2242
      %v2345 = vunpack.c.l.b16 %v2243
      %v2346 = vunpack.c.l.b16 %v2244
      %v2347 = vpack.c.b16 %v2300, %v2299
      %v2348 = vpack.c.b16 %v2302, %v2301
      %v2349 = vpack.c.b16 %v2304, %v2303
      %v2350 = vpack.c.b16 %v2306, %v2305
      %v2351 = vpack.c.b16 %v2308, %v2307
      %v2352 = vpack.c.b16 %v2310, %v2309
      %v2353 = vpack.c.b16 %v2312, %v2311
      %v2354 = vpack.c.b16 %v2314, %v2313
      %v2355 = vpack.c.b16 %v2316, %v2315
      %v2356 = vpack.c.b16 %v2318, %v2317
      %v2357 = vpack.c.b16 %v2320, %v2319
      %v2358 = vpack.c.b16 %v2322, %v2321
      %v2359 = vpack.c.b16 %v2324, %v2323
      %v2360 = vpack.c.b16 %v2326, %v2325
      %v2361 = vpack.c.b16 %v2328, %v2327
      %v2362 = vpack.c.b16 %v2330, %v2329
      %v2363 = vpack.c.b16 %v2332, %v2331
      %v2364 = vpack.c.b16 %v2334, %v2333
      %v2365 = vpack.c.b16 %v2336, %v2335
      %v2366 = vpack.c.b16 %v2338, %v2337
      %v2367 = vpack.c.b16 %v2340, %v2339
      %v2368 = vpack.c.b16 %v2342, %v2341
      %v2369 = vpack.c.b16 %v2344, %v2343
      %v2370 = vpack.c.b16 %v2346, %v2345
      %2395 = vmatprep.subr.bf16.mxu0 0
      %2396 = vmatpush1.bf16.msra.mxu0 %v2354
      %2397 = vmatprep.subr.bf16.mxu0 0
      %2398 = vmatpush1.bf16.msra.mxu0 %v2353
      %2399 = vmatprep.subr.bf16.mxu0 0
      %2400 = vmatpush1.bf16.msra.mxu0 %v2352
      %2401 = vmatprep.subr.bf16.mxu0 0
      %2402 = vmatpush1.bf16.msra.mxu0 %v2351
      %2403 = vmatprep.subr.bf16.mxu0 0
      %2404 = vmatpush1.bf16.msra.mxu0 %v2350
      %2405 = vmatprep.subr.bf16.mxu0 0
      %2406 = vmatpush1.bf16.msra.mxu0 %v2349
      %2407 = vmatprep.subr.bf16.mxu0 0
      %2408 = vmatpush1.bf16.msra.mxu0 %v2348
      %2409 = vmatprep.subr.bf16.mxu0 0
      %2410 = vmatpush1.bf16.msra.mxu0 %v2347
      %2411 = vmatprep.subr.bf16.mxu0 0
      %2412 = vmatpush2.bf16.msra.mxu0 %v2362
      %2413 = vmatprep.subr.bf16.mxu0 0
      %2414 = vmatpush2.bf16.msra.mxu0 %v2361
      %2415 = vmatprep.subr.bf16.mxu0 0
      %2416 = vmatpush2.bf16.msra.mxu0 %v2360
      %2417 = vmatprep.subr.bf16.mxu0 0
      %2418 = vmatpush2.bf16.msra.mxu0 %v2359
      %2419 = vmatprep.subr.bf16.mxu0 0
      %2420 = vmatpush2.bf16.msra.mxu0 %v2358
      %2421 = vmatprep.subr.bf16.mxu0 0
      %2422 = vmatpush2.bf16.msra.mxu0 %v2357
      %2423 = vmatprep.subr.bf16.mxu0 0
      %2424 = vmatpush2.bf16.msra.mxu0 %v2356
      %2425 = vmatprep.subr.bf16.mxu0 0
      %2426 = vmatpush2.bf16.msra.mxu0 %v2355
      %2427 = vmatprep.mubr.bf16.mxu0 %v1519
      %2428 = vmatmul.mubr.bf16.gmra.mxu0 %v1518
      %v2429 = vpop.f32.mrf.mxu0
      %v2430 = vadd.f32 0.0, %v2429
      %v2431 = vpop.f32.mrf.mxu0
      %v2432 = vpop.f32.mrf.mxu0
      %v2433 = vadd.f32 0.0, %v2432
      %v2434 = vpop.f32.mrf.mxu0
      %2435 = vmatprep.mubr.bf16.mxu0 %v1522
      %2436 = vmatmul.mubr.bf16.gmra.mxu0 %v1521
      %v2437 = vpop.f32.mrf.mxu0
      %v2438 = vadd.f32 0.0, %v2437
      %v2439 = vpop.f32.mrf.mxu0
      %v2440 = vpop.f32.mrf.mxu0
      %v2441 = vadd.f32 0.0, %v2440
      %v2442 = vpop.f32.mrf.mxu0
      %2443 = vmatprep.mubr.bf16.mxu0 %v1525
      %2444 = vmatmul.mubr.bf16.gmra.mxu0 %v1524
      %v2445 = vpop.f32.mrf.mxu0
      %v2446 = vadd.f32 0.0, %v2445
      %v2447 = vpop.f32.mrf.mxu0
      %v2448 = vpop.f32.mrf.mxu0
      %v2449 = vadd.f32 0.0, %v2448
      %v2450 = vpop.f32.mrf.mxu0
      %2451 = vmatprep.mubr.bf16.mxu0 %v2246
      %2452 = vmatmul.mubr.bf16.gmra.mxu0 %v2245
      %v2453 = vpop.f32.mrf.mxu0
      %v2454 = vadd.f32 0.0, %v2453
      %v2455 = vpop.f32.mrf.mxu0
      %v2456 = vpop.f32.mrf.mxu0
      %v2457 = vadd.f32 0.0, %v2456
      %v2458 = vpop.f32.mrf.mxu0
      %2459 = vdwg.mxu0
      %2460 = vmatprep.subr.bf16.mxu0 0
      %2461 = vmatpush1.bf16.msra.mxu0 %v2370
      %2462 = vmatprep.subr.bf16.mxu0 0
      %2463 = vmatpush1.bf16.msra.mxu0 %v2369
      %2464 = vmatprep.subr.bf16.mxu0 0
      %2465 = vmatpush1.bf16.msra.mxu0 %v2368
      %2466 = vmatprep.subr.bf16.mxu0 0
      %2467 = vmatpush1.bf16.msra.mxu0 %v2367
      %2468 = vmatprep.subr.bf16.mxu0 0
      %2469 = vmatpush1.bf16.msra.mxu0 %v2366
      %2470 = vmatprep.subr.bf16.mxu0 0
      %2471 = vmatpush1.bf16.msra.mxu0 %v2365
      %2472 = vmatprep.subr.bf16.mxu0 0
      %2473 = vmatpush1.bf16.msra.mxu0 %v2364
      %2474 = vmatprep.subr.bf16.mxu0 0
      %2475 = vmatpush1.bf16.msra.mxu0 %v2363
      %2476 = vmatprep.subr.bf16.mxu0 0
      %2477 = vmatpush2.bf16.msra.mxu0 0
      %2478 = vmatprep.subr.bf16.mxu0 0
      %2479 = vmatpush2.bf16.msra.mxu0 0
      %2480 = vmatprep.subr.bf16.mxu0 0
      %2481 = vmatpush2.bf16.msra.mxu0 0
      %2482 = vmatprep.subr.bf16.mxu0 0
      %2483 = vmatpush2.bf16.msra.mxu0 0
      %2484 = vmatprep.subr.bf16.mxu0 0
      %2485 = vmatpush2.bf16.msra.mxu0 0
      %2486 = vmatprep.subr.bf16.mxu0 0
      %2487 = vmatpush2.bf16.msra.mxu0 0
      %2488 = vmatprep.subr.bf16.mxu0 0
      %2489 = vmatpush2.bf16.msra.mxu0 0
      %2490 = vmatprep.subr.bf16.mxu0 0
      %2491 = vmatpush2.bf16.msra.mxu0 0
      %2492 = vmatprep.mubr.bf16.mxu0 0
      %2493 = vmatmul.mubr.bf16.gmra.mxu0 %v1520
      %v2494 = vpop.f32.mrf.mxu0
      %v2495 = vadd.f32 %v2430, %v2494
      %v2496 = vpop.f32.mrf.mxu0
      %v2497 = vpop.f32.mrf.mxu0
      %v2498 = vadd.f32 %v2433, %v2497
      %v2499 = vpop.f32.mrf.mxu0
      %2500 = vmatprep.mubr.bf16.mxu0 0
      %2501 = vmatmul.mubr.bf16.gmra.mxu0 %v1523
      %v2502 = vpop.f32.mrf.mxu0
      %v2503 = vadd.f32 %v2438, %v2502
      %v2504 = vpop.f32.mrf.mxu0
      %v2505 = vpop.f32.mrf.mxu0
      %v2506 = vadd.f32 %v2441, %v2505
      %v2507 = vpop.f32.mrf.mxu0
      %2508 = vmatprep.mubr.bf16.mxu0 0
      %2509 = vmatmul.mubr.bf16.gmra.mxu0 %v1526
      %v2510 = vpop.f32.mrf.mxu0
      %v2511 = vadd.f32 %v2446, %v2510
      %v2512 = vpop.f32.mrf.mxu0
      %v2513 = vpop.f32.mrf.mxu0
      %v2514 = vadd.f32 %v2449, %v2513
      %v2515 = vpop.f32.mrf.mxu0
      %2516 = vmatprep.mubr.bf16.mxu0 0
      %2517 = vmatmul.mubr.bf16.gmra.mxu0 %v2247
      %v2518 = vpop.f32.mrf.mxu0
      %v2519 = vadd.f32 %v2454, %v2518
      %v2520 = vpop.f32.mrf.mxu0
      %v2521 = vpop.f32.mrf.mxu0
      %v2522 = vadd.f32 %v2457, %v2521
      %v2523 = vpop.f32.mrf.mxu0
      %2524 = vdwg.mxu0
      %v2525 = vld [vmem:[#allocation3] sm:$0xff]
      %v2526 = vld [vmem:[#allocation3 + $0x8] sm:$0xff]
      %v2527 = vld [vmem:[#allocation3 + $0x10] sm:$0xff]
      %v2528 = vld [vmem:[#allocation3 + $0x18] sm:$0xff]
      %v2529 = vld [vmem:[#allocation3 + $0x20] sm:$0xff]
      %v2530 = vld [vmem:[#allocation3 + $0x28] sm:$0xff]
      %v2531 = vld [vmem:[#allocation3 + $0x30] sm:$0xff]
      %v2532 = vld [vmem:[#allocation3 + $0x38] sm:$0xff]
      %v2533 = vadd.f32 %v2525, %v2495
      %v2534 = vadd.f32 %v2526, %v2498
      %v2535 = vadd.f32 %v2527, %v2503
      %v2536 = vadd.f32 %v2528, %v2506
      %v2537 = vadd.f32 %v2529, %v2511
      %v2538 = vadd.f32 %v2530, %v2514
      %v2539 = vadd.f32 %v2531, %v2519
      %v2540 = vadd.f32 %v2532, %v2522
      %2541 = vst [vmem:[#allocation3] sm:$0xff] %v2533
      %2542 = vst [vmem:[#allocation3 + $0x8] sm:$0xff] %v2534
      %2543 = vst [vmem:[#allocation3 + $0x10] sm:$0xff] %v2535
      %2544 = vst [vmem:[#allocation3 + $0x18] sm:$0xff] %v2536
      %2545 = vst [vmem:[#allocation3 + $0x20] sm:$0xff] %v2537
      %2546 = vst [vmem:[#allocation3 + $0x28] sm:$0xff] %v2538
      %2547 = vst [vmem:[#allocation3 + $0x30] sm:$0xff] %v2539
      %2548 = vst [vmem:[#allocation3 + $0x38] sm:$0xff] %v2540
      %s2549 = scalar_lea.vmem [#allocation2], 80
      %v2550 = vld [vmem:[%s2549] sm:$0xf]
      %v2551 = vld [vmem:[%s2549 + $0x8] sm:$0xf]
      %v2552 = vld [vmem:[%s2549 + $0x10] sm:$0xf]
      %v2553 = vld [vmem:[%s2549 + $0x18] sm:$0xf]
      %v2554 = vld [vmem:[%s2549 + $0x20] sm:$0xf]
      %v2555 = vld [vmem:[%s2549 + $0x28] sm:$0xf]
      %v2556 = vld [vmem:[%s2549 + $0x30] sm:$0xf]
      %v2557 = vld [vmem:[%s2549 + $0x38] sm:$0xf]
      %v2558 = vld [vmem:[%s2549 + $0x40] sm:$0xf]
      %v2559 = vld [vmem:[%s2549 + $0x48] sm:$0xf]
      %v2560 = vld [vmem:[%s2549 + $0x4] sm:$0x1]
      %v2561 = vld [vmem:[%s2549 + $0xc] sm:$0x1]
      %v2562 = vld [vmem:[%s2549 + $0x14] sm:$0x1]
      %v2563 = vld [vmem:[%s2549 + $0x1c] sm:$0x1]
      %v2564 = vld [vmem:[%s2549 + $0x24] sm:$0x1]
      %v2565 = vld [vmem:[%s2549 + $0x2c] sm:$0x1]
      %v2566 = vld [vmem:[%s2549 + $0x34] sm:$0x1]
      %v2567 = vld [vmem:[%s2549 + $0x3c] sm:$0x1]
      %v2568 = vld [vmem:[%s2549 + $0x44] sm:$0x1]
      %v2569 = vld [vmem:[%s2549 + $0x4c] sm:$0x1]
      %v2570 = vld [vmem:[%s2549] sm:$0xe]
      %v2571 = vld [vmem:[%s2549 + $0x8] sm:$0xe]
      %v2572 = vld [vmem:[%s2549 + $0x10] sm:$0xe]
      %v2573 = vld [vmem:[%s2549 + $0x18] sm:$0xe]
      %v2574 = vld [vmem:[%s2549 + $0x20] sm:$0xe]
      %v2575 = vld [vmem:[%s2549 + $0x28] sm:$0xe]
      %v2576 = vld [vmem:[%s2549 + $0x30] sm:$0xe]
      %v2577 = vld [vmem:[%s2549 + $0x38] sm:$0xe]
      %v2578 = vld [vmem:[%s2549 + $0x40] sm:$0xe]
      %v2579 = vld [vmem:[%s2549 + $0x48] sm:$0xe]
      %v2600 = vunpack.c.l.b16 %v2550
      %v2601 = vunpack.c.l.b16 %v2560
      %v2602 = vunpack.c.l.b16 %v2551
      %v2603 = vunpack.c.l.b16 %v2561
      %v2604 = vunpack.c.l.b16 %v2552
      %v2605 = vunpack.c.l.b16 %v2562
      %v2606 = vunpack.c.l.b16 %v2553
      %v2607 = vunpack.c.l.b16 %v2563
      %v2608 = vunpack.c.l.b16 %v2554
      %v2609 = vunpack.c.l.b16 %v2564
      %v2610 = vunpack.c.l.b16 %v2555
      %v2611 = vunpack.c.l.b16 %v2565
      %v2612 = vunpack.c.l.b16 %v2556
      %v2613 = vunpack.c.l.b16 %v2566
      %v2614 = vunpack.c.l.b16 %v2557
      %v2615 = vunpack.c.l.b16 %v2567
      %v2616 = vunpack.c.l.b16 %v2558
      %v2617 = vunpack.c.l.b16 %v2568
      %v2618 = vunpack.c.l.b16 %v2559
      %v2619 = vunpack.c.l.b16 %v2569
      %v2620 = vpack.c.b16 %v2601, %v2600
      %v2621 = vpack.c.b16 %v2603, %v2602
      %v2622 = vpack.c.b16 %v2605, %v2604
      %v2623 = vpack.c.b16 %v2607, %v2606
      %v2624 = vpack.c.b16 %v2609, %v2608
      %v2625 = vpack.c.b16 %v2611, %v2610
      %v2626 = vpack.c.b16 %v2613, %v2612
      %v2627 = vpack.c.b16 %v2615, %v2614
      %v2628 = vpack.c.b16 %v2617, %v2616
      %v2629 = vpack.c.b16 %v2619, %v2618
      %v2631 = vshrl.u32 %v2620, 16
      %v2633 = vshll.u32 %v2620, 16
      %v2635 = vrot.slane %v2633, 1
      %v2636 = vor.u32 %v2631, %v2635
      %v2638 = vshrl.u32 %v2621, 16
      %v2640 = vshll.u32 %v2621, 16
      %v2642 = vrot.slane %v2640, 1
      %v2643 = vor.u32 %v2638, %v2642
      %v2645 = vshrl.u32 %v2622, 16
      %v2647 = vshll.u32 %v2622, 16
      %v2649 = vrot.slane %v2647, 1
      %v2650 = vor.u32 %v2645, %v2649
      %v2652 = vshrl.u32 %v2623, 16
      %v2654 = vshll.u32 %v2623, 16
      %v2656 = vrot.slane %v2654, 1
      %v2657 = vor.u32 %v2652, %v2656
      %v2659 = vshrl.u32 %v2624, 16
      %v2661 = vshll.u32 %v2624, 16
      %v2663 = vrot.slane %v2661, 1
      %v2664 = vor.u32 %v2659, %v2663
      %v2666 = vshrl.u32 %v2625, 16
      %v2668 = vshll.u32 %v2625, 16
      %v2670 = vrot.slane %v2668, 1
      %v2671 = vor.u32 %v2666, %v2670
      %v2673 = vshrl.u32 %v2626, 16
      %v2675 = vshll.u32 %v2626, 16
      %v2677 = vrot.slane %v2675, 1
      %v2678 = vor.u32 %v2673, %v2677
      %v2680 = vshrl.u32 %v2627, 16
      %v2682 = vshll.u32 %v2627, 16
      %v2684 = vrot.slane %v2682, 1
      %v2685 = vor.u32 %v2680, %v2684
      %v2687 = vshrl.u32 %v2628, 16
      %v2689 = vshll.u32 %v2628, 16
      %v2691 = vrot.slane %v2689, 1
      %v2692 = vor.u32 %v2687, %v2691
      %v2694 = vshrl.u32 %v2629, 16
      %v2696 = vshll.u32 %v2629, 16
      %v2698 = vrot.slane %v2696, 1
      %v2699 = vor.u32 %v2694, %v2698
      %v2710 = vunpack.c.l.b16 %v2570
      %v2711 = vunpack.c.l.b16 %v2571
      %v2712 = vunpack.c.l.b16 %v2572
      %v2713 = vunpack.c.l.b16 %v2573
      %v2714 = vunpack.c.l.b16 %v2574
      %v2715 = vunpack.c.l.b16 %v2575
      %v2716 = vunpack.c.l.b16 %v2576
      %v2717 = vunpack.c.l.b16 %v2577
      %v2718 = vunpack.c.l.b16 %v2578
      %v2719 = vunpack.c.l.b16 %v2579
      %v2720 = vpack.c.b16 %v2601, %v2710
      %v2721 = vpack.c.b16 %v2603, %v2711
      %v2722 = vpack.c.b16 %v2605, %v2712
      %v2723 = vpack.c.b16 %v2607, %v2713
      %v2724 = vpack.c.b16 %v2609, %v2714
      %v2725 = vpack.c.b16 %v2611, %v2715
      %v2726 = vpack.c.b16 %v2613, %v2716
      %v2727 = vpack.c.b16 %v2615, %v2717
      %v2728 = vpack.c.b16 %v2617, %v2718
      %v2729 = vpack.c.b16 %v2619, %v2719
      %v2730 = vrot.slane %v2720, 1
      %v2731 = vrot.slane %v2721, 1
      %v2732 = vrot.slane %v2722, 1
      %v2733 = vrot.slane %v2723, 1
      %v2734 = vrot.slane %v2724, 1
      %v2735 = vrot.slane %v2725, 1
      %v2736 = vrot.slane %v2726, 1
      %v2737 = vrot.slane %v2727, 1
      %v2738 = vrot.slane %v2728, 1
      %v2739 = vrot.slane %v2729, 1
      %v2740 = vunpack.c.l.b16 %v2636
      %v2741 = vunpack.c.l.b16 %v2730
      %v2742 = vunpack.c.l.b16 %v2643
      %v2743 = vunpack.c.l.b16 %v2731
      %v2744 = vunpack.c.l.b16 %v2650
      %v2745 = vunpack.c.l.b16 %v2732
      %v2746 = vunpack.c.l.b16 %v2657
      %v2747 = vunpack.c.l.b16 %v2733
      %v2748 = vunpack.c.l.b16 %v2664
      %v2749 = vunpack.c.l.b16 %v2734
      %v2750 = vunpack.c.l.b16 %v2671
      %v2751 = vunpack.c.l.b16 %v2735
      %v2752 = vunpack.c.l.b16 %v2678
      %v2753 = vunpack.c.l.b16 %v2736
      %v2754 = vunpack.c.l.b16 %v2685
      %v2755 = vunpack.c.l.b16 %v2737
      %s2756 = scalar_lea.vmem %s5, 576
      %v2757 = vld [vmem:[%s2756] sm:$0xf]
      %v2758 = vld [vmem:[%s2756 + $0x4] sm:$0xf]
      %v2759 = vld [vmem:[%s2756 + $0x8] sm:$0xf]
      %v2760 = vld [vmem:[%s2756 + $0xc] sm:$0xf]
      %v2761 = vld [vmem:[%s2756 + $0x10] sm:$0xf]
      %v2762 = vld [vmem:[%s2756 + $0x14] sm:$0xf]
      %v2763 = vld [vmem:[%s2756 + $0x18] sm:$0xf]
      %v2764 = vld [vmem:[%s2756 + $0x1c] sm:$0xf]
      %v2765 = vld [vmem:[%s2756 + $0x20] sm:$0xf]
      %v2766 = vld [vmem:[%s2756 + $0x24] sm:$0xf]
      %v2767 = vld [vmem:[%s2756 + $0x28] sm:$0xf]
      %v2768 = vld [vmem:[%s2756 + $0x2c] sm:$0xf]
      %v2769 = vld [vmem:[%s2756 + $0x30] sm:$0xf]
      %v2770 = vld [vmem:[%s2756 + $0x34] sm:$0xf]
      %v2771 = vld [vmem:[%s2756 + $0x38] sm:$0xf]
      %v2772 = vld [vmem:[%s2756 + $0x3c] sm:$0xf]
      %v2773 = vld [vmem:[%s2756 + $0x40] sm:$0xf]
      %v2774 = vld [vmem:[%s2756 + $0x44] sm:$0xf]
      %v2775 = vld [vmem:[%s2756 + $0x48] sm:$0xf]
      %v2776 = vld [vmem:[%s2756 + $0x4c] sm:$0xf]
      %v2777 = vld [vmem:[%s2756 + $0x50] sm:$0xf]
      %v2778 = vld [vmem:[%s2756 + $0x54] sm:$0xf]
      %v2779 = vld [vmem:[%s2756 + $0x58] sm:$0xf]
      %v2780 = vld [vmem:[%s2756 + $0x5c] sm:$0xf]
      %v2781 = vld [vmem:[%s2756 + $0x60] sm:$0xf]
      %v2782 = vld [vmem:[%s2756 + $0x64] sm:$0xf]
      %v2783 = vld [vmem:[%s2756 + $0x68] sm:$0xf]
      %v2784 = vld [vmem:[%s2756 + $0x6c] sm:$0xf]
      %v2785 = vld [vmem:[%s2756 + $0x70] sm:$0xf]
      %v2786 = vld [vmem:[%s2756 + $0x74] sm:$0xf]
      %v2787 = vld [vmem:[%s2756 + $0x78] sm:$0xf]
      %v2788 = vld [vmem:[%s2756 + $0x7c] sm:$0xf]
      %v2789 = vld [vmem:[%s2756 + $0x80] sm:$0xf]
      %v2790 = vld [vmem:[%s2756 + $0x84] sm:$0xf]
      %v2791 = vld [vmem:[%s2756 + $0x88] sm:$0xf]
      %v2792 = vld [vmem:[%s2756 + $0x8c] sm:$0xf]
      %v2793 = vld [vmem:[%s2756 + $0x90] sm:$0xf]
      %v2794 = vld [vmem:[%s2756 + $0x94] sm:$0xf]
      %v2795 = vld [vmem:[%s2756 + $0x98] sm:$0xf]
      %v2796 = vld [vmem:[%s2756 + $0x9c] sm:$0xf]
      %v2797 = vld [vmem:[%s2756 + $0xa0] sm:$0xf]
      %v2798 = vld [vmem:[%s2756 + $0xa4] sm:$0xf]
      %v2799 = vld [vmem:[%s2756 + $0xa8] sm:$0xf]
      %v2800 = vld [vmem:[%s2756 + $0xac] sm:$0xf]
      %v2801 = vld [vmem:[%s2756 + $0xb0] sm:$0xf]
      %v2802 = vld [vmem:[%s2756 + $0xb4] sm:$0xf]
      %v2803 = vld [vmem:[%s2756 + $0xb8] sm:$0xf]
      %v2804 = vld [vmem:[%s2756 + $0xbc] sm:$0xf]
      %v2805 = vpack.c.b16 %v2602, %v2600
      %v2806 = vpack.c.b16 %v2742, %v2740
      %v2807 = vpack.c.b16 %v2743, %v2741
      %v2808 = vpack.c.b16 %v2606, %v2604
      %v2809 = vpack.c.b16 %v2746, %v2744
      %v2810 = vpack.c.b16 %v2747, %v2745
      %v2811 = vpack.c.b16 %v2610, %v2608
      %v2812 = vpack.c.b16 %v2750, %v2748
      %v2813 = vpack.c.b16 %v2751, %v2749
      %v2814 = vpack.c.b16 %v2614, %v2612
      %v2815 = vpack.c.b16 %v2754, %v2752
      %v2816 = vpack.c.b16 %v2755, %v2753
      %v2877 = vunpack.c.l.b16 %v2757
      %v2878 = vunpack.c.l.b16 %v2758
      %v2879 = vunpack.c.l.b16 %v2759
      %v2880 = vunpack.c.l.b16 %v2760
      %v2881 = vunpack.c.l.b16 %v2761
      %v2882 = vunpack.c.l.b16 %v2762
      %v2883 = vunpack.c.l.b16 %v2763
      %v2884 = vunpack.c.l.b16 %v2764
      %v2885 = vunpack.c.l.b16 %v2765
      %v2886 = vunpack.c.l.b16 %v2766
      %v2887 = vunpack.c.l.b16 %v2767
      %v2888 = vunpack.c.l.b16 %v2768
      %v2889 = vunpack.c.l.b16 %v2769
      %v2890 = vunpack.c.l.b16 %v2770
      %v2891 = vunpack.c.l.b16 %v2771
      %v2892 = vunpack.c.l.b16 %v2772
      %v2893 = vunpack.c.l.b16 %v2773
      %v2894 = vunpack.c.l.b16 %v2774
      %v2895 = vunpack.c.l.b16 %v2775
      %v2896 = vunpack.c.l.b16 %v2776
      %v2897 = vunpack.c.l.b16 %v2777
      %v2898 = vunpack.c.l.b16 %v2778
      %v2899 = vunpack.c.l.b16 %v2779
      %v2900 = vunpack.c.l.b16 %v2780
      %v2901 = vunpack.c.l.b16 %v2781
      %v2902 = vunpack.c.l.b16 %v2782
      %v2903 = vunpack.c.l.b16 %v2783
      %v2904 = vunpack.c.l.b16 %v2784
      %v2905 = vunpack.c.l.b16 %v2785
      %v2906 = vunpack.c.l.b16 %v2786
      %v2907 = vunpack.c.l.b16 %v2787
      %v2908 = vunpack.c.l.b16 %v2788
      %v2909 = vunpack.c.l.b16 %v2789
      %v2910 = vunpack.c.l.b16 %v2790
      %v2911 = vunpack.c.l.b16 %v2791
      %v2912 = vunpack.c.l.b16 %v2792
      %v2913 = vunpack.c.l.b16 %v2793
      %v2914 = vunpack.c.l.b16 %v2794
      %v2915 = vunpack.c.l.b16 %v2795
      %v2916 = vunpack.c.l.b16 %v2796
      %v2917 = vunpack.c.l.b16 %v2797
      %v2918 = vunpack.c.l.b16 %v2798
      %v2919 = vunpack.c.l.b16 %v2799
      %v2920 = vunpack.c.l.b16 %v2800
      %v2921 = vunpack.c.l.b16 %v2801
      %v2922 = vunpack.c.l.b16 %v2802
      %v2923 = vunpack.c.l.b16 %v2803
      %v2924 = vunpack.c.l.b16 %v2804
      %v2925 = vpack.c.b16 %v2878, %v2877
      %v2926 = vpack.c.b16 %v2880, %v2879
      %v2927 = vpack.c.b16 %v2882, %v2881
      %v2928 = vpack.c.b16 %v2884, %v2883
      %v2929 = vpack.c.b16 %v2886, %v2885
      %v2930 = vpack.c.b16 %v2888, %v2887
      %v2931 = vpack.c.b16 %v2890, %v2889
      %v2932 = vpack.c.b16 %v2892, %v2891
      %v2933 = vpack.c.b16 %v2894, %v2893
      %v2934 = vpack.c.b16 %v2896, %v2895
      %v2935 = vpack.c.b16 %v2898, %v2897
      %v2936 = vpack.c.b16 %v2900, %v2899
      %v2937 = vpack.c.b16 %v2902, %v2901
      %v2938 = vpack.c.b16 %v2904, %v2903
      %v2939 = vpack.c.b16 %v2906, %v2905
      %v2940 = vpack.c.b16 %v2908, %v2907
      %v2941 = vpack.c.b16 %v2910, %v2909
      %v2942 = vpack.c.b16 %v2912, %v2911
      %v2943 = vpack.c.b16 %v2914, %v2913
      %v2944 = vpack.c.b16 %v2916, %v2915
      %v2945 = vpack.c.b16 %v2918, %v2917
      %v2946 = vpack.c.b16 %v2920, %v2919
      %v2947 = vpack.c.b16 %v2922, %v2921
      %v2948 = vpack.c.b16 %v2924, %v2923
      %2973 = vmatprep.subr.bf16.mxu0 0
      %2974 = vmatpush1.bf16.msra.mxu0 %v2932
      %2975 = vmatprep.subr.bf16.mxu0 0
      %2976 = vmatpush1.bf16.msra.mxu0 %v2931
      %2977 = vmatprep.subr.bf16.mxu0 0
      %2978 = vmatpush1.bf16.msra.mxu0 %v2930
      %2979 = vmatprep.subr.bf16.mxu0 0
      %2980 = vmatpush1.bf16.msra.mxu0 %v2929
      %2981 = vmatprep.subr.bf16.mxu0 0
      %2982 = vmatpush1.bf16.msra.mxu0 %v2928
      %2983 = vmatprep.subr.bf16.mxu0 0
      %2984 = vmatpush1.bf16.msra.mxu0 %v2927
      %2985 = vmatprep.subr.bf16.mxu0 0
      %2986 = vmatpush1.bf16.msra.mxu0 %v2926
      %2987 = vmatprep.subr.bf16.mxu0 0
      %2988 = vmatpush1.bf16.msra.mxu0 %v2925
      %2989 = vmatprep.subr.bf16.mxu0 0
      %2990 = vmatpush2.bf16.msra.mxu0 %v2940
      %2991 = vmatprep.subr.bf16.mxu0 0
      %2992 = vmatpush2.bf16.msra.mxu0 %v2939
      %2993 = vmatprep.subr.bf16.mxu0 0
      %2994 = vmatpush2.bf16.msra.mxu0 %v2938
      %2995 = vmatprep.subr.bf16.mxu0 0
      %2996 = vmatpush2.bf16.msra.mxu0 %v2937
      %2997 = vmatprep.subr.bf16.mxu0 0
      %2998 = vmatpush2.bf16.msra.mxu0 %v2936
      %2999 = vmatprep.subr.bf16.mxu0 0
      %3000 = vmatpush2.bf16.msra.mxu0 %v2935
      %3001 = vmatprep.subr.bf16.mxu0 0
      %3002 = vmatpush2.bf16.msra.mxu0 %v2934
      %3003 = vmatprep.subr.bf16.mxu0 0
      %3004 = vmatpush2.bf16.msra.mxu0 %v2933
      %3005 = vmatprep.mubr.bf16.mxu0 %v2806
      %3006 = vmatmul.mubr.bf16.gmra.mxu0 %v2805
      %v3007 = vpop.f32.mrf.mxu0
      %v3008 = vadd.f32 0.0, %v3007
      %v3009 = vpop.f32.mrf.mxu0
      %v3010 = vpop.f32.mrf.mxu0
      %v3011 = vadd.f32 0.0, %v3010
      %v3012 = vpop.f32.mrf.mxu0
      %3013 = vmatprep.mubr.bf16.mxu0 %v2809
      %3014 = vmatmul.mubr.bf16.gmra.mxu0 %v2808
      %v3015 = vpop.f32.mrf.mxu0
      %v3016 = vadd.f32 0.0, %v3015
      %v3017 = vpop.f32.mrf.mxu0
      %v3018 = vpop.f32.mrf.mxu0
      %v3019 = vadd.f32 0.0, %v3018
      %v3020 = vpop.f32.mrf.mxu0
      %3021 = vmatprep.mubr.bf16.mxu0 %v2812
      %3022 = vmatmul.mubr.bf16.gmra.mxu0 %v2811
      %v3023 = vpop.f32.mrf.mxu0
      %v3024 = vadd.f32 0.0, %v3023
      %v3025 = vpop.f32.mrf.mxu0
      %v3026 = vpop.f32.mrf.mxu0
      %v3027 = vadd.f32 0.0, %v3026
      %v3028 = vpop.f32.mrf.mxu0
      %3029 = vmatprep.mubr.bf16.mxu0 %v2815
      %3030 = vmatmul.mubr.bf16.gmra.mxu0 %v2814
      %v3031 = vpop.f32.mrf.mxu0
      %v3032 = vadd.f32 0.0, %v3031
      %v3033 = vpop.f32.mrf.mxu0
      %v3034 = vpop.f32.mrf.mxu0
      %v3035 = vadd.f32 0.0, %v3034
      %v3036 = vpop.f32.mrf.mxu0
      %3037 = vdwg.mxu0
      %3038 = vmatprep.subr.bf16.mxu0 0
      %3039 = vmatpush1.bf16.msra.mxu0 %v2948
      %3040 = vmatprep.subr.bf16.mxu0 0
      %3041 = vmatpush1.bf16.msra.mxu0 %v2947
      %3042 = vmatprep.subr.bf16.mxu0 0
      %3043 = vmatpush1.bf16.msra.mxu0 %v2946
      %3044 = vmatprep.subr.bf16.mxu0 0
      %3045 = vmatpush1.bf16.msra.mxu0 %v2945
      %3046 = vmatprep.subr.bf16.mxu0 0
      %3047 = vmatpush1.bf16.msra.mxu0 %v2944
      %3048 = vmatprep.subr.bf16.mxu0 0
      %3049 = vmatpush1.bf16.msra.mxu0 %v2943
      %3050 = vmatprep.subr.bf16.mxu0 0
      %3051 = vmatpush1.bf16.msra.mxu0 %v2942
      %3052 = vmatprep.subr.bf16.mxu0 0
      %3053 = vmatpush1.bf16.msra.mxu0 %v2941
      %3054 = vmatprep.subr.bf16.mxu0 0
      %3055 = vmatpush2.bf16.msra.mxu0 0
      %3056 = vmatprep.subr.bf16.mxu0 0
      %3057 = vmatpush2.bf16.msra.mxu0 0
      %3058 = vmatprep.subr.bf16.mxu0 0
      %3059 = vmatpush2.bf16.msra.mxu0 0
      %3060 = vmatprep.subr.bf16.mxu0 0
      %3061 = vmatpush2.bf16.msra.mxu0 0
      %3062 = vmatprep.subr.bf16.mxu0 0
      %3063 = vmatpush2.bf16.msra.mxu0 0
      %3064 = vmatprep.subr.bf16.mxu0 0
      %3065 = vmatpush2.bf16.msra.mxu0 0
      %3066 = vmatprep.subr.bf16.mxu0 0
      %3067 = vmatpush2.bf16.msra.mxu0 0
      %3068 = vmatprep.subr.bf16.mxu0 0
      %3069 = vmatpush2.bf16.msra.mxu0 0
      %3070 = vmatprep.mubr.bf16.mxu0 0
      %3071 = vmatmul.mubr.bf16.gmra.mxu0 %v2807
      %v3072 = vpop.f32.mrf.mxu0
      %v3073 = vadd.f32 %v3008, %v3072
      %v3074 = vpop.f32.mrf.mxu0
      %v3075 = vpop.f32.mrf.mxu0
      %v3076 = vadd.f32 %v3011, %v3075
      %v3077 = vpop.f32.mrf.mxu0
      %3078 = vmatprep.mubr.bf16.mxu0 0
      %3079 = vmatmul.mubr.bf16.gmra.mxu0 %v2810
      %v3080 = vpop.f32.mrf.mxu0
      %v3081 = vadd.f32 %v3016, %v3080
      %v3082 = vpop.f32.mrf.mxu0
      %v3083 = vpop.f32.mrf.mxu0
      %v3084 = vadd.f32 %v3019, %v3083
      %v3085 = vpop.f32.mrf.mxu0
      %3086 = vmatprep.mubr.bf16.mxu0 0
      %3087 = vmatmul.mubr.bf16.gmra.mxu0 %v2813
      %v3088 = vpop.f32.mrf.mxu0
      %v3089 = vadd.f32 %v3024, %v3088
      %v3090 = vpop.f32.mrf.mxu0
      %v3091 = vpop.f32.mrf.mxu0
      %v3092 = vadd.f32 %v3027, %v3091
      %v3093 = vpop.f32.mrf.mxu0
      %3094 = vmatprep.mubr.bf16.mxu0 0
      %3095 = vmatmul.mubr.bf16.gmra.mxu0 %v2816
      %v3096 = vpop.f32.mrf.mxu0
      %v3097 = vadd.f32 %v3032, %v3096
      %v3098 = vpop.f32.mrf.mxu0
      %v3099 = vpop.f32.mrf.mxu0
      %v3100 = vadd.f32 %v3035, %v3099
      %v3101 = vpop.f32.mrf.mxu0
      %3102 = vdwg.mxu0
      %v3103 = vld [vmem:[#allocation3] sm:$0xff]
      %v3104 = vld [vmem:[#allocation3 + $0x8] sm:$0xff]
      %v3105 = vld [vmem:[#allocation3 + $0x10] sm:$0xff]
      %v3106 = vld [vmem:[#allocation3 + $0x18] sm:$0xff]
      %v3107 = vld [vmem:[#allocation3 + $0x20] sm:$0xff]
      %v3108 = vld [vmem:[#allocation3 + $0x28] sm:$0xff]
      %v3109 = vld [vmem:[#allocation3 + $0x30] sm:$0xff]
      %v3110 = vld [vmem:[#allocation3 + $0x38] sm:$0xff]
      %v3111 = vadd.f32 %v3103, %v3073
      %v3112 = vadd.f32 %v3104, %v3076
      %v3113 = vadd.f32 %v3105, %v3081
      %v3114 = vadd.f32 %v3106, %v3084
      %v3115 = vadd.f32 %v3107, %v3089
      %v3116 = vadd.f32 %v3108, %v3092
      %v3117 = vadd.f32 %v3109, %v3097
      %v3118 = vadd.f32 %v3110, %v3100
      %3119 = vst [vmem:[#allocation3] sm:$0xff] %v3111
      %3120 = vst [vmem:[#allocation3 + $0x8] sm:$0xff] %v3112
      %3121 = vst [vmem:[#allocation3 + $0x10] sm:$0xff] %v3113
      %3122 = vst [vmem:[#allocation3 + $0x18] sm:$0xff] %v3114
      %3123 = vst [vmem:[#allocation3 + $0x20] sm:$0xff] %v3115
      %3124 = vst [vmem:[#allocation3 + $0x28] sm:$0xff] %v3116
      %3125 = vst [vmem:[#allocation3 + $0x30] sm:$0xff] %v3117
      %3126 = vst [vmem:[#allocation3 + $0x38] sm:$0xff] %v3118
      %v3127 = vunpack.c.l.b16 %v2692
      %v3128 = vunpack.c.l.b16 %v2738
      %s3129 = scalar_lea.vmem %s5, 768
      %v3130 = vld [vmem:[%s3129] sm:$0xf]
      %v3131 = vld [vmem:[%s3129 + $0x4] sm:$0xf]
      %v3132 = vld [vmem:[%s3129 + $0x8] sm:$0xf]
      %v3133 = vld [vmem:[%s3129 + $0xc] sm:$0xf]
      %v3134 = vld [vmem:[%s3129 + $0x10] sm:$0xf]
      %v3135 = vld [vmem:[%s3129 + $0x14] sm:$0xf]
      %v3136 = vld [vmem:[%s3129 + $0x18] sm:$0xf]
      %v3137 = vld [vmem:[%s3129 + $0x1c] sm:$0xf]
      %v3138 = vld [vmem:[%s3129 + $0x20] sm:$0xf]
      %v3139 = vld [vmem:[%s3129 + $0x24] sm:$0xf]
      %v3140 = vld [vmem:[%s3129 + $0x28] sm:$0xf]
      %v3141 = vld [vmem:[%s3129 + $0x2c] sm:$0xf]
      %v3142 = vld [vmem:[%s3129 + $0x30] sm:$0xf]
      %v3143 = vld [vmem:[%s3129 + $0x34] sm:$0xf]
      %v3144 = vld [vmem:[%s3129 + $0x38] sm:$0xf]
      %v3145 = vld [vmem:[%s3129 + $0x3c] sm:$0xf]
      %v3146 = vld [vmem:[%s3129 + $0x40] sm:$0xf]
      %v3147 = vld [vmem:[%s3129 + $0x44] sm:$0xf]
      %v3148 = vld [vmem:[%s3129 + $0x48] sm:$0xf]
      %v3149 = vld [vmem:[%s3129 + $0x4c] sm:$0xf]
      %v3150 = vld [vmem:[%s3129 + $0x50] sm:$0xf]
      %v3151 = vld [vmem:[%s3129 + $0x54] sm:$0xf]
      %v3152 = vld [vmem:[%s3129 + $0x58] sm:$0xf]
      %v3153 = vld [vmem:[%s3129 + $0x5c] sm:$0xf]
      %v3154 = vld [vmem:[%s3129 + $0x60] sm:$0xf]
      %v3155 = vld [vmem:[%s3129 + $0x64] sm:$0xf]
      %v3156 = vld [vmem:[%s3129 + $0x68] sm:$0xf]
      %v3157 = vld [vmem:[%s3129 + $0x6c] sm:$0xf]
      %v3158 = vld [vmem:[%s3129 + $0x70] sm:$0xf]
      %v3159 = vld [vmem:[%s3129 + $0x74] sm:$0xf]
      %v3160 = vld [vmem:[%s3129 + $0x78] sm:$0xf]
      %v3161 = vld [vmem:[%s3129 + $0x7c] sm:$0xf]
      %v3162 = vld [vmem:[%s3129 + $0x80] sm:$0xf]
      %v3163 = vld [vmem:[%s3129 + $0x84] sm:$0xf]
      %v3164 = vld [vmem:[%s3129 + $0x88] sm:$0xf]
      %v3165 = vld [vmem:[%s3129 + $0x8c] sm:$0xf]
      %v3166 = vld [vmem:[%s3129 + $0x90] sm:$0xf]
      %v3167 = vld [vmem:[%s3129 + $0x94] sm:$0xf]
      %v3168 = vld [vmem:[%s3129 + $0x98] sm:$0xf]
      %v3169 = vld [vmem:[%s3129 + $0x9c] sm:$0xf]
      %v3170 = vld [vmem:[%s3129 + $0xa0] sm:$0xf]
      %v3171 = vld [vmem:[%s3129 + $0xa4] sm:$0xf]
      %v3172 = vld [vmem:[%s3129 + $0xa8] sm:$0xf]
      %v3173 = vld [vmem:[%s3129 + $0xac] sm:$0xf]
      %v3174 = vld [vmem:[%s3129 + $0xb0] sm:$0xf]
      %v3175 = vld [vmem:[%s3129 + $0xb4] sm:$0xf]
      %v3176 = vld [vmem:[%s3129 + $0xb8] sm:$0xf]
      %v3177 = vld [vmem:[%s3129 + $0xbc] sm:$0xf]
      %v3178 = vpack.c.b16 %v2604, %v2602
      %v3179 = vpack.c.b16 %v2744, %v2742
      %v3180 = vpack.c.b16 %v2745, %v2743
      %v3181 = vpack.c.b16 %v2608, %v2606
      %v3182 = vpack.c.b16 %v2748, %v2746
      %v3183 = vpack.c.b16 %v2749, %v2747
      %v3184 = vpack.c.b16 %v2612, %v2610
      %v3185 = vpack.c.b16 %v2752, %v2750
      %v3186 = vpack.c.b16 %v2753, %v2751
      %v3187 = vpack.c.b16 %v2616, %v2614
      %v3188 = vpack.c.b16 %v3127, %v2754
      %v3189 = vpack.c.b16 %v3128, %v2755
      %v3250 = vunpack.c.l.b16 %v3130
      %v3251 = vunpack.c.l.b16 %v3131
      %v3252 = vunpack.c.l.b16 %v3132
      %v3253 = vunpack.c.l.b16 %v3133
      %v3254 = vunpack.c.l.b16 %v3134
      %v3255 = vunpack.c.l.b16 %v3135
      %v3256 = vunpack.c.l.b16 %v3136
      %v3257 = vunpack.c.l.b16 %v3137
      %v3258 = vunpack.c.l.b16 %v3138
      %v3259 = vunpack.c.l.b16 %v3139
      %v3260 = vunpack.c.l.b16 %v3140
      %v3261 = vunpack.c.l.b16 %v3141
      %v3262 = vunpack.c.l.b16 %v3142
      %v3263 = vunpack.c.l.b16 %v3143
      %v3264 = vunpack.c.l.b16 %v3144
      %v3265 = vunpack.c.l.b16 %v3145
      %v3266 = vunpack.c.l.b16 %v3146
      %v3267 = vunpack.c.l.b16 %v3147
      %v3268 = vunpack.c.l.b16 %v3148
      %v3269 = vunpack.c.l.b16 %v3149
      %v3270 = vunpack.c.l.b16 %v3150
      %v3271 = vunpack.c.l.b16 %v3151
      %v3272 = vunpack.c.l.b16 %v3152
      %v3273 = vunpack.c.l.b16 %v3153
      %v3274 = vunpack.c.l.b16 %v3154
      %v3275 = vunpack.c.l.b16 %v3155
      %v3276 = vunpack.c.l.b16 %v3156
      %v3277 = vunpack.c.l.b16 %v3157
      %v3278 = vunpack.c.l.b16 %v3158
      %v3279 = vunpack.c.l.b16 %v3159
      %v3280 = vunpack.c.l.b16 %v3160
      %v3281 = vunpack.c.l.b16 %v3161
      %v3282 = vunpack.c.l.b16 %v3162
      %v3283 = vunpack.c.l.b16 %v3163
      %v3284 = vunpack.c.l.b16 %v3164
      %v3285 = vunpack.c.l.b16 %v3165
      %v3286 = vunpack.c.l.b16 %v3166
      %v3287 = vunpack.c.l.b16 %v3167
      %v3288 = vunpack.c.l.b16 %v3168
      %v3289 = vunpack.c.l.b16 %v3169
      %v3290 = vunpack.c.l.b16 %v3170
      %v3291 = vunpack.c.l.b16 %v3171
      %v3292 = vunpack.c.l.b16 %v3172
      %v3293 = vunpack.c.l.b16 %v3173
      %v3294 = vunpack.c.l.b16 %v3174
      %v3295 = vunpack.c.l.b16 %v3175
      %v3296 = vunpack.c.l.b16 %v3176
      %v3297 = vunpack.c.l.b16 %v3177
      %v3298 = vpack.c.b16 %v3251, %v3250
      %v3299 = vpack.c.b16 %v3253, %v3252
      %v3300 = vpack.c.b16 %v3255, %v3254
      %v3301 = vpack.c.b16 %v3257, %v3256
      %v3302 = vpack.c.b16 %v3259, %v3258
      %v3303 = vpack.c.b16 %v3261, %v3260
      %v3304 = vpack.c.b16 %v3263, %v3262
      %v3305 = vpack.c.b16 %v3265, %v3264
      %v3306 = vpack.c.b16 %v3267, %v3266
      %v3307 = vpack.c.b16 %v3269, %v3268
      %v3308 = vpack.c.b16 %v3271, %v3270
      %v3309 = vpack.c.b16 %v3273, %v3272
      %v3310 = vpack.c.b16 %v3275, %v3274
      %v3311 = vpack.c.b16 %v3277, %v3276
      %v3312 = vpack.c.b16 %v3279, %v3278
      %v3313 = vpack.c.b16 %v3281, %v3280
      %v3314 = vpack.c.b16 %v3283, %v3282
      %v3315 = vpack.c.b16 %v3285, %v3284
      %v3316 = vpack.c.b16 %v3287, %v3286
      %v3317 = vpack.c.b16 %v3289, %v3288
      %v3318 = vpack.c.b16 %v3291, %v3290
      %v3319 = vpack.c.b16 %v3293, %v3292
      %v3320 = vpack.c.b16 %v3295, %v3294
      %v3321 = vpack.c.b16 %v3297, %v3296
      %3346 = vmatprep.subr.bf16.mxu0 0
      %3347 = vmatpush1.bf16.msra.mxu0 %v3305
      %3348 = vmatprep.subr.bf16.mxu0 0
      %3349 = vmatpush1.bf16.msra.mxu0 %v3304
      %3350 = vmatprep.subr.bf16.mxu0 0
      %3351 = vmatpush1.bf16.msra.mxu0 %v3303
      %3352 = vmatprep.subr.bf16.mxu0 0
      %3353 = vmatpush1.bf16.msra.mxu0 %v3302
      %3354 = vmatprep.subr.bf16.mxu0 0
      %3355 = vmatpush1.bf16.msra.mxu0 %v3301
      %3356 = vmatprep.subr.bf16.mxu0 0
      %3357 = vmatpush1.bf16.msra.mxu0 %v3300
      %3358 = vmatprep.subr.bf16.mxu0 0
      %3359 = vmatpush1.bf16.msra.mxu0 %v3299
      %3360 = vmatprep.subr.bf16.mxu0 0
      %3361 = vmatpush1.bf16.msra.mxu0 %v3298
      %3362 = vmatprep.subr.bf16.mxu0 0
      %3363 = vmatpush2.bf16.msra.mxu0 %v3313
      %3364 = vmatprep.subr.bf16.mxu0 0
      %3365 = vmatpush2.bf16.msra.mxu0 %v3312
      %3366 = vmatprep.subr.bf16.mxu0 0
      %3367 = vmatpush2.bf16.msra.mxu0 %v3311
      %3368 = vmatprep.subr.bf16.mxu0 0
      %3369 = vmatpush2.bf16.msra.mxu0 %v3310
      %3370 = vmatprep.subr.bf16.mxu0 0
      %3371 = vmatpush2.bf16.msra.mxu0 %v3309
      %3372 = vmatprep.subr.bf16.mxu0 0
      %3373 = vmatpush2.bf16.msra.mxu0 %v3308
      %3374 = vmatprep.subr.bf16.mxu0 0
      %3375 = vmatpush2.bf16.msra.mxu0 %v3307
      %3376 = vmatprep.subr.bf16.mxu0 0
      %3377 = vmatpush2.bf16.msra.mxu0 %v3306
      %3378 = vmatprep.mubr.bf16.mxu0 %v3179
      %3379 = vmatmul.mubr.bf16.gmra.mxu0 %v3178
      %v3380 = vpop.f32.mrf.mxu0
      %v3381 = vadd.f32 0.0, %v3380
      %v3382 = vpop.f32.mrf.mxu0
      %v3383 = vpop.f32.mrf.mxu0
      %v3384 = vadd.f32 0.0, %v3383
      %v3385 = vpop.f32.mrf.mxu0
      %3386 = vmatprep.mubr.bf16.mxu0 %v3182
      %3387 = vmatmul.mubr.bf16.gmra.mxu0 %v3181
      %v3388 = vpop.f32.mrf.mxu0
      %v3389 = vadd.f32 0.0, %v3388
      %v3390 = vpop.f32.mrf.mxu0
      %v3391 = vpop.f32.mrf.mxu0
      %v3392 = vadd.f32 0.0, %v3391
      %v3393 = vpop.f32.mrf.mxu0
      %3394 = vmatprep.mubr.bf16.mxu0 %v3185
      %3395 = vmatmul.mubr.bf16.gmra.mxu0 %v3184
      %v3396 = vpop.f32.mrf.mxu0
      %v3397 = vadd.f32 0.0, %v3396
      %v3398 = vpop.f32.mrf.mxu0
      %v3399 = vpop.f32.mrf.mxu0
      %v3400 = vadd.f32 0.0, %v3399
      %v3401 = vpop.f32.mrf.mxu0
      %3402 = vmatprep.mubr.bf16.mxu0 %v3188
      %3403 = vmatmul.mubr.bf16.gmra.mxu0 %v3187
      %v3404 = vpop.f32.mrf.mxu0
      %v3405 = vadd.f32 0.0, %v3404
      %v3406 = vpop.f32.mrf.mxu0
      %v3407 = vpop.f32.mrf.mxu0
      %v3408 = vadd.f32 0.0, %v3407
      %v3409 = vpop.f32.mrf.mxu0
      %3410 = vdwg.mxu0
      %3411 = vmatprep.subr.bf16.mxu0 0
      %3412 = vmatpush1.bf16.msra.mxu0 %v3321
      %3413 = vmatprep.subr.bf16.mxu0 0
      %3414 = vmatpush1.bf16.msra.mxu0 %v3320
      %3415 = vmatprep.subr.bf16.mxu0 0
      %3416 = vmatpush1.bf16.msra.mxu0 %v3319
      %3417 = vmatprep.subr.bf16.mxu0 0
      %3418 = vmatpush1.bf16.msra.mxu0 %v3318
      %3419 = vmatprep.subr.bf16.mxu0 0
      %3420 = vmatpush1.bf16.msra.mxu0 %v3317
      %3421 = vmatprep.subr.bf16.mxu0 0
      %3422 = vmatpush1.bf16.msra.mxu0 %v3316
      %3423 = vmatprep.subr.bf16.mxu0 0
      %3424 = vmatpush1.bf16.msra.mxu0 %v3315
      %3425 = vmatprep.subr.bf16.mxu0 0
      %3426 = vmatpush1.bf16.msra.mxu0 %v3314
      %3427 = vmatprep.subr.bf16.mxu0 0
      %3428 = vmatpush2.bf16.msra.mxu0 0
      %3429 = vmatprep.subr.bf16.mxu0 0
      %3430 = vmatpush2.bf16.msra.mxu0 0
      %3431 = vmatprep.subr.bf16.mxu0 0
      %3432 = vmatpush2.bf16.msra.mxu0 0
      %3433 = vmatprep.subr.bf16.mxu0 0
      %3434 = vmatpush2.bf16.msra.mxu0 0
      %3435 = vmatprep.subr.bf16.mxu0 0
      %3436 = vmatpush2.bf16.msra.mxu0 0
      %3437 = vmatprep.subr.bf16.mxu0 0
      %3438 = vmatpush2.bf16.msra.mxu0 0
      %3439 = vmatprep.subr.bf16.mxu0 0
      %3440 = vmatpush2.bf16.msra.mxu0 0
      %3441 = vmatprep.subr.bf16.mxu0 0
      %3442 = vmatpush2.bf16.msra.mxu0 0
      %3443 = vmatprep.mubr.bf16.mxu0 0
      %3444 = vmatmul.mubr.bf16.gmra.mxu0 %v3180
      %v3445 = vpop.f32.mrf.mxu0
      %v3446 = vadd.f32 %v3381, %v3445
      %v3447 = vpop.f32.mrf.mxu0
      %v3448 = vpop.f32.mrf.mxu0
      %v3449 = vadd.f32 %v3384, %v3448
      %v3450 = vpop.f32.mrf.mxu0
      %3451 = vmatprep.mubr.bf16.mxu0 0
      %3452 = vmatmul.mubr.bf16.gmra.mxu0 %v3183
      %v3453 = vpop.f32.mrf.mxu0
      %v3454 = vadd.f32 %v3389, %v3453
      %v3455 = vpop.f32.mrf.mxu0
      %v3456 = vpop.f32.mrf.mxu0
      %v3457 = vadd.f32 %v3392, %v3456
      %v3458 = vpop.f32.mrf.mxu0
      %3459 = vmatprep.mubr.bf16.mxu0 0
      %3460 = vmatmul.mubr.bf16.gmra.mxu0 %v3186
      %v3461 = vpop.f32.mrf.mxu0
      %v3462 = vadd.f32 %v3397, %v3461
      %v3463 = vpop.f32.mrf.mxu0
      %v3464 = vpop.f32.mrf.mxu0
      %v3465 = vadd.f32 %v3400, %v3464
      %v3466 = vpop.f32.mrf.mxu0
      %3467 = vmatprep.mubr.bf16.mxu0 0
      %3468 = vmatmul.mubr.bf16.gmra.mxu0 %v3189
      %v3469 = vpop.f32.mrf.mxu0
      %v3470 = vadd.f32 %v3405, %v3469
      %v3471 = vpop.f32.mrf.mxu0
      %v3472 = vpop.f32.mrf.mxu0
      %v3473 = vadd.f32 %v3408, %v3472
      %v3474 = vpop.f32.mrf.mxu0
      %3475 = vdwg.mxu0
      %v3476 = vld [vmem:[#allocation3] sm:$0xff]
      %v3477 = vld [vmem:[#allocation3 + $0x8] sm:$0xff]
      %v3478 = vld [vmem:[#allocation3 + $0x10] sm:$0xff]
      %v3479 = vld [vmem:[#allocation3 + $0x18] sm:$0xff]
      %v3480 = vld [vmem:[#allocation3 + $0x20] sm:$0xff]
      %v3481 = vld [vmem:[#allocation3 + $0x28] sm:$0xff]
      %v3482 = vld [vmem:[#allocation3 + $0x30] sm:$0xff]
      %v3483 = vld [vmem:[#allocation3 + $0x38] sm:$0xff]
      %v3484 = vadd.f32 %v3476, %v3446
      %v3485 = vadd.f32 %v3477, %v3449
      %v3486 = vadd.f32 %v3478, %v3454
      %v3487 = vadd.f32 %v3479, %v3457
      %v3488 = vadd.f32 %v3480, %v3462
      %v3489 = vadd.f32 %v3481, %v3465
      %v3490 = vadd.f32 %v3482, %v3470
      %v3491 = vadd.f32 %v3483, %v3473
      %3492 = vst [vmem:[#allocation3] sm:$0xff] %v3484
      %3493 = vst [vmem:[#allocation3 + $0x8] sm:$0xff] %v3485
      %3494 = vst [vmem:[#allocation3 + $0x10] sm:$0xff] %v3486
      %3495 = vst [vmem:[#allocation3 + $0x18] sm:$0xff] %v3487
      %3496 = vst [vmem:[#allocation3 + $0x20] sm:$0xff] %v3488
      %3497 = vst [vmem:[#allocation3 + $0x28] sm:$0xff] %v3489
      %3498 = vst [vmem:[#allocation3 + $0x30] sm:$0xff] %v3490
      %3499 = vst [vmem:[#allocation3 + $0x38] sm:$0xff] %v3491
      %v3500 = vunpack.c.l.b16 %v2699
      %v3501 = vunpack.c.l.b16 %v2739
      %s3502 = scalar_lea.vmem %s5, 960
      %v3503 = vld [vmem:[%s3502] sm:$0xf]
      %v3504 = vld [vmem:[%s3502 + $0x4] sm:$0xf]
      %v3505 = vld [vmem:[%s3502 + $0x8] sm:$0xf]
      %v3506 = vld [vmem:[%s3502 + $0xc] sm:$0xf]
      %v3507 = vld [vmem:[%s3502 + $0x10] sm:$0xf]
      %v3508 = vld [vmem:[%s3502 + $0x14] sm:$0xf]
      %v3509 = vld [vmem:[%s3502 + $0x18] sm:$0xf]
      %v3510 = vld [vmem:[%s3502 + $0x1c] sm:$0xf]
      %v3511 = vld [vmem:[%s3502 + $0x20] sm:$0xf]
      %v3512 = vld [vmem:[%s3502 + $0x24] sm:$0xf]
      %v3513 = vld [vmem:[%s3502 + $0x28] sm:$0xf]
      %v3514 = vld [vmem:[%s3502 + $0x2c] sm:$0xf]
      %v3515 = vld [vmem:[%s3502 + $0x30] sm:$0xf]
      %v3516 = vld [vmem:[%s3502 + $0x34] sm:$0xf]
      %v3517 = vld [vmem:[%s3502 + $0x38] sm:$0xf]
      %v3518 = vld [vmem:[%s3502 + $0x3c] sm:$0xf]
      %v3519 = vld [vmem:[%s3502 + $0x40] sm:$0xf]
      %v3520 = vld [vmem:[%s3502 + $0x44] sm:$0xf]
      %v3521 = vld [vmem:[%s3502 + $0x48] sm:$0xf]
      %v3522 = vld [vmem:[%s3502 + $0x4c] sm:$0xf]
      %v3523 = vld [vmem:[%s3502 + $0x50] sm:$0xf]
      %v3524 = vld [vmem:[%s3502 + $0x54] sm:$0xf]
      %v3525 = vld [vmem:[%s3502 + $0x58] sm:$0xf]
      %v3526 = vld [vmem:[%s3502 + $0x5c] sm:$0xf]
      %v3527 = vld [vmem:[%s3502 + $0x60] sm:$0xf]
      %v3528 = vld [vmem:[%s3502 + $0x64] sm:$0xf]
      %v3529 = vld [vmem:[%s3502 + $0x68] sm:$0xf]
      %v3530 = vld [vmem:[%s3502 + $0x6c] sm:$0xf]
      %v3531 = vld [vmem:[%s3502 + $0x70] sm:$0xf]
      %v3532 = vld [vmem:[%s3502 + $0x74] sm:$0xf]
      %v3533 = vld [vmem:[%s3502 + $0x78] sm:$0xf]
      %v3534 = vld [vmem:[%s3502 + $0x7c] sm:$0xf]
      %v3535 = vld [vmem:[%s3502 + $0x80] sm:$0xf]
      %v3536 = vld [vmem:[%s3502 + $0x84] sm:$0xf]
      %v3537 = vld [vmem:[%s3502 + $0x88] sm:$0xf]
      %v3538 = vld [vmem:[%s3502 + $0x8c] sm:$0xf]
      %v3539 = vld [vmem:[%s3502 + $0x90] sm:$0xf]
      %v3540 = vld [vmem:[%s3502 + $0x94] sm:$0xf]
      %v3541 = vld [vmem:[%s3502 + $0x98] sm:$0xf]
      %v3542 = vld [vmem:[%s3502 + $0x9c] sm:$0xf]
      %v3543 = vld [vmem:[%s3502 + $0xa0] sm:$0xf]
      %v3544 = vld [vmem:[%s3502 + $0xa4] sm:$0xf]
      %v3545 = vld [vmem:[%s3502 + $0xa8] sm:$0xf]
      %v3546 = vld [vmem:[%s3502 + $0xac] sm:$0xf]
      %v3547 = vld [vmem:[%s3502 + $0xb0] sm:$0xf]
      %v3548 = vld [vmem:[%s3502 + $0xb4] sm:$0xf]
      %v3549 = vld [vmem:[%s3502 + $0xb8] sm:$0xf]
      %v3550 = vld [vmem:[%s3502 + $0xbc] sm:$0xf]
      %v3551 = vpack.c.b16 %v2618, %v2616
      %v3552 = vpack.c.b16 %v3500, %v3127
      %v3553 = vpack.c.b16 %v3501, %v3128
      %v3605 = vunpack.c.l.b16 %v3503
      %v3606 = vunpack.c.l.b16 %v3504
      %v3607 = vunpack.c.l.b16 %v3505
      %v3608 = vunpack.c.l.b16 %v3506
      %v3609 = vunpack.c.l.b16 %v3507
      %v3610 = vunpack.c.l.b16 %v3508
      %v3611 = vunpack.c.l.b16 %v3509
      %v3612 = vunpack.c.l.b16 %v3510
      %v3613 = vunpack.c.l.b16 %v3511
      %v3614 = vunpack.c.l.b16 %v3512
      %v3615 = vunpack.c.l.b16 %v3513
      %v3616 = vunpack.c.l.b16 %v3514
      %v3617 = vunpack.c.l.b16 %v3515
      %v3618 = vunpack.c.l.b16 %v3516
      %v3619 = vunpack.c.l.b16 %v3517
      %v3620 = vunpack.c.l.b16 %v3518
      %v3621 = vunpack.c.l.b16 %v3519
      %v3622 = vunpack.c.l.b16 %v3520
      %v3623 = vunpack.c.l.b16 %v3521
      %v3624 = vunpack.c.l.b16 %v3522
      %v3625 = vunpack.c.l.b16 %v3523
      %v3626 = vunpack.c.l.b16 %v3524
      %v3627 = vunpack.c.l.b16 %v3525
      %v3628 = vunpack.c.l.b16 %v3526
      %v3629 = vunpack.c.l.b16 %v3527
      %v3630 = vunpack.c.l.b16 %v3528
      %v3631 = vunpack.c.l.b16 %v3529
      %v3632 = vunpack.c.l.b16 %v3530
      %v3633 = vunpack.c.l.b16 %v3531
      %v3634 = vunpack.c.l.b16 %v3532
      %v3635 = vunpack.c.l.b16 %v3533
      %v3636 = vunpack.c.l.b16 %v3534
      %v3637 = vunpack.c.l.b16 %v3535
      %v3638 = vunpack.c.l.b16 %v3536
      %v3639 = vunpack.c.l.b16 %v3537
      %v3640 = vunpack.c.l.b16 %v3538
      %v3641 = vunpack.c.l.b16 %v3539
      %v3642 = vunpack.c.l.b16 %v3540
      %v3643 = vunpack.c.l.b16 %v3541
      %v3644 = vunpack.c.l.b16 %v3542
      %v3645 = vunpack.c.l.b16 %v3543
      %v3646 = vunpack.c.l.b16 %v3544
      %v3647 = vunpack.c.l.b16 %v3545
      %v3648 = vunpack.c.l.b16 %v3546
      %v3649 = vunpack.c.l.b16 %v3547
      %v3650 = vunpack.c.l.b16 %v3548
      %v3651 = vunpack.c.l.b16 %v3549
      %v3652 = vunpack.c.l.b16 %v3550
      %v3653 = vpack.c.b16 %v3606, %v3605
      %v3654 = vpack.c.b16 %v3608, %v3607
      %v3655 = vpack.c.b16 %v3610, %v3609
      %v3656 = vpack.c.b16 %v3612, %v3611
      %v3657 = vpack.c.b16 %v3614, %v3613
      %v3658 = vpack.c.b16 %v3616, %v3615
      %v3659 = vpack.c.b16 %v3618, %v3617
      %v3660 = vpack.c.b16 %v3620, %v3619
      %v3661 = vpack.c.b16 %v3622, %v3621
      %v3662 = vpack.c.b16 %v3624, %v3623
      %v3663 = vpack.c.b16 %v3626, %v3625
      %v3664 = vpack.c.b16 %v3628, %v3627
      %v3665 = vpack.c.b16 %v3630, %v3629
      %v3666 = vpack.c.b16 %v3632, %v3631
      %v3667 = vpack.c.b16 %v3634, %v3633
      %v3668 = vpack.c.b16 %v3636, %v3635
      %v3669 = vpack.c.b16 %v3638, %v3637
      %v3670 = vpack.c.b16 %v3640, %v3639
      %v3671 = vpack.c.b16 %v3642, %v3641
      %v3672 = vpack.c.b16 %v3644, %v3643
      %v3673 = vpack.c.b16 %v3646, %v3645
      %v3674 = vpack.c.b16 %v3648, %v3647
      %v3675 = vpack.c.b16 %v3650, %v3649
      %v3676 = vpack.c.b16 %v3652, %v3651
      %3701 = vmatprep.subr.bf16.mxu0 0
      %3702 = vmatpush1.bf16.msra.mxu0 %v3660
      %3703 = vmatprep.subr.bf16.mxu0 0
      %3704 = vmatpush1.bf16.msra.mxu0 %v3659
      %3705 = vmatprep.subr.bf16.mxu0 0
      %3706 = vmatpush1.bf16.msra.mxu0 %v3658
      %3707 = vmatprep.subr.bf16.mxu0 0
      %3708 = vmatpush1.bf16.msra.mxu0 %v3657
      %3709 = vmatprep.subr.bf16.mxu0 0
      %3710 = vmatpush1.bf16.msra.mxu0 %v3656
      %3711 = vmatprep.subr.bf16.mxu0 0
      %3712 = vmatpush1.bf16.msra.mxu0 %v3655
      %3713 = vmatprep.subr.bf16.mxu0 0
      %3714 = vmatpush1.bf16.msra.mxu0 %v3654
      %3715 = vmatprep.subr.bf16.mxu0 0
      %3716 = vmatpush1.bf16.msra.mxu0 %v3653
      %3717 = vmatprep.subr.bf16.mxu0 0
      %3718 = vmatpush2.bf16.msra.mxu0 %v3668
      %3719 = vmatprep.subr.bf16.mxu0 0
      %3720 = vmatpush2.bf16.msra.mxu0 %v3667
      %3721 = vmatprep.subr.bf16.mxu0 0
      %3722 = vmatpush2.bf16.msra.mxu0 %v3666
      %3723 = vmatprep.subr.bf16.mxu0 0
      %3724 = vmatpush2.bf16.msra.mxu0 %v3665
      %3725 = vmatprep.subr.bf16.mxu0 0
      %3726 = vmatpush2.bf16.msra.mxu0 %v3664
      %3727 = vmatprep.subr.bf16.mxu0 0
      %3728 = vmatpush2.bf16.msra.mxu0 %v3663
      %3729 = vmatprep.subr.bf16.mxu0 0
      %3730 = vmatpush2.bf16.msra.mxu0 %v3662
      %3731 = vmatprep.subr.bf16.mxu0 0
      %3732 = vmatpush2.bf16.msra.mxu0 %v3661
      %3733 = vmatprep.mubr.bf16.mxu0 %v2809
      %3734 = vmatmul.mubr.bf16.gmra.mxu0 %v2808
      %v3735 = vpop.f32.mrf.mxu0
      %v3736 = vadd.f32 0.0, %v3735
      %v3737 = vpop.f32.mrf.mxu0
      %v3738 = vpop.f32.mrf.mxu0
      %v3739 = vadd.f32 0.0, %v3738
      %v3740 = vpop.f32.mrf.mxu0
      %3741 = vmatprep.mubr.bf16.mxu0 %v2812
      %3742 = vmatmul.mubr.bf16.gmra.mxu0 %v2811
      %v3743 = vpop.f32.mrf.mxu0
      %v3744 = vadd.f32 0.0, %v3743
      %v3745 = vpop.f32.mrf.mxu0
      %v3746 = vpop.f32.mrf.mxu0
      %v3747 = vadd.f32 0.0, %v3746
      %v3748 = vpop.f32.mrf.mxu0
      %3749 = vmatprep.mubr.bf16.mxu0 %v2815
      %3750 = vmatmul.mubr.bf16.gmra.mxu0 %v2814
      %v3751 = vpop.f32.mrf.mxu0
      %v3752 = vadd.f32 0.0, %v3751
      %v3753 = vpop.f32.mrf.mxu0
      %v3754 = vpop.f32.mrf.mxu0
      %v3755 = vadd.f32 0.0, %v3754
      %v3756 = vpop.f32.mrf.mxu0
      %3757 = vmatprep.mubr.bf16.mxu0 %v3552
      %3758 = vmatmul.mubr.bf16.gmra.mxu0 %v3551
      %v3759 = vpop.f32.mrf.mxu0
      %v3760 = vadd.f32 0.0, %v3759
      %v3761 = vpop.f32.mrf.mxu0
      %v3762 = vpop.f32.mrf.mxu0
      %v3763 = vadd.f32 0.0, %v3762
      %v3764 = vpop.f32.mrf.mxu0
      %3765 = vdwg.mxu0
      %3766 = vmatprep.subr.bf16.mxu0 0
      %3767 = vmatpush1.bf16.msra.mxu0 %v3676
      %3768 = vmatprep.subr.bf16.mxu0 0
      %3769 = vmatpush1.bf16.msra.mxu0 %v3675
      %3770 = vmatprep.subr.bf16.mxu0 0
      %3771 = vmatpush1.bf16.msra.mxu0 %v3674
      %3772 = vmatprep.subr.bf16.mxu0 0
      %3773 = vmatpush1.bf16.msra.mxu0 %v3673
      %3774 = vmatprep.subr.bf16.mxu0 0
      %3775 = vmatpush1.bf16.msra.mxu0 %v3672
      %3776 = vmatprep.subr.bf16.mxu0 0
      %3777 = vmatpush1.bf16.msra.mxu0 %v3671
      %3778 = vmatprep.subr.bf16.mxu0 0
      %3779 = vmatpush1.bf16.msra.mxu0 %v3670
      %3780 = vmatprep.subr.bf16.mxu0 0
      %3781 = vmatpush1.bf16.msra.mxu0 %v3669
      %3782 = vmatprep.subr.bf16.mxu0 0
      %3783 = vmatpush2.bf16.msra.mxu0 0
      %3784 = vmatprep.subr.bf16.mxu0 0
      %3785 = vmatpush2.bf16.msra.mxu0 0
      %3786 = vmatprep.subr.bf16.mxu0 0
      %3787 = vmatpush2.bf16.msra.mxu0 0
      %3788 = vmatprep.subr.bf16.mxu0 0
      %3789 = vmatpush2.bf16.msra.mxu0 0
      %3790 = vmatprep.subr.bf16.mxu0 0
      %3791 = vmatpush2.bf16.msra.mxu0 0
      %3792 = vmatprep.subr.bf16.mxu0 0
      %3793 = vmatpush2.bf16.msra.mxu0 0
      %3794 = vmatprep.subr.bf16.mxu0 0
      %3795 = vmatpush2.bf16.msra.mxu0 0
      %3796 = vmatprep.subr.bf16.mxu0 0
      %3797 = vmatpush2.bf16.msra.mxu0 0
      %3798 = vmatprep.mubr.bf16.mxu0 0
      %3799 = vmatmul.mubr.bf16.gmra.mxu0 %v2810
      %v3800 = vpop.f32.mrf.mxu0
      %v3801 = vadd.f32 %v3736, %v3800
      %v3802 = vpop.f32.mrf.mxu0
      %v3803 = vpop.f32.mrf.mxu0
      %v3804 = vadd.f32 %v3739, %v3803
      %v3805 = vpop.f32.mrf.mxu0
      %3806 = vmatprep.mubr.bf16.mxu0 0
      %3807 = vmatmul.mubr.bf16.gmra.mxu0 %v2813
      %v3808 = vpop.f32.mrf.mxu0
      %v3809 = vadd.f32 %v3744, %v3808
      %v3810 = vpop.f32.mrf.mxu0
      %v3811 = vpop.f32.mrf.mxu0
      %v3812 = vadd.f32 %v3747, %v3811
      %v3813 = vpop.f32.mrf.mxu0
      %3814 = vmatprep.mubr.bf16.mxu0 0
      %3815 = vmatmul.mubr.bf16.gmra.mxu0 %v2816
      %v3816 = vpop.f32.mrf.mxu0
      %v3817 = vadd.f32 %v3752, %v3816
      %v3818 = vpop.f32.mrf.mxu0
      %v3819 = vpop.f32.mrf.mxu0
      %v3820 = vadd.f32 %v3755, %v3819
      %v3821 = vpop.f32.mrf.mxu0
      %3822 = vmatprep.mubr.bf16.mxu0 0
      %3823 = vmatmul.mubr.bf16.gmra.mxu0 %v3553
      %v3824 = vpop.f32.mrf.mxu0
      %v3825 = vadd.f32 %v3760, %v3824
      %v3826 = vpop.f32.mrf.mxu0
      %v3827 = vpop.f32.mrf.mxu0
      %v3828 = vadd.f32 %v3763, %v3827
      %v3829 = vpop.f32.mrf.mxu0
      %3830 = vdwg.mxu0
      %v3831 = vld [vmem:[#allocation3] sm:$0xff]
      %v3832 = vld [vmem:[#allocation3 + $0x8] sm:$0xff]
      %v3833 = vld [vmem:[#allocation3 + $0x10] sm:$0xff]
      %v3834 = vld [vmem:[#allocation3 + $0x18] sm:$0xff]
      %v3835 = vld [vmem:[#allocation3 + $0x20] sm:$0xff]
      %v3836 = vld [vmem:[#allocation3 + $0x28] sm:$0xff]
      %v3837 = vld [vmem:[#allocation3 + $0x30] sm:$0xff]
      %v3838 = vld [vmem:[#allocation3 + $0x38] sm:$0xff]
      %v3839 = vadd.f32 %v3831, %v3801
      %v3840 = vadd.f32 %v3832, %v3804
      %v3841 = vadd.f32 %v3833, %v3809
      %v3842 = vadd.f32 %v3834, %v3812
      %v3843 = vadd.f32 %v3835, %v3817
      %v3844 = vadd.f32 %v3836, %v3820
      %v3845 = vadd.f32 %v3837, %v3825
      %v3846 = vadd.f32 %v3838, %v3828
      %3847 = vst [vmem:[#allocation3] sm:$0xff] %v3839
      %3848 = vst [vmem:[#allocation3 + $0x8] sm:$0xff] %v3840
      %3849 = vst [vmem:[#allocation3 + $0x10] sm:$0xff] %v3841
      %3850 = vst [vmem:[#allocation3 + $0x18] sm:$0xff] %v3842
      %3851 = vst [vmem:[#allocation3 + $0x20] sm:$0xff] %v3843
      %3852 = vst [vmem:[#allocation3 + $0x28] sm:$0xff] %v3844
      %3853 = vst [vmem:[#allocation3 + $0x30] sm:$0xff] %v3845
      %3854 = vst [vmem:[#allocation3 + $0x38] sm:$0xff] %v3846
      %s3855 = scalar_lea.vmem [#allocation2], 160
      %v3856 = vld [vmem:[%s3855] sm:$0xf]
      %v3857 = vld [vmem:[%s3855 + $0x8] sm:$0xf]
      %v3858 = vld [vmem:[%s3855 + $0x10] sm:$0xf]
      %v3859 = vld [vmem:[%s3855 + $0x18] sm:$0xf]
      %v3860 = vld [vmem:[%s3855 + $0x20] sm:$0xf]
      %v3861 = vld [vmem:[%s3855 + $0x28] sm:$0xf]
      %v3862 = vld [vmem:[%s3855 + $0x30] sm:$0xf]
      %v3863 = vld [vmem:[%s3855 + $0x38] sm:$0xf]
      %v3864 = vld [vmem:[%s3855 + $0x40] sm:$0xf]
      %v3865 = vld [vmem:[%s3855 + $0x48] sm:$0xf]
      %v3866 = vld [vmem:[%s3855 + $0x4] sm:$0x1]
      %v3867 = vld [vmem:[%s3855 + $0xc] sm:$0x1]
      %v3868 = vld [vmem:[%s3855 + $0x14] sm:$0x1]
      %v3869 = vld [vmem:[%s3855 + $0x1c] sm:$0x1]
      %v3870 = vld [vmem:[%s3855 + $0x24] sm:$0x1]
      %v3871 = vld [vmem:[%s3855 + $0x2c] sm:$0x1]
      %v3872 = vld [vmem:[%s3855 + $0x34] sm:$0x1]
      %v3873 = vld [vmem:[%s3855 + $0x3c] sm:$0x1]
      %v3874 = vld [vmem:[%s3855 + $0x44] sm:$0x1]
      %v3875 = vld [vmem:[%s3855 + $0x4c] sm:$0x1]
      %v3876 = vld [vmem:[%s3855] sm:$0xe]
      %v3877 = vld [vmem:[%s3855 + $0x8] sm:$0xe]
      %v3878 = vld [vmem:[%s3855 + $0x10] sm:$0xe]
      %v3879 = vld [vmem:[%s3855 + $0x18] sm:$0xe]
      %v3880 = vld [vmem:[%s3855 + $0x20] sm:$0xe]
      %v3881 = vld [vmem:[%s3855 + $0x28] sm:$0xe]
      %v3882 = vld [vmem:[%s3855 + $0x30] sm:$0xe]
      %v3883 = vld [vmem:[%s3855 + $0x38] sm:$0xe]
      %v3884 = vld [vmem:[%s3855 + $0x40] sm:$0xe]
      %v3885 = vld [vmem:[%s3855 + $0x48] sm:$0xe]
      %v3906 = vunpack.c.l.b16 %v3856
      %v3907 = vunpack.c.l.b16 %v3866
      %v3908 = vunpack.c.l.b16 %v3857
      %v3909 = vunpack.c.l.b16 %v3867
      %v3910 = vunpack.c.l.b16 %v3858
      %v3911 = vunpack.c.l.b16 %v3868
      %v3912 = vunpack.c.l.b16 %v3859
      %v3913 = vunpack.c.l.b16 %v3869
      %v3914 = vunpack.c.l.b16 %v3860
      %v3915 = vunpack.c.l.b16 %v3870
      %v3916 = vunpack.c.l.b16 %v3861
      %v3917 = vunpack.c.l.b16 %v3871
      %v3918 = vunpack.c.l.b16 %v3862
      %v3919 = vunpack.c.l.b16 %v3872
      %v3920 = vunpack.c.l.b16 %v3863
      %v3921 = vunpack.c.l.b16 %v3873
      %v3922 = vunpack.c.l.b16 %v3864
      %v3923 = vunpack.c.l.b16 %v3874
      %v3924 = vunpack.c.l.b16 %v3865
      %v3925 = vunpack.c.l.b16 %v3875
      %v3926 = vpack.c.b16 %v3907, %v3906
      %v3927 = vpack.c.b16 %v3909, %v3908
      %v3928 = vpack.c.b16 %v3911, %v3910
      %v3929 = vpack.c.b16 %v3913, %v3912
      %v3930 = vpack.c.b16 %v3915, %v3914
      %v3931 = vpack.c.b16 %v3917, %v3916
      %v3932 = vpack.c.b16 %v3919, %v3918
      %v3933 = vpack.c.b16 %v3921, %v3920
      %v3934 = vpack.c.b16 %v3923, %v3922
      %v3935 = vpack.c.b16 %v3925, %v3924
      %v3937 = vshrl.u32 %v3926, 16
      %v3939 = vshll.u32 %v3926, 16
      %v3941 = vrot.slane %v3939, 1
      %v3942 = vor.u32 %v3937, %v3941
      %v3944 = vshrl.u32 %v3927, 16
      %v3946 = vshll.u32 %v3927, 16
      %v3948 = vrot.slane %v3946, 1
      %v3949 = vor.u32 %v3944, %v3948
      %v3951 = vshrl.u32 %v3928, 16
      %v3953 = vshll.u32 %v3928, 16
      %v3955 = vrot.slane %v3953, 1
      %v3956 = vor.u32 %v3951, %v3955
      %v3958 = vshrl.u32 %v3929, 16
      %v3960 = vshll.u32 %v3929, 16
      %v3962 = vrot.slane %v3960, 1
      %v3963 = vor.u32 %v3958, %v3962
      %v3965 = vshrl.u32 %v3930, 16
      %v3967 = vshll.u32 %v3930, 16
      %v3969 = vrot.slane %v3967, 1
      %v3970 = vor.u32 %v3965, %v3969
      %v3972 = vshrl.u32 %v3931, 16
      %v3974 = vshll.u32 %v3931, 16
      %v3976 = vrot.slane %v3974, 1
      %v3977 = vor.u32 %v3972, %v3976
      %v3979 = vshrl.u32 %v3932, 16
      %v3981 = vshll.u32 %v3932, 16
      %v3983 = vrot.slane %v3981, 1
      %v3984 = vor.u32 %v3979, %v3983
      %v3986 = vshrl.u32 %v3933, 16
      %v3988 = vshll.u32 %v3933, 16
      %v3990 = vrot.slane %v3988, 1
      %v3991 = vor.u32 %v3986, %v3990
      %v3993 = vshrl.u32 %v3934, 16
      %v3995 = vshll.u32 %v3934, 16
      %v3997 = vrot.slane %v3995, 1
      %v3998 = vor.u32 %v3993, %v3997
      %v4000 = vshrl.u32 %v3935, 16
      %v4002 = vshll.u32 %v3935, 16
      %v4004 = vrot.slane %v4002, 1
      %v4005 = vor.u32 %v4000, %v4004
      %v4016 = vunpack.c.l.b16 %v3876
      %v4017 = vunpack.c.l.b16 %v3877
      %v4018 = vunpack.c.l.b16 %v3878
      %v4019 = vunpack.c.l.b16 %v3879
      %v4020 = vunpack.c.l.b16 %v3880
      %v4021 = vunpack.c.l.b16 %v3881
      %v4022 = vunpack.c.l.b16 %v3882
      %v4023 = vunpack.c.l.b16 %v3883
      %v4024 = vunpack.c.l.b16 %v3884
      %v4025 = vunpack.c.l.b16 %v3885
      %v4026 = vpack.c.b16 %v3907, %v4016
      %v4027 = vpack.c.b16 %v3909, %v4017
      %v4028 = vpack.c.b16 %v3911, %v4018
      %v4029 = vpack.c.b16 %v3913, %v4019
      %v4030 = vpack.c.b16 %v3915, %v4020
      %v4031 = vpack.c.b16 %v3917, %v4021
      %v4032 = vpack.c.b16 %v3919, %v4022
      %v4033 = vpack.c.b16 %v3921, %v4023
      %v4034 = vpack.c.b16 %v3923, %v4024
      %v4035 = vpack.c.b16 %v3925, %v4025
      %v4036 = vrot.slane %v4026, 1
      %v4037 = vrot.slane %v4027, 1
      %v4038 = vrot.slane %v4028, 1
      %v4039 = vrot.slane %v4029, 1
      %v4040 = vrot.slane %v4030, 1
      %v4041 = vrot.slane %v4031, 1
      %v4042 = vrot.slane %v4032, 1
      %v4043 = vrot.slane %v4033, 1
      %v4044 = vrot.slane %v4034, 1
      %v4045 = vrot.slane %v4035, 1
      %v4046 = vunpack.c.l.b16 %v3942
      %v4047 = vunpack.c.l.b16 %v4036
      %v4048 = vunpack.c.l.b16 %v3949
      %v4049 = vunpack.c.l.b16 %v4037
      %v4050 = vunpack.c.l.b16 %v3956
      %v4051 = vunpack.c.l.b16 %v4038
      %v4052 = vunpack.c.l.b16 %v3963
      %v4053 = vunpack.c.l.b16 %v4039
      %v4054 = vunpack.c.l.b16 %v3970
      %v4055 = vunpack.c.l.b16 %v4040
      %v4056 = vunpack.c.l.b16 %v3977
      %v4057 = vunpack.c.l.b16 %v4041
      %v4058 = vunpack.c.l.b16 %v3984
      %v4059 = vunpack.c.l.b16 %v4042
      %v4060 = vunpack.c.l.b16 %v3991
      %v4061 = vunpack.c.l.b16 %v4043
      %s4062 = scalar_lea.vmem %s5, 1152
      %v4063 = vld [vmem:[%s4062] sm:$0xf]
      %v4064 = vld [vmem:[%s4062 + $0x4] sm:$0xf]
      %v4065 = vld [vmem:[%s4062 + $0x8] sm:$0xf]
      %v4066 = vld [vmem:[%s4062 + $0xc] sm:$0xf]
      %v4067 = vld [vmem:[%s4062 + $0x10] sm:$0xf]
      %v4068 = vld [vmem:[%s4062 + $0x14] sm:$0xf]
      %v4069 = vld [vmem:[%s4062 + $0x18] sm:$0xf]
      %v4070 = vld [vmem:[%s4062 + $0x1c] sm:$0xf]
      %v4071 = vld [vmem:[%s4062 + $0x20] sm:$0xf]
      %v4072 = vld [vmem:[%s4062 + $0x24] sm:$0xf]
      %v4073 = vld [vmem:[%s4062 + $0x28] sm:$0xf]
      %v4074 = vld [vmem:[%s4062 + $0x2c] sm:$0xf]
      %v4075 = vld [vmem:[%s4062 + $0x30] sm:$0xf]
      %v4076 = vld [vmem:[%s4062 + $0x34] sm:$0xf]
      %v4077 = vld [vmem:[%s4062 + $0x38] sm:$0xf]
      %v4078 = vld [vmem:[%s4062 + $0x3c] sm:$0xf]
      %v4079 = vld [vmem:[%s4062 + $0x40] sm:$0xf]
      %v4080 = vld [vmem:[%s4062 + $0x44] sm:$0xf]
      %v4081 = vld [vmem:[%s4062 + $0x48] sm:$0xf]
      %v4082 = vld [vmem:[%s4062 + $0x4c] sm:$0xf]
      %v4083 = vld [vmem:[%s4062 + $0x50] sm:$0xf]
      %v4084 = vld [vmem:[%s4062 + $0x54] sm:$0xf]
      %v4085 = vld [vmem:[%s4062 + $0x58] sm:$0xf]
      %v4086 = vld [vmem:[%s4062 + $0x5c] sm:$0xf]
      %v4087 = vld [vmem:[%s4062 + $0x60] sm:$0xf]
      %v4088 = vld [vmem:[%s4062 + $0x64] sm:$0xf]
      %v4089 = vld [vmem:[%s4062 + $0x68] sm:$0xf]
      %v4090 = vld [vmem:[%s4062 + $0x6c] sm:$0xf]
      %v4091 = vld [vmem:[%s4062 + $0x70] sm:$0xf]
      %v4092 = vld [vmem:[%s4062 + $0x74] sm:$0xf]
      %v4093 = vld [vmem:[%s4062 + $0x78] sm:$0xf]
      %v4094 = vld [vmem:[%s4062 + $0x7c] sm:$0xf]
      %v4095 = vld [vmem:[%s4062 + $0x80] sm:$0xf]
      %v4096 = vld [vmem:[%s4062 + $0x84] sm:$0xf]
      %v4097 = vld [vmem:[%s4062 + $0x88] sm:$0xf]
      %v4098 = vld [vmem:[%s4062 + $0x8c] sm:$0xf]
      %v4099 = vld [vmem:[%s4062 + $0x90] sm:$0xf]
      %v4100 = vld [vmem:[%s4062 + $0x94] sm:$0xf]
      %v4101 = vld [vmem:[%s4062 + $0x98] sm:$0xf]
      %v4102 = vld [vmem:[%s4062 + $0x9c] sm:$0xf]
      %v4103 = vld [vmem:[%s4062 + $0xa0] sm:$0xf]
      %v4104 = vld [vmem:[%s4062 + $0xa4] sm:$0xf]
      %v4105 = vld [vmem:[%s4062 + $0xa8] sm:$0xf]
      %v4106 = vld [vmem:[%s4062 + $0xac] sm:$0xf]
      %v4107 = vld [vmem:[%s4062 + $0xb0] sm:$0xf]
      %v4108 = vld [vmem:[%s4062 + $0xb4] sm:$0xf]
      %v4109 = vld [vmem:[%s4062 + $0xb8] sm:$0xf]
      %v4110 = vld [vmem:[%s4062 + $0xbc] sm:$0xf]
      %v4111 = vpack.c.b16 %v3908, %v3906
      %v4112 = vpack.c.b16 %v4048, %v4046
      %v4113 = vpack.c.b16 %v4049, %v4047
      %v4114 = vpack.c.b16 %v3912, %v3910
      %v4115 = vpack.c.b16 %v4052, %v4050
      %v4116 = vpack.c.b16 %v4053, %v4051
      %v4117 = vpack.c.b16 %v3916, %v3914
      %v4118 = vpack.c.b16 %v4056, %v4054
      %v4119 = vpack.c.b16 %v4057, %v4055
      %v4120 = vpack.c.b16 %v3920, %v3918
      %v4121 = vpack.c.b16 %v4060, %v4058
      %v4122 = vpack.c.b16 %v4061, %v4059
      %v4183 = vunpack.c.l.b16 %v4063
      %v4184 = vunpack.c.l.b16 %v4064
      %v4185 = vunpack.c.l.b16 %v4065
      %v4186 = vunpack.c.l.b16 %v4066
      %v4187 = vunpack.c.l.b16 %v4067
      %v4188 = vunpack.c.l.b16 %v4068
      %v4189 = vunpack.c.l.b16 %v4069
      %v4190 = vunpack.c.l.b16 %v4070
      %v4191 = vunpack.c.l.b16 %v4071
      %v4192 = vunpack.c.l.b16 %v4072
      %v4193 = vunpack.c.l.b16 %v4073
      %v4194 = vunpack.c.l.b16 %v4074
      %v4195 = vunpack.c.l.b16 %v4075
      %v4196 = vunpack.c.l.b16 %v4076
      %v4197 = vunpack.c.l.b16 %v4077
      %v4198 = vunpack.c.l.b16 %v4078
      %v4199 = vunpack.c.l.b16 %v4079
      %v4200 = vunpack.c.l.b16 %v4080
      %v4201 = vunpack.c.l.b16 %v4081
      %v4202 = vunpack.c.l.b16 %v4082
      %v4203 = vunpack.c.l.b16 %v4083
      %v4204 = vunpack.c.l.b16 %v4084
      %v4205 = vunpack.c.l.b16 %v4085
      %v4206 = vunpack.c.l.b16 %v4086
      %v4207 = vunpack.c.l.b16 %v4087
      %v4208 = vunpack.c.l.b16 %v4088
      %v4209 = vunpack.c.l.b16 %v4089
      %v4210 = vunpack.c.l.b16 %v4090
      %v4211 = vunpack.c.l.b16 %v4091
      %v4212 = vunpack.c.l.b16 %v4092
      %v4213 = vunpack.c.l.b16 %v4093
      %v4214 = vunpack.c.l.b16 %v4094
      %v4215 = vunpack.c.l.b16 %v4095
      %v4216 = vunpack.c.l.b16 %v4096
      %v4217 = vunpack.c.l.b16 %v4097
      %v4218 = vunpack.c.l.b16 %v4098
      %v4219 = vunpack.c.l.b16 %v4099
      %v4220 = vunpack.c.l.b16 %v4100
      %v4221 = vunpack.c.l.b16 %v4101
      %v4222 = vunpack.c.l.b16 %v4102
      %v4223 = vunpack.c.l.b16 %v4103
      %v4224 = vunpack.c.l.b16 %v4104
      %v4225 = vunpack.c.l.b16 %v4105
      %v4226 = vunpack.c.l.b16 %v4106
      %v4227 = vunpack.c.l.b16 %v4107
      %v4228 = vunpack.c.l.b16 %v4108
      %v4229 = vunpack.c.l.b16 %v4109
      %v4230 = vunpack.c.l.b16 %v4110
      %v4231 = vpack.c.b16 %v4184, %v4183
      %v4232 = vpack.c.b16 %v4186, %v4185
      %v4233 = vpack.c.b16 %v4188, %v4187
      %v4234 = vpack.c.b16 %v4190, %v4189
      %v4235 = vpack.c.b16 %v4192, %v4191
      %v4236 = vpack.c.b16 %v4194, %v4193
      %v4237 = vpack.c.b16 %v4196, %v4195
      %v4238 = vpack.c.b16 %v4198, %v4197
      %v4239 = vpack.c.b16 %v4200, %v4199
      %v4240 = vpack.c.b16 %v4202, %v4201
      %v4241 = vpack.c.b16 %v4204, %v4203
      %v4242 = vpack.c.b16 %v4206, %v4205
      %v4243 = vpack.c.b16 %v4208, %v4207
      %v4244 = vpack.c.b16 %v4210, %v4209
      %v4245 = vpack.c.b16 %v4212, %v4211
      %v4246 = vpack.c.b16 %v4214, %v4213
      %v4247 = vpack.c.b16 %v4216, %v4215
      %v4248 = vpack.c.b16 %v4218, %v4217
      %v4249 = vpack.c.b16 %v4220, %v4219
      %v4250 = vpack.c.b16 %v4222, %v4221
      %v4251 = vpack.c.b16 %v4224, %v4223
      %v4252 = vpack.c.b16 %v4226, %v4225
      %v4253 = vpack.c.b16 %v4228, %v4227
      %v4254 = vpack.c.b16 %v4230, %v4229
      %4279 = vmatprep.subr.bf16.mxu0 0
      %4280 = vmatpush1.bf16.msra.mxu0 %v4238
      %4281 = vmatprep.subr.bf16.mxu0 0
      %4282 = vmatpush1.bf16.msra.mxu0 %v4237
      %4283 = vmatprep.subr.bf16.mxu0 0
      %4284 = vmatpush1.bf16.msra.mxu0 %v4236
      %4285 = vmatprep.subr.bf16.mxu0 0
      %4286 = vmatpush1.bf16.msra.mxu0 %v4235
      %4287 = vmatprep.subr.bf16.mxu0 0
      %4288 = vmatpush1.bf16.msra.mxu0 %v4234
      %4289 = vmatprep.subr.bf16.mxu0 0
      %4290 = vmatpush1.bf16.msra.mxu0 %v4233
      %4291 = vmatprep.subr.bf16.mxu0 0
      %4292 = vmatpush1.bf16.msra.mxu0 %v4232
      %4293 = vmatprep.subr.bf16.mxu0 0
      %4294 = vmatpush1.bf16.msra.mxu0 %v4231
      %4295 = vmatprep.subr.bf16.mxu0 0
      %4296 = vmatpush2.bf16.msra.mxu0 %v4246
      %4297 = vmatprep.subr.bf16.mxu0 0
      %4298 = vmatpush2.bf16.msra.mxu0 %v4245
      %4299 = vmatprep.subr.bf16.mxu0 0
      %4300 = vmatpush2.bf16.msra.mxu0 %v4244
      %4301 = vmatprep.subr.bf16.mxu0 0
      %4302 = vmatpush2.bf16.msra.mxu0 %v4243
      %4303 = vmatprep.subr.bf16.mxu0 0
      %4304 = vmatpush2.bf16.msra.mxu0 %v4242
      %4305 = vmatprep.subr.bf16.mxu0 0
      %4306 = vmatpush2.bf16.msra.mxu0 %v4241
      %4307 = vmatprep.subr.bf16.mxu0 0
      %4308 = vmatpush2.bf16.msra.mxu0 %v4240
      %4309 = vmatprep.subr.bf16.mxu0 0
      %4310 = vmatpush2.bf16.msra.mxu0 %v4239
      %4311 = vmatprep.mubr.bf16.mxu0 %v4112
      %4312 = vmatmul.mubr.bf16.gmra.mxu0 %v4111
      %v4313 = vpop.f32.mrf.mxu0
      %v4314 = vadd.f32 0.0, %v4313
      %v4315 = vpop.f32.mrf.mxu0
      %v4316 = vpop.f32.mrf.mxu0
      %v4317 = vadd.f32 0.0, %v4316
      %v4318 = vpop.f32.mrf.mxu0
      %4319 = vmatprep.mubr.bf16.mxu0 %v4115
      %4320 = vmatmul.mubr.bf16.gmra.mxu0 %v4114
      %v4321 = vpop.f32.mrf.mxu0
      %v4322 = vadd.f32 0.0, %v4321
      %v4323 = vpop.f32.mrf.mxu0
      %v4324 = vpop.f32.mrf.mxu0
      %v4325 = vadd.f32 0.0, %v4324
      %v4326 = vpop.f32.mrf.mxu0
      %4327 = vmatprep.mubr.bf16.mxu0 %v4118
      %4328 = vmatmul.mubr.bf16.gmra.mxu0 %v4117
      %v4329 = vpop.f32.mrf.mxu0
      %v4330 = vadd.f32 0.0, %v4329
      %v4331 = vpop.f32.mrf.mxu0
      %v4332 = vpop.f32.mrf.mxu0
      %v4333 = vadd.f32 0.0, %v4332
      %v4334 = vpop.f32.mrf.mxu0
      %4335 = vmatprep.mubr.bf16.mxu0 %v4121
      %4336 = vmatmul.mubr.bf16.gmra.mxu0 %v4120
      %v4337 = vpop.f32.mrf.mxu0
      %v4338 = vadd.f32 0.0, %v4337
      %v4339 = vpop.f32.mrf.mxu0
      %v4340 = vpop.f32.mrf.mxu0
      %v4341 = vadd.f32 0.0, %v4340
      %v4342 = vpop.f32.mrf.mxu0
      %4343 = vdwg.mxu0
      %4344 = vmatprep.subr.bf16.mxu0 0
      %4345 = vmatpush1.bf16.msra.mxu0 %v4254
      %4346 = vmatprep.subr.bf16.mxu0 0
      %4347 = vmatpush1.bf16.msra.mxu0 %v4253
      %4348 = vmatprep.subr.bf16.mxu0 0
      %4349 = vmatpush1.bf16.msra.mxu0 %v4252
      %4350 = vmatprep.subr.bf16.mxu0 0
      %4351 = vmatpush1.bf16.msra.mxu0 %v4251
      %4352 = vmatprep.subr.bf16.mxu0 0
      %4353 = vmatpush1.bf16.msra.mxu0 %v4250
      %4354 = vmatprep.subr.bf16.mxu0 0
      %4355 = vmatpush1.bf16.msra.mxu0 %v4249
      %4356 = vmatprep.subr.bf16.mxu0 0
      %4357 = vmatpush1.bf16.msra.mxu0 %v4248
      %4358 = vmatprep.subr.bf16.mxu0 0
      %4359 = vmatpush1.bf16.msra.mxu0 %v4247
      %4360 = vmatprep.subr.bf16.mxu0 0
      %4361 = vmatpush2.bf16.msra.mxu0 0
      %4362 = vmatprep.subr.bf16.mxu0 0
      %4363 = vmatpush2.bf16.msra.mxu0 0
      %4364 = vmatprep.subr.bf16.mxu0 0
      %4365 = vmatpush2.bf16.msra.mxu0 0
      %4366 = vmatprep.subr.bf16.mxu0 0
      %4367 = vmatpush2.bf16.msra.mxu0 0
      %4368 = vmatprep.subr.bf16.mxu0 0
      %4369 = vmatpush2.bf16.msra.mxu0 0
      %4370 = vmatprep.subr.bf16.mxu0 0
      %4371 = vmatpush2.bf16.msra.mxu0 0
      %4372 = vmatprep.subr.bf16.mxu0 0
      %4373 = vmatpush2.bf16.msra.mxu0 0
      %4374 = vmatprep.subr.bf16.mxu0 0
      %4375 = vmatpush2.bf16.msra.mxu0 0
      %4376 = vmatprep.mubr.bf16.mxu0 0
      %4377 = vmatmul.mubr.bf16.gmra.mxu0 %v4113
      %v4378 = vpop.f32.mrf.mxu0
      %v4379 = vadd.f32 %v4314, %v4378
      %v4380 = vpop.f32.mrf.mxu0
      %v4381 = vpop.f32.mrf.mxu0
      %v4382 = vadd.f32 %v4317, %v4381
      %v4383 = vpop.f32.mrf.mxu0
      %4384 = vmatprep.mubr.bf16.mxu0 0
      %4385 = vmatmul.mubr.bf16.gmra.mxu0 %v4116
      %v4386 = vpop.f32.mrf.mxu0
      %v4387 = vadd.f32 %v4322, %v4386
      %v4388 = vpop.f32.mrf.mxu0
      %v4389 = vpop.f32.mrf.mxu0
      %v4390 = vadd.f32 %v4325, %v4389
      %v4391 = vpop.f32.mrf.mxu0
      %4392 = vmatprep.mubr.bf16.mxu0 0
      %4393 = vmatmul.mubr.bf16.gmra.mxu0 %v4119
      %v4394 = vpop.f32.mrf.mxu0
      %v4395 = vadd.f32 %v4330, %v4394
      %v4396 = vpop.f32.mrf.mxu0
      %v4397 = vpop.f32.mrf.mxu0
      %v4398 = vadd.f32 %v4333, %v4397
      %v4399 = vpop.f32.mrf.mxu0
      %4400 = vmatprep.mubr.bf16.mxu0 0
      %4401 = vmatmul.mubr.bf16.gmra.mxu0 %v4122
      %v4402 = vpop.f32.mrf.mxu0
      %v4403 = vadd.f32 %v4338, %v4402
      %v4404 = vpop.f32.mrf.mxu0
      %v4405 = vpop.f32.mrf.mxu0
      %v4406 = vadd.f32 %v4341, %v4405
      %v4407 = vpop.f32.mrf.mxu0
      %4408 = vdwg.mxu0
      %v4409 = vld [vmem:[#allocation3] sm:$0xff]
      %v4410 = vld [vmem:[#allocation3 + $0x8] sm:$0xff]
      %v4411 = vld [vmem:[#allocation3 + $0x10] sm:$0xff]
      %v4412 = vld [vmem:[#allocation3 + $0x18] sm:$0xff]
      %v4413 = vld [vmem:[#allocation3 + $0x20] sm:$0xff]
      %v4414 = vld [vmem:[#allocation3 + $0x28] sm:$0xff]
      %v4415 = vld [vmem:[#allocation3 + $0x30] sm:$0xff]
      %v4416 = vld [vmem:[#allocation3 + $0x38] sm:$0xff]
      %v4417 = vadd.f32 %v4409, %v4379
      %v4418 = vadd.f32 %v4410, %v4382
      %v4419 = vadd.f32 %v4411, %v4387
      %v4420 = vadd.f32 %v4412, %v4390
      %v4421 = vadd.f32 %v4413, %v4395
      %v4422 = vadd.f32 %v4414, %v4398
      %v4423 = vadd.f32 %v4415, %v4403
      %v4424 = vadd.f32 %v4416, %v4406
      %4425 = vst [vmem:[#allocation3] sm:$0xff] %v4417
      %4426 = vst [vmem:[#allocation3 + $0x8] sm:$0xff] %v4418
      %4427 = vst [vmem:[#allocation3 + $0x10] sm:$0xff] %v4419
      %4428 = vst [vmem:[#allocation3 + $0x18] sm:$0xff] %v4420
      %4429 = vst [vmem:[#allocation3 + $0x20] sm:$0xff] %v4421
      %4430 = vst [vmem:[#allocation3 + $0x28] sm:$0xff] %v4422
      %4431 = vst [vmem:[#allocation3 + $0x30] sm:$0xff] %v4423
      %4432 = vst [vmem:[#allocation3 + $0x38] sm:$0xff] %v4424
      %v4433 = vunpack.c.l.b16 %v3998
      %v4434 = vunpack.c.l.b16 %v4044
      %s4435 = scalar_lea.vmem %s5, 1344
      %v4436 = vld [vmem:[%s4435] sm:$0xf]
      %v4437 = vld [vmem:[%s4435 + $0x4] sm:$0xf]
      %v4438 = vld [vmem:[%s4435 + $0x8] sm:$0xf]
      %v4439 = vld [vmem:[%s4435 + $0xc] sm:$0xf]
      %v4440 = vld [vmem:[%s4435 + $0x10] sm:$0xf]
      %v4441 = vld [vmem:[%s4435 + $0x14] sm:$0xf]
      %v4442 = vld [vmem:[%s4435 + $0x18] sm:$0xf]
      %v4443 = vld [vmem:[%s4435 + $0x1c] sm:$0xf]
      %v4444 = vld [vmem:[%s4435 + $0x20] sm:$0xf]
      %v4445 = vld [vmem:[%s4435 + $0x24] sm:$0xf]
      %v4446 = vld [vmem:[%s4435 + $0x28] sm:$0xf]
      %v4447 = vld [vmem:[%s4435 + $0x2c] sm:$0xf]
      %v4448 = vld [vmem:[%s4435 + $0x30] sm:$0xf]
      %v4449 = vld [vmem:[%s4435 + $0x34] sm:$0xf]
      %v4450 = vld [vmem:[%s4435 + $0x38] sm:$0xf]
      %v4451 = vld [vmem:[%s4435 + $0x3c] sm:$0xf]
      %v4452 = vld [vmem:[%s4435 + $0x40] sm:$0xf]
      %v4453 = vld [vmem:[%s4435 + $0x44] sm:$0xf]
      %v4454 = vld [vmem:[%s4435 + $0x48] sm:$0xf]
      %v4455 = vld [vmem:[%s4435 + $0x4c] sm:$0xf]
      %v4456 = vld [vmem:[%s4435 + $0x50] sm:$0xf]
      %v4457 = vld [vmem:[%s4435 + $0x54] sm:$0xf]
      %v4458 = vld [vmem:[%s4435 + $0x58] sm:$0xf]
      %v4459 = vld [vmem:[%s4435 + $0x5c] sm:$0xf]
      %v4460 = vld [vmem:[%s4435 + $0x60] sm:$0xf]
      %v4461 = vld [vmem:[%s4435 + $0x64] sm:$0xf]
      %v4462 = vld [vmem:[%s4435 + $0x68] sm:$0xf]
      %v4463 = vld [vmem:[%s4435 + $0x6c] sm:$0xf]
      %v4464 = vld [vmem:[%s4435 + $0x70] sm:$0xf]
      %v4465 = vld [vmem:[%s4435 + $0x74] sm:$0xf]
      %v4466 = vld [vmem:[%s4435 + $0x78] sm:$0xf]
      %v4467 = vld [vmem:[%s4435 + $0x7c] sm:$0xf]
      %v4468 = vld [vmem:[%s4435 + $0x80] sm:$0xf]
      %v4469 = vld [vmem:[%s4435 + $0x84] sm:$0xf]
      %v4470 = vld [vmem:[%s4435 + $0x88] sm:$0xf]
      %v4471 = vld [vmem:[%s4435 + $0x8c] sm:$0xf]
      %v4472 = vld [vmem:[%s4435 + $0x90] sm:$0xf]
      %v4473 = vld [vmem:[%s4435 + $0x94] sm:$0xf]
      %v4474 = vld [vmem:[%s4435 + $0x98] sm:$0xf]
      %v4475 = vld [vmem:[%s4435 + $0x9c] sm:$0xf]
      %v4476 = vld [vmem:[%s4435 + $0xa0] sm:$0xf]
      %v4477 = vld [vmem:[%s4435 + $0xa4] sm:$0xf]
      %v4478 = vld [vmem:[%s4435 + $0xa8] sm:$0xf]
      %v4479 = vld [vmem:[%s4435 + $0xac] sm:$0xf]
      %v4480 = vld [vmem:[%s4435 + $0xb0] sm:$0xf]
      %v4481 = vld [vmem:[%s4435 + $0xb4] sm:$0xf]
      %v4482 = vld [vmem:[%s4435 + $0xb8] sm:$0xf]
      %v4483 = vld [vmem:[%s4435 + $0xbc] sm:$0xf]
      %v4484 = vpack.c.b16 %v3910, %v3908
      %v4485 = vpack.c.b16 %v4050, %v4048
      %v4486 = vpack.c.b16 %v4051, %v4049
      %v4487 = vpack.c.b16 %v3914, %v3912
      %v4488 = vpack.c.b16 %v4054, %v4052
      %v4489 = vpack.c.b16 %v4055, %v4053
      %v4490 = vpack.c.b16 %v3918, %v3916
      %v4491 = vpack.c.b16 %v4058, %v4056
      %v4492 = vpack.c.b16 %v4059, %v4057
      %v4493 = vpack.c.b16 %v3922, %v3920
      %v4494 = vpack.c.b16 %v4433, %v4060
      %v4495 = vpack.c.b16 %v4434, %v4061
      %v4556 = vunpack.c.l.b16 %v4436
      %v4557 = vunpack.c.l.b16 %v4437
      %v4558 = vunpack.c.l.b16 %v4438
      %v4559 = vunpack.c.l.b16 %v4439
      %v4560 = vunpack.c.l.b16 %v4440
      %v4561 = vunpack.c.l.b16 %v4441
      %v4562 = vunpack.c.l.b16 %v4442
      %v4563 = vunpack.c.l.b16 %v4443
      %v4564 = vunpack.c.l.b16 %v4444
      %v4565 = vunpack.c.l.b16 %v4445
      %v4566 = vunpack.c.l.b16 %v4446
      %v4567 = vunpack.c.l.b16 %v4447
      %v4568 = vunpack.c.l.b16 %v4448
      %v4569 = vunpack.c.l.b16 %v4449
      %v4570 = vunpack.c.l.b16 %v4450
      %v4571 = vunpack.c.l.b16 %v4451
      %v4572 = vunpack.c.l.b16 %v4452
      %v4573 = vunpack.c.l.b16 %v4453
      %v4574 = vunpack.c.l.b16 %v4454
      %v4575 = vunpack.c.l.b16 %v4455
      %v4576 = vunpack.c.l.b16 %v4456
      %v4577 = vunpack.c.l.b16 %v4457
      %v4578 = vunpack.c.l.b16 %v4458
      %v4579 = vunpack.c.l.b16 %v4459
      %v4580 = vunpack.c.l.b16 %v4460
      %v4581 = vunpack.c.l.b16 %v4461
      %v4582 = vunpack.c.l.b16 %v4462
      %v4583 = vunpack.c.l.b16 %v4463
      %v4584 = vunpack.c.l.b16 %v4464
      %v4585 = vunpack.c.l.b16 %v4465
      %v4586 = vunpack.c.l.b16 %v4466
      %v4587 = vunpack.c.l.b16 %v4467
      %v4588 = vunpack.c.l.b16 %v4468
      %v4589 = vunpack.c.l.b16 %v4469
      %v4590 = vunpack.c.l.b16 %v4470
      %v4591 = vunpack.c.l.b16 %v4471
      %v4592 = vunpack.c.l.b16 %v4472
      %v4593 = vunpack.c.l.b16 %v4473
      %v4594 = vunpack.c.l.b16 %v4474
      %v4595 = vunpack.c.l.b16 %v4475
      %v4596 = vunpack.c.l.b16 %v4476
      %v4597 = vunpack.c.l.b16 %v4477
      %v4598 = vunpack.c.l.b16 %v4478
      %v4599 = vunpack.c.l.b16 %v4479
      %v4600 = vunpack.c.l.b16 %v4480
      %v4601 = vunpack.c.l.b16 %v4481
      %v4602 = vunpack.c.l.b16 %v4482
      %v4603 = vunpack.c.l.b16 %v4483
      %v4604 = vpack.c.b16 %v4557, %v4556
      %v4605 = vpack.c.b16 %v4559, %v4558
      %v4606 = vpack.c.b16 %v4561, %v4560
      %v4607 = vpack.c.b16 %v4563, %v4562
      %v4608 = vpack.c.b16 %v4565, %v4564
      %v4609 = vpack.c.b16 %v4567, %v4566
      %v4610 = vpack.c.b16 %v4569, %v4568
      %v4611 = vpack.c.b16 %v4571, %v4570
      %v4612 = vpack.c.b16 %v4573, %v4572
      %v4613 = vpack.c.b16 %v4575, %v4574
      %v4614 = vpack.c.b16 %v4577, %v4576
      %v4615 = vpack.c.b16 %v4579, %v4578
      %v4616 = vpack.c.b16 %v4581, %v4580
      %v4617 = vpack.c.b16 %v4583, %v4582
      %v4618 = vpack.c.b16 %v4585, %v4584
      %v4619 = vpack.c.b16 %v4587, %v4586
      %v4620 = vpack.c.b16 %v4589, %v4588
      %v4621 = vpack.c.b16 %v4591, %v4590
      %v4622 = vpack.c.b16 %v4593, %v4592
      %v4623 = vpack.c.b16 %v4595, %v4594
      %v4624 = vpack.c.b16 %v4597, %v4596
      %v4625 = vpack.c.b16 %v4599, %v4598
      %v4626 = vpack.c.b16 %v4601, %v4600
      %v4627 = vpack.c.b16 %v4603, %v4602
      %4652 = vmatprep.subr.bf16.mxu0 0
      %4653 = vmatpush1.bf16.msra.mxu0 %v4611
      %4654 = vmatprep.subr.bf16.mxu0 0
      %4655 = vmatpush1.bf16.msra.mxu0 %v4610
      %4656 = vmatprep.subr.bf16.mxu0 0
      %4657 = vmatpush1.bf16.msra.mxu0 %v4609
      %4658 = vmatprep.subr.bf16.mxu0 0
      %4659 = vmatpush1.bf16.msra.mxu0 %v4608
      %4660 = vmatprep.subr.bf16.mxu0 0
      %4661 = vmatpush1.bf16.msra.mxu0 %v4607
      %4662 = vmatprep.subr.bf16.mxu0 0
      %4663 = vmatpush1.bf16.msra.mxu0 %v4606
      %4664 = vmatprep.subr.bf16.mxu0 0
      %4665 = vmatpush1.bf16.msra.mxu0 %v4605
      %4666 = vmatprep.subr.bf16.mxu0 0
      %4667 = vmatpush1.bf16.msra.mxu0 %v4604
      %4668 = vmatprep.subr.bf16.mxu0 0
      %4669 = vmatpush2.bf16.msra.mxu0 %v4619
      %4670 = vmatprep.subr.bf16.mxu0 0
      %4671 = vmatpush2.bf16.msra.mxu0 %v4618
      %4672 = vmatprep.subr.bf16.mxu0 0
      %4673 = vmatpush2.bf16.msra.mxu0 %v4617
      %4674 = vmatprep.subr.bf16.mxu0 0
      %4675 = vmatpush2.bf16.msra.mxu0 %v4616
      %4676 = vmatprep.subr.bf16.mxu0 0
      %4677 = vmatpush2.bf16.msra.mxu0 %v4615
      %4678 = vmatprep.subr.bf16.mxu0 0
      %4679 = vmatpush2.bf16.msra.mxu0 %v4614
      %4680 = vmatprep.subr.bf16.mxu0 0
      %4681 = vmatpush2.bf16.msra.mxu0 %v4613
      %4682 = vmatprep.subr.bf16.mxu0 0
      %4683 = vmatpush2.bf16.msra.mxu0 %v4612
      %4684 = vmatprep.mubr.bf16.mxu0 %v4485
      %4685 = vmatmul.mubr.bf16.gmra.mxu0 %v4484
      %v4686 = vpop.f32.mrf.mxu0
      %v4687 = vadd.f32 0.0, %v4686
      %v4688 = vpop.f32.mrf.mxu0
      %v4689 = vpop.f32.mrf.mxu0
      %v4690 = vadd.f32 0.0, %v4689
      %v4691 = vpop.f32.mrf.mxu0
      %4692 = vmatprep.mubr.bf16.mxu0 %v4488
      %4693 = vmatmul.mubr.bf16.gmra.mxu0 %v4487
      %v4694 = vpop.f32.mrf.mxu0
      %v4695 = vadd.f32 0.0, %v4694
      %v4696 = vpop.f32.mrf.mxu0
      %v4697 = vpop.f32.mrf.mxu0
      %v4698 = vadd.f32 0.0, %v4697
      %v4699 = vpop.f32.mrf.mxu0
      %4700 = vmatprep.mubr.bf16.mxu0 %v4491
      %4701 = vmatmul.mubr.bf16.gmra.mxu0 %v4490
      %v4702 = vpop.f32.mrf.mxu0
      %v4703 = vadd.f32 0.0, %v4702
      %v4704 = vpop.f32.mrf.mxu0
      %v4705 = vpop.f32.mrf.mxu0
      %v4706 = vadd.f32 0.0, %v4705
      %v4707 = vpop.f32.mrf.mxu0
      %4708 = vmatprep.mubr.bf16.mxu0 %v4494
      %4709 = vmatmul.mubr.bf16.gmra.mxu0 %v4493
      %v4710 = vpop.f32.mrf.mxu0
      %v4711 = vadd.f32 0.0, %v4710
      %v4712 = vpop.f32.mrf.mxu0
      %v4713 = vpop.f32.mrf.mxu0
      %v4714 = vadd.f32 0.0, %v4713
      %v4715 = vpop.f32.mrf.mxu0
      %4716 = vdwg.mxu0
      %4717 = vmatprep.subr.bf16.mxu0 0
      %4718 = vmatpush1.bf16.msra.mxu0 %v4627
      %4719 = vmatprep.subr.bf16.mxu0 0
      %4720 = vmatpush1.bf16.msra.mxu0 %v4626
      %4721 = vmatprep.subr.bf16.mxu0 0
      %4722 = vmatpush1.bf16.msra.mxu0 %v4625
      %4723 = vmatprep.subr.bf16.mxu0 0
      %4724 = vmatpush1.bf16.msra.mxu0 %v4624
      %4725 = vmatprep.subr.bf16.mxu0 0
      %4726 = vmatpush1.bf16.msra.mxu0 %v4623
      %4727 = vmatprep.subr.bf16.mxu0 0
      %4728 = vmatpush1.bf16.msra.mxu0 %v4622
      %4729 = vmatprep.subr.bf16.mxu0 0
      %4730 = vmatpush1.bf16.msra.mxu0 %v4621
      %4731 = vmatprep.subr.bf16.mxu0 0
      %4732 = vmatpush1.bf16.msra.mxu0 %v4620
      %4733 = vmatprep.subr.bf16.mxu0 0
      %4734 = vmatpush2.bf16.msra.mxu0 0
      %4735 = vmatprep.subr.bf16.mxu0 0
      %4736 = vmatpush2.bf16.msra.mxu0 0
      %4737 = vmatprep.subr.bf16.mxu0 0
      %4738 = vmatpush2.bf16.msra.mxu0 0
      %4739 = vmatprep.subr.bf16.mxu0 0
      %4740 = vmatpush2.bf16.msra.mxu0 0
      %4741 = vmatprep.subr.bf16.mxu0 0
      %4742 = vmatpush2.bf16.msra.mxu0 0
      %4743 = vmatprep.subr.bf16.mxu0 0
      %4744 = vmatpush2.bf16.msra.mxu0 0
      %4745 = vmatprep.subr.bf16.mxu0 0
      %4746 = vmatpush2.bf16.msra.mxu0 0
      %4747 = vmatprep.subr.bf16.mxu0 0
      %4748 = vmatpush2.bf16.msra.mxu0 0
      %4749 = vmatprep.mubr.bf16.mxu0 0
      %4750 = vmatmul.mubr.bf16.gmra.mxu0 %v4486
      %v4751 = vpop.f32.mrf.mxu0
      %v4752 = vadd.f32 %v4687, %v4751
      %v4753 = vpop.f32.mrf.mxu0
      %v4754 = vpop.f32.mrf.mxu0
      %v4755 = vadd.f32 %v4690, %v4754
      %v4756 = vpop.f32.mrf.mxu0
      %4757 = vmatprep.mubr.bf16.mxu0 0
      %4758 = vmatmul.mubr.bf16.gmra.mxu0 %v4489
      %v4759 = vpop.f32.mrf.mxu0
      %v4760 = vadd.f32 %v4695, %v4759
      %v4761 = vpop.f32.mrf.mxu0
      %v4762 = vpop.f32.mrf.mxu0
      %v4763 = vadd.f32 %v4698, %v4762
      %v4764 = vpop.f32.mrf.mxu0
      %4765 = vmatprep.mubr.bf16.mxu0 0
      %4766 = vmatmul.mubr.bf16.gmra.mxu0 %v4492
      %v4767 = vpop.f32.mrf.mxu0
      %v4768 = vadd.f32 %v4703, %v4767
      %v4769 = vpop.f32.mrf.mxu0
      %v4770 = vpop.f32.mrf.mxu0
      %v4771 = vadd.f32 %v4706, %v4770
      %v4772 = vpop.f32.mrf.mxu0
      %4773 = vmatprep.mubr.bf16.mxu0 0
      %4774 = vmatmul.mubr.bf16.gmra.mxu0 %v4495
      %v4775 = vpop.f32.mrf.mxu0
      %v4776 = vadd.f32 %v4711, %v4775
      %v4777 = vpop.f32.mrf.mxu0
      %v4778 = vpop.f32.mrf.mxu0
      %v4779 = vadd.f32 %v4714, %v4778
      %v4780 = vpop.f32.mrf.mxu0
      %4781 = vdwg.mxu0
      %v4782 = vld [vmem:[#allocation3] sm:$0xff]
      %v4783 = vld [vmem:[#allocation3 + $0x8] sm:$0xff]
      %v4784 = vld [vmem:[#allocation3 + $0x10] sm:$0xff]
      %v4785 = vld [vmem:[#allocation3 + $0x18] sm:$0xff]
      %v4786 = vld [vmem:[#allocation3 + $0x20] sm:$0xff]
      %v4787 = vld [vmem:[#allocation3 + $0x28] sm:$0xff]
      %v4788 = vld [vmem:[#allocation3 + $0x30] sm:$0xff]
      %v4789 = vld [vmem:[#allocation3 + $0x38] sm:$0xff]
      %v4790 = vadd.f32 %v4782, %v4752
      %v4791 = vadd.f32 %v4783, %v4755
      %v4792 = vadd.f32 %v4784, %v4760
      %v4793 = vadd.f32 %v4785, %v4763
      %v4794 = vadd.f32 %v4786, %v4768
      %v4795 = vadd.f32 %v4787, %v4771
      %v4796 = vadd.f32 %v4788, %v4776
      %v4797 = vadd.f32 %v4789, %v4779
      %4798 = vst [vmem:[#allocation3] sm:$0xff] %v4790
      %4799 = vst [vmem:[#allocation3 + $0x8] sm:$0xff] %v4791
      %4800 = vst [vmem:[#allocation3 + $0x10] sm:$0xff] %v4792
      %4801 = vst [vmem:[#allocation3 + $0x18] sm:$0xff] %v4793
      %4802 = vst [vmem:[#allocation3 + $0x20] sm:$0xff] %v4794
      %4803 = vst [vmem:[#allocation3 + $0x28] sm:$0xff] %v4795
      %4804 = vst [vmem:[#allocation3 + $0x30] sm:$0xff] %v4796
      %4805 = vst [vmem:[#allocation3 + $0x38] sm:$0xff] %v4797
      %v4806 = vunpack.c.l.b16 %v4005
      %v4807 = vunpack.c.l.b16 %v4045
      %s4808 = scalar_lea.vmem %s5, 1536
      %v4809 = vld [vmem:[%s4808] sm:$0xf]
      %v4810 = vld [vmem:[%s4808 + $0x4] sm:$0xf]
      %v4811 = vld [vmem:[%s4808 + $0x8] sm:$0xf]
      %v4812 = vld [vmem:[%s4808 + $0xc] sm:$0xf]
      %v4813 = vld [vmem:[%s4808 + $0x10] sm:$0xf]
      %v4814 = vld [vmem:[%s4808 + $0x14] sm:$0xf]
      %v4815 = vld [vmem:[%s4808 + $0x18] sm:$0xf]
      %v4816 = vld [vmem:[%s4808 + $0x1c] sm:$0xf]
      %v4817 = vld [vmem:[%s4808 + $0x20] sm:$0xf]
      %v4818 = vld [vmem:[%s4808 + $0x24] sm:$0xf]
      %v4819 = vld [vmem:[%s4808 + $0x28] sm:$0xf]
      %v4820 = vld [vmem:[%s4808 + $0x2c] sm:$0xf]
      %v4821 = vld [vmem:[%s4808 + $0x30] sm:$0xf]
      %v4822 = vld [vmem:[%s4808 + $0x34] sm:$0xf]
      %v4823 = vld [vmem:[%s4808 + $0x38] sm:$0xf]
      %v4824 = vld [vmem:[%s4808 + $0x3c] sm:$0xf]
      %v4825 = vld [vmem:[%s4808 + $0x40] sm:$0xf]
      %v4826 = vld [vmem:[%s4808 + $0x44] sm:$0xf]
      %v4827 = vld [vmem:[%s4808 + $0x48] sm:$0xf]
      %v4828 = vld [vmem:[%s4808 + $0x4c] sm:$0xf]
      %v4829 = vld [vmem:[%s4808 + $0x50] sm:$0xf]
      %v4830 = vld [vmem:[%s4808 + $0x54] sm:$0xf]
      %v4831 = vld [vmem:[%s4808 + $0x58] sm:$0xf]
      %v4832 = vld [vmem:[%s4808 + $0x5c] sm:$0xf]
      %v4833 = vld [vmem:[%s4808 + $0x60] sm:$0xf]
      %v4834 = vld [vmem:[%s4808 + $0x64] sm:$0xf]
      %v4835 = vld [vmem:[%s4808 + $0x68] sm:$0xf]
      %v4836 = vld [vmem:[%s4808 + $0x6c] sm:$0xf]
      %v4837 = vld [vmem:[%s4808 + $0x70] sm:$0xf]
      %v4838 = vld [vmem:[%s4808 + $0x74] sm:$0xf]
      %v4839 = vld [vmem:[%s4808 + $0x78] sm:$0xf]
      %v4840 = vld [vmem:[%s4808 + $0x7c] sm:$0xf]
      %v4841 = vld [vmem:[%s4808 + $0x80] sm:$0xf]
      %v4842 = vld [vmem:[%s4808 + $0x84] sm:$0xf]
      %v4843 = vld [vmem:[%s4808 + $0x88] sm:$0xf]
      %v4844 = vld [vmem:[%s4808 + $0x8c] sm:$0xf]
      %v4845 = vld [vmem:[%s4808 + $0x90] sm:$0xf]
      %v4846 = vld [vmem:[%s4808 + $0x94] sm:$0xf]
      %v4847 = vld [vmem:[%s4808 + $0x98] sm:$0xf]
      %v4848 = vld [vmem:[%s4808 + $0x9c] sm:$0xf]
      %v4849 = vld [vmem:[%s4808 + $0xa0] sm:$0xf]
      %v4850 = vld [vmem:[%s4808 + $0xa4] sm:$0xf]
      %v4851 = vld [vmem:[%s4808 + $0xa8] sm:$0xf]
      %v4852 = vld [vmem:[%s4808 + $0xac] sm:$0xf]
      %v4853 = vld [vmem:[%s4808 + $0xb0] sm:$0xf]
      %v4854 = vld [vmem:[%s4808 + $0xb4] sm:$0xf]
      %v4855 = vld [vmem:[%s4808 + $0xb8] sm:$0xf]
      %v4856 = vld [vmem:[%s4808 + $0xbc] sm:$0xf]
      %v4857 = vpack.c.b16 %v3924, %v3922
      %v4858 = vpack.c.b16 %v4806, %v4433
      %v4859 = vpack.c.b16 %v4807, %v4434
      %v4911 = vunpack.c.l.b16 %v4809
      %v4912 = vunpack.c.l.b16 %v4810
      %v4913 = vunpack.c.l.b16 %v4811
      %v4914 = vunpack.c.l.b16 %v4812
      %v4915 = vunpack.c.l.b16 %v4813
      %v4916 = vunpack.c.l.b16 %v4814
      %v4917 = vunpack.c.l.b16 %v4815
      %v4918 = vunpack.c.l.b16 %v4816
      %v4919 = vunpack.c.l.b16 %v4817
      %v4920 = vunpack.c.l.b16 %v4818
      %v4921 = vunpack.c.l.b16 %v4819
      %v4922 = vunpack.c.l.b16 %v4820
      %v4923 = vunpack.c.l.b16 %v4821
      %v4924 = vunpack.c.l.b16 %v4822
      %v4925 = vunpack.c.l.b16 %v4823
      %v4926 = vunpack.c.l.b16 %v4824
      %v4927 = vunpack.c.l.b16 %v4825
      %v4928 = vunpack.c.l.b16 %v4826
      %v4929 = vunpack.c.l.b16 %v4827
      %v4930 = vunpack.c.l.b16 %v4828
      %v4931 = vunpack.c.l.b16 %v4829
      %v4932 = vunpack.c.l.b16 %v4830
      %v4933 = vunpack.c.l.b16 %v4831
      %v4934 = vunpack.c.l.b16 %v4832
      %v4935 = vunpack.c.l.b16 %v4833
      %v4936 = vunpack.c.l.b16 %v4834
      %v4937 = vunpack.c.l.b16 %v4835
      %v4938 = vunpack.c.l.b16 %v4836
      %v4939 = vunpack.c.l.b16 %v4837
      %v4940 = vunpack.c.l.b16 %v4838
      %v4941 = vunpack.c.l.b16 %v4839
      %v4942 = vunpack.c.l.b16 %v4840
      %v4943 = vunpack.c.l.b16 %v4841
      %v4944 = vunpack.c.l.b16 %v4842
      %v4945 = vunpack.c.l.b16 %v4843
      %v4946 = vunpack.c.l.b16 %v4844
      %v4947 = vunpack.c.l.b16 %v4845
      %v4948 = vunpack.c.l.b16 %v4846
      %v4949 = vunpack.c.l.b16 %v4847
      %v4950 = vunpack.c.l.b16 %v4848
      %v4951 = vunpack.c.l.b16 %v4849
      %v4952 = vunpack.c.l.b16 %v4850
      %v4953 = vunpack.c.l.b16 %v4851
      %v4954 = vunpack.c.l.b16 %v4852
      %v4955 = vunpack.c.l.b16 %v4853
      %v4956 = vunpack.c.l.b16 %v4854
      %v4957 = vunpack.c.l.b16 %v4855
      %v4958 = vunpack.c.l.b16 %v4856
      %v4959 = vpack.c.b16 %v4912, %v4911
      %v4960 = vpack.c.b16 %v4914, %v4913
      %v4961 = vpack.c.b16 %v4916, %v4915
      %v4962 = vpack.c.b16 %v4918, %v4917
      %v4963 = vpack.c.b16 %v4920, %v4919
      %v4964 = vpack.c.b16 %v4922, %v4921
      %v4965 = vpack.c.b16 %v4924, %v4923
      %v4966 = vpack.c.b16 %v4926, %v4925
      %v4967 = vpack.c.b16 %v4928, %v4927
      %v4968 = vpack.c.b16 %v4930, %v4929
      %v4969 = vpack.c.b16 %v4932, %v4931
      %v4970 = vpack.c.b16 %v4934, %v4933
      %v4971 = vpack.c.b16 %v4936, %v4935
      %v4972 = vpack.c.b16 %v4938, %v4937
      %v4973 = vpack.c.b16 %v4940, %v4939
      %v4974 = vpack.c.b16 %v4942, %v4941
      %v4975 = vpack.c.b16 %v4944, %v4943
      %v4976 = vpack.c.b16 %v4946, %v4945
      %v4977 = vpack.c.b16 %v4948, %v4947
      %v4978 = vpack.c.b16 %v4950, %v4949
      %v4979 = vpack.c.b16 %v4952, %v4951
      %v4980 = vpack.c.b16 %v4954, %v4953
      %v4981 = vpack.c.b16 %v4956, %v4955
      %v4982 = vpack.c.b16 %v4958, %v4957
      %5007 = vmatprep.subr.bf16.mxu0 0
      %5008 = vmatpush1.bf16.msra.mxu0 %v4966
      %5009 = vmatprep.subr.bf16.mxu0 0
      %5010 = vmatpush1.bf16.msra.mxu0 %v4965
      %5011 = vmatprep.subr.bf16.mxu0 0
      %5012 = vmatpush1.bf16.msra.mxu0 %v4964
      %5013 = vmatprep.subr.bf16.mxu0 0
      %5014 = vmatpush1.bf16.msra.mxu0 %v4963
      %5015 = vmatprep.subr.bf16.mxu0 0
      %5016 = vmatpush1.bf16.msra.mxu0 %v4962
      %5017 = vmatprep.subr.bf16.mxu0 0
      %5018 = vmatpush1.bf16.msra.mxu0 %v4961
      %5019 = vmatprep.subr.bf16.mxu0 0
      %5020 = vmatpush1.bf16.msra.mxu0 %v4960
      %5021 = vmatprep.subr.bf16.mxu0 0
      %5022 = vmatpush1.bf16.msra.mxu0 %v4959
      %5023 = vmatprep.subr.bf16.mxu0 0
      %5024 = vmatpush2.bf16.msra.mxu0 %v4974
      %5025 = vmatprep.subr.bf16.mxu0 0
      %5026 = vmatpush2.bf16.msra.mxu0 %v4973
      %5027 = vmatprep.subr.bf16.mxu0 0
      %5028 = vmatpush2.bf16.msra.mxu0 %v4972
      %5029 = vmatprep.subr.bf16.mxu0 0
      %5030 = vmatpush2.bf16.msra.mxu0 %v4971
      %5031 = vmatprep.subr.bf16.mxu0 0
      %5032 = vmatpush2.bf16.msra.mxu0 %v4970
      %5033 = vmatprep.subr.bf16.mxu0 0
      %5034 = vmatpush2.bf16.msra.mxu0 %v4969
      %5035 = vmatprep.subr.bf16.mxu0 0
      %5036 = vmatpush2.bf16.msra.mxu0 %v4968
      %5037 = vmatprep.subr.bf16.mxu0 0
      %5038 = vmatpush2.bf16.msra.mxu0 %v4967
      %5039 = vmatprep.mubr.bf16.mxu0 %v4115
      %5040 = vmatmul.mubr.bf16.gmra.mxu0 %v4114
      %v5041 = vpop.f32.mrf.mxu0
      %v5042 = vadd.f32 0.0, %v5041
      %v5043 = vpop.f32.mrf.mxu0
      %v5044 = vpop.f32.mrf.mxu0
      %v5045 = vadd.f32 0.0, %v5044
      %v5046 = vpop.f32.mrf.mxu0
      %5047 = vmatprep.mubr.bf16.mxu0 %v4118
      %5048 = vmatmul.mubr.bf16.gmra.mxu0 %v4117
      %v5049 = vpop.f32.mrf.mxu0
      %v5050 = vadd.f32 0.0, %v5049
      %v5051 = vpop.f32.mrf.mxu0
      %v5052 = vpop.f32.mrf.mxu0
      %v5053 = vadd.f32 0.0, %v5052
      %v5054 = vpop.f32.mrf.mxu0
      %5055 = vmatprep.mubr.bf16.mxu0 %v4121
      %5056 = vmatmul.mubr.bf16.gmra.mxu0 %v4120
      %v5057 = vpop.f32.mrf.mxu0
      %v5058 = vadd.f32 0.0, %v5057
      %v5059 = vpop.f32.mrf.mxu0
      %v5060 = vpop.f32.mrf.mxu0
      %v5061 = vadd.f32 0.0, %v5060
      %v5062 = vpop.f32.mrf.mxu0
      %5063 = vmatprep.mubr.bf16.mxu0 %v4858
      %5064 = vmatmul.mubr.bf16.gmra.mxu0 %v4857
      %v5065 = vpop.f32.mrf.mxu0
      %v5066 = vadd.f32 0.0, %v5065
      %v5067 = vpop.f32.mrf.mxu0
      %v5068 = vpop.f32.mrf.mxu0
      %v5069 = vadd.f32 0.0, %v5068
      %v5070 = vpop.f32.mrf.mxu0
      %5071 = vdwg.mxu0
      %5072 = vmatprep.subr.bf16.mxu0 0
      %5073 = vmatpush1.bf16.msra.mxu0 %v4982
      %5074 = vmatprep.subr.bf16.mxu0 0
      %5075 = vmatpush1.bf16.msra.mxu0 %v4981
      %5076 = vmatprep.subr.bf16.mxu0 0
      %5077 = vmatpush1.bf16.msra.mxu0 %v4980
      %5078 = vmatprep.subr.bf16.mxu0 0
      %5079 = vmatpush1.bf16.msra.mxu0 %v4979
      %5080 = vmatprep.subr.bf16.mxu0 0
      %5081 = vmatpush1.bf16.msra.mxu0 %v4978
      %5082 = vmatprep.subr.bf16.mxu0 0
      %5083 = vmatpush1.bf16.msra.mxu0 %v4977
      %5084 = vmatprep.subr.bf16.mxu0 0
      %5085 = vmatpush1.bf16.msra.mxu0 %v4976
      %5086 = vmatprep.subr.bf16.mxu0 0
      %5087 = vmatpush1.bf16.msra.mxu0 %v4975
      %5088 = vmatprep.subr.bf16.mxu0 0
      %5089 = vmatpush2.bf16.msra.mxu0 0
      %5090 = vmatprep.subr.bf16.mxu0 0
      %5091 = vmatpush2.bf16.msra.mxu0 0
      %5092 = vmatprep.subr.bf16.mxu0 0
      %5093 = vmatpush2.bf16.msra.mxu0 0
      %5094 = vmatprep.subr.bf16.mxu0 0
      %5095 = vmatpush2.bf16.msra.mxu0 0
      %5096 = vmatprep.subr.bf16.mxu0 0
      %5097 = vmatpush2.bf16.msra.mxu0 0
      %5098 = vmatprep.subr.bf16.mxu0 0
      %5099 = vmatpush2.bf16.msra.mxu0 0
      %5100 = vmatprep.subr.bf16.mxu0 0
      %5101 = vmatpush2.bf16.msra.mxu0 0
      %5102 = vmatprep.subr.bf16.mxu0 0
      %5103 = vmatpush2.bf16.msra.mxu0 0
      %5104 = vmatprep.mubr.bf16.mxu0 0
      %5105 = vmatmul.mubr.bf16.gmra.mxu0 %v4116
      %v5106 = vpop.f32.mrf.mxu0
      %v5107 = vadd.f32 %v5042, %v5106
      %v5108 = vpop.f32.mrf.mxu0
      %v5109 = vpop.f32.mrf.mxu0
      %v5110 = vadd.f32 %v5045, %v5109
      %v5111 = vpop.f32.mrf.mxu0
      %5112 = vmatprep.mubr.bf16.mxu0 0
      %5113 = vmatmul.mubr.bf16.gmra.mxu0 %v4119
      %v5114 = vpop.f32.mrf.mxu0
      %v5115 = vadd.f32 %v5050, %v5114
      %v5116 = vpop.f32.mrf.mxu0
      %v5117 = vpop.f32.mrf.mxu0
      %v5118 = vadd.f32 %v5053, %v5117
      %v5119 = vpop.f32.mrf.mxu0
      %5120 = vmatprep.mubr.bf16.mxu0 0
      %5121 = vmatmul.mubr.bf16.gmra.mxu0 %v4122
      %v5122 = vpop.f32.mrf.mxu0
      %v5123 = vadd.f32 %v5058, %v5122
      %v5124 = vpop.f32.mrf.mxu0
      %v5125 = vpop.f32.mrf.mxu0
      %v5126 = vadd.f32 %v5061, %v5125
      %v5127 = vpop.f32.mrf.mxu0
      %5128 = vmatprep.mubr.bf16.mxu0 0
      %5129 = vmatmul.mubr.bf16.gmra.mxu0 %v4859
      %v5130 = vpop.f32.mrf.mxu0
      %v5131 = vadd.f32 %v5066, %v5130
      %v5132 = vpop.f32.mrf.mxu0
      %v5133 = vpop.f32.mrf.mxu0
      %v5134 = vadd.f32 %v5069, %v5133
      %v5135 = vpop.f32.mrf.mxu0
      %5136 = vdwg.mxu0
      %v5137 = vld [vmem:[#allocation3] sm:$0xff]
      %v5138 = vld [vmem:[#allocation3 + $0x8] sm:$0xff]
      %v5139 = vld [vmem:[#allocation3 + $0x10] sm:$0xff]
      %v5140 = vld [vmem:[#allocation3 + $0x18] sm:$0xff]
      %v5141 = vld [vmem:[#allocation3 + $0x20] sm:$0xff]
      %v5142 = vld [vmem:[#allocation3 + $0x28] sm:$0xff]
      %v5143 = vld [vmem:[#allocation3 + $0x30] sm:$0xff]
      %v5144 = vld [vmem:[#allocation3 + $0x38] sm:$0xff]
      %v5145 = vadd.f32 %v5137, %v5107
      %v5146 = vadd.f32 %v5138, %v5110
      %v5147 = vadd.f32 %v5139, %v5115
      %v5148 = vadd.f32 %v5140, %v5118
      %v5149 = vadd.f32 %v5141, %v5123
      %v5150 = vadd.f32 %v5142, %v5126
      %v5151 = vadd.f32 %v5143, %v5131
      %v5152 = vadd.f32 %v5144, %v5134
      %5153 = vst [vmem:[#allocation3] sm:$0xff] %v5145
      %5154 = vst [vmem:[#allocation3 + $0x8] sm:$0xff] %v5146
      %5155 = vst [vmem:[#allocation3 + $0x10] sm:$0xff] %v5147
      %5156 = vst [vmem:[#allocation3 + $0x18] sm:$0xff] %v5148
      %5157 = vst [vmem:[#allocation3 + $0x20] sm:$0xff] %v5149
      %5158 = vst [vmem:[#allocation3 + $0x28] sm:$0xff] %v5150
      %5159 = vst [vmem:[#allocation3 + $0x30] sm:$0xff] %v5151
      %5160 = vst [vmem:[#allocation3 + $0x38] sm:$0xff] %v5152
      %v5161 = vld [vmem:[#allocation3] sm:$0xff]
      %v5162 = vld [vmem:[#allocation3 + $0x8] sm:$0xff]
      %v5163 = vld [vmem:[#allocation3 + $0x10] sm:$0xff]
      %v5164 = vld [vmem:[#allocation3 + $0x18] sm:$0xff]
      %v5165 = vld [vmem:[#allocation3 + $0x20] sm:$0xff]
      %v5166 = vld [vmem:[#allocation3 + $0x28] sm:$0xff]
      %v5167 = vld [vmem:[#allocation3 + $0x30] sm:$0xff]
      %v5168 = vld [vmem:[#allocation3 + $0x38] sm:$0xff]
      %v5169 = vpack.c.bf16 %v5161, %v5161
      %v5170 = vpack.c.bf16 %v5162, %v5162
      %v5171 = vpack.c.bf16 %v5163, %v5163
      %v5172 = vpack.c.bf16 %v5164, %v5164
      %v5173 = vpack.c.bf16 %v5165, %v5165
      %v5174 = vpack.c.bf16 %v5166, %v5166
      %v5175 = vpack.c.bf16 %v5167, %v5167
      %v5176 = vpack.c.bf16 %v5168, %v5168
      %5177 = vst [vmem:[%s530] sm:$0xf] %v5169
      %5178 = vst [vmem:[%s530 + $0x4] sm:$0xf] %v5170
      %5179 = vst [vmem:[%s530 + $0x8] sm:$0xf] %v5171
      %5180 = vst [vmem:[%s530 + $0xc] sm:$0xf] %v5172
      %5181 = vst [vmem:[%s530 + $0x10] sm:$0xf] %v5173
      %5182 = vst [vmem:[%s530 + $0x14] sm:$0xf] %v5174
      %5183 = vst [vmem:[%s530 + $0x18] sm:$0xf] %v5175
      %5184 = vst [vmem:[%s530 + $0x1c] sm:$0xf] %v5176
      %v5185 = vadd.f32 %v5161, %v5162
      %v5186 = vadd.f32 %v5185, %v5163
      %v5187 = vadd.f32 %v5186, %v5164
      %v5188 = vadd.f32 %v5187, %v5165
      %v5189 = vadd.f32 %v5188, %v5166
      %v5190 = vadd.f32 %v5189, %v5167
      %v5191 = vadd.f32 %v5190, %v5168
      %v5192 = vrot.slane %v5191, 4
      %v5193 = vadd.f32 %v5191, %v5192
      %v5194 = vrot.slane %v5193, 2
      %v5195 = vadd.f32 %v5193, %v5194
      %v5196 = vrot.slane %v5195, 1
      %v5197 = vadd.f32 %v5195, %v5196
      %5198 = vst [vmem:[%s537] sm:$0x1] %v5197
      %v5199 = vmul.f32 %v5161, %v5161
      %v5200 = vmul.f32 %v5162, %v5162
      %v5201 = vmul.f32 %v5163, %v5163
      %v5202 = vmul.f32 %v5164, %v5164
      %v5203 = vmul.f32 %v5165, %v5165
      %v5204 = vmul.f32 %v5166, %v5166
      %v5205 = vmul.f32 %v5167, %v5167
      %v5206 = vmul.f32 %v5168, %v5168
      %v5207 = vadd.f32 %v5199, %v5200
      %v5208 = vadd.f32 %v5207, %v5201
      %v5209 = vadd.f32 %v5208, %v5202
      %v5210 = vadd.f32 %v5209, %v5203
      %v5211 = vadd.f32 %v5210, %v5204
      %v5212 = vadd.f32 %v5211, %v5205
      %v5213 = vadd.f32 %v5212, %v5206
      %v5214 = vrot.slane %v5213, 4
      %v5215 = vadd.f32 %v5213, %v5214
      %v5216 = vrot.slane %v5215, 2
      %v5217 = vadd.f32 %v5215, %v5216
      %v5218 = vrot.slane %v5217, 1
      %v5219 = vadd.f32 %v5217, %v5218
      %5220 = vst [vmem:[%s544] sm:$0x1] %v5219
      %p5221 = scmp.lt.s32.totalorder %s24, 1
      %s5222 = scalar_select %p5221, %s24, 1
      %p5223 = scmp.lt.s32.totalorder %s25, 7
      %s5224 = scalar_select %p5223, %s25, 7
      %s5225 = smul.addr %s5224, 8
      %s5226 = smul.addr %s5222, 64
      %s5227 = sadd.s32 %s5225, %s5226
      %s5228 = smul.addr %s5227, 4
      %s5229 = scalar_lea.vmem %s6, %s5228
      %p5230 = scmp.lt.s32.totalorder %s24, 1
      %s5231 = scalar_select %p5230, %s24, 1
      %p5232 = scmp.lt.s32.totalorder %s25, 7
      %s5233 = scalar_select %p5232, %s25, 7
      %s5234 = smul.addr %s5231, 8
      %s5235 = sadd.s32 %s5233, %s5234
      %s5236 = scalar_lea.vmem %s7, %s5235
      %p5237 = scmp.lt.s32.totalorder %s24, 1
      %s5238 = scalar_select %p5237, %s24, 1
      %p5239 = scmp.lt.s32.totalorder %s25, 7
      %s5240 = scalar_select %p5239, %s25, 7
      %s5241 = smul.addr %s5238, 8
      %s5242 = sadd.s32 %s5240, %s5241
      %s5243 = scalar_lea.vmem %s8, %s5242
      // Predicated region
      $region45: #{bottleneck_block.5} parent=43 // pred_check
        %p5244 = pneg %p227
      $region46: #{bottleneck_block.5} parent=43 // pred_check_branch
        %5246 = sbr.rel (%p5244) target = $region48
      $region47: #{bottleneck_block.5} parent=43 // pred_region
        _
      $region48: #{bottleneck_block.5} parent=43 // pred_fallthru
        _
      // Predicated region
      $region49: #{bottleneck_block.5} parent=43 // pred_check
        %p5247 = pneg %p255
      $region50: #{bottleneck_block.5} parent=43 // pred_check_branch
        %5249 = sbr.rel (%p5247) target = $region52
      $region51: #{bottleneck_block.5} parent=43 // pred_region
        _
      $region52: #{bottleneck_block.5} parent=43 // pred_fallthru
        _
      // Predicated region
      $region53: #{bottleneck_block.5} parent=43 // pred_check
        %p5250 = pneg %p283
      $region54: #{bottleneck_block.5} parent=43 // pred_check_branch
        %5252 = sbr.rel (%p5250) target = $region56
      $region55: #{bottleneck_block.5} parent=43 // pred_region
        _
      $region56: #{bottleneck_block.5} parent=43 // pred_fallthru
        _
    $region44: #{bottleneck_block.5} parent=5 // pred_fallthru
      _
    %p5253 = scmp.le.s32.totalorder 2, %s15
    // Predicated region
    $region57: #{bottleneck_block.5} parent=5 // pred_check
      %p5254 = pneg %p5253
    $region58: #{bottleneck_block.5} parent=5 // pred_check_branch
      %5256 = sbr.rel (%p5254) target = $region60
    $region59: #{bottleneck_block.5} parent=5 // pred_region
      %s5257 = ssub.s32 %s15, 2
      // Predicated region
      $region61: #{bottleneck_block.5} parent=59 // pred_check
        %p5258 = pneg %p233
      $region62: #{bottleneck_block.5} parent=59 // pred_check_branch
        %5260 = sbr.rel (%p5258) target = $region64
      $region63: #{bottleneck_block.5} parent=59 // pred_region
        %p5261 = scmp.lt.s32.totalorder %s26, 1
        %s5262 = scalar_select %p5261, %s26, 1
        %p5263 = scmp.lt.s32.totalorder %s27, 7
        %s5264 = scalar_select %p5263, %s27, 7
        %s5265 = smul.addr %s5264, 8
        %s5266 = smul.addr %s5262, 64
        %s5267 = sadd.s32 %s5265, %s5266
        %s5268 = smul.addr %s5267, 4
        %s5269 = scalar_lea.vmem %s6, %s5268
      $region64: #{bottleneck_block.5} parent=59 // pred_fallthru
        _
      // Predicated region
      $region65: #{bottleneck_block.5} parent=59 // pred_check
        %p5270 = pneg %p261
      $region66: #{bottleneck_block.5} parent=59 // pred_check_branch
        %5272 = sbr.rel (%p5270) target = $region68
      $region67: #{bottleneck_block.5} parent=59 // pred_region
        %p5273 = scmp.lt.s32.totalorder %s26, 1
        %s5274 = scalar_select %p5273, %s26, 1
        %p5275 = scmp.lt.s32.totalorder %s27, 7
        %s5276 = scalar_select %p5275, %s27, 7
        %s5277 = smul.addr %s5274, 8
        %s5278 = sadd.s32 %s5276, %s5277
        %s5279 = scalar_lea.vmem %s7, %s5278
      $region68: #{bottleneck_block.5} parent=59 // pred_fallthru
        _
      // Predicated region
      $region69: #{bottleneck_block.5} parent=59 // pred_check
        %p5280 = pneg %p289
      $region70: #{bottleneck_block.5} parent=59 // pred_check_branch
        %5282 = sbr.rel (%p5280) target = $region72
      $region71: #{bottleneck_block.5} parent=59 // pred_region
        %p5283 = scmp.lt.s32.totalorder %s26, 1
        %s5284 = scalar_select %p5283, %s26, 1
        %p5285 = scmp.lt.s32.totalorder %s27, 7
        %s5286 = scalar_select %p5285, %s27, 7
        %s5287 = smul.addr %s5284, 8
        %s5288 = sadd.s32 %s5286, %s5287
        %s5289 = scalar_lea.vmem %s8, %s5288
      $region72: #{bottleneck_block.5} parent=59 // pred_fallthru
        _
    $region60: #{bottleneck_block.5} parent=5 // pred_fallthru
      _
  $region6: #{bottleneck_block.5} parent=0 // loop_footer
    %s19 = sadd.s32 1, %s15
  $region7: #{bottleneck_block.5} parent=0 // loop_footer_branch
    %14 = sbr.rel target = $region3
  $region8: #{bottleneck_block.5} parent=0 // loop_exit
    _

</llo_original>
